<compile_context>
chip_gen: v6e
topology: v6e:2x2x1
jax: 0.10.0
libtpu: 0.0.40
codegen_flags: <defaults>
</compile_context>

<pallas_src>
import jax
import jax.numpy as jnp
from jax import lax
from jax.experimental import pallas as pl
from jax.experimental.pallas import tpu as pltpu

BB = 8  # images per grid step (one f32 sublane tile)


# ----------------------------------------------------------------------------
# Fused kernel: conv1 -> pool1 -> conv2 -> pool2 -> fc1+ReLU -> fc2 -> logsoftmax
#
# Activation layout inside the kernel: 2-D slabs whose rows are
# (spatial_row * BB + image) and whose lanes pack (spatial_col, channel),
# i.e. conv1 output lane = ow*10 + c, conv2 output lane = ow*20 + c.
# ----------------------------------------------------------------------------
def _net_kernel(x_ref, m1_ref, b1_ref, s1_ref, m2_ref, b2_ref, s2_ref,
                wfc1_ref, bfc1_ref, wfc2_ref, bfc2_ref,
                o_ref, y1_s, p1_s, c2_s):
    f32 = jnp.float32

    # ---- conv1 (5x5, 1->10): Y[oh*BB+b, ow*10+c], oh,ow in [0,24) ----------
    # banded matmuls: Y_rows(oh) = sum_di X_rows(oh+di) @ M1[di]
    for blk in range(3):                       # 24 output rows, 8 per block
        oh0 = blk * 8
        acc = jnp.zeros((8 * BB, 240), f32)
        for di in range(5):
            lhs = x_ref[pl.ds((oh0 + di) * BB, 8 * BB), :]          # (64, 28)
            acc = acc + jnp.dot(lhs, m1_ref[di],
                                preferred_element_type=f32)
        y1_s[pl.ds(oh0 * BB, 8 * BB), :] = acc + b1_ref[...]

    # ---- maxpool 2x2 -> P[i*BB+b, j*10+c], i,j in [0,12) --------------------
    s1a = s1_ref[0]                                                  # (240,120)
    s1b = s1_ref[1]
    for i in range(12):
        ya = y1_s[pl.ds((2 * i) * BB, BB), :]                        # (8, 240)
        yb = y1_s[pl.ds((2 * i + 1) * BB, BB), :]
        ym = jnp.maximum(ya, yb)                                     # max over oh pair
        p = jnp.maximum(jnp.dot(ym, s1a, preferred_element_type=f32),
                        jnp.dot(ym, s1b, preferred_element_type=f32))
        p1_s[pl.ds(i * BB, BB), :] = p                               # (8, 120)

    # ---- conv2 (5x5, 10->20): Z[oh*BB+b, ow*20+c], oh,ow in [0,8) -----------
    acc2 = jnp.zeros((8 * BB, 160), f32)
    for di in range(5):
        lhs = p1_s[pl.ds(di * BB, 8 * BB), :]                        # (64, 120)
        acc2 = acc2 + jnp.dot(lhs, m2_ref[di], preferred_element_type=f32)
    c2_s[...] = acc2 + b2_ref[...]

    # ---- maxpool 2x2 + flatten + fc1 partial sums ---------------------------
    s2a = s2_ref[0]                                                  # (160, 80)
    s2b = s2_ref[1]
    h = jnp.zeros((BB, 50), f32)
    for i in range(4):
        za = c2_s[pl.ds((2 * i) * BB, BB), :]                        # (8, 160)
        zb = c2_s[pl.ds((2 * i + 1) * BB, BB), :]
        zm = jnp.maximum(za, zb)
        piece = jnp.maximum(jnp.dot(zm, s2a, preferred_element_type=f32),
                            jnp.dot(zm, s2b, preferred_element_type=f32))
        # feature rows [i*80, (i+1)*80) of the (already permuted) fc1 weight
        h = h + jnp.dot(piece, wfc1_ref[pl.ds(i * 80, 80), :],
                        preferred_element_type=f32)
    h = jnp.maximum(h + bfc1_ref[...], 0.0)

    # ---- fc2 + log_softmax --------------------------------------------------
    logits = (jnp.dot(h, wfc2_ref[...], preferred_element_type=f32)
              + bfc2_ref[...])
    m = jnp.max(logits, axis=-1, keepdims=True)
    s = logits - m
    lse = jnp.log(jnp.sum(jnp.exp(s), axis=-1, keepdims=True))
    o_ref[...] = s - lse


# ----------------------------------------------------------------------------
# One-time parameter re-layout (PyTorch layouts -> fused-kernel layouts)
# ----------------------------------------------------------------------------
def init_params(key):
    ks = jax.random.split(key, 8)

    def u(k, shape, fan_in):
        bound = 1.0 / jnp.sqrt(fan_in)
        return jax.random.uniform(k, shape, jnp.float32, -bound, bound)

    return {
        "w1": u(ks[0], (10, 1, 5, 5), 25),
        "b1": u(ks[1], (10,), 25),
        "w2": u(ks[2], (20, 10, 5, 5), 250),
        "b2": u(ks[3], (20,), 250),
        "wfc1": u(ks[4], (50, 320), 320),   # PyTorch Linear layout: (out, in)
        "bfc1": u(ks[5], (50,), 320),
        "wfc2": u(ks[6], (10, 50), 50),
        "bfc2": u(ks[7], (10,), 50),
    }


def pack_params(params):
    """Build the banded conv matrices, pool selection matrices and permuted
    FC weights the fused kernel consumes.  Called once, outside the jit."""
    f32 = jnp.float32

    # conv1 -> M1[di]: (28, 24*10), M1[di][w, ow*10+c] = w1[di, w-ow, c]
    w1t = jnp.transpose(params["w1"][:, 0, :, :], (1, 2, 0)).astype(f32)  # (5,5,10)
    shift1 = (jnp.arange(28)[None, :, None] ==
              (jnp.arange(24)[None, None, :] +
               jnp.arange(5)[:, None, None])).astype(f32)                 # (5,28,24)
    m1 = jnp.einsum('jwo,djc->dwoc', shift1, w1t).reshape(5, 28, 240)
    b1t = jnp.tile(params["b1"].astype(f32), 24).reshape(1, 240)

    # conv2 -> M2[di]: (12*10, 8*20), M2[di][w*10+ci, ow*20+co] = w2[di,w-ow,ci,co]
    w2t = jnp.transpose(params["w2"], (2, 3, 1, 0)).astype(f32)           # (5,5,10,20)
    shift2 = (jnp.arange(12)[None, :, None] ==
              (jnp.arange(8)[None, None, :] +
               jnp.arange(5)[:, None, None])).astype(f32)                 # (5,12,8)
    m2 = jnp.einsum('jwo,djce->dwcoe', shift2, w2t).reshape(5, 120, 160)
    b2t = jnp.tile(params["b2"].astype(f32), 8).reshape(1, 160)

    # 2x2 pool "pick even / odd spatial-column group" selection matrices
    def sel_mats(n_in, n_out, nch):
        eye = jnp.eye(nch, dtype=f32)
        mats = []
        for u in (0, 1):
            sel = (jnp.arange(n_in)[:, None] ==
                   (2 * jnp.arange(n_out)[None, :] + u)).astype(f32)      # (n_in,n_out)
            mats.append(jnp.einsum('oj,ck->ocjk', sel, eye)
                        .reshape(n_in * nch, n_out * nch))
        return jnp.stack(mats)

    s1 = sel_mats(24, 12, 10)        # (2, 240, 120)
    s2 = sel_mats(8, 4, 20)          # (2, 160,  80)

    # fc1: permute the 320 input rows from PyTorch NCHW-flatten order
    # (c*16 + h*4 + w) to the kernel's (h*4 + w)*20 + c order, transpose to (in,out)
    wfc1p = jnp.transpose(params["wfc1"].astype(f32).reshape(50, 20, 4, 4),
                          (0, 2, 3, 1)).reshape(50, 320).T                # (320, 50)
    wfc2p = params["wfc2"].astype(f32).T                                  # (50, 10)

    return {
        "m1": m1, "b1": b1t, "s1": s1,
        "m2": m2, "b2": b2t, "s2": s2,
        "wfc1": wfc1p, "bfc1": params["bfc1"].astype(f32).reshape(1, 50),
        "wfc2": wfc2p, "bfc2": params["bfc2"].astype(f32).reshape(1, 10),
    }


# ----------------------------------------------------------------------------
# Forward pass: single fused pallas_call, grid over batch blocks
# ----------------------------------------------------------------------------
@jax.jit
def net_forward(x_nchw, packed):
    B = x_nchw.shape[0]
    assert x_nchw.shape[1:] == (1, 28, 28)
    nb = (B + BB - 1) // BB
    Bp = nb * BB

    x = x_nchw.reshape(B, 28, 28).astype(jnp.float32)
    if Bp != B:
        x = jnp.pad(x, ((0, Bp - B), (0, 0), (0, 0)))
    # layout plumbing only (tiny raw input): rows = (block, h, image), cols = w
    xflat = jnp.transpose(x.reshape(nb, BB, 28, 28),
                          (0, 2, 1, 3)).reshape(nb * 28 * BB, 28)

    def full(shape):
        return pl.BlockSpec(shape, lambda i: (0,) * len(shape))

    out = pl.pallas_call(
        _net_kernel,
        out_shape=jax.ShapeDtypeStruct((Bp, 10), jnp.float32),
        grid_spec=pltpu.PrefetchScalarGridSpec(
            num_scalar_prefetch=0,
            grid=(nb,),
            in_specs=[
                pl.BlockSpec((28 * BB, 28), lambda i: (i, 0)),   # image block
                full((5, 28, 240)),     # M1
                full((1, 240)),         # b1 (tiled over ow)
                full((2, 240, 120)),    # pool1 selection
                full((5, 120, 160)),    # M2
                full((1, 160)),         # b2 (tiled over ow)
                full((2, 160, 80)),     # pool2 selection
                full((320, 50)),        # fc1 (permuted, (in,out))
                full((1, 50)),
                full((50, 10)),         # fc2 ((in,out))
                full((1, 10)),
            ],
            out_specs=pl.BlockSpec((BB, 10), lambda i: (i, 0)),
            scratch_shapes=[
                pltpu.VMEM((24 * BB, 240), jnp.float32),   # conv1 output
                pltpu.VMEM((12 * BB, 120), jnp.float32),   # pool1 output
                pltpu.VMEM((8 * BB, 160), jnp.float32),    # conv2 output
            ],
        ),
        compiler_params=pltpu.CompilerParams(
            dimension_semantics=("parallel",),
            vmem_limit_bytes=32 * 1024 * 1024,
        ),
    )(xflat, packed["m1"], packed["b1"], packed["s1"],
      packed["m2"], packed["b2"], packed["s2"],
      packed["wfc1"], packed["bfc1"], packed["wfc2"], packed["bfc2"])
    return out[:B]


# ----------------------------------------------------------------------------
# Pure-JAX reference (PyTorch semantics) for a correctness check
# ----------------------------------------------------------------------------
def net_forward_reference(x_nchw, params):
    hi = lax.Precision.HIGHEST
    dn = ('NCHW', 'OIHW', 'NCHW')
    x = x_nchw.astype(jnp.float32)
    y = lax.conv_general_dilated(x, params["w1"], (1, 1), 'VALID',
                                 dimension_numbers=dn, precision=hi)
    y = y + params["b1"].reshape(1, -1, 1, 1)
    y = lax.reduce_window(y, -jnp.inf, lax.max, (1, 1, 2, 2), (1, 1, 2, 2), 'VALID')
    y = lax.conv_general_dilated(y, params["w2"], (1, 1), 'VALID',
                                 dimension_numbers=dn, precision=hi)
    y = y + params["b2"].reshape(1, -1, 1, 1)
    y = lax.reduce_window(y, -jnp.inf, lax.max, (1, 1, 2, 2), (1, 1, 2, 2), 'VALID')
    y = y.reshape(x.shape[0], 320)                       # NCHW flatten
    y = jnp.maximum(jnp.dot(y, params["wfc1"].T, precision=hi) + params["bfc1"], 0.0)
    y = jnp.dot(y, params["wfc2"].T, precision=hi) + params["bfc2"]
    return jax.nn.log_softmax(y, axis=-1)


if __name__ == "__main__":
    key = jax.random.PRNGKey(0)
    pkey, xkey = jax.random.split(key)
    params = init_params(pkey)
    packed = pack_params(params)          # one-time weight re-layout

    # MNIST-shaped input (the 320 flatten implies 28x28 single-channel images).
    x = jax.random.normal(xkey, (2, 1, 28, 28), dtype=jnp.float32)

    out = net_forward(x, packed)
    out = jax.block_until_ready(out)
    assert out.shape == (2, 10)

    # log_softmax rows must sum to 1 in probability space.
    assert bool(jnp.allclose(jnp.sum(jnp.exp(out), axis=1), 1.0, atol=1e-4))

    # match the pure-JAX / PyTorch-semantics reference.
    ref = net_forward_reference(x, params)
    assert bool(jnp.allclose(out, ref, atol=2e-2, rtol=2e-2)), \
        float(jnp.max(jnp.abs(out - ref)))

    print("KERNEL_OK")
</pallas_src>

<mosaic_0001>
module attributes {stable_mosaic.version = 11 : i64} {
  func.func @_net_kernel(%arg0: i32, %arg1: memref<224x28xf32, #tpu.memory_space<vmem>>, %arg2: memref<5x28x240xf32, #tpu.memory_space<vmem>>, %arg3: memref<1x240xf32, #tpu.memory_space<vmem>>, %arg4: memref<2x240x120xf32, #tpu.memory_space<vmem>>, %arg5: memref<5x120x160xf32, #tpu.memory_space<vmem>>, %arg6: memref<1x160xf32, #tpu.memory_space<vmem>>, %arg7: memref<2x160x80xf32, #tpu.memory_space<vmem>>, %arg8: memref<320x50xf32, #tpu.memory_space<vmem>>, %arg9: memref<1x50xf32, #tpu.memory_space<vmem>>, %arg10: memref<50x10xf32, #tpu.memory_space<vmem>>, %arg11: memref<1x10xf32, #tpu.memory_space<vmem>>, %arg12: memref<8x10xf32, #tpu.memory_space<vmem>>, %arg13: memref<192x240xf32, #tpu.memory_space<vmem>>, %arg14: memref<96x120xf32, #tpu.memory_space<vmem>>, %arg15: memref<64x160xf32, #tpu.memory_space<vmem>>) attributes {dimension_semantics = [#tpu.dimension_semantics<parallel>], iteration_bounds = array<i64: 1>, scalar_prefetch = 0 : i64, scratch_operands = 3 : i64, tpu.core_type = #tpu.core_type<tc>, window_params = [{transform_indices = @transform_0, window_bounds = array<i64: 224, 28>}, {pipeline_mode = #tpu.pipeline_mode<synchronous>, transform_indices = @transform_1, window_bounds = array<i64: 5, 28, 240>}, {pipeline_mode = #tpu.pipeline_mode<synchronous>, transform_indices = @transform_2, window_bounds = array<i64: 1, 240>}, {pipeline_mode = #tpu.pipeline_mode<synchronous>, transform_indices = @transform_3, window_bounds = array<i64: 2, 240, 120>}, {pipeline_mode = #tpu.pipeline_mode<synchronous>, transform_indices = @transform_4, window_bounds = array<i64: 5, 120, 160>}, {pipeline_mode = #tpu.pipeline_mode<synchronous>, transform_indices = @transform_5, window_bounds = array<i64: 1, 160>}, {pipeline_mode = #tpu.pipeline_mode<synchronous>, transform_indices = @transform_6, window_bounds = array<i64: 2, 160, 80>}, {pipeline_mode = #tpu.pipeline_mode<synchronous>, transform_indices = @transform_7, window_bounds = array<i64: 320, 50>}, {pipeline_mode = #tpu.pipeline_mode<synchronous>, transform_indices = @transform_8, window_bounds = array<i64: 1, 50>}, {pipeline_mode = #tpu.pipeline_mode<synchronous>, transform_indices = @transform_9, window_bounds = array<i64: 50, 10>}, {pipeline_mode = #tpu.pipeline_mode<synchronous>, transform_indices = @transform_10, window_bounds = array<i64: 1, 10>}, {transform_indices = @transform_11, window_bounds = array<i64: 8, 10>}]} {
    %cst = arith.constant 0.000000e+00 : f32
    %0 = vector.broadcast %cst : f32 to vector<64x240xf32>
    %c0 = arith.constant 0 : index
    %c0_0 = arith.constant 0 : index
    %1 = vector.load %arg1[%c0, %c0_0] : memref<224x28xf32, #tpu.memory_space<vmem>>, vector<64x28xf32>
    %c0_1 = arith.constant 0 : index
    %c0_2 = arith.constant 0 : index
    %c0_3 = arith.constant 0 : index
    %2 = vector.load %arg2[%c0_1, %c0_2, %c0_3] : memref<5x28x240xf32, #tpu.memory_space<vmem>>, vector<1x28x240xf32>
    %3 = vector.shape_cast %2 : vector<1x28x240xf32> to vector<28x240xf32>
    %cst_4 = arith.constant dense<0.000000e+00> : vector<64x240xf32>
    %4 = tpu.matmul %1, %3, %cst_4 {dimension_numbers = #tpu.dot_dimension_numbers<[1], [0], [0], [1], [0, 0, 1, 1], [], []>} : vector<64x28xf32>, vector<28x240xf32>, vector<64x240xf32> -> vector<64x240xf32>
    %5 = arith.addf %0, %4 : vector<64x240xf32>
    %c8 = arith.constant 8 : index
    %c0_5 = arith.constant 0 : index
    %6 = vector.load %arg1[%c8, %c0_5] : memref<224x28xf32, #tpu.memory_space<vmem>>, vector<64x28xf32>
    %c1 = arith.constant 1 : index
    %c0_6 = arith.constant 0 : index
    %c0_7 = arith.constant 0 : index
    %7 = vector.load %arg2[%c1, %c0_6, %c0_7] : memref<5x28x240xf32, #tpu.memory_space<vmem>>, vector<1x28x240xf32>
    %8 = vector.shape_cast %7 : vector<1x28x240xf32> to vector<28x240xf32>
    %cst_8 = arith.constant dense<0.000000e+00> : vector<64x240xf32>
    %9 = tpu.matmul %6, %8, %cst_8 {dimension_numbers = #tpu.dot_dimension_numbers<[1], [0], [0], [1], [0, 0, 1, 1], [], []>} : vector<64x28xf32>, vector<28x240xf32>, vector<64x240xf32> -> vector<64x240xf32>
    %10 = arith.addf %5, %9 : vector<64x240xf32>
    %c16 = arith.constant 16 : index
    %c0_9 = arith.constant 0 : index
    %11 = vector.load %arg1[%c16, %c0_9] : memref<224x28xf32, #tpu.memory_space<vmem>>, vector<64x28xf32>
    %c2 = arith.constant 2 : index
    %c0_10 = arith.constant 0 : index
    %c0_11 = arith.constant 0 : index
    %12 = vector.load %arg2[%c2, %c0_10, %c0_11] : memref<5x28x240xf32, #tpu.memory_space<vmem>>, vector<1x28x240xf32>
    %13 = vector.shape_cast %12 : vector<1x28x240xf32> to vector<28x240xf32>
    %cst_12 = arith.constant dense<0.000000e+00> : vector<64x240xf32>
    %14 = tpu.matmul %11, %13, %cst_12 {dimension_numbers = #tpu.dot_dimension_numbers<[1], [0], [0], [1], [0, 0, 1, 1], [], []>} : vector<64x28xf32>, vector<28x240xf32>, vector<64x240xf32> -> vector<64x240xf32>
    %15 = arith.addf %10, %14 : vector<64x240xf32>
    %c24 = arith.constant 24 : index
    %c0_13 = arith.constant 0 : index
    %16 = vector.load %arg1[%c24, %c0_13] : memref<224x28xf32, #tpu.memory_space<vmem>>, vector<64x28xf32>
    %c3 = arith.constant 3 : index
    %c0_14 = arith.constant 0 : index
    %c0_15 = arith.constant 0 : index
    %17 = vector.load %arg2[%c3, %c0_14, %c0_15] : memref<5x28x240xf32, #tpu.memory_space<vmem>>, vector<1x28x240xf32>
    %18 = vector.shape_cast %17 : vector<1x28x240xf32> to vector<28x240xf32>
    %cst_16 = arith.constant dense<0.000000e+00> : vector<64x240xf32>
    %19 = tpu.matmul %16, %18, %cst_16 {dimension_numbers = #tpu.dot_dimension_numbers<[1], [0], [0], [1], [0, 0, 1, 1], [], []>} : vector<64x28xf32>, vector<28x240xf32>, vector<64x240xf32> -> vector<64x240xf32>
    %20 = arith.addf %15, %19 : vector<64x240xf32>
    %c32 = arith.constant 32 : index
    %c0_17 = arith.constant 0 : index
    %21 = vector.load %arg1[%c32, %c0_17] : memref<224x28xf32, #tpu.memory_space<vmem>>, vector<64x28xf32>
    %c4 = arith.constant 4 : index
    %c0_18 = arith.constant 0 : index
    %c0_19 = arith.constant 0 : index
    %22 = vector.load %arg2[%c4, %c0_18, %c0_19] : memref<5x28x240xf32, #tpu.memory_space<vmem>>, vector<1x28x240xf32>
    %23 = vector.shape_cast %22 : vector<1x28x240xf32> to vector<28x240xf32>
    %cst_20 = arith.constant dense<0.000000e+00> : vector<64x240xf32>
    %24 = tpu.matmul %21, %23, %cst_20 {dimension_numbers = #tpu.dot_dimension_numbers<[1], [0], [0], [1], [0, 0, 1, 1], [], []>} : vector<64x28xf32>, vector<28x240xf32>, vector<64x240xf32> -> vector<64x240xf32>
    %25 = arith.addf %20, %24 : vector<64x240xf32>
    %c0_21 = arith.constant 0 : index
    %c0_22 = arith.constant 0 : index
    %26 = vector.load %arg3[%c0_21, %c0_22] : memref<1x240xf32, #tpu.memory_space<vmem>>, vector<1x240xf32>
    %27 = vector.broadcast %26 : vector<1x240xf32> to vector<64x240xf32>
    %28 = arith.addf %25, %27 : vector<64x240xf32>
    %c0_23 = arith.constant 0 : index
    %c0_24 = arith.constant 0 : index
    %29 = vector.load %arg13[%c0_23, %c0_24] : memref<192x240xf32, #tpu.memory_space<vmem>>, vector<64x240xf32>
    tpu.vector_store %arg13[%c0_23, %c0_24], %28 {strides = array<i32>} : memref<192x240xf32, #tpu.memory_space<vmem>>, vector<64x240xf32>,
    %cst_25 = arith.constant 0.000000e+00 : f32
    %30 = vector.broadcast %cst_25 : f32 to vector<64x240xf32>
    %c64 = arith.constant 64 : index
    %c0_26 = arith.constant 0 : index
    %31 = vector.load %arg1[%c64, %c0_26] : memref<224x28xf32, #tpu.memory_space<vmem>>, vector<64x28xf32>
    %c0_27 = arith.constant 0 : index
    %c0_28 = arith.constant 0 : index
    %c0_29 = arith.constant 0 : index
    %32 = vector.load %arg2[%c0_27, %c0_28, %c0_29] : memref<5x28x240xf32, #tpu.memory_space<vmem>>, vector<1x28x240xf32>
    %33 = vector.shape_cast %32 : vector<1x28x240xf32> to vector<28x240xf32>
    %cst_30 = arith.constant dense<0.000000e+00> : vector<64x240xf32>
    %34 = tpu.matmul %31, %33, %cst_30 {dimension_numbers = #tpu.dot_dimension_numbers<[1], [0], [0], [1], [0, 0, 1, 1], [], []>} : vector<64x28xf32>, vector<28x240xf32>, vector<64x240xf32> -> vector<64x240xf32>
    %35 = arith.addf %30, %34 : vector<64x240xf32>
    %c72 = arith.constant 72 : index
    %c0_31 = arith.constant 0 : index
    %36 = vector.load %arg1[%c72, %c0_31] : memref<224x28xf32, #tpu.memory_space<vmem>>, vector<64x28xf32>
    %c1_32 = arith.constant 1 : index
    %c0_33 = arith.constant 0 : index
    %c0_34 = arith.constant 0 : index
    %37 = vector.load %arg2[%c1_32, %c0_33, %c0_34] : memref<5x28x240xf32, #tpu.memory_space<vmem>>, vector<1x28x240xf32>
    %38 = vector.shape_cast %37 : vector<1x28x240xf32> to vector<28x240xf32>
    %cst_35 = arith.constant dense<0.000000e+00> : vector<64x240xf32>
    %39 = tpu.matmul %36, %38, %cst_35 {dimension_numbers = #tpu.dot_dimension_numbers<[1], [0], [0], [1], [0, 0, 1, 1], [], []>} : vector<64x28xf32>, vector<28x240xf32>, vector<64x240xf32> -> vector<64x240xf32>
    %40 = arith.addf %35, %39 : vector<64x240xf32>
    %c80 = arith.constant 80 : index
    %c0_36 = arith.constant 0 : index
    %41 = vector.load %arg1[%c80, %c0_36] : memref<224x28xf32, #tpu.memory_space<vmem>>, vector<64x28xf32>
    %c2_37 = arith.constant 2 : index
    %c0_38 = arith.constant 0 : index
    %c0_39 = arith.constant 0 : index
    %42 = vector.load %arg2[%c2_37, %c0_38, %c0_39] : memref<5x28x240xf32, #tpu.memory_space<vmem>>, vector<1x28x240xf32>
    %43 = vector.shape_cast %42 : vector<1x28x240xf32> to vector<28x240xf32>
    %cst_40 = arith.constant dense<0.000000e+00> : vector<64x240xf32>
    %44 = tpu.matmul %41, %43, %cst_40 {dimension_numbers = #tpu.dot_dimension_numbers<[1], [0], [0], [1], [0, 0, 1, 1], [], []>} : vector<64x28xf32>, vector<28x240xf32>, vector<64x240xf32> -> vector<64x240xf32>
    %45 = arith.addf %40, %44 : vector<64x240xf32>
    %c88 = arith.constant 88 : index
    %c0_41 = arith.constant 0 : index
    %46 = vector.load %arg1[%c88, %c0_41] : memref<224x28xf32, #tpu.memory_space<vmem>>, vector<64x28xf32>
    %c3_42 = arith.constant 3 : index
    %c0_43 = arith.constant 0 : index
    %c0_44 = arith.constant 0 : index
    %47 = vector.load %arg2[%c3_42, %c0_43, %c0_44] : memref<5x28x240xf32, #tpu.memory_space<vmem>>, vector<1x28x240xf32>
    %48 = vector.shape_cast %47 : vector<1x28x240xf32> to vector<28x240xf32>
    %cst_45 = arith.constant dense<0.000000e+00> : vector<64x240xf32>
    %49 = tpu.matmul %46, %48, %cst_45 {dimension_numbers = #tpu.dot_dimension_numbers<[1], [0], [0], [1], [0, 0, 1, 1], [], []>} : vector<64x28xf32>, vector<28x240xf32>, vector<64x240xf32> -> vector<64x240xf32>
    %50 = arith.addf %45, %49 : vector<64x240xf32>
    %c96 = arith.constant 96 : index
    %c0_46 = arith.constant 0 : index
    %51 = vector.load %arg1[%c96, %c0_46] : memref<224x28xf32, #tpu.memory_space<vmem>>, vector<64x28xf32>
    %c4_47 = arith.constant 4 : index
    %c0_48 = arith.constant 0 : index
    %c0_49 = arith.constant 0 : index
    %52 = vector.load %arg2[%c4_47, %c0_48, %c0_49] : memref<5x28x240xf32, #tpu.memory_space<vmem>>, vector<1x28x240xf32>
    %53 = vector.shape_cast %52 : vector<1x28x240xf32> to vector<28x240xf32>
    %cst_50 = arith.constant dense<0.000000e+00> : vector<64x240xf32>
    %54 = tpu.matmul %51, %53, %cst_50 {dimension_numbers = #tpu.dot_dimension_numbers<[1], [0], [0], [1], [0, 0, 1, 1], [], []>} : vector<64x28xf32>, vector<28x240xf32>, vector<64x240xf32> -> vector<64x240xf32>
    %55 = arith.addf %50, %54 : vector<64x240xf32>
    %c0_51 = arith.constant 0 : index
    %c0_52 = arith.constant 0 : index
    %56 = vector.load %arg3[%c0_51, %c0_52] : memref<1x240xf32, #tpu.memory_space<vmem>>, vector<1x240xf32>
    %57 = vector.broadcast %56 : vector<1x240xf32> to vector<64x240xf32>
    %58 = arith.addf %55, %57 : vector<64x240xf32>
    %c64_53 = arith.constant 64 : index
    %c0_54 = arith.constant 0 : index
    %59 = vector.load %arg13[%c64_53, %c0_54] : memref<192x240xf32, #tpu.memory_space<vmem>>, vector<64x240xf32>
    tpu.vector_store %arg13[%c64_53, %c0_54], %58 {strides = array<i32>} : memref<192x240xf32, #tpu.memory_space<vmem>>, vector<64x240xf32>,
    %cst_55 = arith.constant 0.000000e+00 : f32
    %60 = vector.broadcast %cst_55 : f32 to vector<64x240xf32>
    %c128 = arith.constant 128 : index
    %c0_56 = arith.constant 0 : index
    %61 = vector.load %arg1[%c128, %c0_56] : memref<224x28xf32, #tpu.memory_space<vmem>>, vector<64x28xf32>
    %c0_57 = arith.constant 0 : index
    %c0_58 = arith.constant 0 : index
    %c0_59 = arith.constant 0 : index
    %62 = vector.load %arg2[%c0_57, %c0_58, %c0_59] : memref<5x28x240xf32, #tpu.memory_space<vmem>>, vector<1x28x240xf32>
    %63 = vector.shape_cast %62 : vector<1x28x240xf32> to vector<28x240xf32>
    %cst_60 = arith.constant dense<0.000000e+00> : vector<64x240xf32>
    %64 = tpu.matmul %61, %63, %cst_60 {dimension_numbers = #tpu.dot_dimension_numbers<[1], [0], [0], [1], [0, 0, 1, 1], [], []>} : vector<64x28xf32>, vector<28x240xf32>, vector<64x240xf32> -> vector<64x240xf32>
    %65 = arith.addf %60, %64 : vector<64x240xf32>
    %c136 = arith.constant 136 : index
    %c0_61 = arith.constant 0 : index
    %66 = vector.load %arg1[%c136, %c0_61] : memref<224x28xf32, #tpu.memory_space<vmem>>, vector<64x28xf32>
    %c1_62 = arith.constant 1 : index
    %c0_63 = arith.constant 0 : index
    %c0_64 = arith.constant 0 : index
    %67 = vector.load %arg2[%c1_62, %c0_63, %c0_64] : memref<5x28x240xf32, #tpu.memory_space<vmem>>, vector<1x28x240xf32>
    %68 = vector.shape_cast %67 : vector<1x28x240xf32> to vector<28x240xf32>
    %cst_65 = arith.constant dense<0.000000e+00> : vector<64x240xf32>
    %69 = tpu.matmul %66, %68, %cst_65 {dimension_numbers = #tpu.dot_dimension_numbers<[1], [0], [0], [1], [0, 0, 1, 1], [], []>} : vector<64x28xf32>, vector<28x240xf32>, vector<64x240xf32> -> vector<64x240xf32>
    %70 = arith.addf %65, %69 : vector<64x240xf32>
    %c144 = arith.constant 144 : index
    %c0_66 = arith.constant 0 : index
    %71 = vector.load %arg1[%c144, %c0_66] : memref<224x28xf32, #tpu.memory_space<vmem>>, vector<64x28xf32>
    %c2_67 = arith.constant 2 : index
    %c0_68 = arith.constant 0 : index
    %c0_69 = arith.constant 0 : index
    %72 = vector.load %arg2[%c2_67, %c0_68, %c0_69] : memref<5x28x240xf32, #tpu.memory_space<vmem>>, vector<1x28x240xf32>
    %73 = vector.shape_cast %72 : vector<1x28x240xf32> to vector<28x240xf32>
    %cst_70 = arith.constant dense<0.000000e+00> : vector<64x240xf32>
    %74 = tpu.matmul %71, %73, %cst_70 {dimension_numbers = #tpu.dot_dimension_numbers<[1], [0], [0], [1], [0, 0, 1, 1], [], []>} : vector<64x28xf32>, vector<28x240xf32>, vector<64x240xf32> -> vector<64x240xf32>
    %75 = arith.addf %70, %74 : vector<64x240xf32>
    %c152 = arith.constant 152 : index
    %c0_71 = arith.constant 0 : index
    %76 = vector.load %arg1[%c152, %c0_71] : memref<224x28xf32, #tpu.memory_space<vmem>>, vector<64x28xf32>
    %c3_72 = arith.constant 3 : index
    %c0_73 = arith.constant 0 : index
    %c0_74 = arith.constant 0 : index
    %77 = vector.load %arg2[%c3_72, %c0_73, %c0_74] : memref<5x28x240xf32, #tpu.memory_space<vmem>>, vector<1x28x240xf32>
    %78 = vector.shape_cast %77 : vector<1x28x240xf32> to vector<28x240xf32>
    %cst_75 = arith.constant dense<0.000000e+00> : vector<64x240xf32>
    %79 = tpu.matmul %76, %78, %cst_75 {dimension_numbers = #tpu.dot_dimension_numbers<[1], [0], [0], [1], [0, 0, 1, 1], [], []>} : vector<64x28xf32>, vector<28x240xf32>, vector<64x240xf32> -> vector<64x240xf32>
    %80 = arith.addf %75, %79 : vector<64x240xf32>
    %c160 = arith.constant 160 : index
    %c0_76 = arith.constant 0 : index
    %81 = vector.load %arg1[%c160, %c0_76] : memref<224x28xf32, #tpu.memory_space<vmem>>, vector<64x28xf32>
    %c4_77 = arith.constant 4 : index
    %c0_78 = arith.constant 0 : index
    %c0_79 = arith.constant 0 : index
    %82 = vector.load %arg2[%c4_77, %c0_78, %c0_79] : memref<5x28x240xf32, #tpu.memory_space<vmem>>, vector<1x28x240xf32>
    %83 = vector.shape_cast %82 : vector<1x28x240xf32> to vector<28x240xf32>
    %cst_80 = arith.constant dense<0.000000e+00> : vector<64x240xf32>
    %84 = tpu.matmul %81, %83, %cst_80 {dimension_numbers = #tpu.dot_dimension_numbers<[1], [0], [0], [1], [0, 0, 1, 1], [], []>} : vector<64x28xf32>, vector<28x240xf32>, vector<64x240xf32> -> vector<64x240xf32>
    %85 = arith.addf %80, %84 : vector<64x240xf32>
    %c0_81 = arith.constant 0 : index
    %c0_82 = arith.constant 0 : index
    %86 = vector.load %arg3[%c0_81, %c0_82] : memref<1x240xf32, #tpu.memory_space<vmem>>, vector<1x240xf32>
    %87 = vector.broadcast %86 : vector<1x240xf32> to vector<64x240xf32>
    %88 = arith.addf %85, %87 : vector<64x240xf32>
    %c128_83 = arith.constant 128 : index
    %c0_84 = arith.constant 0 : index
    %89 = vector.load %arg13[%c128_83, %c0_84] : memref<192x240xf32, #tpu.memory_space<vmem>>, vector<64x240xf32>
    tpu.vector_store %arg13[%c128_83, %c0_84], %88 {strides = array<i32>} : memref<192x240xf32, #tpu.memory_space<vmem>>, vector<64x240xf32>,
    %c0_85 = arith.constant 0 : index
    %c0_86 = arith.constant 0 : index
    %c0_87 = arith.constant 0 : index
    %90 = vector.load %arg4[%c0_85, %c0_86, %c0_87] : memref<2x240x120xf32, #tpu.memory_space<vmem>>, vector<1x240x120xf32>
    %91 = vector.shape_cast %90 : vector<1x240x120xf32> to vector<240x120xf32>
    %c1_88 = arith.constant 1 : index
    %c0_89 = arith.constant 0 : index
    %c0_90 = arith.constant 0 : index
    %92 = vector.load %arg4[%c1_88, %c0_89, %c0_90] : memref<2x240x120xf32, #tpu.memory_space<vmem>>, vector<1x240x120xf32>
    %93 = vector.shape_cast %92 : vector<1x240x120xf32> to vector<240x120xf32>
    %c0_91 = arith.constant 0 : index
    %c0_92 = arith.constant 0 : index
    %94 = vector.load %arg13[%c0_91, %c0_92] : memref<192x240xf32, #tpu.memory_space<vmem>>, vector<8x240xf32>
    %c8_93 = arith.constant 8 : index
    %c0_94 = arith.constant 0 : index
    %95 = vector.load %arg13[%c8_93, %c0_94] : memref<192x240xf32, #tpu.memory_space<vmem>>, vector<8x240xf32>
    %96 = arith.maximumf %94, %95 : vector<8x240xf32>
    %cst_95 = arith.constant dense<0.000000e+00> : vector<8x120xf32>
    %97 = tpu.matmul %96, %91, %cst_95 {dimension_numbers = #tpu.dot_dimension_numbers<[1], [0], [0], [1], [0, 0, 1, 1], [], []>} : vector<8x240xf32>, vector<240x120xf32>, vector<8x120xf32> -> vector<8x120xf32>
    %cst_96 = arith.constant dense<0.000000e+00> : vector<8x120xf32>
    %98 = tpu.matmul %96, %93, %cst_96 {dimension_numbers = #tpu.dot_dimension_numbers<[1], [0], [0], [1], [0, 0, 1, 1], [], []>} : vector<8x240xf32>, vector<240x120xf32>, vector<8x120xf32> -> vector<8x120xf32>
    %99 = arith.maximumf %97, %98 : vector<8x120xf32>
    %c0_97 = arith.constant 0 : index
    %c0_98 = arith.constant 0 : index
    %100 = vector.load %arg14[%c0_97, %c0_98] : memref<96x120xf32, #tpu.memory_space<vmem>>, vector<8x120xf32>
    tpu.vector_store %arg14[%c0_97, %c0_98], %99 {strides = array<i32>} : memref<96x120xf32, #tpu.memory_space<vmem>>, vector<8x120xf32>,
    %c16_99 = arith.constant 16 : index
    %c0_100 = arith.constant 0 : index
    %101 = vector.load %arg13[%c16_99, %c0_100] : memref<192x240xf32, #tpu.memory_space<vmem>>, vector<8x240xf32>
    %c24_101 = arith.constant 24 : index
    %c0_102 = arith.constant 0 : index
    %102 = vector.load %arg13[%c24_101, %c0_102] : memref<192x240xf32, #tpu.memory_space<vmem>>, vector<8x240xf32>
    %103 = arith.maximumf %101, %102 : vector<8x240xf32>
    %cst_103 = arith.constant dense<0.000000e+00> : vector<8x120xf32>
    %104 = tpu.matmul %103, %91, %cst_103 {dimension_numbers = #tpu.dot_dimension_numbers<[1], [0], [0], [1], [0, 0, 1, 1], [], []>} : vector<8x240xf32>, vector<240x120xf32>, vector<8x120xf32> -> vector<8x120xf32>
    %cst_104 = arith.constant dense<0.000000e+00> : vector<8x120xf32>
    %105 = tpu.matmul %103, %93, %cst_104 {dimension_numbers = #tpu.dot_dimension_numbers<[1], [0], [0], [1], [0, 0, 1, 1], [], []>} : vector<8x240xf32>, vector<240x120xf32>, vector<8x120xf32> -> vector<8x120xf32>
    %106 = arith.maximumf %104, %105 : vector<8x120xf32>
    %c8_105 = arith.constant 8 : index
    %c0_106 = arith.constant 0 : index
    %107 = vector.load %arg14[%c8_105, %c0_106] : memref<96x120xf32, #tpu.memory_space<vmem>>, vector<8x120xf32>
    tpu.vector_store %arg14[%c8_105, %c0_106], %106 {strides = array<i32>} : memref<96x120xf32, #tpu.memory_space<vmem>>, vector<8x120xf32>,
    %c32_107 = arith.constant 32 : index
    %c0_108 = arith.constant 0 : index
    %108 = vector.load %arg13[%c32_107, %c0_108] : memref<192x240xf32, #tpu.memory_space<vmem>>, vector<8x240xf32>
    %c40 = arith.constant 40 : index
    %c0_109 = arith.constant 0 : index
    %109 = vector.load %arg13[%c40, %c0_109] : memref<192x240xf32, #tpu.memory_space<vmem>>, vector<8x240xf32>
    %110 = arith.maximumf %108, %109 : vector<8x240xf32>
    %cst_110 = arith.constant dense<0.000000e+00> : vector<8x120xf32>
    %111 = tpu.matmul %110, %91, %cst_110 {dimension_numbers = #tpu.dot_dimension_numbers<[1], [0], [0], [1], [0, 0, 1, 1], [], []>} : vector<8x240xf32>, vector<240x120xf32>, vector<8x120xf32> -> vector<8x120xf32>
    %cst_111 = arith.constant dense<0.000000e+00> : vector<8x120xf32>
    %112 = tpu.matmul %110, %93, %cst_111 {dimension_numbers = #tpu.dot_dimension_numbers<[1], [0], [0], [1], [0, 0, 1, 1], [], []>} : vector<8x240xf32>, vector<240x120xf32>, vector<8x120xf32> -> vector<8x120xf32>
    %113 = arith.maximumf %111, %112 : vector<8x120xf32>
    %c16_112 = arith.constant 16 : index
    %c0_113 = arith.constant 0 : index
    %114 = vector.load %arg14[%c16_112, %c0_113] : memref<96x120xf32, #tpu.memory_space<vmem>>, vector<8x120xf32>
    tpu.vector_store %arg14[%c16_112, %c0_113], %113 {strides = array<i32>} : memref<96x120xf32, #tpu.memory_space<vmem>>, vector<8x120xf32>,
    %c48 = arith.constant 48 : index
    %c0_114 = arith.constant 0 : index
    %115 = vector.load %arg13[%c48, %c0_114] : memref<192x240xf32, #tpu.memory_space<vmem>>, vector<8x240xf32>
    %c56 = arith.constant 56 : index
    %c0_115 = arith.constant 0 : index
    %116 = vector.load %arg13[%c56, %c0_115] : memref<192x240xf32, #tpu.memory_space<vmem>>, vector<8x240xf32>
    %117 = arith.maximumf %115, %116 : vector<8x240xf32>
    %cst_116 = arith.constant dense<0.000000e+00> : vector<8x120xf32>
    %118 = tpu.matmul %117, %91, %cst_116 {dimension_numbers = #tpu.dot_dimension_numbers<[1], [0], [0], [1], [0, 0, 1, 1], [], []>} : vector<8x240xf32>, vector<240x120xf32>, vector<8x120xf32> -> vector<8x120xf32>
    %cst_117 = arith.constant dense<0.000000e+00> : vector<8x120xf32>
    %119 = tpu.matmul %117, %93, %cst_117 {dimension_numbers = #tpu.dot_dimension_numbers<[1], [0], [0], [1], [0, 0, 1, 1], [], []>} : vector<8x240xf32>, vector<240x120xf32>, vector<8x120xf32> -> vector<8x120xf32>
    %120 = arith.maximumf %118, %119 : vector<8x120xf32>
    %c24_118 = arith.constant 24 : index
    %c0_119 = arith.constant 0 : index
    %121 = vector.load %arg14[%c24_118, %c0_119] : memref<96x120xf32, #tpu.memory_space<vmem>>, vector<8x120xf32>
    tpu.vector_store %arg14[%c24_118, %c0_119], %120 {strides = array<i32>} : memref<96x120xf32, #tpu.memory_space<vmem>>, vector<8x120xf32>,
    %c64_120 = arith.constant 64 : index
    %c0_121 = arith.constant 0 : index
    %122 = vector.load %arg13[%c64_120, %c0_121] : memref<192x240xf32, #tpu.memory_space<vmem>>, vector<8x240xf32>
    %c72_122 = arith.constant 72 : index
    %c0_123 = arith.constant 0 : index
    %123 = vector.load %arg13[%c72_122, %c0_123] : memref<192x240xf32, #tpu.memory_space<vmem>>, vector<8x240xf32>
    %124 = arith.maximumf %122, %123 : vector<8x240xf32>
    %cst_124 = arith.constant dense<0.000000e+00> : vector<8x120xf32>
    %125 = tpu.matmul %124, %91, %cst_124 {dimension_numbers = #tpu.dot_dimension_numbers<[1], [0], [0], [1], [0, 0, 1, 1], [], []>} : vector<8x240xf32>, vector<240x120xf32>, vector<8x120xf32> -> vector<8x120xf32>
    %cst_125 = arith.constant dense<0.000000e+00> : vector<8x120xf32>
    %126 = tpu.matmul %124, %93, %cst_125 {dimension_numbers = #tpu.dot_dimension_numbers<[1], [0], [0], [1], [0, 0, 1, 1], [], []>} : vector<8x240xf32>, vector<240x120xf32>, vector<8x120xf32> -> vector<8x120xf32>
    %127 = arith.maximumf %125, %126 : vector<8x120xf32>
    %c32_126 = arith.constant 32 : index
    %c0_127 = arith.constant 0 : index
    %128 = vector.load %arg14[%c32_126, %c0_127] : memref<96x120xf32, #tpu.memory_space<vmem>>, vector<8x120xf32>
    tpu.vector_store %arg14[%c32_126, %c0_127], %127 {strides = array<i32>} : memref<96x120xf32, #tpu.memory_space<vmem>>, vector<8x120xf32>,
    %c80_128 = arith.constant 80 : index
    %c0_129 = arith.constant 0 : index
    %129 = vector.load %arg13[%c80_128, %c0_129] : memref<192x240xf32, #tpu.memory_space<vmem>>, vector<8x240xf32>
    %c88_130 = arith.constant 88 : index
    %c0_131 = arith.constant 0 : index
    %130 = vector.load %arg13[%c88_130, %c0_131] : memref<192x240xf32, #tpu.memory_space<vmem>>, vector<8x240xf32>
    %131 = arith.maximumf %129, %130 : vector<8x240xf32>
    %cst_132 = arith.constant dense<0.000000e+00> : vector<8x120xf32>
    %132 = tpu.matmul %131, %91, %cst_132 {dimension_numbers = #tpu.dot_dimension_numbers<[1], [0], [0], [1], [0, 0, 1, 1], [], []>} : vector<8x240xf32>, vector<240x120xf32>, vector<8x120xf32> -> vector<8x120xf32>
    %cst_133 = arith.constant dense<0.000000e+00> : vector<8x120xf32>
    %133 = tpu.matmul %131, %93, %cst_133 {dimension_numbers = #tpu.dot_dimension_numbers<[1], [0], [0], [1], [0, 0, 1, 1], [], []>} : vector<8x240xf32>, vector<240x120xf32>, vector<8x120xf32> -> vector<8x120xf32>
    %134 = arith.maximumf %132, %133 : vector<8x120xf32>
    %c40_134 = arith.constant 40 : index
    %c0_135 = arith.constant 0 : index
    %135 = vector.load %arg14[%c40_134, %c0_135] : memref<96x120xf32, #tpu.memory_space<vmem>>, vector<8x120xf32>
    tpu.vector_store %arg14[%c40_134, %c0_135], %134 {strides = array<i32>} : memref<96x120xf32, #tpu.memory_space<vmem>>, vector<8x120xf32>,
    %c96_136 = arith.constant 96 : index
    %c0_137 = arith.constant 0 : index
    %136 = vector.load %arg13[%c96_136, %c0_137] : memref<192x240xf32, #tpu.memory_space<vmem>>, vector<8x240xf32>
    %c104 = arith.constant 104 : index
    %c0_138 = arith.constant 0 : index
    %137 = vector.load %arg13[%c104, %c0_138] : memref<192x240xf32, #tpu.memory_space<vmem>>, vector<8x240xf32>
    %138 = arith.maximumf %136, %137 : vector<8x240xf32>
    %cst_139 = arith.constant dense<0.000000e+00> : vector<8x120xf32>
    %139 = tpu.matmul %138, %91, %cst_139 {dimension_numbers = #tpu.dot_dimension_numbers<[1], [0], [0], [1], [0, 0, 1, 1], [], []>} : vector<8x240xf32>, vector<240x120xf32>, vector<8x120xf32> -> vector<8x120xf32>
    %cst_140 = arith.constant dense<0.000000e+00> : vector<8x120xf32>
    %140 = tpu.matmul %138, %93, %cst_140 {dimension_numbers = #tpu.dot_dimension_numbers<[1], [0], [0], [1], [0, 0, 1, 1], [], []>} : vector<8x240xf32>, vector<240x120xf32>, vector<8x120xf32> -> vector<8x120xf32>
    %141 = arith.maximumf %139, %140 : vector<8x120xf32>
    %c48_141 = arith.constant 48 : index
    %c0_142 = arith.constant 0 : index
    %142 = vector.load %arg14[%c48_141, %c0_142] : memref<96x120xf32, #tpu.memory_space<vmem>>, vector<8x120xf32>
    tpu.vector_store %arg14[%c48_141, %c0_142], %141 {strides = array<i32>} : memref<96x120xf32, #tpu.memory_space<vmem>>, vector<8x120xf32>,
    %c112 = arith.constant 112 : index
    %c0_143 = arith.constant 0 : index
    %143 = vector.load %arg13[%c112, %c0_143] : memref<192x240xf32, #tpu.memory_space<vmem>>, vector<8x240xf32>
    %c120 = arith.constant 120 : index
    %c0_144 = arith.constant 0 : index
    %144 = vector.load %arg13[%c120, %c0_144] : memref<192x240xf32, #tpu.memory_space<vmem>>, vector<8x240xf32>
    %145 = arith.maximumf %143, %144 : vector<8x240xf32>
    %cst_145 = arith.constant dense<0.000000e+00> : vector<8x120xf32>
    %146 = tpu.matmul %145, %91, %cst_145 {dimension_numbers = #tpu.dot_dimension_numbers<[1], [0], [0], [1], [0, 0, 1, 1], [], []>} : vector<8x240xf32>, vector<240x120xf32>, vector<8x120xf32> -> vector<8x120xf32>
    %cst_146 = arith.constant dense<0.000000e+00> : vector<8x120xf32>
    %147 = tpu.matmul %145, %93, %cst_146 {dimension_numbers = #tpu.dot_dimension_numbers<[1], [0], [0], [1], [0, 0, 1, 1], [], []>} : vector<8x240xf32>, vector<240x120xf32>, vector<8x120xf32> -> vector<8x120xf32>
    %148 = arith.maximumf %146, %147 : vector<8x120xf32>
    %c56_147 = arith.constant 56 : index
    %c0_148 = arith.constant 0 : index
    %149 = vector.load %arg14[%c56_147, %c0_148] : memref<96x120xf32, #tpu.memory_space<vmem>>, vector<8x120xf32>
    tpu.vector_store %arg14[%c56_147, %c0_148], %148 {strides = array<i32>} : memref<96x120xf32, #tpu.memory_space<vmem>>, vector<8x120xf32>,
    %c128_149 = arith.constant 128 : index
    %c0_150 = arith.constant 0 : index
    %150 = vector.load %arg13[%c128_149, %c0_150] : memref<192x240xf32, #tpu.memory_space<vmem>>, vector<8x240xf32>
    %c136_151 = arith.constant 136 : index
    %c0_152 = arith.constant 0 : index
    %151 = vector.load %arg13[%c136_151, %c0_152] : memref<192x240xf32, #tpu.memory_space<vmem>>, vector<8x240xf32>
    %152 = arith.maximumf %150, %151 : vector<8x240xf32>
    %cst_153 = arith.constant dense<0.000000e+00> : vector<8x120xf32>
    %153 = tpu.matmul %152, %91, %cst_153 {dimension_numbers = #tpu.dot_dimension_numbers<[1], [0], [0], [1], [0, 0, 1, 1], [], []>} : vector<8x240xf32>, vector<240x120xf32>, vector<8x120xf32> -> vector<8x120xf32>
    %cst_154 = arith.constant dense<0.000000e+00> : vector<8x120xf32>
    %154 = tpu.matmul %152, %93, %cst_154 {dimension_numbers = #tpu.dot_dimension_numbers<[1], [0], [0], [1], [0, 0, 1, 1], [], []>} : vector<8x240xf32>, vector<240x120xf32>, vector<8x120xf32> -> vector<8x120xf32>
    %155 = arith.maximumf %153, %154 : vector<8x120xf32>
    %c64_155 = arith.constant 64 : index
    %c0_156 = arith.constant 0 : index
    %156 = vector.load %arg14[%c64_155, %c0_156] : memref<96x120xf32, #tpu.memory_space<vmem>>, vector<8x120xf32>
    tpu.vector_store %arg14[%c64_155, %c0_156], %155 {strides = array<i32>} : memref<96x120xf32, #tpu.memory_space<vmem>>, vector<8x120xf32>,
    %c144_157 = arith.constant 144 : index
    %c0_158 = arith.constant 0 : index
    %157 = vector.load %arg13[%c144_157, %c0_158] : memref<192x240xf32, #tpu.memory_space<vmem>>, vector<8x240xf32>
    %c152_159 = arith.constant 152 : index
    %c0_160 = arith.constant 0 : index
    %158 = vector.load %arg13[%c152_159, %c0_160] : memref<192x240xf32, #tpu.memory_space<vmem>>, vector<8x240xf32>
    %159 = arith.maximumf %157, %158 : vector<8x240xf32>
    %cst_161 = arith.constant dense<0.000000e+00> : vector<8x120xf32>
    %160 = tpu.matmul %159, %91, %cst_161 {dimension_numbers = #tpu.dot_dimension_numbers<[1], [0], [0], [1], [0, 0, 1, 1], [], []>} : vector<8x240xf32>, vector<240x120xf32>, vector<8x120xf32> -> vector<8x120xf32>
    %cst_162 = arith.constant dense<0.000000e+00> : vector<8x120xf32>
    %161 = tpu.matmul %159, %93, %cst_162 {dimension_numbers = #tpu.dot_dimension_numbers<[1], [0], [0], [1], [0, 0, 1, 1], [], []>} : vector<8x240xf32>, vector<240x120xf32>, vector<8x120xf32> -> vector<8x120xf32>
    %162 = arith.maximumf %160, %161 : vector<8x120xf32>
    %c72_163 = arith.constant 72 : index
    %c0_164 = arith.constant 0 : index
    %163 = vector.load %arg14[%c72_163, %c0_164] : memref<96x120xf32, #tpu.memory_space<vmem>>, vector<8x120xf32>
    tpu.vector_store %arg14[%c72_163, %c0_164], %162 {strides = array<i32>} : memref<96x120xf32, #tpu.memory_space<vmem>>, vector<8x120xf32>,
    %c160_165 = arith.constant 160 : index
    %c0_166 = arith.constant 0 : index
    %164 = vector.load %arg13[%c160_165, %c0_166] : memref<192x240xf32, #tpu.memory_space<vmem>>, vector<8x240xf32>
    %c168 = arith.constant 168 : index
    %c0_167 = arith.constant 0 : index
    %165 = vector.load %arg13[%c168, %c0_167] : memref<192x240xf32, #tpu.memory_space<vmem>>, vector<8x240xf32>
    %166 = arith.maximumf %164, %165 : vector<8x240xf32>
    %cst_168 = arith.constant dense<0.000000e+00> : vector<8x120xf32>
    %167 = tpu.matmul %166, %91, %cst_168 {dimension_numbers = #tpu.dot_dimension_numbers<[1], [0], [0], [1], [0, 0, 1, 1], [], []>} : vector<8x240xf32>, vector<240x120xf32>, vector<8x120xf32> -> vector<8x120xf32>
    %cst_169 = arith.constant dense<0.000000e+00> : vector<8x120xf32>
    %168 = tpu.matmul %166, %93, %cst_169 {dimension_numbers = #tpu.dot_dimension_numbers<[1], [0], [0], [1], [0, 0, 1, 1], [], []>} : vector<8x240xf32>, vector<240x120xf32>, vector<8x120xf32> -> vector<8x120xf32>
    %169 = arith.maximumf %167, %168 : vector<8x120xf32>
    %c80_170 = arith.constant 80 : index
    %c0_171 = arith.constant 0 : index
    %170 = vector.load %arg14[%c80_170, %c0_171] : memref<96x120xf32, #tpu.memory_space<vmem>>, vector<8x120xf32>
    tpu.vector_store %arg14[%c80_170, %c0_171], %169 {strides = array<i32>} : memref<96x120xf32, #tpu.memory_space<vmem>>, vector<8x120xf32>,
    %c176 = arith.constant 176 : index
    %c0_172 = arith.constant 0 : index
    %171 = vector.load %arg13[%c176, %c0_172] : memref<192x240xf32, #tpu.memory_space<vmem>>, vector<8x240xf32>
    %c184 = arith.constant 184 : index
    %c0_173 = arith.constant 0 : index
    %172 = vector.load %arg13[%c184, %c0_173] : memref<192x240xf32, #tpu.memory_space<vmem>>, vector<8x240xf32>
    %173 = arith.maximumf %171, %172 : vector<8x240xf32>
    %cst_174 = arith.constant dense<0.000000e+00> : vector<8x120xf32>
    %174 = tpu.matmul %173, %91, %cst_174 {dimension_numbers = #tpu.dot_dimension_numbers<[1], [0], [0], [1], [0, 0, 1, 1], [], []>} : vector<8x240xf32>, vector<240x120xf32>, vector<8x120xf32> -> vector<8x120xf32>
    %cst_175 = arith.constant dense<0.000000e+00> : vector<8x120xf32>
    %175 = tpu.matmul %173, %93, %cst_175 {dimension_numbers = #tpu.dot_dimension_numbers<[1], [0], [0], [1], [0, 0, 1, 1], [], []>} : vector<8x240xf32>, vector<240x120xf32>, vector<8x120xf32> -> vector<8x120xf32>
    %176 = arith.maximumf %174, %175 : vector<8x120xf32>
    %c88_176 = arith.constant 88 : index
    %c0_177 = arith.constant 0 : index
    %177 = vector.load %arg14[%c88_176, %c0_177] : memref<96x120xf32, #tpu.memory_space<vmem>>, vector<8x120xf32>
    tpu.vector_store %arg14[%c88_176, %c0_177], %176 {strides = array<i32>} : memref<96x120xf32, #tpu.memory_space<vmem>>, vector<8x120xf32>,
    %cst_178 = arith.constant 0.000000e+00 : f32
    %178 = vector.broadcast %cst_178 : f32 to vector<64x160xf32>
    %c0_179 = arith.constant 0 : index
    %c0_180 = arith.constant 0 : index
    %179 = vector.load %arg14[%c0_179, %c0_180] : memref<96x120xf32, #tpu.memory_space<vmem>>, vector<64x120xf32>
    %c0_181 = arith.constant 0 : index
    %c0_182 = arith.constant 0 : index
    %c0_183 = arith.constant 0 : index
    %180 = vector.load %arg5[%c0_181, %c0_182, %c0_183] : memref<5x120x160xf32, #tpu.memory_space<vmem>>, vector<1x120x160xf32>
    %181 = vector.shape_cast %180 : vector<1x120x160xf32> to vector<120x160xf32>
    %cst_184 = arith.constant dense<0.000000e+00> : vector<64x160xf32>
    %182 = tpu.matmul %179, %181, %cst_184 {dimension_numbers = #tpu.dot_dimension_numbers<[1], [0], [0], [1], [0, 0, 1, 1], [], []>} : vector<64x120xf32>, vector<120x160xf32>, vector<64x160xf32> -> vector<64x160xf32>
    %183 = arith.addf %178, %182 : vector<64x160xf32>
    %c8_185 = arith.constant 8 : index
    %c0_186 = arith.constant 0 : index
    %184 = vector.load %arg14[%c8_185, %c0_186] : memref<96x120xf32, #tpu.memory_space<vmem>>, vector<64x120xf32>
    %c1_187 = arith.constant 1 : index
    %c0_188 = arith.constant 0 : index
    %c0_189 = arith.constant 0 : index
    %185 = vector.load %arg5[%c1_187, %c0_188, %c0_189] : memref<5x120x160xf32, #tpu.memory_space<vmem>>, vector<1x120x160xf32>
    %186 = vector.shape_cast %185 : vector<1x120x160xf32> to vector<120x160xf32>
    %cst_190 = arith.constant dense<0.000000e+00> : vector<64x160xf32>
    %187 = tpu.matmul %184, %186, %cst_190 {dimension_numbers = #tpu.dot_dimension_numbers<[1], [0], [0], [1], [0, 0, 1, 1], [], []>} : vector<64x120xf32>, vector<120x160xf32>, vector<64x160xf32> -> vector<64x160xf32>
    %188 = arith.addf %183, %187 : vector<64x160xf32>
    %c16_191 = arith.constant 16 : index
    %c0_192 = arith.constant 0 : index
    %189 = vector.load %arg14[%c16_191, %c0_192] : memref<96x120xf32, #tpu.memory_space<vmem>>, vector<64x120xf32>
    %c2_193 = arith.constant 2 : index
    %c0_194 = arith.constant 0 : index
    %c0_195 = arith.constant 0 : index
    %190 = vector.load %arg5[%c2_193, %c0_194, %c0_195] : memref<5x120x160xf32, #tpu.memory_space<vmem>>, vector<1x120x160xf32>
    %191 = vector.shape_cast %190 : vector<1x120x160xf32> to vector<120x160xf32>
    %cst_196 = arith.constant dense<0.000000e+00> : vector<64x160xf32>
    %192 = tpu.matmul %189, %191, %cst_196 {dimension_numbers = #tpu.dot_dimension_numbers<[1], [0], [0], [1], [0, 0, 1, 1], [], []>} : vector<64x120xf32>, vector<120x160xf32>, vector<64x160xf32> -> vector<64x160xf32>
    %193 = arith.addf %188, %192 : vector<64x160xf32>
    %c24_197 = arith.constant 24 : index
    %c0_198 = arith.constant 0 : index
    %194 = vector.load %arg14[%c24_197, %c0_198] : memref<96x120xf32, #tpu.memory_space<vmem>>, vector<64x120xf32>
    %c3_199 = arith.constant 3 : index
    %c0_200 = arith.constant 0 : index
    %c0_201 = arith.constant 0 : index
    %195 = vector.load %arg5[%c3_199, %c0_200, %c0_201] : memref<5x120x160xf32, #tpu.memory_space<vmem>>, vector<1x120x160xf32>
    %196 = vector.shape_cast %195 : vector<1x120x160xf32> to vector<120x160xf32>
    %cst_202 = arith.constant dense<0.000000e+00> : vector<64x160xf32>
    %197 = tpu.matmul %194, %196, %cst_202 {dimension_numbers = #tpu.dot_dimension_numbers<[1], [0], [0], [1], [0, 0, 1, 1], [], []>} : vector<64x120xf32>, vector<120x160xf32>, vector<64x160xf32> -> vector<64x160xf32>
    %198 = arith.addf %193, %197 : vector<64x160xf32>
    %c32_203 = arith.constant 32 : index
    %c0_204 = arith.constant 0 : index
    %199 = vector.load %arg14[%c32_203, %c0_204] : memref<96x120xf32, #tpu.memory_space<vmem>>, vector<64x120xf32>
    %c4_205 = arith.constant 4 : index
    %c0_206 = arith.constant 0 : index
    %c0_207 = arith.constant 0 : index
    %200 = vector.load %arg5[%c4_205, %c0_206, %c0_207] : memref<5x120x160xf32, #tpu.memory_space<vmem>>, vector<1x120x160xf32>
    %201 = vector.shape_cast %200 : vector<1x120x160xf32> to vector<120x160xf32>
    %cst_208 = arith.constant dense<0.000000e+00> : vector<64x160xf32>
    %202 = tpu.matmul %199, %201, %cst_208 {dimension_numbers = #tpu.dot_dimension_numbers<[1], [0], [0], [1], [0, 0, 1, 1], [], []>} : vector<64x120xf32>, vector<120x160xf32>, vector<64x160xf32> -> vector<64x160xf32>
    %203 = arith.addf %198, %202 : vector<64x160xf32>
    %c0_209 = arith.constant 0 : index
    %c0_210 = arith.constant 0 : index
    %204 = vector.load %arg6[%c0_209, %c0_210] : memref<1x160xf32, #tpu.memory_space<vmem>>, vector<1x160xf32>
    %205 = vector.broadcast %204 : vector<1x160xf32> to vector<64x160xf32>
    %206 = arith.addf %203, %205 : vector<64x160xf32>
    %c0_211 = arith.constant 0 : index
    %c0_212 = arith.constant 0 : index
    %207 = vector.load %arg15[%c0_211, %c0_212] : memref<64x160xf32, #tpu.memory_space<vmem>>, vector<64x160xf32>
    tpu.vector_store %arg15[%c0_211, %c0_212], %206 {strides = array<i32>} : memref<64x160xf32, #tpu.memory_space<vmem>>, vector<64x160xf32>,
    %c0_213 = arith.constant 0 : index
    %c0_214 = arith.constant 0 : index
    %c0_215 = arith.constant 0 : index
    %208 = vector.load %arg7[%c0_213, %c0_214, %c0_215] : memref<2x160x80xf32, #tpu.memory_space<vmem>>, vector<1x160x80xf32>
    %209 = vector.shape_cast %208 : vector<1x160x80xf32> to vector<160x80xf32>
    %c1_216 = arith.constant 1 : index
    %c0_217 = arith.constant 0 : index
    %c0_218 = arith.constant 0 : index
    %210 = vector.load %arg7[%c1_216, %c0_217, %c0_218] : memref<2x160x80xf32, #tpu.memory_space<vmem>>, vector<1x160x80xf32>
    %211 = vector.shape_cast %210 : vector<1x160x80xf32> to vector<160x80xf32>
    %cst_219 = arith.constant 0.000000e+00 : f32
    %212 = vector.broadcast %cst_219 : f32 to vector<8x50xf32>
    %c0_220 = arith.constant 0 : index
    %c0_221 = arith.constant 0 : index
    %213 = vector.load %arg15[%c0_220, %c0_221] : memref<64x160xf32, #tpu.memory_space<vmem>>, vector<8x160xf32>
    %c8_222 = arith.constant 8 : index
    %c0_223 = arith.constant 0 : index
    %214 = vector.load %arg15[%c8_222, %c0_223] : memref<64x160xf32, #tpu.memory_space<vmem>>, vector<8x160xf32>
    %215 = arith.maximumf %213, %214 : vector<8x160xf32>
    %cst_224 = arith.constant dense<0.000000e+00> : vector<8x80xf32>
    %216 = tpu.matmul %215, %209, %cst_224 {dimension_numbers = #tpu.dot_dimension_numbers<[1], [0], [0], [1], [0, 0, 1, 1], [], []>} : vector<8x160xf32>, vector<160x80xf32>, vector<8x80xf32> -> vector<8x80xf32>
    %cst_225 = arith.constant dense<0.000000e+00> : vector<8x80xf32>
    %217 = tpu.matmul %215, %211, %cst_225 {dimension_numbers = #tpu.dot_dimension_numbers<[1], [0], [0], [1], [0, 0, 1, 1], [], []>} : vector<8x160xf32>, vector<160x80xf32>, vector<8x80xf32> -> vector<8x80xf32>
    %218 = arith.maximumf %216, %217 : vector<8x80xf32>
    %c0_226 = arith.constant 0 : index
    %c0_227 = arith.constant 0 : index
    %219 = vector.load %arg8[%c0_226, %c0_227] : memref<320x50xf32, #tpu.memory_space<vmem>>, vector<80x50xf32>
    %cst_228 = arith.constant dense<0.000000e+00> : vector<8x50xf32>
    %220 = tpu.matmul %218, %219, %cst_228 {dimension_numbers = #tpu.dot_dimension_numbers<[1], [0], [0], [1], [0, 0, 1, 1], [], []>} : vector<8x80xf32>, vector<80x50xf32>, vector<8x50xf32> -> vector<8x50xf32>
    %221 = arith.addf %212, %220 : vector<8x50xf32>
    %c16_229 = arith.constant 16 : index
    %c0_230 = arith.constant 0 : index
    %222 = vector.load %arg15[%c16_229, %c0_230] : memref<64x160xf32, #tpu.memory_space<vmem>>, vector<8x160xf32>
    %c24_231 = arith.constant 24 : index
    %c0_232 = arith.constant 0 : index
    %223 = vector.load %arg15[%c24_231, %c0_232] : memref<64x160xf32, #tpu.memory_space<vmem>>, vector<8x160xf32>
    %224 = arith.maximumf %222, %223 : vector<8x160xf32>
    %cst_233 = arith.constant dense<0.000000e+00> : vector<8x80xf32>
    %225 = tpu.matmul %224, %209, %cst_233 {dimension_numbers = #tpu.dot_dimension_numbers<[1], [0], [0], [1], [0, 0, 1, 1], [], []>} : vector<8x160xf32>, vector<160x80xf32>, vector<8x80xf32> -> vector<8x80xf32>
    %cst_234 = arith.constant dense<0.000000e+00> : vector<8x80xf32>
    %226 = tpu.matmul %224, %211, %cst_234 {dimension_numbers = #tpu.dot_dimension_numbers<[1], [0], [0], [1], [0, 0, 1, 1], [], []>} : vector<8x160xf32>, vector<160x80xf32>, vector<8x80xf32> -> vector<8x80xf32>
    %227 = arith.maximumf %225, %226 : vector<8x80xf32>
    %c80_235 = arith.constant 80 : index
    %c0_236 = arith.constant 0 : index
    %228 = vector.load %arg8[%c80_235, %c0_236] : memref<320x50xf32, #tpu.memory_space<vmem>>, vector<80x50xf32>
    %cst_237 = arith.constant dense<0.000000e+00> : vector<8x50xf32>
    %229 = tpu.matmul %227, %228, %cst_237 {dimension_numbers = #tpu.dot_dimension_numbers<[1], [0], [0], [1], [0, 0, 1, 1], [], []>} : vector<8x80xf32>, vector<80x50xf32>, vector<8x50xf32> -> vector<8x50xf32>
    %230 = arith.addf %221, %229 : vector<8x50xf32>
    %c32_238 = arith.constant 32 : index
    %c0_239 = arith.constant 0 : index
    %231 = vector.load %arg15[%c32_238, %c0_239] : memref<64x160xf32, #tpu.memory_space<vmem>>, vector<8x160xf32>
    %c40_240 = arith.constant 40 : index
    %c0_241 = arith.constant 0 : index
    %232 = vector.load %arg15[%c40_240, %c0_241] : memref<64x160xf32, #tpu.memory_space<vmem>>, vector<8x160xf32>
    %233 = arith.maximumf %231, %232 : vector<8x160xf32>
    %cst_242 = arith.constant dense<0.000000e+00> : vector<8x80xf32>
    %234 = tpu.matmul %233, %209, %cst_242 {dimension_numbers = #tpu.dot_dimension_numbers<[1], [0], [0], [1], [0, 0, 1, 1], [], []>} : vector<8x160xf32>, vector<160x80xf32>, vector<8x80xf32> -> vector<8x80xf32>
    %cst_243 = arith.constant dense<0.000000e+00> : vector<8x80xf32>
    %235 = tpu.matmul %233, %211, %cst_243 {dimension_numbers = #tpu.dot_dimension_numbers<[1], [0], [0], [1], [0, 0, 1, 1], [], []>} : vector<8x160xf32>, vector<160x80xf32>, vector<8x80xf32> -> vector<8x80xf32>
    %236 = arith.maximumf %234, %235 : vector<8x80xf32>
    %c160_244 = arith.constant 160 : index
    %c0_245 = arith.constant 0 : index
    %237 = vector.load %arg8[%c160_244, %c0_245] : memref<320x50xf32, #tpu.memory_space<vmem>>, vector<80x50xf32>
    %cst_246 = arith.constant dense<0.000000e+00> : vector<8x50xf32>
    %238 = tpu.matmul %236, %237, %cst_246 {dimension_numbers = #tpu.dot_dimension_numbers<[1], [0], [0], [1], [0, 0, 1, 1], [], []>} : vector<8x80xf32>, vector<80x50xf32>, vector<8x50xf32> -> vector<8x50xf32>
    %239 = arith.addf %230, %238 : vector<8x50xf32>
    %c48_247 = arith.constant 48 : index
    %c0_248 = arith.constant 0 : index
    %240 = vector.load %arg15[%c48_247, %c0_248] : memref<64x160xf32, #tpu.memory_space<vmem>>, vector<8x160xf32>
    %c56_249 = arith.constant 56 : index
    %c0_250 = arith.constant 0 : index
    %241 = vector.load %arg15[%c56_249, %c0_250] : memref<64x160xf32, #tpu.memory_space<vmem>>, vector<8x160xf32>
    %242 = arith.maximumf %240, %241 : vector<8x160xf32>
    %cst_251 = arith.constant dense<0.000000e+00> : vector<8x80xf32>
    %243 = tpu.matmul %242, %209, %cst_251 {dimension_numbers = #tpu.dot_dimension_numbers<[1], [0], [0], [1], [0, 0, 1, 1], [], []>} : vector<8x160xf32>, vector<160x80xf32>, vector<8x80xf32> -> vector<8x80xf32>
    %cst_252 = arith.constant dense<0.000000e+00> : vector<8x80xf32>
    %244 = tpu.matmul %242, %211, %cst_252 {dimension_numbers = #tpu.dot_dimension_numbers<[1], [0], [0], [1], [0, 0, 1, 1], [], []>} : vector<8x160xf32>, vector<160x80xf32>, vector<8x80xf32> -> vector<8x80xf32>
    %245 = arith.maximumf %243, %244 : vector<8x80xf32>
    %c240 = arith.constant 240 : index
    %c0_253 = arith.constant 0 : index
    %246 = vector.load %arg8[%c240, %c0_253] : memref<320x50xf32, #tpu.memory_space<vmem>>, vector<80x50xf32>
    %cst_254 = arith.constant dense<0.000000e+00> : vector<8x50xf32>
    %247 = tpu.matmul %245, %246, %cst_254 {dimension_numbers = #tpu.dot_dimension_numbers<[1], [0], [0], [1], [0, 0, 1, 1], [], []>} : vector<8x80xf32>, vector<80x50xf32>, vector<8x50xf32> -> vector<8x50xf32>
    %248 = arith.addf %239, %247 : vector<8x50xf32>
    %c0_255 = arith.constant 0 : index
    %c0_256 = arith.constant 0 : index
    %249 = vector.load %arg9[%c0_255, %c0_256] : memref<1x50xf32, #tpu.memory_space<vmem>>, vector<1x50xf32>
    %250 = vector.broadcast %249 : vector<1x50xf32> to vector<8x50xf32>
    %251 = arith.addf %248, %250 : vector<8x50xf32>
    %cst_257 = arith.constant 0.000000e+00 : f32
    %252 = vector.broadcast %cst_257 : f32 to vector<8x50xf32>
    %253 = arith.maximumf %251, %252 : vector<8x50xf32>
    %c0_258 = arith.constant 0 : index
    %c0_259 = arith.constant 0 : index
    %254 = vector.load %arg10[%c0_258, %c0_259] : memref<50x10xf32, #tpu.memory_space<vmem>>, vector<50x10xf32>
    %cst_260 = arith.constant dense<0.000000e+00> : vector<8x10xf32>
    %255 = tpu.matmul %253, %254, %cst_260 {dimension_numbers = #tpu.dot_dimension_numbers<[1], [0], [0], [1], [0, 0, 1, 1], [], []>} : vector<8x50xf32>, vector<50x10xf32>, vector<8x10xf32> -> vector<8x10xf32>
    %c0_261 = arith.constant 0 : index
    %c0_262 = arith.constant 0 : index
    %256 = vector.load %arg11[%c0_261, %c0_262] : memref<1x10xf32, #tpu.memory_space<vmem>>, vector<1x10xf32>
    %257 = vector.broadcast %256 : vector<1x10xf32> to vector<8x10xf32>
    %258 = arith.addf %255, %257 : vector<8x10xf32>
    %cst_263 = arith.constant dense<0xFF800000> : vector<8xf32>
    %259 = vector.multi_reduction <maximumf>, %258, %cst_263 [1] : vector<8x10xf32> to vector<8xf32>
    %260 = vector.shape_cast %259 : vector<8xf32> to vector<8x1xf32>
    %261 = vector.broadcast %260 : vector<8x1xf32> to vector<8x10xf32>
    %262 = arith.subf %258, %261 : vector<8x10xf32>
    %263 = math.exp %262 : vector<8x10xf32>
    %cst_264 = arith.constant dense<0.000000e+00> : vector<8xf32>
    %264 = vector.multi_reduction <add>, %263, %cst_264 [1] : vector<8x10xf32> to vector<8xf32>
    %265 = vector.shape_cast %264 : vector<8xf32> to vector<8x1xf32>
    %266 = math.log %265 : vector<8x1xf32>
    %267 = vector.broadcast %266 : vector<8x1xf32> to vector<8x10xf32>
    %268 = arith.subf %262, %267 : vector<8x10xf32>
    %c0_265 = arith.constant 0 : index
    %c0_266 = arith.constant 0 : index
    %269 = vector.load %arg12[%c0_265, %c0_266] : memref<8x10xf32, #tpu.memory_space<vmem>>, vector<8x10xf32>
    tpu.vector_store %arg12[%c0_265, %c0_266], %268 {strides = array<i32>} : memref<8x10xf32, #tpu.memory_space<vmem>>, vector<8x10xf32>,
    return
  }
  func.func @transform_0(%arg0: i32) -> (i32, i32) {
    %c0_i32 = arith.constant 0 : i32
    %c0_i32_0 = arith.constant 0 : i32
    return %arg0, %c0_i32 : i32, i32
  }
  func.func @transform_1(%arg0: i32) -> (i32, i32, i32) {
    %c0_i32 = arith.constant 0 : i32
    %c0_i32_0 = arith.constant 0 : i32
    %c0_i32_1 = arith.constant 0 : i32
    %c0_i32_2 = arith.constant 0 : i32
    return %c0_i32, %c0_i32_0, %c0_i32_1 : i32, i32, i32
  }
  func.func @transform_2(%arg0: i32) -> (i32, i32) {
    %c0_i32 = arith.constant 0 : i32
    %c0_i32_0 = arith.constant 0 : i32
    %c0_i32_1 = arith.constant 0 : i32
    return %c0_i32, %c0_i32_0 : i32, i32
  }
  func.func @transform_3(%arg0: i32) -> (i32, i32, i32) {
    %c0_i32 = arith.constant 0 : i32
    %c0_i32_0 = arith.constant 0 : i32
    %c0_i32_1 = arith.constant 0 : i32
    %c0_i32_2 = arith.constant 0 : i32
    return %c0_i32, %c0_i32_0, %c0_i32_1 : i32, i32, i32
  }
  func.func @transform_4(%arg0: i32) -> (i32, i32, i32) {
    %c0_i32 = arith.constant 0 : i32
    %c0_i32_0 = arith.constant 0 : i32
    %c0_i32_1 = arith.constant 0 : i32
    %c0_i32_2 = arith.constant 0 : i32
    return %c0_i32, %c0_i32_0, %c0_i32_1 : i32, i32, i32
  }
  func.func @transform_5(%arg0: i32) -> (i32, i32) {
    %c0_i32 = arith.constant 0 : i32
    %c0_i32_0 = arith.constant 0 : i32
    %c0_i32_1 = arith.constant 0 : i32
    return %c0_i32, %c0_i32_0 : i32, i32
  }
  func.func @transform_6(%arg0: i32) -> (i32, i32, i32) {
    %c0_i32 = arith.constant 0 : i32
    %c0_i32_0 = arith.constant 0 : i32
    %c0_i32_1 = arith.constant 0 : i32
    %c0_i32_2 = arith.constant 0 : i32
    return %c0_i32, %c0_i32_0, %c0_i32_1 : i32, i32, i32
  }
  func.func @transform_7(%arg0: i32) -> (i32, i32) {
    %c0_i32 = arith.constant 0 : i32
    %c0_i32_0 = arith.constant 0 : i32
    %c0_i32_1 = arith.constant 0 : i32
    return %c0_i32, %c0_i32_0 : i32, i32
  }
  func.func @transform_8(%arg0: i32) -> (i32, i32) {
    %c0_i32 = arith.constant 0 : i32
    %c0_i32_0 = arith.constant 0 : i32
    %c0_i32_1 = arith.constant 0 : i32
    return %c0_i32, %c0_i32_0 : i32, i32
  }
  func.func @transform_9(%arg0: i32) -> (i32, i32) {
    %c0_i32 = arith.constant 0 : i32
    %c0_i32_0 = arith.constant 0 : i32
    %c0_i32_1 = arith.constant 0 : i32
    return %c0_i32, %c0_i32_0 : i32, i32
  }
  func.func @transform_10(%arg0: i32) -> (i32, i32) {
    %c0_i32 = arith.constant 0 : i32
    %c0_i32_0 = arith.constant 0 : i32
    %c0_i32_1 = arith.constant 0 : i32
    return %c0_i32, %c0_i32_0 : i32, i32
  }
  func.func @transform_11(%arg0: i32) -> (i32, i32) {
    %c0_i32 = arith.constant 0 : i32
    %c0_i32_0 = arith.constant 0 : i32
    return %arg0, %c0_i32 : i32, i32
  }
}

</mosaic_0001>

<llo_original>
// kernel: net_forward.1
$region0: #{net_forward.1}
  #allocation0 [shape = 'u32[]', space=smem, size = 0x4, offset = 0x4, fixed_abs, tag = 'smem constant byte address 0x4 - core index']
  #allocation1 [shape = 'u32[144,128]{1,0:T(1,128)}', space=vmem, size = 0x12000, scoped, tag = 'internal scratch']
  #allocation2 [shape = 'f32[192,240]{1,0:T(8,128)}', space=vmem, size = 0x30000, scoped, tag = 'scratch operand']
  #allocation3 [shape = 'f32[96,120]{1,0:T(8,128)}', space=vmem, size = 0xc000, scoped, tag = 'scratch operand']
  #allocation4 [shape = 'f32[64,160]{1,0:T(8,128)}', space=vmem, size = 0x10000, scoped, tag = 'scratch operand']
  %s0 = inlined_call_operand.vmem [shape: f32[224,28], index: 0, kind: input, shape index: {}]
  %s1 = inlined_call_operand.vmem [shape: f32[5,28,240], index: 1, kind: input, shape index: {}]
  %s2 = inlined_call_operand.vmem [shape: f32[1,240], index: 2, kind: input, shape index: {}]
  %s3 = inlined_call_operand.vmem [shape: f32[2,240,120], index: 3, kind: input, shape index: {}]
  %s4 = inlined_call_operand.vmem [shape: f32[5,120,160], index: 4, kind: input, shape index: {}]
  %s5 = inlined_call_operand.vmem [shape: f32[1,160], index: 5, kind: input, shape index: {}]
  %s6 = inlined_call_operand.vmem [shape: f32[2,160,80], index: 6, kind: input, shape index: {}]
  %s7 = inlined_call_operand.vmem [shape: f32[320,50], index: 7, kind: input, shape index: {}]
  %s8 = inlined_call_operand.vmem [shape: f32[1,50], index: 8, kind: input, shape index: {}]
  %s9 = inlined_call_operand.vmem [shape: f32[50,10], index: 9, kind: input, shape index: {}]
  %s10 = inlined_call_operand.vmem [shape: f32[1,10], index: 10, kind: input, shape index: {}]
  %s11 = inlined_call_operand.vmem [shape: f32[8,10], index: 11, kind: output, shape index: {}]
  %s12 = sld [smem:[#allocation0]]
  $region54: #{net_forward.1} parent=0
    _
  %s14 = ssub.s32 1, %s12
  %s15 = scalar_select 0, %s14, %s12
  // Predicated region
  $region2: #{net_forward.1} parent=0 // pred_check
    _
  $region3: #{net_forward.1} parent=0 // pred_check_branch
    %17 = sbr.rel (0) target = $region5
  $region4: #{net_forward.1} parent=0 // pred_region
    _
  $region5: #{net_forward.1} parent=0 // pred_fallthru
    _
  // Predicated region
  $region6: #{net_forward.1} parent=0 // pred_check
    _
  $region7: #{net_forward.1} parent=0 // pred_check_branch
    %19 = sbr.rel (0) target = $region9
  $region8: #{net_forward.1} parent=0 // pred_region
    _
  $region9: #{net_forward.1} parent=0 // pred_fallthru
    _
  // Predicated region
  $region10: #{net_forward.1} parent=0 // pred_check
    _
  $region11: #{net_forward.1} parent=0 // pred_check_branch
    %21 = sbr.rel (0) target = $region13
  $region12: #{net_forward.1} parent=0 // pred_region
    _
  $region13: #{net_forward.1} parent=0 // pred_fallthru
    _
  // Predicated region
  $region14: #{net_forward.1} parent=0 // pred_check
    _
  $region15: #{net_forward.1} parent=0 // pred_check_branch
    %23 = sbr.rel (0) target = $region17
  $region16: #{net_forward.1} parent=0 // pred_region
    _
  $region17: #{net_forward.1} parent=0 // pred_fallthru
    _
  // Predicated region
  $region18: #{net_forward.1} parent=0 // pred_check
    _
  $region19: #{net_forward.1} parent=0 // pred_check_branch
    %25 = sbr.rel (0) target = $region21
  $region20: #{net_forward.1} parent=0 // pred_region
    _
  $region21: #{net_forward.1} parent=0 // pred_fallthru
    _
  // Predicated region
  $region22: #{net_forward.1} parent=0 // pred_check
    _
  $region23: #{net_forward.1} parent=0 // pred_check_branch
    %27 = sbr.rel (0) target = $region25
  $region24: #{net_forward.1} parent=0 // pred_region
    _
  $region25: #{net_forward.1} parent=0 // pred_fallthru
    _
  // Predicated region
  $region26: #{net_forward.1} parent=0 // pred_check
    _
  $region27: #{net_forward.1} parent=0 // pred_check_branch
    %29 = sbr.rel (0) target = $region29
  $region28: #{net_forward.1} parent=0 // pred_region
    _
  $region29: #{net_forward.1} parent=0 // pred_fallthru
    _
  // Predicated region
  $region30: #{net_forward.1} parent=0 // pred_check
    _
  $region31: #{net_forward.1} parent=0 // pred_check_branch
    %31 = sbr.rel (0) target = $region33
  $region32: #{net_forward.1} parent=0 // pred_region
    _
  $region33: #{net_forward.1} parent=0 // pred_fallthru
    _
  // Predicated region
  $region34: #{net_forward.1} parent=0 // pred_check
    _
  $region35: #{net_forward.1} parent=0 // pred_check_branch
    %33 = sbr.rel (0) target = $region37
  $region36: #{net_forward.1} parent=0 // pred_region
    _
  $region37: #{net_forward.1} parent=0 // pred_fallthru
    _
  // Predicated region
  $region38: #{net_forward.1} parent=0 // pred_check
    _
  $region39: #{net_forward.1} parent=0 // pred_check_branch
    %35 = sbr.rel (0) target = $region41
  $region40: #{net_forward.1} parent=0 // pred_region
    _
  $region41: #{net_forward.1} parent=0 // pred_fallthru
    _
  // Predicated region
  $region42: #{net_forward.1} parent=0 // pred_check
    _
  $region43: #{net_forward.1} parent=0 // pred_check_branch
    %37 = sbr.rel (0) target = $region45
  $region44: #{net_forward.1} parent=0 // pred_region
    _
  $region45: #{net_forward.1} parent=0 // pred_fallthru
    _
  %v38 = vld [vmem:[%s0] sm:$0xff]
  %v39 = vld [vmem:[%s0 + $0x8] sm:$0xff]
  %v40 = vld [vmem:[%s0 + $0x10] sm:$0xff]
  %v41 = vld [vmem:[%s0 + $0x18] sm:$0xff]
  %v42 = vld [vmem:[%s0 + $0x20] sm:$0xff]
  %v43 = vld [vmem:[%s0 + $0x28] sm:$0xff]
  %v44 = vld [vmem:[%s0 + $0x30] sm:$0xff]
  %v45 = vld [vmem:[%s0 + $0x38] sm:$0xff]
  %v46 = vld [vmem:[%s1] sm:$0xff]
  %v47 = vld [vmem:[%s1 + $0x8] sm:$0xff]
  %v48 = vld [vmem:[%s1 + $0x10] sm:$0xff]
  %v49 = vld [vmem:[%s1 + $0x18] sm:$0xff]
  %v50 = vld [vmem:[%s1 + $0x20] sm:$0xff]
  %v51 = vld [vmem:[%s1 + $0x28] sm:$0xff]
  %v52 = vld [vmem:[%s1 + $0x30] sm:$0xf]
  %v53 = vld [vmem:[%s1 + $0x38] sm:$0xf]
  %v54 = vld [vmem:[%s0 + $0x40] sm:$0xff]
  %s55 = scalar_lea.vmem %s1, 64
  %v56 = vld [vmem:[%s55] sm:$0xff]
  %v57 = vld [vmem:[%s55 + $0x8] sm:$0xff]
  %v58 = vld [vmem:[%s55 + $0x10] sm:$0xff]
  %v59 = vld [vmem:[%s55 + $0x18] sm:$0xff]
  %v60 = vld [vmem:[%s55 + $0x20] sm:$0xff]
  %v61 = vld [vmem:[%s55 + $0x28] sm:$0xff]
  %v62 = vld [vmem:[%s55 + $0x30] sm:$0xf]
  %v63 = vld [vmem:[%s55 + $0x38] sm:$0xf]
  %vm64 = vcmask 228352
  %v66 = vsel %vm64, %v39, 0
  %v69 = vsel %vm64, %v40, 0
  %v72 = vsel %vm64, %v41, 0
  %v75 = vsel %vm64, %v42, 0
  %v78 = vsel %vm64, %v43, 0
  %v81 = vsel %vm64, %v44, 0
  %v84 = vsel %vm64, %v45, 0
  %v87 = vsel %vm64, %v54, 0
  %vm89 = vcmask 1043456
  %v91 = vsel %vm89, %v62, 0
  %v94 = vsel %vm89, %v63, 0
  %96 = vmatprep.subr.mxu0 0.0
  %97 = vmatpush1.msra.mxu0 0.0
  %98 = vmatprep.subr.mxu0 0.0
  %99 = vmatpush1.msra.mxu0 0.0
  %100 = vmatprep.subr.mxu0 0.0
  %101 = vmatpush1.msra.mxu0 0.0
  %102 = vmatprep.subr.mxu0 0.0
  %103 = vmatpush1.msra.mxu0 0.0
  %104 = vmatprep.subr.mxu0 0.0
  %105 = vmatpush1.msra.mxu0 0.0
  %106 = vmatprep.subr.mxu0 0.0
  %107 = vmatpush1.msra.mxu0 0.0
  %108 = vmatprep.subr.mxu0 0.0
  %109 = vmatpush1.msra.mxu0 0.0
  %110 = vmatprep.subr.mxu0 0.0
  %111 = vmatpush1.msra.mxu0 0.0
  %112 = vmatprep.subr.mxu0 0.0
  %113 = vmatpush1.msra.mxu0 0.0
  %114 = vmatprep.subr.mxu0 0.0
  %115 = vmatpush1.msra.mxu0 0.0
  %116 = vmatprep.subr.mxu0 0.0
  %117 = vmatpush1.msra.mxu0 0.0
  %118 = vmatprep.subr.mxu0 0.0
  %119 = vmatpush1.msra.mxu0 0.0
  %120 = vmatprep.subr.mxu0 %v94
  %121 = vmatpush1.msra.mxu0 %v91
  %122 = vmatprep.subr.mxu0 %v61
  %123 = vmatpush1.msra.mxu0 %v60
  %124 = vmatprep.subr.mxu0 %v59
  %125 = vmatpush1.msra.mxu0 %v58
  %126 = vmatprep.subr.mxu0 %v57
  %127 = vmatpush1.msra.mxu0 %v56
  %128 = vmatprep.subr.mxu0 0.0
  %129 = vmatpush2.msra.mxu0 0.0
  %130 = vmatprep.subr.mxu0 0.0
  %131 = vmatpush2.msra.mxu0 0.0
  %132 = vmatprep.subr.mxu0 0.0
  %133 = vmatpush2.msra.mxu0 0.0
  %134 = vmatprep.subr.mxu0 0.0
  %135 = vmatpush2.msra.mxu0 0.0
  %136 = vmatprep.subr.mxu0 0.0
  %137 = vmatpush2.msra.mxu0 0.0
  %138 = vmatprep.subr.mxu0 0.0
  %139 = vmatpush2.msra.mxu0 0.0
  %140 = vmatprep.subr.mxu0 0.0
  %141 = vmatpush2.msra.mxu0 0.0
  %142 = vmatprep.subr.mxu0 0.0
  %143 = vmatpush2.msra.mxu0 0.0
  %144 = vmatprep.subr.mxu0 0.0
  %145 = vmatpush2.msra.mxu0 0.0
  %146 = vmatprep.subr.mxu0 0.0
  %147 = vmatpush2.msra.mxu0 0.0
  %148 = vmatprep.subr.mxu0 0.0
  %149 = vmatpush2.msra.mxu0 0.0
  %150 = vmatprep.subr.mxu0 0.0
  %151 = vmatpush2.msra.mxu0 0.0
  %152 = vmatprep.subr.mxu0 0.0
  %153 = vmatpush2.msra.mxu0 0.0
  %154 = vmatprep.subr.mxu0 0.0
  %155 = vmatpush2.msra.mxu0 0.0
  %156 = vmatprep.subr.mxu0 0.0
  %157 = vmatpush2.msra.mxu0 0.0
  %158 = vmatprep.subr.mxu0 0.0
  %159 = vmatpush2.msra.mxu0 0.0
  %160 = vmatprep.mubr.f32.mxu0 0.0
  %161 = vmatmul.mubr.f32.gmra.mxu0 %v66
  %v162 = vpop.f32.mrf.mxu0
  %v163 = vadd.f32 0.0, %v162
  %v164 = vpop.f32.mrf.mxu0
  %v165 = vadd.f32 0.0, %v164
  %166 = vmatprep.mubr.f32.mxu0 0.0
  %167 = vmatmul.mubr.f32.gmra.mxu0 %v69
  %v168 = vpop.f32.mrf.mxu0
  %v169 = vadd.f32 0.0, %v168
  %v170 = vpop.f32.mrf.mxu0
  %v171 = vadd.f32 0.0, %v170
  %172 = vmatprep.mubr.f32.mxu0 0.0
  %173 = vmatmul.mubr.f32.gmra.mxu0 %v72
  %v174 = vpop.f32.mrf.mxu0
  %v175 = vadd.f32 0.0, %v174
  %v176 = vpop.f32.mrf.mxu0
  %v177 = vadd.f32 0.0, %v176
  %178 = vmatprep.mubr.f32.mxu0 0.0
  %179 = vmatmul.mubr.f32.gmra.mxu0 %v75
  %v180 = vpop.f32.mrf.mxu0
  %v181 = vadd.f32 0.0, %v180
  %v182 = vpop.f32.mrf.mxu0
  %v183 = vadd.f32 0.0, %v182
  %184 = vmatprep.mubr.f32.mxu0 0.0
  %185 = vmatmul.mubr.f32.gmra.mxu0 %v78
  %v186 = vpop.f32.mrf.mxu0
  %v187 = vadd.f32 0.0, %v186
  %v188 = vpop.f32.mrf.mxu0
  %v189 = vadd.f32 0.0, %v188
  %190 = vmatprep.mubr.f32.mxu0 0.0
  %191 = vmatmul.mubr.f32.gmra.mxu0 %v81
  %v192 = vpop.f32.mrf.mxu0
  %v193 = vadd.f32 0.0, %v192
  %v194 = vpop.f32.mrf.mxu0
  %v195 = vadd.f32 0.0, %v194
  %196 = vmatprep.mubr.f32.mxu0 0.0
  %197 = vmatmul.mubr.f32.gmra.mxu0 %v84
  %v198 = vpop.f32.mrf.mxu0
  %v199 = vadd.f32 0.0, %v198
  %v200 = vpop.f32.mrf.mxu0
  %v201 = vadd.f32 0.0, %v200
  %202 = vmatprep.mubr.f32.mxu0 0.0
  %203 = vmatmul.mubr.f32.gmra.mxu0 %v87
  %v204 = vpop.f32.mrf.mxu0
  %v205 = vadd.f32 0.0, %v204
  %v206 = vpop.f32.mrf.mxu0
  %v207 = vadd.f32 0.0, %v206
  %208 = vdwg.mxu0
  %v210 = vsel %vm64, %v38, 0
  %v213 = vsel %vm89, %v52, 0
  %v216 = vsel %vm89, %v53, 0
  %218 = vmatprep.subr.mxu0 0.0
  %219 = vmatpush1.msra.mxu0 0.0
  %220 = vmatprep.subr.mxu0 0.0
  %221 = vmatpush1.msra.mxu0 0.0
  %222 = vmatprep.subr.mxu0 0.0
  %223 = vmatpush1.msra.mxu0 0.0
  %224 = vmatprep.subr.mxu0 0.0
  %225 = vmatpush1.msra.mxu0 0.0
  %226 = vmatprep.subr.mxu0 0.0
  %227 = vmatpush1.msra.mxu0 0.0
  %228 = vmatprep.subr.mxu0 0.0
  %229 = vmatpush1.msra.mxu0 0.0
  %230 = vmatprep.subr.mxu0 0.0
  %231 = vmatpush1.msra.mxu0 0.0
  %232 = vmatprep.subr.mxu0 0.0
  %233 = vmatpush1.msra.mxu0 0.0
  %234 = vmatprep.subr.mxu0 0.0
  %235 = vmatpush1.msra.mxu0 0.0
  %236 = vmatprep.subr.mxu0 0.0
  %237 = vmatpush1.msra.mxu0 0.0
  %238 = vmatprep.subr.mxu0 0.0
  %239 = vmatpush1.msra.mxu0 0.0
  %240 = vmatprep.subr.mxu0 0.0
  %241 = vmatpush1.msra.mxu0 0.0
  %242 = vmatprep.subr.mxu0 %v216
  %243 = vmatpush1.msra.mxu0 %v213
  %244 = vmatprep.subr.mxu0 %v51
  %245 = vmatpush1.msra.mxu0 %v50
  %246 = vmatprep.subr.mxu0 %v49
  %247 = vmatpush1.msra.mxu0 %v48
  %248 = vmatprep.subr.mxu0 %v47
  %249 = vmatpush1.msra.mxu0 %v46
  %250 = vmatprep.subr.mxu0 0.0
  %251 = vmatpush2.msra.mxu0 0.0
  %252 = vmatprep.subr.mxu0 0.0
  %253 = vmatpush2.msra.mxu0 0.0
  %254 = vmatprep.subr.mxu0 0.0
  %255 = vmatpush2.msra.mxu0 0.0
  %256 = vmatprep.subr.mxu0 0.0
  %257 = vmatpush2.msra.mxu0 0.0
  %258 = vmatprep.subr.mxu0 0.0
  %259 = vmatpush2.msra.mxu0 0.0
  %260 = vmatprep.subr.mxu0 0.0
  %261 = vmatpush2.msra.mxu0 0.0
  %262 = vmatprep.subr.mxu0 0.0
  %263 = vmatpush2.msra.mxu0 0.0
  %264 = vmatprep.subr.mxu0 0.0
  %265 = vmatpush2.msra.mxu0 0.0
  %266 = vmatprep.subr.mxu0 0.0
  %267 = vmatpush2.msra.mxu0 0.0
  %268 = vmatprep.subr.mxu0 0.0
  %269 = vmatpush2.msra.mxu0 0.0
  %270 = vmatprep.subr.mxu0 0.0
  %271 = vmatpush2.msra.mxu0 0.0
  %272 = vmatprep.subr.mxu0 0.0
  %273 = vmatpush2.msra.mxu0 0.0
  %274 = vmatprep.subr.mxu0 0.0
  %275 = vmatpush2.msra.mxu0 0.0
  %276 = vmatprep.subr.mxu0 0.0
  %277 = vmatpush2.msra.mxu0 0.0
  %278 = vmatprep.subr.mxu0 0.0
  %279 = vmatpush2.msra.mxu0 0.0
  %280 = vmatprep.subr.mxu0 0.0
  %281 = vmatpush2.msra.mxu0 0.0
  %282 = vmatprep.mubr.f32.mxu0 0.0
  %283 = vmatmul.mubr.f32.gmra.mxu0 %v210
  %v284 = vpop.f32.mrf.mxu0
  %v285 = vadd.f32 %v163, %v284
  %v286 = vpop.f32.mrf.mxu0
  %v287 = vadd.f32 %v165, %v286
  %288 = vmatprep.mubr.f32.mxu0 0.0
  %289 = vmatmul.mubr.f32.gmra.mxu0 %v66
  %v290 = vpop.f32.mrf.mxu0
  %v291 = vadd.f32 %v169, %v290
  %v292 = vpop.f32.mrf.mxu0
  %v293 = vadd.f32 %v171, %v292
  %294 = vmatprep.mubr.f32.mxu0 0.0
  %295 = vmatmul.mubr.f32.gmra.mxu0 %v69
  %v296 = vpop.f32.mrf.mxu0
  %v297 = vadd.f32 %v175, %v296
  %v298 = vpop.f32.mrf.mxu0
  %v299 = vadd.f32 %v177, %v298
  %300 = vmatprep.mubr.f32.mxu0 0.0
  %301 = vmatmul.mubr.f32.gmra.mxu0 %v72
  %v302 = vpop.f32.mrf.mxu0
  %v303 = vadd.f32 %v181, %v302
  %v304 = vpop.f32.mrf.mxu0
  %v305 = vadd.f32 %v183, %v304
  %306 = vmatprep.mubr.f32.mxu0 0.0
  %307 = vmatmul.mubr.f32.gmra.mxu0 %v75
  %v308 = vpop.f32.mrf.mxu0
  %v309 = vadd.f32 %v187, %v308
  %v310 = vpop.f32.mrf.mxu0
  %v311 = vadd.f32 %v189, %v310
  %312 = vmatprep.mubr.f32.mxu0 0.0
  %313 = vmatmul.mubr.f32.gmra.mxu0 %v78
  %v314 = vpop.f32.mrf.mxu0
  %v315 = vadd.f32 %v193, %v314
  %v316 = vpop.f32.mrf.mxu0
  %v317 = vadd.f32 %v195, %v316
  %318 = vmatprep.mubr.f32.mxu0 0.0
  %319 = vmatmul.mubr.f32.gmra.mxu0 %v81
  %v320 = vpop.f32.mrf.mxu0
  %v321 = vadd.f32 %v199, %v320
  %v322 = vpop.f32.mrf.mxu0
  %v323 = vadd.f32 %v201, %v322
  %324 = vmatprep.mubr.f32.mxu0 0.0
  %325 = vmatmul.mubr.f32.gmra.mxu0 %v84
  %v326 = vpop.f32.mrf.mxu0
  %v327 = vadd.f32 %v205, %v326
  %v328 = vpop.f32.mrf.mxu0
  %v329 = vadd.f32 %v207, %v328
  %330 = vdwg.mxu0
  %v331 = vld [vmem:[%s0 + $0x10] sm:$0xff]
  %v332 = vld [vmem:[%s0 + $0x18] sm:$0xff]
  %v333 = vld [vmem:[%s0 + $0x20] sm:$0xff]
  %v334 = vld [vmem:[%s0 + $0x28] sm:$0xff]
  %v335 = vld [vmem:[%s0 + $0x30] sm:$0xff]
  %v336 = vld [vmem:[%s0 + $0x38] sm:$0xff]
  %v337 = vld [vmem:[%s0 + $0x40] sm:$0xff]
  %v338 = vld [vmem:[%s0 + $0x48] sm:$0xff]
  %s339 = scalar_lea.vmem %s1, 128
  %v340 = vld [vmem:[%s339] sm:$0xff]
  %v341 = vld [vmem:[%s339 + $0x8] sm:$0xff]
  %v342 = vld [vmem:[%s339 + $0x10] sm:$0xff]
  %v343 = vld [vmem:[%s339 + $0x18] sm:$0xff]
  %v344 = vld [vmem:[%s339 + $0x20] sm:$0xff]
  %v345 = vld [vmem:[%s339 + $0x28] sm:$0xff]
  %v346 = vld [vmem:[%s339 + $0x30] sm:$0xf]
  %v347 = vld [vmem:[%s339 + $0x38] sm:$0xf]
  %v349 = vsel %vm64, %v331, 0
  %v352 = vsel %vm64, %v332, 0
  %v355 = vsel %vm64, %v333, 0
  %v358 = vsel %vm64, %v334, 0
  %v361 = vsel %vm64, %v335, 0
  %v364 = vsel %vm64, %v336, 0
  %v367 = vsel %vm64, %v337, 0
  %v370 = vsel %vm64, %v338, 0
  %v373 = vsel %vm89, %v346, 0
  %v376 = vsel %vm89, %v347, 0
  %378 = vmatprep.subr.mxu0 0.0
  %379 = vmatpush1.msra.mxu0 0.0
  %380 = vmatprep.subr.mxu0 0.0
  %381 = vmatpush1.msra.mxu0 0.0
  %382 = vmatprep.subr.mxu0 0.0
  %383 = vmatpush1.msra.mxu0 0.0
  %384 = vmatprep.subr.mxu0 0.0
  %385 = vmatpush1.msra.mxu0 0.0
  %386 = vmatprep.subr.mxu0 0.0
  %387 = vmatpush1.msra.mxu0 0.0
  %388 = vmatprep.subr.mxu0 0.0
  %389 = vmatpush1.msra.mxu0 0.0
  %390 = vmatprep.subr.mxu0 0.0
  %391 = vmatpush1.msra.mxu0 0.0
  %392 = vmatprep.subr.mxu0 0.0
  %393 = vmatpush1.msra.mxu0 0.0
  %394 = vmatprep.subr.mxu0 0.0
  %395 = vmatpush1.msra.mxu0 0.0
  %396 = vmatprep.subr.mxu0 0.0
  %397 = vmatpush1.msra.mxu0 0.0
  %398 = vmatprep.subr.mxu0 0.0
  %399 = vmatpush1.msra.mxu0 0.0
  %400 = vmatprep.subr.mxu0 0.0
  %401 = vmatpush1.msra.mxu0 0.0
  %402 = vmatprep.subr.mxu0 %v376
  %403 = vmatpush1.msra.mxu0 %v373
  %404 = vmatprep.subr.mxu0 %v345
  %405 = vmatpush1.msra.mxu0 %v344
  %406 = vmatprep.subr.mxu0 %v343
  %407 = vmatpush1.msra.mxu0 %v342
  %408 = vmatprep.subr.mxu0 %v341
  %409 = vmatpush1.msra.mxu0 %v340
  %410 = vmatprep.subr.mxu0 0.0
  %411 = vmatpush2.msra.mxu0 0.0
  %412 = vmatprep.subr.mxu0 0.0
  %413 = vmatpush2.msra.mxu0 0.0
  %414 = vmatprep.subr.mxu0 0.0
  %415 = vmatpush2.msra.mxu0 0.0
  %416 = vmatprep.subr.mxu0 0.0
  %417 = vmatpush2.msra.mxu0 0.0
  %418 = vmatprep.subr.mxu0 0.0
  %419 = vmatpush2.msra.mxu0 0.0
  %420 = vmatprep.subr.mxu0 0.0
  %421 = vmatpush2.msra.mxu0 0.0
  %422 = vmatprep.subr.mxu0 0.0
  %423 = vmatpush2.msra.mxu0 0.0
  %424 = vmatprep.subr.mxu0 0.0
  %425 = vmatpush2.msra.mxu0 0.0
  %426 = vmatprep.subr.mxu0 0.0
  %427 = vmatpush2.msra.mxu0 0.0
  %428 = vmatprep.subr.mxu0 0.0
  %429 = vmatpush2.msra.mxu0 0.0
  %430 = vmatprep.subr.mxu0 0.0
  %431 = vmatpush2.msra.mxu0 0.0
  %432 = vmatprep.subr.mxu0 0.0
  %433 = vmatpush2.msra.mxu0 0.0
  %434 = vmatprep.subr.mxu0 0.0
  %435 = vmatpush2.msra.mxu0 0.0
  %436 = vmatprep.subr.mxu0 0.0
  %437 = vmatpush2.msra.mxu0 0.0
  %438 = vmatprep.subr.mxu0 0.0
  %439 = vmatpush2.msra.mxu0 0.0
  %440 = vmatprep.subr.mxu0 0.0
  %441 = vmatpush2.msra.mxu0 0.0
  %442 = vmatprep.mubr.f32.mxu0 0.0
  %443 = vmatmul.mubr.f32.gmra.mxu0 %v349
  %v444 = vpop.f32.mrf.mxu0
  %v445 = vadd.f32 0.0, %v444
  %v446 = vpop.f32.mrf.mxu0
  %v447 = vadd.f32 0.0, %v446
  %448 = vmatprep.mubr.f32.mxu0 0.0
  %449 = vmatmul.mubr.f32.gmra.mxu0 %v352
  %v450 = vpop.f32.mrf.mxu0
  %v451 = vadd.f32 0.0, %v450
  %v452 = vpop.f32.mrf.mxu0
  %v453 = vadd.f32 0.0, %v452
  %454 = vmatprep.mubr.f32.mxu0 0.0
  %455 = vmatmul.mubr.f32.gmra.mxu0 %v355
  %v456 = vpop.f32.mrf.mxu0
  %v457 = vadd.f32 0.0, %v456
  %v458 = vpop.f32.mrf.mxu0
  %v459 = vadd.f32 0.0, %v458
  %460 = vmatprep.mubr.f32.mxu0 0.0
  %461 = vmatmul.mubr.f32.gmra.mxu0 %v358
  %v462 = vpop.f32.mrf.mxu0
  %v463 = vadd.f32 0.0, %v462
  %v464 = vpop.f32.mrf.mxu0
  %v465 = vadd.f32 0.0, %v464
  %466 = vmatprep.mubr.f32.mxu0 0.0
  %467 = vmatmul.mubr.f32.gmra.mxu0 %v361
  %v468 = vpop.f32.mrf.mxu0
  %v469 = vadd.f32 0.0, %v468
  %v470 = vpop.f32.mrf.mxu0
  %v471 = vadd.f32 0.0, %v470
  %472 = vmatprep.mubr.f32.mxu0 0.0
  %473 = vmatmul.mubr.f32.gmra.mxu0 %v364
  %v474 = vpop.f32.mrf.mxu0
  %v475 = vadd.f32 0.0, %v474
  %v476 = vpop.f32.mrf.mxu0
  %v477 = vadd.f32 0.0, %v476
  %478 = vmatprep.mubr.f32.mxu0 0.0
  %479 = vmatmul.mubr.f32.gmra.mxu0 %v367
  %v480 = vpop.f32.mrf.mxu0
  %v481 = vadd.f32 0.0, %v480
  %v482 = vpop.f32.mrf.mxu0
  %v483 = vadd.f32 0.0, %v482
  %484 = vmatprep.mubr.f32.mxu0 0.0
  %485 = vmatmul.mubr.f32.gmra.mxu0 %v370
  %v486 = vpop.f32.mrf.mxu0
  %v487 = vadd.f32 0.0, %v486
  %v488 = vpop.f32.mrf.mxu0
  %v489 = vadd.f32 0.0, %v488
  %490 = vdwg.mxu0
  %v491 = vadd.f32 %v285, %v445
  %v492 = vadd.f32 %v287, %v447
  %v493 = vadd.f32 %v291, %v451
  %v494 = vadd.f32 %v293, %v453
  %v495 = vadd.f32 %v297, %v457
  %v496 = vadd.f32 %v299, %v459
  %v497 = vadd.f32 %v303, %v463
  %v498 = vadd.f32 %v305, %v465
  %v499 = vadd.f32 %v309, %v469
  %v500 = vadd.f32 %v311, %v471
  %v501 = vadd.f32 %v315, %v475
  %v502 = vadd.f32 %v317, %v477
  %v503 = vadd.f32 %v321, %v481
  %v504 = vadd.f32 %v323, %v483
  %v505 = vadd.f32 %v327, %v487
  %v506 = vadd.f32 %v329, %v489
  %v507 = vld [vmem:[%s0 + $0x18] sm:$0xff]
  %v508 = vld [vmem:[%s0 + $0x20] sm:$0xff]
  %v509 = vld [vmem:[%s0 + $0x28] sm:$0xff]
  %v510 = vld [vmem:[%s0 + $0x30] sm:$0xff]
  %v511 = vld [vmem:[%s0 + $0x38] sm:$0xff]
  %v512 = vld [vmem:[%s0 + $0x40] sm:$0xff]
  %v513 = vld [vmem:[%s0 + $0x48] sm:$0xff]
  %v514 = vld [vmem:[%s0 + $0x50] sm:$0xff]
  %s515 = scalar_lea.vmem %s1, 192
  %v516 = vld [vmem:[%s515] sm:$0xff]
  %v517 = vld [vmem:[%s515 + $0x8] sm:$0xff]
  %v518 = vld [vmem:[%s515 + $0x10] sm:$0xff]
  %v519 = vld [vmem:[%s515 + $0x18] sm:$0xff]
  %v520 = vld [vmem:[%s515 + $0x20] sm:$0xff]
  %v521 = vld [vmem:[%s515 + $0x28] sm:$0xff]
  %v522 = vld [vmem:[%s515 + $0x30] sm:$0xf]
  %v523 = vld [vmem:[%s515 + $0x38] sm:$0xf]
  %v525 = vsel %vm64, %v507, 0
  %v528 = vsel %vm64, %v508, 0
  %v531 = vsel %vm64, %v509, 0
  %v534 = vsel %vm64, %v510, 0
  %v537 = vsel %vm64, %v511, 0
  %v540 = vsel %vm64, %v512, 0
  %v543 = vsel %vm64, %v513, 0
  %v546 = vsel %vm64, %v514, 0
  %v549 = vsel %vm89, %v522, 0
  %v552 = vsel %vm89, %v523, 0
  %554 = vmatprep.subr.mxu0 0.0
  %555 = vmatpush1.msra.mxu0 0.0
  %556 = vmatprep.subr.mxu0 0.0
  %557 = vmatpush1.msra.mxu0 0.0
  %558 = vmatprep.subr.mxu0 0.0
  %559 = vmatpush1.msra.mxu0 0.0
  %560 = vmatprep.subr.mxu0 0.0
  %561 = vmatpush1.msra.mxu0 0.0
  %562 = vmatprep.subr.mxu0 0.0
  %563 = vmatpush1.msra.mxu0 0.0
  %564 = vmatprep.subr.mxu0 0.0
  %565 = vmatpush1.msra.mxu0 0.0
  %566 = vmatprep.subr.mxu0 0.0
  %567 = vmatpush1.msra.mxu0 0.0
  %568 = vmatprep.subr.mxu0 0.0
  %569 = vmatpush1.msra.mxu0 0.0
  %570 = vmatprep.subr.mxu0 0.0
  %571 = vmatpush1.msra.mxu0 0.0
  %572 = vmatprep.subr.mxu0 0.0
  %573 = vmatpush1.msra.mxu0 0.0
  %574 = vmatprep.subr.mxu0 0.0
  %575 = vmatpush1.msra.mxu0 0.0
  %576 = vmatprep.subr.mxu0 0.0
  %577 = vmatpush1.msra.mxu0 0.0
  %578 = vmatprep.subr.mxu0 %v552
  %579 = vmatpush1.msra.mxu0 %v549
  %580 = vmatprep.subr.mxu0 %v521
  %581 = vmatpush1.msra.mxu0 %v520
  %582 = vmatprep.subr.mxu0 %v519
  %583 = vmatpush1.msra.mxu0 %v518
  %584 = vmatprep.subr.mxu0 %v517
  %585 = vmatpush1.msra.mxu0 %v516
  %586 = vmatprep.subr.mxu0 0.0
  %587 = vmatpush2.msra.mxu0 0.0
  %588 = vmatprep.subr.mxu0 0.0
  %589 = vmatpush2.msra.mxu0 0.0
  %590 = vmatprep.subr.mxu0 0.0
  %591 = vmatpush2.msra.mxu0 0.0
  %592 = vmatprep.subr.mxu0 0.0
  %593 = vmatpush2.msra.mxu0 0.0
  %594 = vmatprep.subr.mxu0 0.0
  %595 = vmatpush2.msra.mxu0 0.0
  %596 = vmatprep.subr.mxu0 0.0
  %597 = vmatpush2.msra.mxu0 0.0
  %598 = vmatprep.subr.mxu0 0.0
  %599 = vmatpush2.msra.mxu0 0.0
  %600 = vmatprep.subr.mxu0 0.0
  %601 = vmatpush2.msra.mxu0 0.0
  %602 = vmatprep.subr.mxu0 0.0
  %603 = vmatpush2.msra.mxu0 0.0
  %604 = vmatprep.subr.mxu0 0.0
  %605 = vmatpush2.msra.mxu0 0.0
  %606 = vmatprep.subr.mxu0 0.0
  %607 = vmatpush2.msra.mxu0 0.0
  %608 = vmatprep.subr.mxu0 0.0
  %609 = vmatpush2.msra.mxu0 0.0
  %610 = vmatprep.subr.mxu0 0.0
  %611 = vmatpush2.msra.mxu0 0.0
  %612 = vmatprep.subr.mxu0 0.0
  %613 = vmatpush2.msra.mxu0 0.0
  %614 = vmatprep.subr.mxu0 0.0
  %615 = vmatpush2.msra.mxu0 0.0
  %616 = vmatprep.subr.mxu0 0.0
  %617 = vmatpush2.msra.mxu0 0.0
  %618 = vmatprep.mubr.f32.mxu0 0.0
  %619 = vmatmul.mubr.f32.gmra.mxu0 %v525
  %v620 = vpop.f32.mrf.mxu0
  %v621 = vadd.f32 0.0, %v620
  %v622 = vpop.f32.mrf.mxu0
  %v623 = vadd.f32 0.0, %v622
  %624 = vmatprep.mubr.f32.mxu0 0.0
  %625 = vmatmul.mubr.f32.gmra.mxu0 %v528
  %v626 = vpop.f32.mrf.mxu0
  %v627 = vadd.f32 0.0, %v626
  %v628 = vpop.f32.mrf.mxu0
  %v629 = vadd.f32 0.0, %v628
  %630 = vmatprep.mubr.f32.mxu0 0.0
  %631 = vmatmul.mubr.f32.gmra.mxu0 %v531
  %v632 = vpop.f32.mrf.mxu0
  %v633 = vadd.f32 0.0, %v632
  %v634 = vpop.f32.mrf.mxu0
  %v635 = vadd.f32 0.0, %v634
  %636 = vmatprep.mubr.f32.mxu0 0.0
  %637 = vmatmul.mubr.f32.gmra.mxu0 %v534
  %v638 = vpop.f32.mrf.mxu0
  %v639 = vadd.f32 0.0, %v638
  %v640 = vpop.f32.mrf.mxu0
  %v641 = vadd.f32 0.0, %v640
  %642 = vmatprep.mubr.f32.mxu0 0.0
  %643 = vmatmul.mubr.f32.gmra.mxu0 %v537
  %v644 = vpop.f32.mrf.mxu0
  %v645 = vadd.f32 0.0, %v644
  %v646 = vpop.f32.mrf.mxu0
  %v647 = vadd.f32 0.0, %v646
  %648 = vmatprep.mubr.f32.mxu0 0.0
  %649 = vmatmul.mubr.f32.gmra.mxu0 %v540
  %v650 = vpop.f32.mrf.mxu0
  %v651 = vadd.f32 0.0, %v650
  %v652 = vpop.f32.mrf.mxu0
  %v653 = vadd.f32 0.0, %v652
  %654 = vmatprep.mubr.f32.mxu0 0.0
  %655 = vmatmul.mubr.f32.gmra.mxu0 %v543
  %v656 = vpop.f32.mrf.mxu0
  %v657 = vadd.f32 0.0, %v656
  %v658 = vpop.f32.mrf.mxu0
  %v659 = vadd.f32 0.0, %v658
  %660 = vmatprep.mubr.f32.mxu0 0.0
  %661 = vmatmul.mubr.f32.gmra.mxu0 %v546
  %v662 = vpop.f32.mrf.mxu0
  %v663 = vadd.f32 0.0, %v662
  %v664 = vpop.f32.mrf.mxu0
  %v665 = vadd.f32 0.0, %v664
  %666 = vdwg.mxu0
  %v667 = vadd.f32 %v491, %v621
  %v668 = vadd.f32 %v492, %v623
  %v669 = vadd.f32 %v493, %v627
  %v670 = vadd.f32 %v494, %v629
  %v671 = vadd.f32 %v495, %v633
  %v672 = vadd.f32 %v496, %v635
  %v673 = vadd.f32 %v497, %v639
  %v674 = vadd.f32 %v498, %v641
  %v675 = vadd.f32 %v499, %v645
  %v676 = vadd.f32 %v500, %v647
  %v677 = vadd.f32 %v501, %v651
  %v678 = vadd.f32 %v502, %v653
  %v679 = vadd.f32 %v503, %v657
  %v680 = vadd.f32 %v504, %v659
  %v681 = vadd.f32 %v505, %v663
  %v682 = vadd.f32 %v506, %v665
  %v683 = vld [vmem:[%s0 + $0x20] sm:$0xff]
  %v684 = vld [vmem:[%s0 + $0x28] sm:$0xff]
  %v685 = vld [vmem:[%s0 + $0x30] sm:$0xff]
  %v686 = vld [vmem:[%s0 + $0x38] sm:$0xff]
  %v687 = vld [vmem:[%s0 + $0x40] sm:$0xff]
  %v688 = vld [vmem:[%s0 + $0x48] sm:$0xff]
  %v689 = vld [vmem:[%s0 + $0x50] sm:$0xff]
  %v690 = vld [vmem:[%s0 + $0x58] sm:$0xff]
  %s691 = scalar_lea.vmem %s1, 256
  %v692 = vld [vmem:[%s691] sm:$0xff]
  %v693 = vld [vmem:[%s691 + $0x8] sm:$0xff]
  %v694 = vld [vmem:[%s691 + $0x10] sm:$0xff]
  %v695 = vld [vmem:[%s691 + $0x18] sm:$0xff]
  %v696 = vld [vmem:[%s691 + $0x20] sm:$0xff]
  %v697 = vld [vmem:[%s691 + $0x28] sm:$0xff]
  %v698 = vld [vmem:[%s691 + $0x30] sm:$0xf]
  %v699 = vld [vmem:[%s691 + $0x38] sm:$0xf]
  %v701 = vsel %vm64, %v683, 0
  %v704 = vsel %vm64, %v684, 0
  %v707 = vsel %vm64, %v685, 0
  %v710 = vsel %vm64, %v686, 0
  %v713 = vsel %vm64, %v687, 0
  %v716 = vsel %vm64, %v688, 0
  %v719 = vsel %vm64, %v689, 0
  %v722 = vsel %vm64, %v690, 0
  %v725 = vsel %vm89, %v698, 0
  %v728 = vsel %vm89, %v699, 0
  %730 = vmatprep.subr.mxu0 0.0
  %731 = vmatpush1.msra.mxu0 0.0
  %732 = vmatprep.subr.mxu0 0.0
  %733 = vmatpush1.msra.mxu0 0.0
  %734 = vmatprep.subr.mxu0 0.0
  %735 = vmatpush1.msra.mxu0 0.0
  %736 = vmatprep.subr.mxu0 0.0
  %737 = vmatpush1.msra.mxu0 0.0
  %738 = vmatprep.subr.mxu0 0.0
  %739 = vmatpush1.msra.mxu0 0.0
  %740 = vmatprep.subr.mxu0 0.0
  %741 = vmatpush1.msra.mxu0 0.0
  %742 = vmatprep.subr.mxu0 0.0
  %743 = vmatpush1.msra.mxu0 0.0
  %744 = vmatprep.subr.mxu0 0.0
  %745 = vmatpush1.msra.mxu0 0.0
  %746 = vmatprep.subr.mxu0 0.0
  %747 = vmatpush1.msra.mxu0 0.0
  %748 = vmatprep.subr.mxu0 0.0
  %749 = vmatpush1.msra.mxu0 0.0
  %750 = vmatprep.subr.mxu0 0.0
  %751 = vmatpush1.msra.mxu0 0.0
  %752 = vmatprep.subr.mxu0 0.0
  %753 = vmatpush1.msra.mxu0 0.0
  %754 = vmatprep.subr.mxu0 %v728
  %755 = vmatpush1.msra.mxu0 %v725
  %756 = vmatprep.subr.mxu0 %v697
  %757 = vmatpush1.msra.mxu0 %v696
  %758 = vmatprep.subr.mxu0 %v695
  %759 = vmatpush1.msra.mxu0 %v694
  %760 = vmatprep.subr.mxu0 %v693
  %761 = vmatpush1.msra.mxu0 %v692
  %762 = vmatprep.subr.mxu0 0.0
  %763 = vmatpush2.msra.mxu0 0.0
  %764 = vmatprep.subr.mxu0 0.0
  %765 = vmatpush2.msra.mxu0 0.0
  %766 = vmatprep.subr.mxu0 0.0
  %767 = vmatpush2.msra.mxu0 0.0
  %768 = vmatprep.subr.mxu0 0.0
  %769 = vmatpush2.msra.mxu0 0.0
  %770 = vmatprep.subr.mxu0 0.0
  %771 = vmatpush2.msra.mxu0 0.0
  %772 = vmatprep.subr.mxu0 0.0
  %773 = vmatpush2.msra.mxu0 0.0
  %774 = vmatprep.subr.mxu0 0.0
  %775 = vmatpush2.msra.mxu0 0.0
  %776 = vmatprep.subr.mxu0 0.0
  %777 = vmatpush2.msra.mxu0 0.0
  %778 = vmatprep.subr.mxu0 0.0
  %779 = vmatpush2.msra.mxu0 0.0
  %780 = vmatprep.subr.mxu0 0.0
  %781 = vmatpush2.msra.mxu0 0.0
  %782 = vmatprep.subr.mxu0 0.0
  %783 = vmatpush2.msra.mxu0 0.0
  %784 = vmatprep.subr.mxu0 0.0
  %785 = vmatpush2.msra.mxu0 0.0
  %786 = vmatprep.subr.mxu0 0.0
  %787 = vmatpush2.msra.mxu0 0.0
  %788 = vmatprep.subr.mxu0 0.0
  %789 = vmatpush2.msra.mxu0 0.0
  %790 = vmatprep.subr.mxu0 0.0
  %791 = vmatpush2.msra.mxu0 0.0
  %792 = vmatprep.subr.mxu0 0.0
  %793 = vmatpush2.msra.mxu0 0.0
  %794 = vmatprep.mubr.f32.mxu0 0.0
  %795 = vmatmul.mubr.f32.gmra.mxu0 %v701
  %v796 = vpop.f32.mrf.mxu0
  %v797 = vadd.f32 0.0, %v796
  %v798 = vpop.f32.mrf.mxu0
  %v799 = vadd.f32 0.0, %v798
  %800 = vmatprep.mubr.f32.mxu0 0.0
  %801 = vmatmul.mubr.f32.gmra.mxu0 %v704
  %v802 = vpop.f32.mrf.mxu0
  %v803 = vadd.f32 0.0, %v802
  %v804 = vpop.f32.mrf.mxu0
  %v805 = vadd.f32 0.0, %v804
  %806 = vmatprep.mubr.f32.mxu0 0.0
  %807 = vmatmul.mubr.f32.gmra.mxu0 %v707
  %v808 = vpop.f32.mrf.mxu0
  %v809 = vadd.f32 0.0, %v808
  %v810 = vpop.f32.mrf.mxu0
  %v811 = vadd.f32 0.0, %v810
  %812 = vmatprep.mubr.f32.mxu0 0.0
  %813 = vmatmul.mubr.f32.gmra.mxu0 %v710
  %v814 = vpop.f32.mrf.mxu0
  %v815 = vadd.f32 0.0, %v814
  %v816 = vpop.f32.mrf.mxu0
  %v817 = vadd.f32 0.0, %v816
  %818 = vmatprep.mubr.f32.mxu0 0.0
  %819 = vmatmul.mubr.f32.gmra.mxu0 %v713
  %v820 = vpop.f32.mrf.mxu0
  %v821 = vadd.f32 0.0, %v820
  %v822 = vpop.f32.mrf.mxu0
  %v823 = vadd.f32 0.0, %v822
  %824 = vmatprep.mubr.f32.mxu0 0.0
  %825 = vmatmul.mubr.f32.gmra.mxu0 %v716
  %v826 = vpop.f32.mrf.mxu0
  %v827 = vadd.f32 0.0, %v826
  %v828 = vpop.f32.mrf.mxu0
  %v829 = vadd.f32 0.0, %v828
  %830 = vmatprep.mubr.f32.mxu0 0.0
  %831 = vmatmul.mubr.f32.gmra.mxu0 %v719
  %v832 = vpop.f32.mrf.mxu0
  %v833 = vadd.f32 0.0, %v832
  %v834 = vpop.f32.mrf.mxu0
  %v835 = vadd.f32 0.0, %v834
  %836 = vmatprep.mubr.f32.mxu0 0.0
  %837 = vmatmul.mubr.f32.gmra.mxu0 %v722
  %v838 = vpop.f32.mrf.mxu0
  %v839 = vadd.f32 0.0, %v838
  %v840 = vpop.f32.mrf.mxu0
  %v841 = vadd.f32 0.0, %v840
  %842 = vdwg.mxu0
  %v843 = vadd.f32 %v667, %v797
  %v844 = vadd.f32 %v668, %v799
  %v845 = vadd.f32 %v669, %v803
  %v846 = vadd.f32 %v670, %v805
  %v847 = vadd.f32 %v671, %v809
  %v848 = vadd.f32 %v672, %v811
  %v849 = vadd.f32 %v673, %v815
  %v850 = vadd.f32 %v674, %v817
  %v851 = vadd.f32 %v675, %v821
  %v852 = vadd.f32 %v676, %v823
  %v853 = vadd.f32 %v677, %v827
  %v854 = vadd.f32 %v678, %v829
  %v855 = vadd.f32 %v679, %v833
  %v856 = vadd.f32 %v680, %v835
  %v857 = vadd.f32 %v681, %v839
  %v858 = vadd.f32 %v682, %v841
  %v859 = vld [vmem:[%s2] sm:$0x3]
  %v861 = vlaneseq
  %v862 = vshrl.u32 %v861, 7
  %v863 = vsub.s32 0, %v862
  %v864 = vrot.slane %v859, %v863
  %v865 = vlaneseq
  %v866 = vshrl.u32 %v865, 7
  %v867 = vsub.s32 1, %v866
  %v868 = vrot.slane %v859, %v867
  %v871 = vadd.f32 %v843, %v864
  %v872 = vadd.f32 %v844, %v868
  %v873 = vadd.f32 %v845, %v864
  %v874 = vadd.f32 %v846, %v868
  %v875 = vadd.f32 %v847, %v864
  %v876 = vadd.f32 %v848, %v868
  %v877 = vadd.f32 %v849, %v864
  %v878 = vadd.f32 %v850, %v868
  %v879 = vadd.f32 %v851, %v864
  %v880 = vadd.f32 %v852, %v868
  %v881 = vadd.f32 %v853, %v864
  %v882 = vadd.f32 %v854, %v868
  %v883 = vadd.f32 %v855, %v864
  %v884 = vadd.f32 %v856, %v868
  %v885 = vadd.f32 %v857, %v864
  %v886 = vadd.f32 %v858, %v868
  %887 = vst [vmem:[#allocation2] sm:$0xff] %v871
  %vm888 = vcmask 916480
  %889 = vst.msk [vmem:[#allocation2 + $0x8] sm:$0xff] %vm888, %v872
  %890 = vst [vmem:[#allocation2 + $0x10] sm:$0xff] %v873
  %891 = vst.msk [vmem:[#allocation2 + $0x18] sm:$0xff] %vm888, %v874
  %892 = vst [vmem:[#allocation2 + $0x20] sm:$0xff] %v875
  %893 = vst.msk [vmem:[#allocation2 + $0x28] sm:$0xff] %vm888, %v876
  %894 = vst [vmem:[#allocation2 + $0x30] sm:$0xff] %v877
  %895 = vst.msk [vmem:[#allocation2 + $0x38] sm:$0xff] %vm888, %v878
  %896 = vst [vmem:[#allocation2 + $0x40] sm:$0xff] %v879
  %897 = vst.msk [vmem:[#allocation2 + $0x48] sm:$0xff] %vm888, %v880
  %898 = vst [vmem:[#allocation2 + $0x50] sm:$0xff] %v881
  %899 = vst.msk [vmem:[#allocation2 + $0x58] sm:$0xff] %vm888, %v882
  %900 = vst [vmem:[#allocation2 + $0x60] sm:$0xff] %v883
  %901 = vst.msk [vmem:[#allocation2 + $0x68] sm:$0xff] %vm888, %v884
  %902 = vst [vmem:[#allocation2 + $0x70] sm:$0xff] %v885
  %903 = vst.msk [vmem:[#allocation2 + $0x78] sm:$0xff] %vm888, %v886
  %v904 = vld [vmem:[%s0 + $0x40] sm:$0xff]
  %v905 = vld [vmem:[%s0 + $0x48] sm:$0xff]
  %v906 = vld [vmem:[%s0 + $0x50] sm:$0xff]
  %v907 = vld [vmem:[%s0 + $0x58] sm:$0xff]
  %v908 = vld [vmem:[%s0 + $0x60] sm:$0xff]
  %v909 = vld [vmem:[%s0 + $0x68] sm:$0xff]
  %v910 = vld [vmem:[%s0 + $0x70] sm:$0xff]
  %v911 = vld [vmem:[%s0 + $0x78] sm:$0xff]
  %v912 = vld [vmem:[%s1] sm:$0xff]
  %v913 = vld [vmem:[%s1 + $0x8] sm:$0xff]
  %v914 = vld [vmem:[%s1 + $0x10] sm:$0xff]
  %v915 = vld [vmem:[%s1 + $0x18] sm:$0xff]
  %v916 = vld [vmem:[%s1 + $0x20] sm:$0xff]
  %v917 = vld [vmem:[%s1 + $0x28] sm:$0xff]
  %v918 = vld [vmem:[%s1 + $0x30] sm:$0xf]
  %v919 = vld [vmem:[%s1 + $0x38] sm:$0xf]
  %v920 = vld [vmem:[%s0 + $0x80] sm:$0xff]
  %v921 = vld [vmem:[%s55] sm:$0xff]
  %v922 = vld [vmem:[%s55 + $0x8] sm:$0xff]
  %v923 = vld [vmem:[%s55 + $0x10] sm:$0xff]
  %v924 = vld [vmem:[%s55 + $0x18] sm:$0xff]
  %v925 = vld [vmem:[%s55 + $0x20] sm:$0xff]
  %v926 = vld [vmem:[%s55 + $0x28] sm:$0xff]
  %v927 = vld [vmem:[%s55 + $0x30] sm:$0xf]
  %v928 = vld [vmem:[%s55 + $0x38] sm:$0xf]
  %v930 = vsel %vm64, %v905, 0
  %v933 = vsel %vm64, %v906, 0
  %v936 = vsel %vm64, %v907, 0
  %v939 = vsel %vm64, %v908, 0
  %v942 = vsel %vm64, %v909, 0
  %v945 = vsel %vm64, %v910, 0
  %v948 = vsel %vm64, %v911, 0
  %v951 = vsel %vm64, %v920, 0
  %v954 = vsel %vm89, %v927, 0
  %v957 = vsel %vm89, %v928, 0
  %959 = vmatprep.subr.mxu0 0.0
  %960 = vmatpush1.msra.mxu0 0.0
  %961 = vmatprep.subr.mxu0 0.0
  %962 = vmatpush1.msra.mxu0 0.0
  %963 = vmatprep.subr.mxu0 0.0
  %964 = vmatpush1.msra.mxu0 0.0
  %965 = vmatprep.subr.mxu0 0.0
  %966 = vmatpush1.msra.mxu0 0.0
  %967 = vmatprep.subr.mxu0 0.0
  %968 = vmatpush1.msra.mxu0 0.0
  %969 = vmatprep.subr.mxu0 0.0
  %970 = vmatpush1.msra.mxu0 0.0
  %971 = vmatprep.subr.mxu0 0.0
  %972 = vmatpush1.msra.mxu0 0.0
  %973 = vmatprep.subr.mxu0 0.0
  %974 = vmatpush1.msra.mxu0 0.0
  %975 = vmatprep.subr.mxu0 0.0
  %976 = vmatpush1.msra.mxu0 0.0
  %977 = vmatprep.subr.mxu0 0.0
  %978 = vmatpush1.msra.mxu0 0.0
  %979 = vmatprep.subr.mxu0 0.0
  %980 = vmatpush1.msra.mxu0 0.0
  %981 = vmatprep.subr.mxu0 0.0
  %982 = vmatpush1.msra.mxu0 0.0
  %983 = vmatprep.subr.mxu0 %v957
  %984 = vmatpush1.msra.mxu0 %v954
  %985 = vmatprep.subr.mxu0 %v926
  %986 = vmatpush1.msra.mxu0 %v925
  %987 = vmatprep.subr.mxu0 %v924
  %988 = vmatpush1.msra.mxu0 %v923
  %989 = vmatprep.subr.mxu0 %v922
  %990 = vmatpush1.msra.mxu0 %v921
  %991 = vmatprep.subr.mxu0 0.0
  %992 = vmatpush2.msra.mxu0 0.0
  %993 = vmatprep.subr.mxu0 0.0
  %994 = vmatpush2.msra.mxu0 0.0
  %995 = vmatprep.subr.mxu0 0.0
  %996 = vmatpush2.msra.mxu0 0.0
  %997 = vmatprep.subr.mxu0 0.0
  %998 = vmatpush2.msra.mxu0 0.0
  %999 = vmatprep.subr.mxu0 0.0
  %1000 = vmatpush2.msra.mxu0 0.0
  %1001 = vmatprep.subr.mxu0 0.0
  %1002 = vmatpush2.msra.mxu0 0.0
  %1003 = vmatprep.subr.mxu0 0.0
  %1004 = vmatpush2.msra.mxu0 0.0
  %1005 = vmatprep.subr.mxu0 0.0
  %1006 = vmatpush2.msra.mxu0 0.0
  %1007 = vmatprep.subr.mxu0 0.0
  %1008 = vmatpush2.msra.mxu0 0.0
  %1009 = vmatprep.subr.mxu0 0.0
  %1010 = vmatpush2.msra.mxu0 0.0
  %1011 = vmatprep.subr.mxu0 0.0
  %1012 = vmatpush2.msra.mxu0 0.0
  %1013 = vmatprep.subr.mxu0 0.0
  %1014 = vmatpush2.msra.mxu0 0.0
  %1015 = vmatprep.subr.mxu0 0.0
  %1016 = vmatpush2.msra.mxu0 0.0
  %1017 = vmatprep.subr.mxu0 0.0
  %1018 = vmatpush2.msra.mxu0 0.0
  %1019 = vmatprep.subr.mxu0 0.0
  %1020 = vmatpush2.msra.mxu0 0.0
  %1021 = vmatprep.subr.mxu0 0.0
  %1022 = vmatpush2.msra.mxu0 0.0
  %1023 = vmatprep.mubr.f32.mxu0 0.0
  %1024 = vmatmul.mubr.f32.gmra.mxu0 %v930
  %v1025 = vpop.f32.mrf.mxu0
  %v1026 = vadd.f32 0.0, %v1025
  %v1027 = vpop.f32.mrf.mxu0
  %v1028 = vadd.f32 0.0, %v1027
  %1029 = vmatprep.mubr.f32.mxu0 0.0
  %1030 = vmatmul.mubr.f32.gmra.mxu0 %v933
  %v1031 = vpop.f32.mrf.mxu0
  %v1032 = vadd.f32 0.0, %v1031
  %v1033 = vpop.f32.mrf.mxu0
  %v1034 = vadd.f32 0.0, %v1033
  %1035 = vmatprep.mubr.f32.mxu0 0.0
  %1036 = vmatmul.mubr.f32.gmra.mxu0 %v936
  %v1037 = vpop.f32.mrf.mxu0
  %v1038 = vadd.f32 0.0, %v1037
  %v1039 = vpop.f32.mrf.mxu0
  %v1040 = vadd.f32 0.0, %v1039
  %1041 = vmatprep.mubr.f32.mxu0 0.0
  %1042 = vmatmul.mubr.f32.gmra.mxu0 %v939
  %v1043 = vpop.f32.mrf.mxu0
  %v1044 = vadd.f32 0.0, %v1043
  %v1045 = vpop.f32.mrf.mxu0
  %v1046 = vadd.f32 0.0, %v1045
  %1047 = vmatprep.mubr.f32.mxu0 0.0
  %1048 = vmatmul.mubr.f32.gmra.mxu0 %v942
  %v1049 = vpop.f32.mrf.mxu0
  %v1050 = vadd.f32 0.0, %v1049
  %v1051 = vpop.f32.mrf.mxu0
  %v1052 = vadd.f32 0.0, %v1051
  %1053 = vmatprep.mubr.f32.mxu0 0.0
  %1054 = vmatmul.mubr.f32.gmra.mxu0 %v945
  %v1055 = vpop.f32.mrf.mxu0
  %v1056 = vadd.f32 0.0, %v1055
  %v1057 = vpop.f32.mrf.mxu0
  %v1058 = vadd.f32 0.0, %v1057
  %1059 = vmatprep.mubr.f32.mxu0 0.0
  %1060 = vmatmul.mubr.f32.gmra.mxu0 %v948
  %v1061 = vpop.f32.mrf.mxu0
  %v1062 = vadd.f32 0.0, %v1061
  %v1063 = vpop.f32.mrf.mxu0
  %v1064 = vadd.f32 0.0, %v1063
  %1065 = vmatprep.mubr.f32.mxu0 0.0
  %1066 = vmatmul.mubr.f32.gmra.mxu0 %v951
  %v1067 = vpop.f32.mrf.mxu0
  %v1068 = vadd.f32 0.0, %v1067
  %v1069 = vpop.f32.mrf.mxu0
  %v1070 = vadd.f32 0.0, %v1069
  %1071 = vdwg.mxu0
  %v1073 = vsel %vm64, %v904, 0
  %v1076 = vsel %vm89, %v918, 0
  %v1079 = vsel %vm89, %v919, 0
  %1081 = vmatprep.subr.mxu0 0.0
  %1082 = vmatpush1.msra.mxu0 0.0
  %1083 = vmatprep.subr.mxu0 0.0
  %1084 = vmatpush1.msra.mxu0 0.0
  %1085 = vmatprep.subr.mxu0 0.0
  %1086 = vmatpush1.msra.mxu0 0.0
  %1087 = vmatprep.subr.mxu0 0.0
  %1088 = vmatpush1.msra.mxu0 0.0
  %1089 = vmatprep.subr.mxu0 0.0
  %1090 = vmatpush1.msra.mxu0 0.0
  %1091 = vmatprep.subr.mxu0 0.0
  %1092 = vmatpush1.msra.mxu0 0.0
  %1093 = vmatprep.subr.mxu0 0.0
  %1094 = vmatpush1.msra.mxu0 0.0
  %1095 = vmatprep.subr.mxu0 0.0
  %1096 = vmatpush1.msra.mxu0 0.0
  %1097 = vmatprep.subr.mxu0 0.0
  %1098 = vmatpush1.msra.mxu0 0.0
  %1099 = vmatprep.subr.mxu0 0.0
  %1100 = vmatpush1.msra.mxu0 0.0
  %1101 = vmatprep.subr.mxu0 0.0
  %1102 = vmatpush1.msra.mxu0 0.0
  %1103 = vmatprep.subr.mxu0 0.0
  %1104 = vmatpush1.msra.mxu0 0.0
  %1105 = vmatprep.subr.mxu0 %v1079
  %1106 = vmatpush1.msra.mxu0 %v1076
  %1107 = vmatprep.subr.mxu0 %v917
  %1108 = vmatpush1.msra.mxu0 %v916
  %1109 = vmatprep.subr.mxu0 %v915
  %1110 = vmatpush1.msra.mxu0 %v914
  %1111 = vmatprep.subr.mxu0 %v913
  %1112 = vmatpush1.msra.mxu0 %v912
  %1113 = vmatprep.subr.mxu0 0.0
  %1114 = vmatpush2.msra.mxu0 0.0
  %1115 = vmatprep.subr.mxu0 0.0
  %1116 = vmatpush2.msra.mxu0 0.0
  %1117 = vmatprep.subr.mxu0 0.0
  %1118 = vmatpush2.msra.mxu0 0.0
  %1119 = vmatprep.subr.mxu0 0.0
  %1120 = vmatpush2.msra.mxu0 0.0
  %1121 = vmatprep.subr.mxu0 0.0
  %1122 = vmatpush2.msra.mxu0 0.0
  %1123 = vmatprep.subr.mxu0 0.0
  %1124 = vmatpush2.msra.mxu0 0.0
  %1125 = vmatprep.subr.mxu0 0.0
  %1126 = vmatpush2.msra.mxu0 0.0
  %1127 = vmatprep.subr.mxu0 0.0
  %1128 = vmatpush2.msra.mxu0 0.0
  %1129 = vmatprep.subr.mxu0 0.0
  %1130 = vmatpush2.msra.mxu0 0.0
  %1131 = vmatprep.subr.mxu0 0.0
  %1132 = vmatpush2.msra.mxu0 0.0
  %1133 = vmatprep.subr.mxu0 0.0
  %1134 = vmatpush2.msra.mxu0 0.0
  %1135 = vmatprep.subr.mxu0 0.0
  %1136 = vmatpush2.msra.mxu0 0.0
  %1137 = vmatprep.subr.mxu0 0.0
  %1138 = vmatpush2.msra.mxu0 0.0
  %1139 = vmatprep.subr.mxu0 0.0
  %1140 = vmatpush2.msra.mxu0 0.0
  %1141 = vmatprep.subr.mxu0 0.0
  %1142 = vmatpush2.msra.mxu0 0.0
  %1143 = vmatprep.subr.mxu0 0.0
  %1144 = vmatpush2.msra.mxu0 0.0
  %1145 = vmatprep.mubr.f32.mxu0 0.0
  %1146 = vmatmul.mubr.f32.gmra.mxu0 %v1073
  %v1147 = vpop.f32.mrf.mxu0
  %v1148 = vadd.f32 %v1026, %v1147
  %v1149 = vpop.f32.mrf.mxu0
  %v1150 = vadd.f32 %v1028, %v1149
  %1151 = vmatprep.mubr.f32.mxu0 0.0
  %1152 = vmatmul.mubr.f32.gmra.mxu0 %v930
  %v1153 = vpop.f32.mrf.mxu0
  %v1154 = vadd.f32 %v1032, %v1153
  %v1155 = vpop.f32.mrf.mxu0
  %v1156 = vadd.f32 %v1034, %v1155
  %1157 = vmatprep.mubr.f32.mxu0 0.0
  %1158 = vmatmul.mubr.f32.gmra.mxu0 %v933
  %v1159 = vpop.f32.mrf.mxu0
  %v1160 = vadd.f32 %v1038, %v1159
  %v1161 = vpop.f32.mrf.mxu0
  %v1162 = vadd.f32 %v1040, %v1161
  %1163 = vmatprep.mubr.f32.mxu0 0.0
  %1164 = vmatmul.mubr.f32.gmra.mxu0 %v936
  %v1165 = vpop.f32.mrf.mxu0
  %v1166 = vadd.f32 %v1044, %v1165
  %v1167 = vpop.f32.mrf.mxu0
  %v1168 = vadd.f32 %v1046, %v1167
  %1169 = vmatprep.mubr.f32.mxu0 0.0
  %1170 = vmatmul.mubr.f32.gmra.mxu0 %v939
  %v1171 = vpop.f32.mrf.mxu0
  %v1172 = vadd.f32 %v1050, %v1171
  %v1173 = vpop.f32.mrf.mxu0
  %v1174 = vadd.f32 %v1052, %v1173
  %1175 = vmatprep.mubr.f32.mxu0 0.0
  %1176 = vmatmul.mubr.f32.gmra.mxu0 %v942
  %v1177 = vpop.f32.mrf.mxu0
  %v1178 = vadd.f32 %v1056, %v1177
  %v1179 = vpop.f32.mrf.mxu0
  %v1180 = vadd.f32 %v1058, %v1179
  %1181 = vmatprep.mubr.f32.mxu0 0.0
  %1182 = vmatmul.mubr.f32.gmra.mxu0 %v945
  %v1183 = vpop.f32.mrf.mxu0
  %v1184 = vadd.f32 %v1062, %v1183
  %v1185 = vpop.f32.mrf.mxu0
  %v1186 = vadd.f32 %v1064, %v1185
  %1187 = vmatprep.mubr.f32.mxu0 0.0
  %1188 = vmatmul.mubr.f32.gmra.mxu0 %v948
  %v1189 = vpop.f32.mrf.mxu0
  %v1190 = vadd.f32 %v1068, %v1189
  %v1191 = vpop.f32.mrf.mxu0
  %v1192 = vadd.f32 %v1070, %v1191
  %1193 = vdwg.mxu0
  %v1194 = vld [vmem:[%s0 + $0x50] sm:$0xff]
  %v1195 = vld [vmem:[%s0 + $0x58] sm:$0xff]
  %v1196 = vld [vmem:[%s0 + $0x60] sm:$0xff]
  %v1197 = vld [vmem:[%s0 + $0x68] sm:$0xff]
  %v1198 = vld [vmem:[%s0 + $0x70] sm:$0xff]
  %v1199 = vld [vmem:[%s0 + $0x78] sm:$0xff]
  %v1200 = vld [vmem:[%s0 + $0x80] sm:$0xff]
  %v1201 = vld [vmem:[%s0 + $0x88] sm:$0xff]
  %v1202 = vld [vmem:[%s339] sm:$0xff]
  %v1203 = vld [vmem:[%s339 + $0x8] sm:$0xff]
  %v1204 = vld [vmem:[%s339 + $0x10] sm:$0xff]
  %v1205 = vld [vmem:[%s339 + $0x18] sm:$0xff]
  %v1206 = vld [vmem:[%s339 + $0x20] sm:$0xff]
  %v1207 = vld [vmem:[%s339 + $0x28] sm:$0xff]
  %v1208 = vld [vmem:[%s339 + $0x30] sm:$0xf]
  %v1209 = vld [vmem:[%s339 + $0x38] sm:$0xf]
  %v1211 = vsel %vm64, %v1194, 0
  %v1214 = vsel %vm64, %v1195, 0
  %v1217 = vsel %vm64, %v1196, 0
  %v1220 = vsel %vm64, %v1197, 0
  %v1223 = vsel %vm64, %v1198, 0
  %v1226 = vsel %vm64, %v1199, 0
  %v1229 = vsel %vm64, %v1200, 0
  %v1232 = vsel %vm64, %v1201, 0
  %v1235 = vsel %vm89, %v1208, 0
  %v1238 = vsel %vm89, %v1209, 0
  %1240 = vmatprep.subr.mxu0 0.0
  %1241 = vmatpush1.msra.mxu0 0.0
  %1242 = vmatprep.subr.mxu0 0.0
  %1243 = vmatpush1.msra.mxu0 0.0
  %1244 = vmatprep.subr.mxu0 0.0
  %1245 = vmatpush1.msra.mxu0 0.0
  %1246 = vmatprep.subr.mxu0 0.0
  %1247 = vmatpush1.msra.mxu0 0.0
  %1248 = vmatprep.subr.mxu0 0.0
  %1249 = vmatpush1.msra.mxu0 0.0
  %1250 = vmatprep.subr.mxu0 0.0
  %1251 = vmatpush1.msra.mxu0 0.0
  %1252 = vmatprep.subr.mxu0 0.0
  %1253 = vmatpush1.msra.mxu0 0.0
  %1254 = vmatprep.subr.mxu0 0.0
  %1255 = vmatpush1.msra.mxu0 0.0
  %1256 = vmatprep.subr.mxu0 0.0
  %1257 = vmatpush1.msra.mxu0 0.0
  %1258 = vmatprep.subr.mxu0 0.0
  %1259 = vmatpush1.msra.mxu0 0.0
  %1260 = vmatprep.subr.mxu0 0.0
  %1261 = vmatpush1.msra.mxu0 0.0
  %1262 = vmatprep.subr.mxu0 0.0
  %1263 = vmatpush1.msra.mxu0 0.0
  %1264 = vmatprep.subr.mxu0 %v1238
  %1265 = vmatpush1.msra.mxu0 %v1235
  %1266 = vmatprep.subr.mxu0 %v1207
  %1267 = vmatpush1.msra.mxu0 %v1206
  %1268 = vmatprep.subr.mxu0 %v1205
  %1269 = vmatpush1.msra.mxu0 %v1204
  %1270 = vmatprep.subr.mxu0 %v1203
  %1271 = vmatpush1.msra.mxu0 %v1202
  %1272 = vmatprep.subr.mxu0 0.0
  %1273 = vmatpush2.msra.mxu0 0.0
  %1274 = vmatprep.subr.mxu0 0.0
  %1275 = vmatpush2.msra.mxu0 0.0
  %1276 = vmatprep.subr.mxu0 0.0
  %1277 = vmatpush2.msra.mxu0 0.0
  %1278 = vmatprep.subr.mxu0 0.0
  %1279 = vmatpush2.msra.mxu0 0.0
  %1280 = vmatprep.subr.mxu0 0.0
  %1281 = vmatpush2.msra.mxu0 0.0
  %1282 = vmatprep.subr.mxu0 0.0
  %1283 = vmatpush2.msra.mxu0 0.0
  %1284 = vmatprep.subr.mxu0 0.0
  %1285 = vmatpush2.msra.mxu0 0.0
  %1286 = vmatprep.subr.mxu0 0.0
  %1287 = vmatpush2.msra.mxu0 0.0
  %1288 = vmatprep.subr.mxu0 0.0
  %1289 = vmatpush2.msra.mxu0 0.0
  %1290 = vmatprep.subr.mxu0 0.0
  %1291 = vmatpush2.msra.mxu0 0.0
  %1292 = vmatprep.subr.mxu0 0.0
  %1293 = vmatpush2.msra.mxu0 0.0
  %1294 = vmatprep.subr.mxu0 0.0
  %1295 = vmatpush2.msra.mxu0 0.0
  %1296 = vmatprep.subr.mxu0 0.0
  %1297 = vmatpush2.msra.mxu0 0.0
  %1298 = vmatprep.subr.mxu0 0.0
  %1299 = vmatpush2.msra.mxu0 0.0
  %1300 = vmatprep.subr.mxu0 0.0
  %1301 = vmatpush2.msra.mxu0 0.0
  %1302 = vmatprep.subr.mxu0 0.0
  %1303 = vmatpush2.msra.mxu0 0.0
  %1304 = vmatprep.mubr.f32.mxu0 0.0
  %1305 = vmatmul.mubr.f32.gmra.mxu0 %v1211
  %v1306 = vpop.f32.mrf.mxu0
  %v1307 = vadd.f32 0.0, %v1306
  %v1308 = vpop.f32.mrf.mxu0
  %v1309 = vadd.f32 0.0, %v1308
  %1310 = vmatprep.mubr.f32.mxu0 0.0
  %1311 = vmatmul.mubr.f32.gmra.mxu0 %v1214
  %v1312 = vpop.f32.mrf.mxu0
  %v1313 = vadd.f32 0.0, %v1312
  %v1314 = vpop.f32.mrf.mxu0
  %v1315 = vadd.f32 0.0, %v1314
  %1316 = vmatprep.mubr.f32.mxu0 0.0
  %1317 = vmatmul.mubr.f32.gmra.mxu0 %v1217
  %v1318 = vpop.f32.mrf.mxu0
  %v1319 = vadd.f32 0.0, %v1318
  %v1320 = vpop.f32.mrf.mxu0
  %v1321 = vadd.f32 0.0, %v1320
  %1322 = vmatprep.mubr.f32.mxu0 0.0
  %1323 = vmatmul.mubr.f32.gmra.mxu0 %v1220
  %v1324 = vpop.f32.mrf.mxu0
  %v1325 = vadd.f32 0.0, %v1324
  %v1326 = vpop.f32.mrf.mxu0
  %v1327 = vadd.f32 0.0, %v1326
  %1328 = vmatprep.mubr.f32.mxu0 0.0
  %1329 = vmatmul.mubr.f32.gmra.mxu0 %v1223
  %v1330 = vpop.f32.mrf.mxu0
  %v1331 = vadd.f32 0.0, %v1330
  %v1332 = vpop.f32.mrf.mxu0
  %v1333 = vadd.f32 0.0, %v1332
  %1334 = vmatprep.mubr.f32.mxu0 0.0
  %1335 = vmatmul.mubr.f32.gmra.mxu0 %v1226
  %v1336 = vpop.f32.mrf.mxu0
  %v1337 = vadd.f32 0.0, %v1336
  %v1338 = vpop.f32.mrf.mxu0
  %v1339 = vadd.f32 0.0, %v1338
  %1340 = vmatprep.mubr.f32.mxu0 0.0
  %1341 = vmatmul.mubr.f32.gmra.mxu0 %v1229
  %v1342 = vpop.f32.mrf.mxu0
  %v1343 = vadd.f32 0.0, %v1342
  %v1344 = vpop.f32.mrf.mxu0
  %v1345 = vadd.f32 0.0, %v1344
  %1346 = vmatprep.mubr.f32.mxu0 0.0
  %1347 = vmatmul.mubr.f32.gmra.mxu0 %v1232
  %v1348 = vpop.f32.mrf.mxu0
  %v1349 = vadd.f32 0.0, %v1348
  %v1350 = vpop.f32.mrf.mxu0
  %v1351 = vadd.f32 0.0, %v1350
  %1352 = vdwg.mxu0
  %v1353 = vadd.f32 %v1148, %v1307
  %v1354 = vadd.f32 %v1150, %v1309
  %v1355 = vadd.f32 %v1154, %v1313
  %v1356 = vadd.f32 %v1156, %v1315
  %v1357 = vadd.f32 %v1160, %v1319
  %v1358 = vadd.f32 %v1162, %v1321
  %v1359 = vadd.f32 %v1166, %v1325
  %v1360 = vadd.f32 %v1168, %v1327
  %v1361 = vadd.f32 %v1172, %v1331
  %v1362 = vadd.f32 %v1174, %v1333
  %v1363 = vadd.f32 %v1178, %v1337
  %v1364 = vadd.f32 %v1180, %v1339
  %v1365 = vadd.f32 %v1184, %v1343
  %v1366 = vadd.f32 %v1186, %v1345
  %v1367 = vadd.f32 %v1190, %v1349
  %v1368 = vadd.f32 %v1192, %v1351
  %v1369 = vld [vmem:[%s0 + $0x58] sm:$0xff]
  %v1370 = vld [vmem:[%s0 + $0x60] sm:$0xff]
  %v1371 = vld [vmem:[%s0 + $0x68] sm:$0xff]
  %v1372 = vld [vmem:[%s0 + $0x70] sm:$0xff]
  %v1373 = vld [vmem:[%s0 + $0x78] sm:$0xff]
  %v1374 = vld [vmem:[%s0 + $0x80] sm:$0xff]
  %v1375 = vld [vmem:[%s0 + $0x88] sm:$0xff]
  %v1376 = vld [vmem:[%s0 + $0x90] sm:$0xff]
  %v1377 = vld [vmem:[%s515] sm:$0xff]
  %v1378 = vld [vmem:[%s515 + $0x8] sm:$0xff]
  %v1379 = vld [vmem:[%s515 + $0x10] sm:$0xff]
  %v1380 = vld [vmem:[%s515 + $0x18] sm:$0xff]
  %v1381 = vld [vmem:[%s515 + $0x20] sm:$0xff]
  %v1382 = vld [vmem:[%s515 + $0x28] sm:$0xff]
  %v1383 = vld [vmem:[%s515 + $0x30] sm:$0xf]
  %v1384 = vld [vmem:[%s515 + $0x38] sm:$0xf]
  %v1386 = vsel %vm64, %v1369, 0
  %v1389 = vsel %vm64, %v1370, 0
  %v1392 = vsel %vm64, %v1371, 0
  %v1395 = vsel %vm64, %v1372, 0
  %v1398 = vsel %vm64, %v1373, 0
  %v1401 = vsel %vm64, %v1374, 0
  %v1404 = vsel %vm64, %v1375, 0
  %v1407 = vsel %vm64, %v1376, 0
  %v1410 = vsel %vm89, %v1383, 0
  %v1413 = vsel %vm89, %v1384, 0
  %1415 = vmatprep.subr.mxu0 0.0
  %1416 = vmatpush1.msra.mxu0 0.0
  %1417 = vmatprep.subr.mxu0 0.0
  %1418 = vmatpush1.msra.mxu0 0.0
  %1419 = vmatprep.subr.mxu0 0.0
  %1420 = vmatpush1.msra.mxu0 0.0
  %1421 = vmatprep.subr.mxu0 0.0
  %1422 = vmatpush1.msra.mxu0 0.0
  %1423 = vmatprep.subr.mxu0 0.0
  %1424 = vmatpush1.msra.mxu0 0.0
  %1425 = vmatprep.subr.mxu0 0.0
  %1426 = vmatpush1.msra.mxu0 0.0
  %1427 = vmatprep.subr.mxu0 0.0
  %1428 = vmatpush1.msra.mxu0 0.0
  %1429 = vmatprep.subr.mxu0 0.0
  %1430 = vmatpush1.msra.mxu0 0.0
  %1431 = vmatprep.subr.mxu0 0.0
  %1432 = vmatpush1.msra.mxu0 0.0
  %1433 = vmatprep.subr.mxu0 0.0
  %1434 = vmatpush1.msra.mxu0 0.0
  %1435 = vmatprep.subr.mxu0 0.0
  %1436 = vmatpush1.msra.mxu0 0.0
  %1437 = vmatprep.subr.mxu0 0.0
  %1438 = vmatpush1.msra.mxu0 0.0
  %1439 = vmatprep.subr.mxu0 %v1413
  %1440 = vmatpush1.msra.mxu0 %v1410
  %1441 = vmatprep.subr.mxu0 %v1382
  %1442 = vmatpush1.msra.mxu0 %v1381
  %1443 = vmatprep.subr.mxu0 %v1380
  %1444 = vmatpush1.msra.mxu0 %v1379
  %1445 = vmatprep.subr.mxu0 %v1378
  %1446 = vmatpush1.msra.mxu0 %v1377
  %1447 = vmatprep.subr.mxu0 0.0
  %1448 = vmatpush2.msra.mxu0 0.0
  %1449 = vmatprep.subr.mxu0 0.0
  %1450 = vmatpush2.msra.mxu0 0.0
  %1451 = vmatprep.subr.mxu0 0.0
  %1452 = vmatpush2.msra.mxu0 0.0
  %1453 = vmatprep.subr.mxu0 0.0
  %1454 = vmatpush2.msra.mxu0 0.0
  %1455 = vmatprep.subr.mxu0 0.0
  %1456 = vmatpush2.msra.mxu0 0.0
  %1457 = vmatprep.subr.mxu0 0.0
  %1458 = vmatpush2.msra.mxu0 0.0
  %1459 = vmatprep.subr.mxu0 0.0
  %1460 = vmatpush2.msra.mxu0 0.0
  %1461 = vmatprep.subr.mxu0 0.0
  %1462 = vmatpush2.msra.mxu0 0.0
  %1463 = vmatprep.subr.mxu0 0.0
  %1464 = vmatpush2.msra.mxu0 0.0
  %1465 = vmatprep.subr.mxu0 0.0
  %1466 = vmatpush2.msra.mxu0 0.0
  %1467 = vmatprep.subr.mxu0 0.0
  %1468 = vmatpush2.msra.mxu0 0.0
  %1469 = vmatprep.subr.mxu0 0.0
  %1470 = vmatpush2.msra.mxu0 0.0
  %1471 = vmatprep.subr.mxu0 0.0
  %1472 = vmatpush2.msra.mxu0 0.0
  %1473 = vmatprep.subr.mxu0 0.0
  %1474 = vmatpush2.msra.mxu0 0.0
  %1475 = vmatprep.subr.mxu0 0.0
  %1476 = vmatpush2.msra.mxu0 0.0
  %1477 = vmatprep.subr.mxu0 0.0
  %1478 = vmatpush2.msra.mxu0 0.0
  %1479 = vmatprep.mubr.f32.mxu0 0.0
  %1480 = vmatmul.mubr.f32.gmra.mxu0 %v1386
  %v1481 = vpop.f32.mrf.mxu0
  %v1482 = vadd.f32 0.0, %v1481
  %v1483 = vpop.f32.mrf.mxu0
  %v1484 = vadd.f32 0.0, %v1483
  %1485 = vmatprep.mubr.f32.mxu0 0.0
  %1486 = vmatmul.mubr.f32.gmra.mxu0 %v1389
  %v1487 = vpop.f32.mrf.mxu0
  %v1488 = vadd.f32 0.0, %v1487
  %v1489 = vpop.f32.mrf.mxu0
  %v1490 = vadd.f32 0.0, %v1489
  %1491 = vmatprep.mubr.f32.mxu0 0.0
  %1492 = vmatmul.mubr.f32.gmra.mxu0 %v1392
  %v1493 = vpop.f32.mrf.mxu0
  %v1494 = vadd.f32 0.0, %v1493
  %v1495 = vpop.f32.mrf.mxu0
  %v1496 = vadd.f32 0.0, %v1495
  %1497 = vmatprep.mubr.f32.mxu0 0.0
  %1498 = vmatmul.mubr.f32.gmra.mxu0 %v1395
  %v1499 = vpop.f32.mrf.mxu0
  %v1500 = vadd.f32 0.0, %v1499
  %v1501 = vpop.f32.mrf.mxu0
  %v1502 = vadd.f32 0.0, %v1501
  %1503 = vmatprep.mubr.f32.mxu0 0.0
  %1504 = vmatmul.mubr.f32.gmra.mxu0 %v1398
  %v1505 = vpop.f32.mrf.mxu0
  %v1506 = vadd.f32 0.0, %v1505
  %v1507 = vpop.f32.mrf.mxu0
  %v1508 = vadd.f32 0.0, %v1507
  %1509 = vmatprep.mubr.f32.mxu0 0.0
  %1510 = vmatmul.mubr.f32.gmra.mxu0 %v1401
  %v1511 = vpop.f32.mrf.mxu0
  %v1512 = vadd.f32 0.0, %v1511
  %v1513 = vpop.f32.mrf.mxu0
  %v1514 = vadd.f32 0.0, %v1513
  %1515 = vmatprep.mubr.f32.mxu0 0.0
  %1516 = vmatmul.mubr.f32.gmra.mxu0 %v1404
  %v1517 = vpop.f32.mrf.mxu0
  %v1518 = vadd.f32 0.0, %v1517
  %v1519 = vpop.f32.mrf.mxu0
  %v1520 = vadd.f32 0.0, %v1519
  %1521 = vmatprep.mubr.f32.mxu0 0.0
  %1522 = vmatmul.mubr.f32.gmra.mxu0 %v1407
  %v1523 = vpop.f32.mrf.mxu0
  %v1524 = vadd.f32 0.0, %v1523
  %v1525 = vpop.f32.mrf.mxu0
  %v1526 = vadd.f32 0.0, %v1525
  %1527 = vdwg.mxu0
  %v1528 = vadd.f32 %v1353, %v1482
  %v1529 = vadd.f32 %v1354, %v1484
  %v1530 = vadd.f32 %v1355, %v1488
  %v1531 = vadd.f32 %v1356, %v1490
  %v1532 = vadd.f32 %v1357, %v1494
  %v1533 = vadd.f32 %v1358, %v1496
  %v1534 = vadd.f32 %v1359, %v1500
  %v1535 = vadd.f32 %v1360, %v1502
  %v1536 = vadd.f32 %v1361, %v1506
  %v1537 = vadd.f32 %v1362, %v1508
  %v1538 = vadd.f32 %v1363, %v1512
  %v1539 = vadd.f32 %v1364, %v1514
  %v1540 = vadd.f32 %v1365, %v1518
  %v1541 = vadd.f32 %v1366, %v1520
  %v1542 = vadd.f32 %v1367, %v1524
  %v1543 = vadd.f32 %v1368, %v1526
  %v1544 = vld [vmem:[%s0 + $0x60] sm:$0xff]
  %v1545 = vld [vmem:[%s0 + $0x68] sm:$0xff]
  %v1546 = vld [vmem:[%s0 + $0x70] sm:$0xff]
  %v1547 = vld [vmem:[%s0 + $0x78] sm:$0xff]
  %v1548 = vld [vmem:[%s0 + $0x80] sm:$0xff]
  %v1549 = vld [vmem:[%s0 + $0x88] sm:$0xff]
  %v1550 = vld [vmem:[%s0 + $0x90] sm:$0xff]
  %v1551 = vld [vmem:[%s0 + $0x98] sm:$0xff]
  %v1552 = vld [vmem:[%s691] sm:$0xff]
  %v1553 = vld [vmem:[%s691 + $0x8] sm:$0xff]
  %v1554 = vld [vmem:[%s691 + $0x10] sm:$0xff]
  %v1555 = vld [vmem:[%s691 + $0x18] sm:$0xff]
  %v1556 = vld [vmem:[%s691 + $0x20] sm:$0xff]
  %v1557 = vld [vmem:[%s691 + $0x28] sm:$0xff]
  %v1558 = vld [vmem:[%s691 + $0x30] sm:$0xf]
  %v1559 = vld [vmem:[%s691 + $0x38] sm:$0xf]
  %v1561 = vsel %vm64, %v1544, 0
  %v1564 = vsel %vm64, %v1545, 0
  %v1567 = vsel %vm64, %v1546, 0
  %v1570 = vsel %vm64, %v1547, 0
  %v1573 = vsel %vm64, %v1548, 0
  %v1576 = vsel %vm64, %v1549, 0
  %v1579 = vsel %vm64, %v1550, 0
  %v1582 = vsel %vm64, %v1551, 0
  %v1585 = vsel %vm89, %v1558, 0
  %v1588 = vsel %vm89, %v1559, 0
  %1590 = vmatprep.subr.mxu0 0.0
  %1591 = vmatpush1.msra.mxu0 0.0
  %1592 = vmatprep.subr.mxu0 0.0
  %1593 = vmatpush1.msra.mxu0 0.0
  %1594 = vmatprep.subr.mxu0 0.0
  %1595 = vmatpush1.msra.mxu0 0.0
  %1596 = vmatprep.subr.mxu0 0.0
  %1597 = vmatpush1.msra.mxu0 0.0
  %1598 = vmatprep.subr.mxu0 0.0
  %1599 = vmatpush1.msra.mxu0 0.0
  %1600 = vmatprep.subr.mxu0 0.0
  %1601 = vmatpush1.msra.mxu0 0.0
  %1602 = vmatprep.subr.mxu0 0.0
  %1603 = vmatpush1.msra.mxu0 0.0
  %1604 = vmatprep.subr.mxu0 0.0
  %1605 = vmatpush1.msra.mxu0 0.0
  %1606 = vmatprep.subr.mxu0 0.0
  %1607 = vmatpush1.msra.mxu0 0.0
  %1608 = vmatprep.subr.mxu0 0.0
  %1609 = vmatpush1.msra.mxu0 0.0
  %1610 = vmatprep.subr.mxu0 0.0
  %1611 = vmatpush1.msra.mxu0 0.0
  %1612 = vmatprep.subr.mxu0 0.0
  %1613 = vmatpush1.msra.mxu0 0.0
  %1614 = vmatprep.subr.mxu0 %v1588
  %1615 = vmatpush1.msra.mxu0 %v1585
  %1616 = vmatprep.subr.mxu0 %v1557
  %1617 = vmatpush1.msra.mxu0 %v1556
  %1618 = vmatprep.subr.mxu0 %v1555
  %1619 = vmatpush1.msra.mxu0 %v1554
  %1620 = vmatprep.subr.mxu0 %v1553
  %1621 = vmatpush1.msra.mxu0 %v1552
  %1622 = vmatprep.subr.mxu0 0.0
  %1623 = vmatpush2.msra.mxu0 0.0
  %1624 = vmatprep.subr.mxu0 0.0
  %1625 = vmatpush2.msra.mxu0 0.0
  %1626 = vmatprep.subr.mxu0 0.0
  %1627 = vmatpush2.msra.mxu0 0.0
  %1628 = vmatprep.subr.mxu0 0.0
  %1629 = vmatpush2.msra.mxu0 0.0
  %1630 = vmatprep.subr.mxu0 0.0
  %1631 = vmatpush2.msra.mxu0 0.0
  %1632 = vmatprep.subr.mxu0 0.0
  %1633 = vmatpush2.msra.mxu0 0.0
  %1634 = vmatprep.subr.mxu0 0.0
  %1635 = vmatpush2.msra.mxu0 0.0
  %1636 = vmatprep.subr.mxu0 0.0
  %1637 = vmatpush2.msra.mxu0 0.0
  %1638 = vmatprep.subr.mxu0 0.0
  %1639 = vmatpush2.msra.mxu0 0.0
  %1640 = vmatprep.subr.mxu0 0.0
  %1641 = vmatpush2.msra.mxu0 0.0
  %1642 = vmatprep.subr.mxu0 0.0
  %1643 = vmatpush2.msra.mxu0 0.0
  %1644 = vmatprep.subr.mxu0 0.0
  %1645 = vmatpush2.msra.mxu0 0.0
  %1646 = vmatprep.subr.mxu0 0.0
  %1647 = vmatpush2.msra.mxu0 0.0
  %1648 = vmatprep.subr.mxu0 0.0
  %1649 = vmatpush2.msra.mxu0 0.0
  %1650 = vmatprep.subr.mxu0 0.0
  %1651 = vmatpush2.msra.mxu0 0.0
  %1652 = vmatprep.subr.mxu0 0.0
  %1653 = vmatpush2.msra.mxu0 0.0
  %1654 = vmatprep.mubr.f32.mxu0 0.0
  %1655 = vmatmul.mubr.f32.gmra.mxu0 %v1561
  %v1656 = vpop.f32.mrf.mxu0
  %v1657 = vadd.f32 0.0, %v1656
  %v1658 = vpop.f32.mrf.mxu0
  %v1659 = vadd.f32 0.0, %v1658
  %1660 = vmatprep.mubr.f32.mxu0 0.0
  %1661 = vmatmul.mubr.f32.gmra.mxu0 %v1564
  %v1662 = vpop.f32.mrf.mxu0
  %v1663 = vadd.f32 0.0, %v1662
  %v1664 = vpop.f32.mrf.mxu0
  %v1665 = vadd.f32 0.0, %v1664
  %1666 = vmatprep.mubr.f32.mxu0 0.0
  %1667 = vmatmul.mubr.f32.gmra.mxu0 %v1567
  %v1668 = vpop.f32.mrf.mxu0
  %v1669 = vadd.f32 0.0, %v1668
  %v1670 = vpop.f32.mrf.mxu0
  %v1671 = vadd.f32 0.0, %v1670
  %1672 = vmatprep.mubr.f32.mxu0 0.0
  %1673 = vmatmul.mubr.f32.gmra.mxu0 %v1570
  %v1674 = vpop.f32.mrf.mxu0
  %v1675 = vadd.f32 0.0, %v1674
  %v1676 = vpop.f32.mrf.mxu0
  %v1677 = vadd.f32 0.0, %v1676
  %1678 = vmatprep.mubr.f32.mxu0 0.0
  %1679 = vmatmul.mubr.f32.gmra.mxu0 %v1573
  %v1680 = vpop.f32.mrf.mxu0
  %v1681 = vadd.f32 0.0, %v1680
  %v1682 = vpop.f32.mrf.mxu0
  %v1683 = vadd.f32 0.0, %v1682
  %1684 = vmatprep.mubr.f32.mxu0 0.0
  %1685 = vmatmul.mubr.f32.gmra.mxu0 %v1576
  %v1686 = vpop.f32.mrf.mxu0
  %v1687 = vadd.f32 0.0, %v1686
  %v1688 = vpop.f32.mrf.mxu0
  %v1689 = vadd.f32 0.0, %v1688
  %1690 = vmatprep.mubr.f32.mxu0 0.0
  %1691 = vmatmul.mubr.f32.gmra.mxu0 %v1579
  %v1692 = vpop.f32.mrf.mxu0
  %v1693 = vadd.f32 0.0, %v1692
  %v1694 = vpop.f32.mrf.mxu0
  %v1695 = vadd.f32 0.0, %v1694
  %1696 = vmatprep.mubr.f32.mxu0 0.0
  %1697 = vmatmul.mubr.f32.gmra.mxu0 %v1582
  %v1698 = vpop.f32.mrf.mxu0
  %v1699 = vadd.f32 0.0, %v1698
  %v1700 = vpop.f32.mrf.mxu0
  %v1701 = vadd.f32 0.0, %v1700
  %1702 = vdwg.mxu0
  %v1703 = vadd.f32 %v1528, %v1657
  %v1704 = vadd.f32 %v1529, %v1659
  %v1705 = vadd.f32 %v1530, %v1663
  %v1706 = vadd.f32 %v1531, %v1665
  %v1707 = vadd.f32 %v1532, %v1669
  %v1708 = vadd.f32 %v1533, %v1671
  %v1709 = vadd.f32 %v1534, %v1675
  %v1710 = vadd.f32 %v1535, %v1677
  %v1711 = vadd.f32 %v1536, %v1681
  %v1712 = vadd.f32 %v1537, %v1683
  %v1713 = vadd.f32 %v1538, %v1687
  %v1714 = vadd.f32 %v1539, %v1689
  %v1715 = vadd.f32 %v1540, %v1693
  %v1716 = vadd.f32 %v1541, %v1695
  %v1717 = vadd.f32 %v1542, %v1699
  %v1718 = vadd.f32 %v1543, %v1701
  %v1719 = vld [vmem:[%s2] sm:$0x3]
  %v1721 = vlaneseq
  %v1722 = vshrl.u32 %v1721, 7
  %v1723 = vsub.s32 0, %v1722
  %v1724 = vrot.slane %v1719, %v1723
  %v1725 = vlaneseq
  %v1726 = vshrl.u32 %v1725, 7
  %v1727 = vsub.s32 1, %v1726
  %v1728 = vrot.slane %v1719, %v1727
  %v1731 = vadd.f32 %v1703, %v1724
  %v1732 = vadd.f32 %v1704, %v1728
  %v1733 = vadd.f32 %v1705, %v1724
  %v1734 = vadd.f32 %v1706, %v1728
  %v1735 = vadd.f32 %v1707, %v1724
  %v1736 = vadd.f32 %v1708, %v1728
  %v1737 = vadd.f32 %v1709, %v1724
  %v1738 = vadd.f32 %v1710, %v1728
  %v1739 = vadd.f32 %v1711, %v1724
  %v1740 = vadd.f32 %v1712, %v1728
  %v1741 = vadd.f32 %v1713, %v1724
  %v1742 = vadd.f32 %v1714, %v1728
  %v1743 = vadd.f32 %v1715, %v1724
  %v1744 = vadd.f32 %v1716, %v1728
  %v1745 = vadd.f32 %v1717, %v1724
  %v1746 = vadd.f32 %v1718, %v1728
  %1747 = vst [vmem:[#allocation2 + $0x80] sm:$0xff] %v1731
  %1748 = vst.msk [vmem:[#allocation2 + $0x88] sm:$0xff] %vm888, %v1732
  %1749 = vst [vmem:[#allocation2 + $0x90] sm:$0xff] %v1733
  %1750 = vst.msk [vmem:[#allocation2 + $0x98] sm:$0xff] %vm888, %v1734
  %1751 = vst [vmem:[#allocation2 + $0xa0] sm:$0xff] %v1735
  %1752 = vst.msk [vmem:[#allocation2 + $0xa8] sm:$0xff] %vm888, %v1736
  %1753 = vst [vmem:[#allocation2 + $0xb0] sm:$0xff] %v1737
  %1754 = vst.msk [vmem:[#allocation2 + $0xb8] sm:$0xff] %vm888, %v1738
  %1755 = vst [vmem:[#allocation2 + $0xc0] sm:$0xff] %v1739
  %1756 = vst.msk [vmem:[#allocation2 + $0xc8] sm:$0xff] %vm888, %v1740
  %1757 = vst [vmem:[#allocation2 + $0xd0] sm:$0xff] %v1741
  %1758 = vst.msk [vmem:[#allocation2 + $0xd8] sm:$0xff] %vm888, %v1742
  %1759 = vst [vmem:[#allocation2 + $0xe0] sm:$0xff] %v1743
  %1760 = vst.msk [vmem:[#allocation2 + $0xe8] sm:$0xff] %vm888, %v1744
  %1761 = vst [vmem:[#allocation2 + $0xf0] sm:$0xff] %v1745
  %1762 = vst.msk [vmem:[#allocation2 + $0xf8] sm:$0xff] %vm888, %v1746
  %v1763 = vld [vmem:[%s0 + $0x80] sm:$0xff]
  %v1764 = vld [vmem:[%s0 + $0x88] sm:$0xff]
  %v1765 = vld [vmem:[%s0 + $0x90] sm:$0xff]
  %v1766 = vld [vmem:[%s0 + $0x98] sm:$0xff]
  %v1767 = vld [vmem:[%s0 + $0xa0] sm:$0xff]
  %v1768 = vld [vmem:[%s0 + $0xa8] sm:$0xff]
  %v1769 = vld [vmem:[%s0 + $0xb0] sm:$0xff]
  %v1770 = vld [vmem:[%s0 + $0xb8] sm:$0xff]
  %v1771 = vld [vmem:[%s1] sm:$0xff]
  %v1772 = vld [vmem:[%s1 + $0x8] sm:$0xff]
  %v1773 = vld [vmem:[%s1 + $0x10] sm:$0xff]
  %v1774 = vld [vmem:[%s1 + $0x18] sm:$0xff]
  %v1775 = vld [vmem:[%s1 + $0x20] sm:$0xff]
  %v1776 = vld [vmem:[%s1 + $0x28] sm:$0xff]
  %v1777 = vld [vmem:[%s1 + $0x30] sm:$0xf]
  %v1778 = vld [vmem:[%s1 + $0x38] sm:$0xf]
  %v1779 = vld [vmem:[%s0 + $0xc0] sm:$0xff]
  %v1780 = vld [vmem:[%s55] sm:$0xff]
  %v1781 = vld [vmem:[%s55 + $0x8] sm:$0xff]
  %v1782 = vld [vmem:[%s55 + $0x10] sm:$0xff]
  %v1783 = vld [vmem:[%s55 + $0x18] sm:$0xff]
  %v1784 = vld [vmem:[%s55 + $0x20] sm:$0xff]
  %v1785 = vld [vmem:[%s55 + $0x28] sm:$0xff]
  %v1786 = vld [vmem:[%s55 + $0x30] sm:$0xf]
  %v1787 = vld [vmem:[%s55 + $0x38] sm:$0xf]
  %v1789 = vsel %vm64, %v1764, 0
  %v1792 = vsel %vm64, %v1765, 0
  %v1795 = vsel %vm64, %v1766, 0
  %v1798 = vsel %vm64, %v1767, 0
  %v1801 = vsel %vm64, %v1768, 0
  %v1804 = vsel %vm64, %v1769, 0
  %v1807 = vsel %vm64, %v1770, 0
  %v1810 = vsel %vm64, %v1779, 0
  %v1813 = vsel %vm89, %v1786, 0
  %v1816 = vsel %vm89, %v1787, 0
  %1818 = vmatprep.subr.mxu0 0.0
  %1819 = vmatpush1.msra.mxu0 0.0
  %1820 = vmatprep.subr.mxu0 0.0
  %1821 = vmatpush1.msra.mxu0 0.0
  %1822 = vmatprep.subr.mxu0 0.0
  %1823 = vmatpush1.msra.mxu0 0.0
  %1824 = vmatprep.subr.mxu0 0.0
  %1825 = vmatpush1.msra.mxu0 0.0
  %1826 = vmatprep.subr.mxu0 0.0
  %1827 = vmatpush1.msra.mxu0 0.0
  %1828 = vmatprep.subr.mxu0 0.0
  %1829 = vmatpush1.msra.mxu0 0.0
  %1830 = vmatprep.subr.mxu0 0.0
  %1831 = vmatpush1.msra.mxu0 0.0
  %1832 = vmatprep.subr.mxu0 0.0
  %1833 = vmatpush1.msra.mxu0 0.0
  %1834 = vmatprep.subr.mxu0 0.0
  %1835 = vmatpush1.msra.mxu0 0.0
  %1836 = vmatprep.subr.mxu0 0.0
  %1837 = vmatpush1.msra.mxu0 0.0
  %1838 = vmatprep.subr.mxu0 0.0
  %1839 = vmatpush1.msra.mxu0 0.0
  %1840 = vmatprep.subr.mxu0 0.0
  %1841 = vmatpush1.msra.mxu0 0.0
  %1842 = vmatprep.subr.mxu0 %v1816
  %1843 = vmatpush1.msra.mxu0 %v1813
  %1844 = vmatprep.subr.mxu0 %v1785
  %1845 = vmatpush1.msra.mxu0 %v1784
  %1846 = vmatprep.subr.mxu0 %v1783
  %1847 = vmatpush1.msra.mxu0 %v1782
  %1848 = vmatprep.subr.mxu0 %v1781
  %1849 = vmatpush1.msra.mxu0 %v1780
  %1850 = vmatprep.subr.mxu0 0.0
  %1851 = vmatpush2.msra.mxu0 0.0
  %1852 = vmatprep.subr.mxu0 0.0
  %1853 = vmatpush2.msra.mxu0 0.0
  %1854 = vmatprep.subr.mxu0 0.0
  %1855 = vmatpush2.msra.mxu0 0.0
  %1856 = vmatprep.subr.mxu0 0.0
  %1857 = vmatpush2.msra.mxu0 0.0
  %1858 = vmatprep.subr.mxu0 0.0
  %1859 = vmatpush2.msra.mxu0 0.0
  %1860 = vmatprep.subr.mxu0 0.0
  %1861 = vmatpush2.msra.mxu0 0.0
  %1862 = vmatprep.subr.mxu0 0.0
  %1863 = vmatpush2.msra.mxu0 0.0
  %1864 = vmatprep.subr.mxu0 0.0
  %1865 = vmatpush2.msra.mxu0 0.0
  %1866 = vmatprep.subr.mxu0 0.0
  %1867 = vmatpush2.msra.mxu0 0.0
  %1868 = vmatprep.subr.mxu0 0.0
  %1869 = vmatpush2.msra.mxu0 0.0
  %1870 = vmatprep.subr.mxu0 0.0
  %1871 = vmatpush2.msra.mxu0 0.0
  %1872 = vmatprep.subr.mxu0 0.0
  %1873 = vmatpush2.msra.mxu0 0.0
  %1874 = vmatprep.subr.mxu0 0.0
  %1875 = vmatpush2.msra.mxu0 0.0
  %1876 = vmatprep.subr.mxu0 0.0
  %1877 = vmatpush2.msra.mxu0 0.0
  %1878 = vmatprep.subr.mxu0 0.0
  %1879 = vmatpush2.msra.mxu0 0.0
  %1880 = vmatprep.subr.mxu0 0.0
  %1881 = vmatpush2.msra.mxu0 0.0
  %1882 = vmatprep.mubr.f32.mxu0 0.0
  %1883 = vmatmul.mubr.f32.gmra.mxu0 %v1789
  %v1884 = vpop.f32.mrf.mxu0
  %v1885 = vadd.f32 0.0, %v1884
  %v1886 = vpop.f32.mrf.mxu0
  %v1887 = vadd.f32 0.0, %v1886
  %1888 = vmatprep.mubr.f32.mxu0 0.0
  %1889 = vmatmul.mubr.f32.gmra.mxu0 %v1792
  %v1890 = vpop.f32.mrf.mxu0
  %v1891 = vadd.f32 0.0, %v1890
  %v1892 = vpop.f32.mrf.mxu0
  %v1893 = vadd.f32 0.0, %v1892
  %1894 = vmatprep.mubr.f32.mxu0 0.0
  %1895 = vmatmul.mubr.f32.gmra.mxu0 %v1795
  %v1896 = vpop.f32.mrf.mxu0
  %v1897 = vadd.f32 0.0, %v1896
  %v1898 = vpop.f32.mrf.mxu0
  %v1899 = vadd.f32 0.0, %v1898
  %1900 = vmatprep.mubr.f32.mxu0 0.0
  %1901 = vmatmul.mubr.f32.gmra.mxu0 %v1798
  %v1902 = vpop.f32.mrf.mxu0
  %v1903 = vadd.f32 0.0, %v1902
  %v1904 = vpop.f32.mrf.mxu0
  %v1905 = vadd.f32 0.0, %v1904
  %1906 = vmatprep.mubr.f32.mxu0 0.0
  %1907 = vmatmul.mubr.f32.gmra.mxu0 %v1801
  %v1908 = vpop.f32.mrf.mxu0
  %v1909 = vadd.f32 0.0, %v1908
  %v1910 = vpop.f32.mrf.mxu0
  %v1911 = vadd.f32 0.0, %v1910
  %1912 = vmatprep.mubr.f32.mxu0 0.0
  %1913 = vmatmul.mubr.f32.gmra.mxu0 %v1804
  %v1914 = vpop.f32.mrf.mxu0
  %v1915 = vadd.f32 0.0, %v1914
  %v1916 = vpop.f32.mrf.mxu0
  %v1917 = vadd.f32 0.0, %v1916
  %1918 = vmatprep.mubr.f32.mxu0 0.0
  %1919 = vmatmul.mubr.f32.gmra.mxu0 %v1807
  %v1920 = vpop.f32.mrf.mxu0
  %v1921 = vadd.f32 0.0, %v1920
  %v1922 = vpop.f32.mrf.mxu0
  %v1923 = vadd.f32 0.0, %v1922
  %1924 = vmatprep.mubr.f32.mxu0 0.0
  %1925 = vmatmul.mubr.f32.gmra.mxu0 %v1810
  %v1926 = vpop.f32.mrf.mxu0
  %v1927 = vadd.f32 0.0, %v1926
  %v1928 = vpop.f32.mrf.mxu0
  %v1929 = vadd.f32 0.0, %v1928
  %1930 = vdwg.mxu0
  %v1932 = vsel %vm64, %v1763, 0
  %v1935 = vsel %vm89, %v1777, 0
  %v1938 = vsel %vm89, %v1778, 0
  %1940 = vmatprep.subr.mxu0 0.0
  %1941 = vmatpush1.msra.mxu0 0.0
  %1942 = vmatprep.subr.mxu0 0.0
  %1943 = vmatpush1.msra.mxu0 0.0
  %1944 = vmatprep.subr.mxu0 0.0
  %1945 = vmatpush1.msra.mxu0 0.0
  %1946 = vmatprep.subr.mxu0 0.0
  %1947 = vmatpush1.msra.mxu0 0.0
  %1948 = vmatprep.subr.mxu0 0.0
  %1949 = vmatpush1.msra.mxu0 0.0
  %1950 = vmatprep.subr.mxu0 0.0
  %1951 = vmatpush1.msra.mxu0 0.0
  %1952 = vmatprep.subr.mxu0 0.0
  %1953 = vmatpush1.msra.mxu0 0.0
  %1954 = vmatprep.subr.mxu0 0.0
  %1955 = vmatpush1.msra.mxu0 0.0
  %1956 = vmatprep.subr.mxu0 0.0
  %1957 = vmatpush1.msra.mxu0 0.0
  %1958 = vmatprep.subr.mxu0 0.0
  %1959 = vmatpush1.msra.mxu0 0.0
  %1960 = vmatprep.subr.mxu0 0.0
  %1961 = vmatpush1.msra.mxu0 0.0
  %1962 = vmatprep.subr.mxu0 0.0
  %1963 = vmatpush1.msra.mxu0 0.0
  %1964 = vmatprep.subr.mxu0 %v1938
  %1965 = vmatpush1.msra.mxu0 %v1935
  %1966 = vmatprep.subr.mxu0 %v1776
  %1967 = vmatpush1.msra.mxu0 %v1775
  %1968 = vmatprep.subr.mxu0 %v1774
  %1969 = vmatpush1.msra.mxu0 %v1773
  %1970 = vmatprep.subr.mxu0 %v1772
  %1971 = vmatpush1.msra.mxu0 %v1771
  %1972 = vmatprep.subr.mxu0 0.0
  %1973 = vmatpush2.msra.mxu0 0.0
  %1974 = vmatprep.subr.mxu0 0.0
  %1975 = vmatpush2.msra.mxu0 0.0
  %1976 = vmatprep.subr.mxu0 0.0
  %1977 = vmatpush2.msra.mxu0 0.0
  %1978 = vmatprep.subr.mxu0 0.0
  %1979 = vmatpush2.msra.mxu0 0.0
  %1980 = vmatprep.subr.mxu0 0.0
  %1981 = vmatpush2.msra.mxu0 0.0
  %1982 = vmatprep.subr.mxu0 0.0
  %1983 = vmatpush2.msra.mxu0 0.0
  %1984 = vmatprep.subr.mxu0 0.0
  %1985 = vmatpush2.msra.mxu0 0.0
  %1986 = vmatprep.subr.mxu0 0.0
  %1987 = vmatpush2.msra.mxu0 0.0
  %1988 = vmatprep.subr.mxu0 0.0
  %1989 = vmatpush2.msra.mxu0 0.0
  %1990 = vmatprep.subr.mxu0 0.0
  %1991 = vmatpush2.msra.mxu0 0.0
  %1992 = vmatprep.subr.mxu0 0.0
  %1993 = vmatpush2.msra.mxu0 0.0
  %1994 = vmatprep.subr.mxu0 0.0
  %1995 = vmatpush2.msra.mxu0 0.0
  %1996 = vmatprep.subr.mxu0 0.0
  %1997 = vmatpush2.msra.mxu0 0.0
  %1998 = vmatprep.subr.mxu0 0.0
  %1999 = vmatpush2.msra.mxu0 0.0
  %2000 = vmatprep.subr.mxu0 0.0
  %2001 = vmatpush2.msra.mxu0 0.0
  %2002 = vmatprep.subr.mxu0 0.0
  %2003 = vmatpush2.msra.mxu0 0.0
  %2004 = vmatprep.mubr.f32.mxu0 0.0
  %2005 = vmatmul.mubr.f32.gmra.mxu0 %v1932
  %v2006 = vpop.f32.mrf.mxu0
  %v2007 = vadd.f32 %v1885, %v2006
  %v2008 = vpop.f32.mrf.mxu0
  %v2009 = vadd.f32 %v1887, %v2008
  %2010 = vmatprep.mubr.f32.mxu0 0.0
  %2011 = vmatmul.mubr.f32.gmra.mxu0 %v1789
  %v2012 = vpop.f32.mrf.mxu0
  %v2013 = vadd.f32 %v1891, %v2012
  %v2014 = vpop.f32.mrf.mxu0
  %v2015 = vadd.f32 %v1893, %v2014
  %2016 = vmatprep.mubr.f32.mxu0 0.0
  %2017 = vmatmul.mubr.f32.gmra.mxu0 %v1792
  %v2018 = vpop.f32.mrf.mxu0
  %v2019 = vadd.f32 %v1897, %v2018
  %v2020 = vpop.f32.mrf.mxu0
  %v2021 = vadd.f32 %v1899, %v2020
  %2022 = vmatprep.mubr.f32.mxu0 0.0
  %2023 = vmatmul.mubr.f32.gmra.mxu0 %v1795
  %v2024 = vpop.f32.mrf.mxu0
  %v2025 = vadd.f32 %v1903, %v2024
  %v2026 = vpop.f32.mrf.mxu0
  %v2027 = vadd.f32 %v1905, %v2026
  %2028 = vmatprep.mubr.f32.mxu0 0.0
  %2029 = vmatmul.mubr.f32.gmra.mxu0 %v1798
  %v2030 = vpop.f32.mrf.mxu0
  %v2031 = vadd.f32 %v1909, %v2030
  %v2032 = vpop.f32.mrf.mxu0
  %v2033 = vadd.f32 %v1911, %v2032
  %2034 = vmatprep.mubr.f32.mxu0 0.0
  %2035 = vmatmul.mubr.f32.gmra.mxu0 %v1801
  %v2036 = vpop.f32.mrf.mxu0
  %v2037 = vadd.f32 %v1915, %v2036
  %v2038 = vpop.f32.mrf.mxu0
  %v2039 = vadd.f32 %v1917, %v2038
  %2040 = vmatprep.mubr.f32.mxu0 0.0
  %2041 = vmatmul.mubr.f32.gmra.mxu0 %v1804
  %v2042 = vpop.f32.mrf.mxu0
  %v2043 = vadd.f32 %v1921, %v2042
  %v2044 = vpop.f32.mrf.mxu0
  %v2045 = vadd.f32 %v1923, %v2044
  %2046 = vmatprep.mubr.f32.mxu0 0.0
  %2047 = vmatmul.mubr.f32.gmra.mxu0 %v1807
  %v2048 = vpop.f32.mrf.mxu0
  %v2049 = vadd.f32 %v1927, %v2048
  %v2050 = vpop.f32.mrf.mxu0
  %v2051 = vadd.f32 %v1929, %v2050
  %2052 = vdwg.mxu0
  %v2053 = vld [vmem:[%s0 + $0x90] sm:$0xff]
  %v2054 = vld [vmem:[%s0 + $0x98] sm:$0xff]
  %v2055 = vld [vmem:[%s0 + $0xa0] sm:$0xff]
  %v2056 = vld [vmem:[%s0 + $0xa8] sm:$0xff]
  %v2057 = vld [vmem:[%s0 + $0xb0] sm:$0xff]
  %v2058 = vld [vmem:[%s0 + $0xb8] sm:$0xff]
  %v2059 = vld [vmem:[%s0 + $0xc0] sm:$0xff]
  %v2060 = vld [vmem:[%s0 + $0xc8] sm:$0xff]
  %v2061 = vld [vmem:[%s339] sm:$0xff]
  %v2062 = vld [vmem:[%s339 + $0x8] sm:$0xff]
  %v2063 = vld [vmem:[%s339 + $0x10] sm:$0xff]
  %v2064 = vld [vmem:[%s339 + $0x18] sm:$0xff]
  %v2065 = vld [vmem:[%s339 + $0x20] sm:$0xff]
  %v2066 = vld [vmem:[%s339 + $0x28] sm:$0xff]
  %v2067 = vld [vmem:[%s339 + $0x30] sm:$0xf]
  %v2068 = vld [vmem:[%s339 + $0x38] sm:$0xf]
  %v2070 = vsel %vm64, %v2053, 0
  %v2073 = vsel %vm64, %v2054, 0
  %v2076 = vsel %vm64, %v2055, 0
  %v2079 = vsel %vm64, %v2056, 0
  %v2082 = vsel %vm64, %v2057, 0
  %v2085 = vsel %vm64, %v2058, 0
  %v2088 = vsel %vm64, %v2059, 0
  %v2091 = vsel %vm64, %v2060, 0
  %v2094 = vsel %vm89, %v2067, 0
  %v2097 = vsel %vm89, %v2068, 0
  %2099 = vmatprep.subr.mxu0 0.0
  %2100 = vmatpush1.msra.mxu0 0.0
  %2101 = vmatprep.subr.mxu0 0.0
  %2102 = vmatpush1.msra.mxu0 0.0
  %2103 = vmatprep.subr.mxu0 0.0
  %2104 = vmatpush1.msra.mxu0 0.0
  %2105 = vmatprep.subr.mxu0 0.0
  %2106 = vmatpush1.msra.mxu0 0.0
  %2107 = vmatprep.subr.mxu0 0.0
  %2108 = vmatpush1.msra.mxu0 0.0
  %2109 = vmatprep.subr.mxu0 0.0
  %2110 = vmatpush1.msra.mxu0 0.0
  %2111 = vmatprep.subr.mxu0 0.0
  %2112 = vmatpush1.msra.mxu0 0.0
  %2113 = vmatprep.subr.mxu0 0.0
  %2114 = vmatpush1.msra.mxu0 0.0
  %2115 = vmatprep.subr.mxu0 0.0
  %2116 = vmatpush1.msra.mxu0 0.0
  %2117 = vmatprep.subr.mxu0 0.0
  %2118 = vmatpush1.msra.mxu0 0.0
  %2119 = vmatprep.subr.mxu0 0.0
  %2120 = vmatpush1.msra.mxu0 0.0
  %2121 = vmatprep.subr.mxu0 0.0
  %2122 = vmatpush1.msra.mxu0 0.0
  %2123 = vmatprep.subr.mxu0 %v2097
  %2124 = vmatpush1.msra.mxu0 %v2094
  %2125 = vmatprep.subr.mxu0 %v2066
  %2126 = vmatpush1.msra.mxu0 %v2065
  %2127 = vmatprep.subr.mxu0 %v2064
  %2128 = vmatpush1.msra.mxu0 %v2063
  %2129 = vmatprep.subr.mxu0 %v2062
  %2130 = vmatpush1.msra.mxu0 %v2061
  %2131 = vmatprep.subr.mxu0 0.0
  %2132 = vmatpush2.msra.mxu0 0.0
  %2133 = vmatprep.subr.mxu0 0.0
  %2134 = vmatpush2.msra.mxu0 0.0
  %2135 = vmatprep.subr.mxu0 0.0
  %2136 = vmatpush2.msra.mxu0 0.0
  %2137 = vmatprep.subr.mxu0 0.0
  %2138 = vmatpush2.msra.mxu0 0.0
  %2139 = vmatprep.subr.mxu0 0.0
  %2140 = vmatpush2.msra.mxu0 0.0
  %2141 = vmatprep.subr.mxu0 0.0
  %2142 = vmatpush2.msra.mxu0 0.0
  %2143 = vmatprep.subr.mxu0 0.0
  %2144 = vmatpush2.msra.mxu0 0.0
  %2145 = vmatprep.subr.mxu0 0.0
  %2146 = vmatpush2.msra.mxu0 0.0
  %2147 = vmatprep.subr.mxu0 0.0
  %2148 = vmatpush2.msra.mxu0 0.0
  %2149 = vmatprep.subr.mxu0 0.0
  %2150 = vmatpush2.msra.mxu0 0.0
  %2151 = vmatprep.subr.mxu0 0.0
  %2152 = vmatpush2.msra.mxu0 0.0
  %2153 = vmatprep.subr.mxu0 0.0
  %2154 = vmatpush2.msra.mxu0 0.0
  %2155 = vmatprep.subr.mxu0 0.0
  %2156 = vmatpush2.msra.mxu0 0.0
  %2157 = vmatprep.subr.mxu0 0.0
  %2158 = vmatpush2.msra.mxu0 0.0
  %2159 = vmatprep.subr.mxu0 0.0
  %2160 = vmatpush2.msra.mxu0 0.0
  %2161 = vmatprep.subr.mxu0 0.0
  %2162 = vmatpush2.msra.mxu0 0.0
  %2163 = vmatprep.mubr.f32.mxu0 0.0
  %2164 = vmatmul.mubr.f32.gmra.mxu0 %v2070
  %v2165 = vpop.f32.mrf.mxu0
  %v2166 = vadd.f32 0.0, %v2165
  %v2167 = vpop.f32.mrf.mxu0
  %v2168 = vadd.f32 0.0, %v2167
  %2169 = vmatprep.mubr.f32.mxu0 0.0
  %2170 = vmatmul.mubr.f32.gmra.mxu0 %v2073
  %v2171 = vpop.f32.mrf.mxu0
  %v2172 = vadd.f32 0.0, %v2171
  %v2173 = vpop.f32.mrf.mxu0
  %v2174 = vadd.f32 0.0, %v2173
  %2175 = vmatprep.mubr.f32.mxu0 0.0
  %2176 = vmatmul.mubr.f32.gmra.mxu0 %v2076
  %v2177 = vpop.f32.mrf.mxu0
  %v2178 = vadd.f32 0.0, %v2177
  %v2179 = vpop.f32.mrf.mxu0
  %v2180 = vadd.f32 0.0, %v2179
  %2181 = vmatprep.mubr.f32.mxu0 0.0
  %2182 = vmatmul.mubr.f32.gmra.mxu0 %v2079
  %v2183 = vpop.f32.mrf.mxu0
  %v2184 = vadd.f32 0.0, %v2183
  %v2185 = vpop.f32.mrf.mxu0
  %v2186 = vadd.f32 0.0, %v2185
  %2187 = vmatprep.mubr.f32.mxu0 0.0
  %2188 = vmatmul.mubr.f32.gmra.mxu0 %v2082
  %v2189 = vpop.f32.mrf.mxu0
  %v2190 = vadd.f32 0.0, %v2189
  %v2191 = vpop.f32.mrf.mxu0
  %v2192 = vadd.f32 0.0, %v2191
  %2193 = vmatprep.mubr.f32.mxu0 0.0
  %2194 = vmatmul.mubr.f32.gmra.mxu0 %v2085
  %v2195 = vpop.f32.mrf.mxu0
  %v2196 = vadd.f32 0.0, %v2195
  %v2197 = vpop.f32.mrf.mxu0
  %v2198 = vadd.f32 0.0, %v2197
  %2199 = vmatprep.mubr.f32.mxu0 0.0
  %2200 = vmatmul.mubr.f32.gmra.mxu0 %v2088
  %v2201 = vpop.f32.mrf.mxu0
  %v2202 = vadd.f32 0.0, %v2201
  %v2203 = vpop.f32.mrf.mxu0
  %v2204 = vadd.f32 0.0, %v2203
  %2205 = vmatprep.mubr.f32.mxu0 0.0
  %2206 = vmatmul.mubr.f32.gmra.mxu0 %v2091
  %v2207 = vpop.f32.mrf.mxu0
  %v2208 = vadd.f32 0.0, %v2207
  %v2209 = vpop.f32.mrf.mxu0
  %v2210 = vadd.f32 0.0, %v2209
  %2211 = vdwg.mxu0
  %v2212 = vadd.f32 %v2007, %v2166
  %v2213 = vadd.f32 %v2009, %v2168
  %v2214 = vadd.f32 %v2013, %v2172
  %v2215 = vadd.f32 %v2015, %v2174
  %v2216 = vadd.f32 %v2019, %v2178
  %v2217 = vadd.f32 %v2021, %v2180
  %v2218 = vadd.f32 %v2025, %v2184
  %v2219 = vadd.f32 %v2027, %v2186
  %v2220 = vadd.f32 %v2031, %v2190
  %v2221 = vadd.f32 %v2033, %v2192
  %v2222 = vadd.f32 %v2037, %v2196
  %v2223 = vadd.f32 %v2039, %v2198
  %v2224 = vadd.f32 %v2043, %v2202
  %v2225 = vadd.f32 %v2045, %v2204
  %v2226 = vadd.f32 %v2049, %v2208
  %v2227 = vadd.f32 %v2051, %v2210
  %v2228 = vld [vmem:[%s0 + $0x98] sm:$0xff]
  %v2229 = vld [vmem:[%s0 + $0xa0] sm:$0xff]
  %v2230 = vld [vmem:[%s0 + $0xa8] sm:$0xff]
  %v2231 = vld [vmem:[%s0 + $0xb0] sm:$0xff]
  %v2232 = vld [vmem:[%s0 + $0xb8] sm:$0xff]
  %v2233 = vld [vmem:[%s0 + $0xc0] sm:$0xff]
  %v2234 = vld [vmem:[%s0 + $0xc8] sm:$0xff]
  %v2235 = vld [vmem:[%s0 + $0xd0] sm:$0xff]
  %v2236 = vld [vmem:[%s515] sm:$0xff]
  %v2237 = vld [vmem:[%s515 + $0x8] sm:$0xff]
  %v2238 = vld [vmem:[%s515 + $0x10] sm:$0xff]
  %v2239 = vld [vmem:[%s515 + $0x18] sm:$0xff]
  %v2240 = vld [vmem:[%s515 + $0x20] sm:$0xff]
  %v2241 = vld [vmem:[%s515 + $0x28] sm:$0xff]
  %v2242 = vld [vmem:[%s515 + $0x30] sm:$0xf]
  %v2243 = vld [vmem:[%s515 + $0x38] sm:$0xf]
  %v2245 = vsel %vm64, %v2228, 0
  %v2248 = vsel %vm64, %v2229, 0
  %v2251 = vsel %vm64, %v2230, 0
  %v2254 = vsel %vm64, %v2231, 0
  %v2257 = vsel %vm64, %v2232, 0
  %v2260 = vsel %vm64, %v2233, 0
  %v2263 = vsel %vm64, %v2234, 0
  %v2266 = vsel %vm64, %v2235, 0
  %v2269 = vsel %vm89, %v2242, 0
  %v2272 = vsel %vm89, %v2243, 0
  %2274 = vmatprep.subr.mxu0 0.0
  %2275 = vmatpush1.msra.mxu0 0.0
  %2276 = vmatprep.subr.mxu0 0.0
  %2277 = vmatpush1.msra.mxu0 0.0
  %2278 = vmatprep.subr.mxu0 0.0
  %2279 = vmatpush1.msra.mxu0 0.0
  %2280 = vmatprep.subr.mxu0 0.0
  %2281 = vmatpush1.msra.mxu0 0.0
  %2282 = vmatprep.subr.mxu0 0.0
  %2283 = vmatpush1.msra.mxu0 0.0
  %2284 = vmatprep.subr.mxu0 0.0
  %2285 = vmatpush1.msra.mxu0 0.0
  %2286 = vmatprep.subr.mxu0 0.0
  %2287 = vmatpush1.msra.mxu0 0.0
  %2288 = vmatprep.subr.mxu0 0.0
  %2289 = vmatpush1.msra.mxu0 0.0
  %2290 = vmatprep.subr.mxu0 0.0
  %2291 = vmatpush1.msra.mxu0 0.0
  %2292 = vmatprep.subr.mxu0 0.0
  %2293 = vmatpush1.msra.mxu0 0.0
  %2294 = vmatprep.subr.mxu0 0.0
  %2295 = vmatpush1.msra.mxu0 0.0
  %2296 = vmatprep.subr.mxu0 0.0
  %2297 = vmatpush1.msra.mxu0 0.0
  %2298 = vmatprep.subr.mxu0 %v2272
  %2299 = vmatpush1.msra.mxu0 %v2269
  %2300 = vmatprep.subr.mxu0 %v2241
  %2301 = vmatpush1.msra.mxu0 %v2240
  %2302 = vmatprep.subr.mxu0 %v2239
  %2303 = vmatpush1.msra.mxu0 %v2238
  %2304 = vmatprep.subr.mxu0 %v2237
  %2305 = vmatpush1.msra.mxu0 %v2236
  %2306 = vmatprep.subr.mxu0 0.0
  %2307 = vmatpush2.msra.mxu0 0.0
  %2308 = vmatprep.subr.mxu0 0.0
  %2309 = vmatpush2.msra.mxu0 0.0
  %2310 = vmatprep.subr.mxu0 0.0
  %2311 = vmatpush2.msra.mxu0 0.0
  %2312 = vmatprep.subr.mxu0 0.0
  %2313 = vmatpush2.msra.mxu0 0.0
  %2314 = vmatprep.subr.mxu0 0.0
  %2315 = vmatpush2.msra.mxu0 0.0
  %2316 = vmatprep.subr.mxu0 0.0
  %2317 = vmatpush2.msra.mxu0 0.0
  %2318 = vmatprep.subr.mxu0 0.0
  %2319 = vmatpush2.msra.mxu0 0.0
  %2320 = vmatprep.subr.mxu0 0.0
  %2321 = vmatpush2.msra.mxu0 0.0
  %2322 = vmatprep.subr.mxu0 0.0
  %2323 = vmatpush2.msra.mxu0 0.0
  %2324 = vmatprep.subr.mxu0 0.0
  %2325 = vmatpush2.msra.mxu0 0.0
  %2326 = vmatprep.subr.mxu0 0.0
  %2327 = vmatpush2.msra.mxu0 0.0
  %2328 = vmatprep.subr.mxu0 0.0
  %2329 = vmatpush2.msra.mxu0 0.0
  %2330 = vmatprep.subr.mxu0 0.0
  %2331 = vmatpush2.msra.mxu0 0.0
  %2332 = vmatprep.subr.mxu0 0.0
  %2333 = vmatpush2.msra.mxu0 0.0
  %2334 = vmatprep.subr.mxu0 0.0
  %2335 = vmatpush2.msra.mxu0 0.0
  %2336 = vmatprep.subr.mxu0 0.0
  %2337 = vmatpush2.msra.mxu0 0.0
  %2338 = vmatprep.mubr.f32.mxu0 0.0
  %2339 = vmatmul.mubr.f32.gmra.mxu0 %v2245
  %v2340 = vpop.f32.mrf.mxu0
  %v2341 = vadd.f32 0.0, %v2340
  %v2342 = vpop.f32.mrf.mxu0
  %v2343 = vadd.f32 0.0, %v2342
  %2344 = vmatprep.mubr.f32.mxu0 0.0
  %2345 = vmatmul.mubr.f32.gmra.mxu0 %v2248
  %v2346 = vpop.f32.mrf.mxu0
  %v2347 = vadd.f32 0.0, %v2346
  %v2348 = vpop.f32.mrf.mxu0
  %v2349 = vadd.f32 0.0, %v2348
  %2350 = vmatprep.mubr.f32.mxu0 0.0
  %2351 = vmatmul.mubr.f32.gmra.mxu0 %v2251
  %v2352 = vpop.f32.mrf.mxu0
  %v2353 = vadd.f32 0.0, %v2352
  %v2354 = vpop.f32.mrf.mxu0
  %v2355 = vadd.f32 0.0, %v2354
  %2356 = vmatprep.mubr.f32.mxu0 0.0
  %2357 = vmatmul.mubr.f32.gmra.mxu0 %v2254
  %v2358 = vpop.f32.mrf.mxu0
  %v2359 = vadd.f32 0.0, %v2358
  %v2360 = vpop.f32.mrf.mxu0
  %v2361 = vadd.f32 0.0, %v2360
  %2362 = vmatprep.mubr.f32.mxu0 0.0
  %2363 = vmatmul.mubr.f32.gmra.mxu0 %v2257
  %v2364 = vpop.f32.mrf.mxu0
  %v2365 = vadd.f32 0.0, %v2364
  %v2366 = vpop.f32.mrf.mxu0
  %v2367 = vadd.f32 0.0, %v2366
  %2368 = vmatprep.mubr.f32.mxu0 0.0
  %2369 = vmatmul.mubr.f32.gmra.mxu0 %v2260
  %v2370 = vpop.f32.mrf.mxu0
  %v2371 = vadd.f32 0.0, %v2370
  %v2372 = vpop.f32.mrf.mxu0
  %v2373 = vadd.f32 0.0, %v2372
  %2374 = vmatprep.mubr.f32.mxu0 0.0
  %2375 = vmatmul.mubr.f32.gmra.mxu0 %v2263
  %v2376 = vpop.f32.mrf.mxu0
  %v2377 = vadd.f32 0.0, %v2376
  %v2378 = vpop.f32.mrf.mxu0
  %v2379 = vadd.f32 0.0, %v2378
  %2380 = vmatprep.mubr.f32.mxu0 0.0
  %2381 = vmatmul.mubr.f32.gmra.mxu0 %v2266
  %v2382 = vpop.f32.mrf.mxu0
  %v2383 = vadd.f32 0.0, %v2382
  %v2384 = vpop.f32.mrf.mxu0
  %v2385 = vadd.f32 0.0, %v2384
  %2386 = vdwg.mxu0
  %v2387 = vadd.f32 %v2212, %v2341
  %v2388 = vadd.f32 %v2213, %v2343
  %v2389 = vadd.f32 %v2214, %v2347
  %v2390 = vadd.f32 %v2215, %v2349
  %v2391 = vadd.f32 %v2216, %v2353
  %v2392 = vadd.f32 %v2217, %v2355
  %v2393 = vadd.f32 %v2218, %v2359
  %v2394 = vadd.f32 %v2219, %v2361
  %v2395 = vadd.f32 %v2220, %v2365
  %v2396 = vadd.f32 %v2221, %v2367
  %v2397 = vadd.f32 %v2222, %v2371
  %v2398 = vadd.f32 %v2223, %v2373
  %v2399 = vadd.f32 %v2224, %v2377
  %v2400 = vadd.f32 %v2225, %v2379
  %v2401 = vadd.f32 %v2226, %v2383
  %v2402 = vadd.f32 %v2227, %v2385
  %v2403 = vld [vmem:[%s0 + $0xa0] sm:$0xff]
  %v2404 = vld [vmem:[%s0 + $0xa8] sm:$0xff]
  %v2405 = vld [vmem:[%s0 + $0xb0] sm:$0xff]
  %v2406 = vld [vmem:[%s0 + $0xb8] sm:$0xff]
  %v2407 = vld [vmem:[%s0 + $0xc0] sm:$0xff]
  %v2408 = vld [vmem:[%s0 + $0xc8] sm:$0xff]
  %v2409 = vld [vmem:[%s0 + $0xd0] sm:$0xff]
  %v2410 = vld [vmem:[%s0 + $0xd8] sm:$0xff]
  %v2411 = vld [vmem:[%s691] sm:$0xff]
  %v2412 = vld [vmem:[%s691 + $0x8] sm:$0xff]
  %v2413 = vld [vmem:[%s691 + $0x10] sm:$0xff]
  %v2414 = vld [vmem:[%s691 + $0x18] sm:$0xff]
  %v2415 = vld [vmem:[%s691 + $0x20] sm:$0xff]
  %v2416 = vld [vmem:[%s691 + $0x28] sm:$0xff]
  %v2417 = vld [vmem:[%s691 + $0x30] sm:$0xf]
  %v2418 = vld [vmem:[%s691 + $0x38] sm:$0xf]
  %v2420 = vsel %vm64, %v2403, 0
  %v2423 = vsel %vm64, %v2404, 0
  %v2426 = vsel %vm64, %v2405, 0
  %v2429 = vsel %vm64, %v2406, 0
  %v2432 = vsel %vm64, %v2407, 0
  %v2435 = vsel %vm64, %v2408, 0
  %v2438 = vsel %vm64, %v2409, 0
  %v2441 = vsel %vm64, %v2410, 0
  %v2444 = vsel %vm89, %v2417, 0
  %v2447 = vsel %vm89, %v2418, 0
  %2449 = vmatprep.subr.mxu0 0.0
  %2450 = vmatpush1.msra.mxu0 0.0
  %2451 = vmatprep.subr.mxu0 0.0
  %2452 = vmatpush1.msra.mxu0 0.0
  %2453 = vmatprep.subr.mxu0 0.0
  %2454 = vmatpush1.msra.mxu0 0.0
  %2455 = vmatprep.subr.mxu0 0.0
  %2456 = vmatpush1.msra.mxu0 0.0
  %2457 = vmatprep.subr.mxu0 0.0
  %2458 = vmatpush1.msra.mxu0 0.0
  %2459 = vmatprep.subr.mxu0 0.0
  %2460 = vmatpush1.msra.mxu0 0.0
  %2461 = vmatprep.subr.mxu0 0.0
  %2462 = vmatpush1.msra.mxu0 0.0
  %2463 = vmatprep.subr.mxu0 0.0
  %2464 = vmatpush1.msra.mxu0 0.0
  %2465 = vmatprep.subr.mxu0 0.0
  %2466 = vmatpush1.msra.mxu0 0.0
  %2467 = vmatprep.subr.mxu0 0.0
  %2468 = vmatpush1.msra.mxu0 0.0
  %2469 = vmatprep.subr.mxu0 0.0
  %2470 = vmatpush1.msra.mxu0 0.0
  %2471 = vmatprep.subr.mxu0 0.0
  %2472 = vmatpush1.msra.mxu0 0.0
  %2473 = vmatprep.subr.mxu0 %v2447
  %2474 = vmatpush1.msra.mxu0 %v2444
  %2475 = vmatprep.subr.mxu0 %v2416
  %2476 = vmatpush1.msra.mxu0 %v2415
  %2477 = vmatprep.subr.mxu0 %v2414
  %2478 = vmatpush1.msra.mxu0 %v2413
  %2479 = vmatprep.subr.mxu0 %v2412
  %2480 = vmatpush1.msra.mxu0 %v2411
  %2481 = vmatprep.subr.mxu0 0.0
  %2482 = vmatpush2.msra.mxu0 0.0
  %2483 = vmatprep.subr.mxu0 0.0
  %2484 = vmatpush2.msra.mxu0 0.0
  %2485 = vmatprep.subr.mxu0 0.0
  %2486 = vmatpush2.msra.mxu0 0.0
  %2487 = vmatprep.subr.mxu0 0.0
  %2488 = vmatpush2.msra.mxu0 0.0
  %2489 = vmatprep.subr.mxu0 0.0
  %2490 = vmatpush2.msra.mxu0 0.0
  %2491 = vmatprep.subr.mxu0 0.0
  %2492 = vmatpush2.msra.mxu0 0.0
  %2493 = vmatprep.subr.mxu0 0.0
  %2494 = vmatpush2.msra.mxu0 0.0
  %2495 = vmatprep.subr.mxu0 0.0
  %2496 = vmatpush2.msra.mxu0 0.0
  %2497 = vmatprep.subr.mxu0 0.0
  %2498 = vmatpush2.msra.mxu0 0.0
  %2499 = vmatprep.subr.mxu0 0.0
  %2500 = vmatpush2.msra.mxu0 0.0
  %2501 = vmatprep.subr.mxu0 0.0
  %2502 = vmatpush2.msra.mxu0 0.0
  %2503 = vmatprep.subr.mxu0 0.0
  %2504 = vmatpush2.msra.mxu0 0.0
  %2505 = vmatprep.subr.mxu0 0.0
  %2506 = vmatpush2.msra.mxu0 0.0
  %2507 = vmatprep.subr.mxu0 0.0
  %2508 = vmatpush2.msra.mxu0 0.0
  %2509 = vmatprep.subr.mxu0 0.0
  %2510 = vmatpush2.msra.mxu0 0.0
  %2511 = vmatprep.subr.mxu0 0.0
  %2512 = vmatpush2.msra.mxu0 0.0
  %2513 = vmatprep.mubr.f32.mxu0 0.0
  %2514 = vmatmul.mubr.f32.gmra.mxu0 %v2420
  %v2515 = vpop.f32.mrf.mxu0
  %v2516 = vadd.f32 0.0, %v2515
  %v2517 = vpop.f32.mrf.mxu0
  %v2518 = vadd.f32 0.0, %v2517
  %2519 = vmatprep.mubr.f32.mxu0 0.0
  %2520 = vmatmul.mubr.f32.gmra.mxu0 %v2423
  %v2521 = vpop.f32.mrf.mxu0
  %v2522 = vadd.f32 0.0, %v2521
  %v2523 = vpop.f32.mrf.mxu0
  %v2524 = vadd.f32 0.0, %v2523
  %2525 = vmatprep.mubr.f32.mxu0 0.0
  %2526 = vmatmul.mubr.f32.gmra.mxu0 %v2426
  %v2527 = vpop.f32.mrf.mxu0
  %v2528 = vadd.f32 0.0, %v2527
  %v2529 = vpop.f32.mrf.mxu0
  %v2530 = vadd.f32 0.0, %v2529
  %2531 = vmatprep.mubr.f32.mxu0 0.0
  %2532 = vmatmul.mubr.f32.gmra.mxu0 %v2429
  %v2533 = vpop.f32.mrf.mxu0
  %v2534 = vadd.f32 0.0, %v2533
  %v2535 = vpop.f32.mrf.mxu0
  %v2536 = vadd.f32 0.0, %v2535
  %2537 = vmatprep.mubr.f32.mxu0 0.0
  %2538 = vmatmul.mubr.f32.gmra.mxu0 %v2432
  %v2539 = vpop.f32.mrf.mxu0
  %v2540 = vadd.f32 0.0, %v2539
  %v2541 = vpop.f32.mrf.mxu0
  %v2542 = vadd.f32 0.0, %v2541
  %2543 = vmatprep.mubr.f32.mxu0 0.0
  %2544 = vmatmul.mubr.f32.gmra.mxu0 %v2435
  %v2545 = vpop.f32.mrf.mxu0
  %v2546 = vadd.f32 0.0, %v2545
  %v2547 = vpop.f32.mrf.mxu0
  %v2548 = vadd.f32 0.0, %v2547
  %2549 = vmatprep.mubr.f32.mxu0 0.0
  %2550 = vmatmul.mubr.f32.gmra.mxu0 %v2438
  %v2551 = vpop.f32.mrf.mxu0
  %v2552 = vadd.f32 0.0, %v2551
  %v2553 = vpop.f32.mrf.mxu0
  %v2554 = vadd.f32 0.0, %v2553
  %2555 = vmatprep.mubr.f32.mxu0 0.0
  %2556 = vmatmul.mubr.f32.gmra.mxu0 %v2441
  %v2557 = vpop.f32.mrf.mxu0
  %v2558 = vadd.f32 0.0, %v2557
  %v2559 = vpop.f32.mrf.mxu0
  %v2560 = vadd.f32 0.0, %v2559
  %2561 = vdwg.mxu0
  %v2562 = vadd.f32 %v2387, %v2516
  %v2563 = vadd.f32 %v2388, %v2518
  %v2564 = vadd.f32 %v2389, %v2522
  %v2565 = vadd.f32 %v2390, %v2524
  %v2566 = vadd.f32 %v2391, %v2528
  %v2567 = vadd.f32 %v2392, %v2530
  %v2568 = vadd.f32 %v2393, %v2534
  %v2569 = vadd.f32 %v2394, %v2536
  %v2570 = vadd.f32 %v2395, %v2540
  %v2571 = vadd.f32 %v2396, %v2542
  %v2572 = vadd.f32 %v2397, %v2546
  %v2573 = vadd.f32 %v2398, %v2548
  %v2574 = vadd.f32 %v2399, %v2552
  %v2575 = vadd.f32 %v2400, %v2554
  %v2576 = vadd.f32 %v2401, %v2558
  %v2577 = vadd.f32 %v2402, %v2560
  %v2578 = vld [vmem:[%s2] sm:$0x3]
  %v2580 = vlaneseq
  %v2581 = vshrl.u32 %v2580, 7
  %v2582 = vsub.s32 0, %v2581
  %v2583 = vrot.slane %v2578, %v2582
  %v2584 = vlaneseq
  %v2585 = vshrl.u32 %v2584, 7
  %v2586 = vsub.s32 1, %v2585
  %v2587 = vrot.slane %v2578, %v2586
  %v2590 = vadd.f32 %v2562, %v2583
  %v2591 = vadd.f32 %v2563, %v2587
  %v2592 = vadd.f32 %v2564, %v2583
  %v2593 = vadd.f32 %v2565, %v2587
  %v2594 = vadd.f32 %v2566, %v2583
  %v2595 = vadd.f32 %v2567, %v2587
  %v2596 = vadd.f32 %v2568, %v2583
  %v2597 = vadd.f32 %v2569, %v2587
  %v2598 = vadd.f32 %v2570, %v2583
  %v2599 = vadd.f32 %v2571, %v2587
  %v2600 = vadd.f32 %v2572, %v2583
  %v2601 = vadd.f32 %v2573, %v2587
  %v2602 = vadd.f32 %v2574, %v2583
  %v2603 = vadd.f32 %v2575, %v2587
  %v2604 = vadd.f32 %v2576, %v2583
  %v2605 = vadd.f32 %v2577, %v2587
  %2606 = vst [vmem:[#allocation2 + $0x100] sm:$0xff] %v2590
  %2607 = vst.msk [vmem:[#allocation2 + $0x108] sm:$0xff] %vm888, %v2591
  %2608 = vst [vmem:[#allocation2 + $0x110] sm:$0xff] %v2592
  %2609 = vst.msk [vmem:[#allocation2 + $0x118] sm:$0xff] %vm888, %v2593
  %2610 = vst [vmem:[#allocation2 + $0x120] sm:$0xff] %v2594
  %2611 = vst.msk [vmem:[#allocation2 + $0x128] sm:$0xff] %vm888, %v2595
  %2612 = vst [vmem:[#allocation2 + $0x130] sm:$0xff] %v2596
  %2613 = vst.msk [vmem:[#allocation2 + $0x138] sm:$0xff] %vm888, %v2597
  %2614 = vst [vmem:[#allocation2 + $0x140] sm:$0xff] %v2598
  %2615 = vst.msk [vmem:[#allocation2 + $0x148] sm:$0xff] %vm888, %v2599
  %2616 = vst [vmem:[#allocation2 + $0x150] sm:$0xff] %v2600
  %2617 = vst.msk [vmem:[#allocation2 + $0x158] sm:$0xff] %vm888, %v2601
  %2618 = vst [vmem:[#allocation2 + $0x160] sm:$0xff] %v2602
  %2619 = vst.msk [vmem:[#allocation2 + $0x168] sm:$0xff] %vm888, %v2603
  %2620 = vst [vmem:[#allocation2 + $0x170] sm:$0xff] %v2604
  %2621 = vst.msk [vmem:[#allocation2 + $0x178] sm:$0xff] %vm888, %v2605
  %v2622 = vld [vmem:[%s3] sm:$0xff]
  %v2623 = vld [vmem:[%s3 + $0x8] sm:$0xff]
  %v2624 = vld [vmem:[%s3 + $0x10] sm:$0xff]
  %v2625 = vld [vmem:[%s3 + $0x18] sm:$0xff]
  %v2626 = vld [vmem:[%s3 + $0x20] sm:$0xff]
  %v2627 = vld [vmem:[%s3 + $0x28] sm:$0xff]
  %v2628 = vld [vmem:[%s3 + $0x30] sm:$0xff]
  %v2629 = vld [vmem:[%s3 + $0x38] sm:$0xff]
  %v2630 = vld [vmem:[%s3 + $0x40] sm:$0xff]
  %v2631 = vld [vmem:[%s3 + $0x48] sm:$0xff]
  %v2632 = vld [vmem:[%s3 + $0x50] sm:$0xff]
  %v2633 = vld [vmem:[%s3 + $0x58] sm:$0xff]
  %v2634 = vld [vmem:[%s3 + $0x60] sm:$0xff]
  %v2635 = vld [vmem:[%s3 + $0x68] sm:$0xff]
  %v2636 = vld [vmem:[%s3 + $0x70] sm:$0xff]
  %v2637 = vld [vmem:[%s3 + $0x78] sm:$0xff]
  %v2638 = vld [vmem:[%s3 + $0x80] sm:$0xff]
  %v2639 = vld [vmem:[%s3 + $0x88] sm:$0xff]
  %v2640 = vld [vmem:[%s3 + $0x90] sm:$0xff]
  %v2641 = vld [vmem:[%s3 + $0x98] sm:$0xff]
  %v2642 = vld [vmem:[%s3 + $0xa0] sm:$0xff]
  %v2643 = vld [vmem:[%s3 + $0xa8] sm:$0xff]
  %v2644 = vld [vmem:[%s3 + $0xb0] sm:$0xff]
  %v2645 = vld [vmem:[%s3 + $0xb8] sm:$0xff]
  %v2646 = vld [vmem:[%s3 + $0xc0] sm:$0xff]
  %v2647 = vld [vmem:[%s3 + $0xc8] sm:$0xff]
  %v2648 = vld [vmem:[%s3 + $0xd0] sm:$0xff]
  %v2649 = vld [vmem:[%s3 + $0xd8] sm:$0xff]
  %v2650 = vld [vmem:[%s3 + $0xe0] sm:$0xff]
  %v2651 = vld [vmem:[%s3 + $0xe8] sm:$0xff]
  %s2652 = scalar_lea.vmem %s3, 240
  %v2653 = vld [vmem:[%s2652] sm:$0xff]
  %v2654 = vld [vmem:[%s2652 + $0x8] sm:$0xff]
  %v2655 = vld [vmem:[%s2652 + $0x10] sm:$0xff]
  %v2656 = vld [vmem:[%s2652 + $0x18] sm:$0xff]
  %v2657 = vld [vmem:[%s2652 + $0x20] sm:$0xff]
  %v2658 = vld [vmem:[%s2652 + $0x28] sm:$0xff]
  %v2659 = vld [vmem:[%s2652 + $0x30] sm:$0xff]
  %v2660 = vld [vmem:[%s2652 + $0x38] sm:$0xff]
  %v2661 = vld [vmem:[%s2652 + $0x40] sm:$0xff]
  %v2662 = vld [vmem:[%s2652 + $0x48] sm:$0xff]
  %v2663 = vld [vmem:[%s2652 + $0x50] sm:$0xff]
  %v2664 = vld [vmem:[%s2652 + $0x58] sm:$0xff]
  %v2665 = vld [vmem:[%s2652 + $0x60] sm:$0xff]
  %v2666 = vld [vmem:[%s2652 + $0x68] sm:$0xff]
  %v2667 = vld [vmem:[%s2652 + $0x70] sm:$0xff]
  %v2668 = vld [vmem:[%s2652 + $0x78] sm:$0xff]
  %v2669 = vld [vmem:[%s2652 + $0x80] sm:$0xff]
  %v2670 = vld [vmem:[%s2652 + $0x88] sm:$0xff]
  %v2671 = vld [vmem:[%s2652 + $0x90] sm:$0xff]
  %v2672 = vld [vmem:[%s2652 + $0x98] sm:$0xff]
  %v2673 = vld [vmem:[%s2652 + $0xa0] sm:$0xff]
  %v2674 = vld [vmem:[%s2652 + $0xa8] sm:$0xff]
  %v2675 = vld [vmem:[%s2652 + $0xb0] sm:$0xff]
  %v2676 = vld [vmem:[%s2652 + $0xb8] sm:$0xff]
  %v2677 = vld [vmem:[%s2652 + $0xc0] sm:$0xff]
  %v2678 = vld [vmem:[%s2652 + $0xc8] sm:$0xff]
  %v2679 = vld [vmem:[%s2652 + $0xd0] sm:$0xff]
  %v2680 = vld [vmem:[%s2652 + $0xd8] sm:$0xff]
  %v2681 = vld [vmem:[%s2652 + $0xe0] sm:$0xff]
  %v2682 = vld [vmem:[%s2652 + $0xe8] sm:$0xff]
  %v2683 = vld [vmem:[#allocation2] sm:$0xff]
  %v2684 = vld [vmem:[#allocation2 + $0x8] sm:$0xff]
  %v2685 = vld [vmem:[#allocation2 + $0x10] sm:$0xff]
  %v2686 = vld [vmem:[#allocation2 + $0x18] sm:$0xff]
  %v2687 = vmax.f32 %v2683, %v2685
  %v2688 = vmax.f32 %v2684, %v2686
  %v2690 = vsel %vm888, %v2688, 0
  %2692 = vmatprep.subr.mxu0 0.0
  %2693 = vmatpush1.msra.mxu0 %v2637
  %2694 = vmatprep.subr.mxu0 0.0
  %2695 = vmatpush1.msra.mxu0 %v2636
  %2696 = vmatprep.subr.mxu0 0.0
  %2697 = vmatpush1.msra.mxu0 %v2635
  %2698 = vmatprep.subr.mxu0 0.0
  %2699 = vmatpush1.msra.mxu0 %v2634
  %2700 = vmatprep.subr.mxu0 0.0
  %2701 = vmatpush1.msra.mxu0 %v2633
  %2702 = vmatprep.subr.mxu0 0.0
  %2703 = vmatpush1.msra.mxu0 %v2632
  %2704 = vmatprep.subr.mxu0 0.0
  %2705 = vmatpush1.msra.mxu0 %v2631
  %2706 = vmatprep.subr.mxu0 0.0
  %2707 = vmatpush1.msra.mxu0 %v2630
  %2708 = vmatprep.subr.mxu0 0.0
  %2709 = vmatpush1.msra.mxu0 %v2629
  %2710 = vmatprep.subr.mxu0 0.0
  %2711 = vmatpush1.msra.mxu0 %v2628
  %2712 = vmatprep.subr.mxu0 0.0
  %2713 = vmatpush1.msra.mxu0 %v2627
  %2714 = vmatprep.subr.mxu0 0.0
  %2715 = vmatpush1.msra.mxu0 %v2626
  %2716 = vmatprep.subr.mxu0 0.0
  %2717 = vmatpush1.msra.mxu0 %v2625
  %2718 = vmatprep.subr.mxu0 0.0
  %2719 = vmatpush1.msra.mxu0 %v2624
  %2720 = vmatprep.subr.mxu0 0.0
  %2721 = vmatpush1.msra.mxu0 %v2623
  %2722 = vmatprep.subr.mxu0 0.0
  %2723 = vmatpush1.msra.mxu0 %v2622
  %2724 = vmatprep.subr.mxu0 0.0
  %2725 = vmatpush2.msra.mxu0 0.0
  %2726 = vmatprep.subr.mxu0 0.0
  %2727 = vmatpush2.msra.mxu0 0.0
  %2728 = vmatprep.subr.mxu0 0.0
  %2729 = vmatpush2.msra.mxu0 %v2651
  %2730 = vmatprep.subr.mxu0 0.0
  %2731 = vmatpush2.msra.mxu0 %v2650
  %2732 = vmatprep.subr.mxu0 0.0
  %2733 = vmatpush2.msra.mxu0 %v2649
  %2734 = vmatprep.subr.mxu0 0.0
  %2735 = vmatpush2.msra.mxu0 %v2648
  %2736 = vmatprep.subr.mxu0 0.0
  %2737 = vmatpush2.msra.mxu0 %v2647
  %2738 = vmatprep.subr.mxu0 0.0
  %2739 = vmatpush2.msra.mxu0 %v2646
  %2740 = vmatprep.subr.mxu0 0.0
  %2741 = vmatpush2.msra.mxu0 %v2645
  %2742 = vmatprep.subr.mxu0 0.0
  %2743 = vmatpush2.msra.mxu0 %v2644
  %2744 = vmatprep.subr.mxu0 0.0
  %2745 = vmatpush2.msra.mxu0 %v2643
  %2746 = vmatprep.subr.mxu0 0.0
  %2747 = vmatpush2.msra.mxu0 %v2642
  %2748 = vmatprep.subr.mxu0 0.0
  %2749 = vmatpush2.msra.mxu0 %v2641
  %2750 = vmatprep.subr.mxu0 0.0
  %2751 = vmatpush2.msra.mxu0 %v2640
  %2752 = vmatprep.subr.mxu0 0.0
  %2753 = vmatpush2.msra.mxu0 %v2639
  %2754 = vmatprep.subr.mxu0 0.0
  %2755 = vmatpush2.msra.mxu0 %v2638
  %2756 = vmatprep.mubr.f32.mxu0 %v2690
  %2757 = vmatmul.mubr.f32.gmra.mxu0 %v2687
  %v2758 = vpop.f32.mrf.mxu0
  %v2759 = vadd.f32 0.0, %v2758
  %v2760 = vpop.f32.mrf.mxu0
  %2761 = vdwg.mxu0
  %2762 = vmatprep.subr.mxu0 0.0
  %2763 = vmatpush1.msra.mxu0 %v2668
  %2764 = vmatprep.subr.mxu0 0.0
  %2765 = vmatpush1.msra.mxu0 %v2667
  %2766 = vmatprep.subr.mxu0 0.0
  %2767 = vmatpush1.msra.mxu0 %v2666
  %2768 = vmatprep.subr.mxu0 0.0
  %2769 = vmatpush1.msra.mxu0 %v2665
  %2770 = vmatprep.subr.mxu0 0.0
  %2771 = vmatpush1.msra.mxu0 %v2664
  %2772 = vmatprep.subr.mxu0 0.0
  %2773 = vmatpush1.msra.mxu0 %v2663
  %2774 = vmatprep.subr.mxu0 0.0
  %2775 = vmatpush1.msra.mxu0 %v2662
  %2776 = vmatprep.subr.mxu0 0.0
  %2777 = vmatpush1.msra.mxu0 %v2661
  %2778 = vmatprep.subr.mxu0 0.0
  %2779 = vmatpush1.msra.mxu0 %v2660
  %2780 = vmatprep.subr.mxu0 0.0
  %2781 = vmatpush1.msra.mxu0 %v2659
  %2782 = vmatprep.subr.mxu0 0.0
  %2783 = vmatpush1.msra.mxu0 %v2658
  %2784 = vmatprep.subr.mxu0 0.0
  %2785 = vmatpush1.msra.mxu0 %v2657
  %2786 = vmatprep.subr.mxu0 0.0
  %2787 = vmatpush1.msra.mxu0 %v2656
  %2788 = vmatprep.subr.mxu0 0.0
  %2789 = vmatpush1.msra.mxu0 %v2655
  %2790 = vmatprep.subr.mxu0 0.0
  %2791 = vmatpush1.msra.mxu0 %v2654
  %2792 = vmatprep.subr.mxu0 0.0
  %2793 = vmatpush1.msra.mxu0 %v2653
  %2794 = vmatprep.subr.mxu0 0.0
  %2795 = vmatpush2.msra.mxu0 0.0
  %2796 = vmatprep.subr.mxu0 0.0
  %2797 = vmatpush2.msra.mxu0 0.0
  %2798 = vmatprep.subr.mxu0 0.0
  %2799 = vmatpush2.msra.mxu0 %v2682
  %2800 = vmatprep.subr.mxu0 0.0
  %2801 = vmatpush2.msra.mxu0 %v2681
  %2802 = vmatprep.subr.mxu0 0.0
  %2803 = vmatpush2.msra.mxu0 %v2680
  %2804 = vmatprep.subr.mxu0 0.0
  %2805 = vmatpush2.msra.mxu0 %v2679
  %2806 = vmatprep.subr.mxu0 0.0
  %2807 = vmatpush2.msra.mxu0 %v2678
  %2808 = vmatprep.subr.mxu0 0.0
  %2809 = vmatpush2.msra.mxu0 %v2677
  %2810 = vmatprep.subr.mxu0 0.0
  %2811 = vmatpush2.msra.mxu0 %v2676
  %2812 = vmatprep.subr.mxu0 0.0
  %2813 = vmatpush2.msra.mxu0 %v2675
  %2814 = vmatprep.subr.mxu0 0.0
  %2815 = vmatpush2.msra.mxu0 %v2674
  %2816 = vmatprep.subr.mxu0 0.0
  %2817 = vmatpush2.msra.mxu0 %v2673
  %2818 = vmatprep.subr.mxu0 0.0
  %2819 = vmatpush2.msra.mxu0 %v2672
  %2820 = vmatprep.subr.mxu0 0.0
  %2821 = vmatpush2.msra.mxu0 %v2671
  %2822 = vmatprep.subr.mxu0 0.0
  %2823 = vmatpush2.msra.mxu0 %v2670
  %2824 = vmatprep.subr.mxu0 0.0
  %2825 = vmatpush2.msra.mxu0 %v2669
  %2826 = vmatprep.mubr.f32.mxu0 %v2690
  %2827 = vmatmul.mubr.f32.gmra.mxu0 %v2687
  %v2828 = vpop.f32.mrf.mxu0
  %v2829 = vadd.f32 0.0, %v2828
  %v2830 = vpop.f32.mrf.mxu0
  %2831 = vdwg.mxu0
  %v2832 = vmax.f32 %v2759, %v2829
  %vm2833 = vcmask 982016
  %2834 = vst.msk [vmem:[#allocation3] sm:$0xff] %vm2833, %v2832
  %v2835 = vld [vmem:[#allocation2 + $0x20] sm:$0xff]
  %v2836 = vld [vmem:[#allocation2 + $0x28] sm:$0xff]
  %v2837 = vld [vmem:[#allocation2 + $0x30] sm:$0xff]
  %v2838 = vld [vmem:[#allocation2 + $0x38] sm:$0xff]
  %v2839 = vmax.f32 %v2835, %v2837
  %v2840 = vmax.f32 %v2836, %v2838
  %v2842 = vsel %vm888, %v2840, 0
  %2844 = vmatprep.subr.mxu0 0.0
  %2845 = vmatpush1.msra.mxu0 %v2637
  %2846 = vmatprep.subr.mxu0 0.0
  %2847 = vmatpush1.msra.mxu0 %v2636
  %2848 = vmatprep.subr.mxu0 0.0
  %2849 = vmatpush1.msra.mxu0 %v2635
  %2850 = vmatprep.subr.mxu0 0.0
  %2851 = vmatpush1.msra.mxu0 %v2634
  %2852 = vmatprep.subr.mxu0 0.0
  %2853 = vmatpush1.msra.mxu0 %v2633
  %2854 = vmatprep.subr.mxu0 0.0
  %2855 = vmatpush1.msra.mxu0 %v2632
  %2856 = vmatprep.subr.mxu0 0.0
  %2857 = vmatpush1.msra.mxu0 %v2631
  %2858 = vmatprep.subr.mxu0 0.0
  %2859 = vmatpush1.msra.mxu0 %v2630
  %2860 = vmatprep.subr.mxu0 0.0
  %2861 = vmatpush1.msra.mxu0 %v2629
  %2862 = vmatprep.subr.mxu0 0.0
  %2863 = vmatpush1.msra.mxu0 %v2628
  %2864 = vmatprep.subr.mxu0 0.0
  %2865 = vmatpush1.msra.mxu0 %v2627
  %2866 = vmatprep.subr.mxu0 0.0
  %2867 = vmatpush1.msra.mxu0 %v2626
  %2868 = vmatprep.subr.mxu0 0.0
  %2869 = vmatpush1.msra.mxu0 %v2625
  %2870 = vmatprep.subr.mxu0 0.0
  %2871 = vmatpush1.msra.mxu0 %v2624
  %2872 = vmatprep.subr.mxu0 0.0
  %2873 = vmatpush1.msra.mxu0 %v2623
  %2874 = vmatprep.subr.mxu0 0.0
  %2875 = vmatpush1.msra.mxu0 %v2622
  %2876 = vmatprep.subr.mxu0 0.0
  %2877 = vmatpush2.msra.mxu0 0.0
  %2878 = vmatprep.subr.mxu0 0.0
  %2879 = vmatpush2.msra.mxu0 0.0
  %2880 = vmatprep.subr.mxu0 0.0
  %2881 = vmatpush2.msra.mxu0 %v2651
  %2882 = vmatprep.subr.mxu0 0.0
  %2883 = vmatpush2.msra.mxu0 %v2650
  %2884 = vmatprep.subr.mxu0 0.0
  %2885 = vmatpush2.msra.mxu0 %v2649
  %2886 = vmatprep.subr.mxu0 0.0
  %2887 = vmatpush2.msra.mxu0 %v2648
  %2888 = vmatprep.subr.mxu0 0.0
  %2889 = vmatpush2.msra.mxu0 %v2647
  %2890 = vmatprep.subr.mxu0 0.0
  %2891 = vmatpush2.msra.mxu0 %v2646
  %2892 = vmatprep.subr.mxu0 0.0
  %2893 = vmatpush2.msra.mxu0 %v2645
  %2894 = vmatprep.subr.mxu0 0.0
  %2895 = vmatpush2.msra.mxu0 %v2644
  %2896 = vmatprep.subr.mxu0 0.0
  %2897 = vmatpush2.msra.mxu0 %v2643
  %2898 = vmatprep.subr.mxu0 0.0
  %2899 = vmatpush2.msra.mxu0 %v2642
  %2900 = vmatprep.subr.mxu0 0.0
  %2901 = vmatpush2.msra.mxu0 %v2641
  %2902 = vmatprep.subr.mxu0 0.0
  %2903 = vmatpush2.msra.mxu0 %v2640
  %2904 = vmatprep.subr.mxu0 0.0
  %2905 = vmatpush2.msra.mxu0 %v2639
  %2906 = vmatprep.subr.mxu0 0.0
  %2907 = vmatpush2.msra.mxu0 %v2638
  %2908 = vmatprep.mubr.f32.mxu0 %v2842
  %2909 = vmatmul.mubr.f32.gmra.mxu0 %v2839
  %v2910 = vpop.f32.mrf.mxu0
  %v2911 = vadd.f32 0.0, %v2910
  %v2912 = vpop.f32.mrf.mxu0
  %2913 = vdwg.mxu0
  %2914 = vmatprep.subr.mxu0 0.0
  %2915 = vmatpush1.msra.mxu0 %v2668
  %2916 = vmatprep.subr.mxu0 0.0
  %2917 = vmatpush1.msra.mxu0 %v2667
  %2918 = vmatprep.subr.mxu0 0.0
  %2919 = vmatpush1.msra.mxu0 %v2666
  %2920 = vmatprep.subr.mxu0 0.0
  %2921 = vmatpush1.msra.mxu0 %v2665
  %2922 = vmatprep.subr.mxu0 0.0
  %2923 = vmatpush1.msra.mxu0 %v2664
  %2924 = vmatprep.subr.mxu0 0.0
  %2925 = vmatpush1.msra.mxu0 %v2663
  %2926 = vmatprep.subr.mxu0 0.0
  %2927 = vmatpush1.msra.mxu0 %v2662
  %2928 = vmatprep.subr.mxu0 0.0
  %2929 = vmatpush1.msra.mxu0 %v2661
  %2930 = vmatprep.subr.mxu0 0.0
  %2931 = vmatpush1.msra.mxu0 %v2660
  %2932 = vmatprep.subr.mxu0 0.0
  %2933 = vmatpush1.msra.mxu0 %v2659
  %2934 = vmatprep.subr.mxu0 0.0
  %2935 = vmatpush1.msra.mxu0 %v2658
  %2936 = vmatprep.subr.mxu0 0.0
  %2937 = vmatpush1.msra.mxu0 %v2657
  %2938 = vmatprep.subr.mxu0 0.0
  %2939 = vmatpush1.msra.mxu0 %v2656
  %2940 = vmatprep.subr.mxu0 0.0
  %2941 = vmatpush1.msra.mxu0 %v2655
  %2942 = vmatprep.subr.mxu0 0.0
  %2943 = vmatpush1.msra.mxu0 %v2654
  %2944 = vmatprep.subr.mxu0 0.0
  %2945 = vmatpush1.msra.mxu0 %v2653
  %2946 = vmatprep.subr.mxu0 0.0
  %2947 = vmatpush2.msra.mxu0 0.0
  %2948 = vmatprep.subr.mxu0 0.0
  %2949 = vmatpush2.msra.mxu0 0.0
  %2950 = vmatprep.subr.mxu0 0.0
  %2951 = vmatpush2.msra.mxu0 %v2682
  %2952 = vmatprep.subr.mxu0 0.0
  %2953 = vmatpush2.msra.mxu0 %v2681
  %2954 = vmatprep.subr.mxu0 0.0
  %2955 = vmatpush2.msra.mxu0 %v2680
  %2956 = vmatprep.subr.mxu0 0.0
  %2957 = vmatpush2.msra.mxu0 %v2679
  %2958 = vmatprep.subr.mxu0 0.0
  %2959 = vmatpush2.msra.mxu0 %v2678
  %2960 = vmatprep.subr.mxu0 0.0
  %2961 = vmatpush2.msra.mxu0 %v2677
  %2962 = vmatprep.subr.mxu0 0.0
  %2963 = vmatpush2.msra.mxu0 %v2676
  %2964 = vmatprep.subr.mxu0 0.0
  %2965 = vmatpush2.msra.mxu0 %v2675
  %2966 = vmatprep.subr.mxu0 0.0
  %2967 = vmatpush2.msra.mxu0 %v2674
  %2968 = vmatprep.subr.mxu0 0.0
  %2969 = vmatpush2.msra.mxu0 %v2673
  %2970 = vmatprep.subr.mxu0 0.0
  %2971 = vmatpush2.msra.mxu0 %v2672
  %2972 = vmatprep.subr.mxu0 0.0
  %2973 = vmatpush2.msra.mxu0 %v2671
  %2974 = vmatprep.subr.mxu0 0.0
  %2975 = vmatpush2.msra.mxu0 %v2670
  %2976 = vmatprep.subr.mxu0 0.0
  %2977 = vmatpush2.msra.mxu0 %v2669
  %2978 = vmatprep.mubr.f32.mxu0 %v2842
  %2979 = vmatmul.mubr.f32.gmra.mxu0 %v2839
  %v2980 = vpop.f32.mrf.mxu0
  %v2981 = vadd.f32 0.0, %v2980
  %v2982 = vpop.f32.mrf.mxu0
  %2983 = vdwg.mxu0
  %v2984 = vmax.f32 %v2911, %v2981
  %2985 = vst.msk [vmem:[#allocation3 + $0x8] sm:$0xff] %vm2833, %v2984
  %v2986 = vld [vmem:[#allocation2 + $0x40] sm:$0xff]
  %v2987 = vld [vmem:[#allocation2 + $0x48] sm:$0xff]
  %v2988 = vld [vmem:[#allocation2 + $0x50] sm:$0xff]
  %v2989 = vld [vmem:[#allocation2 + $0x58] sm:$0xff]
  %v2990 = vmax.f32 %v2986, %v2988
  %v2991 = vmax.f32 %v2987, %v2989
  %v2993 = vsel %vm888, %v2991, 0
  %2995 = vmatprep.subr.mxu0 0.0
  %2996 = vmatpush1.msra.mxu0 %v2637
  %2997 = vmatprep.subr.mxu0 0.0
  %2998 = vmatpush1.msra.mxu0 %v2636
  %2999 = vmatprep.subr.mxu0 0.0
  %3000 = vmatpush1.msra.mxu0 %v2635
  %3001 = vmatprep.subr.mxu0 0.0
  %3002 = vmatpush1.msra.mxu0 %v2634
  %3003 = vmatprep.subr.mxu0 0.0
  %3004 = vmatpush1.msra.mxu0 %v2633
  %3005 = vmatprep.subr.mxu0 0.0
  %3006 = vmatpush1.msra.mxu0 %v2632
  %3007 = vmatprep.subr.mxu0 0.0
  %3008 = vmatpush1.msra.mxu0 %v2631
  %3009 = vmatprep.subr.mxu0 0.0
  %3010 = vmatpush1.msra.mxu0 %v2630
  %3011 = vmatprep.subr.mxu0 0.0
  %3012 = vmatpush1.msra.mxu0 %v2629
  %3013 = vmatprep.subr.mxu0 0.0
  %3014 = vmatpush1.msra.mxu0 %v2628
  %3015 = vmatprep.subr.mxu0 0.0
  %3016 = vmatpush1.msra.mxu0 %v2627
  %3017 = vmatprep.subr.mxu0 0.0
  %3018 = vmatpush1.msra.mxu0 %v2626
  %3019 = vmatprep.subr.mxu0 0.0
  %3020 = vmatpush1.msra.mxu0 %v2625
  %3021 = vmatprep.subr.mxu0 0.0
  %3022 = vmatpush1.msra.mxu0 %v2624
  %3023 = vmatprep.subr.mxu0 0.0
  %3024 = vmatpush1.msra.mxu0 %v2623
  %3025 = vmatprep.subr.mxu0 0.0
  %3026 = vmatpush1.msra.mxu0 %v2622
  %3027 = vmatprep.subr.mxu0 0.0
  %3028 = vmatpush2.msra.mxu0 0.0
  %3029 = vmatprep.subr.mxu0 0.0
  %3030 = vmatpush2.msra.mxu0 0.0
  %3031 = vmatprep.subr.mxu0 0.0
  %3032 = vmatpush2.msra.mxu0 %v2651
  %3033 = vmatprep.subr.mxu0 0.0
  %3034 = vmatpush2.msra.mxu0 %v2650
  %3035 = vmatprep.subr.mxu0 0.0
  %3036 = vmatpush2.msra.mxu0 %v2649
  %3037 = vmatprep.subr.mxu0 0.0
  %3038 = vmatpush2.msra.mxu0 %v2648
  %3039 = vmatprep.subr.mxu0 0.0
  %3040 = vmatpush2.msra.mxu0 %v2647
  %3041 = vmatprep.subr.mxu0 0.0
  %3042 = vmatpush2.msra.mxu0 %v2646
  %3043 = vmatprep.subr.mxu0 0.0
  %3044 = vmatpush2.msra.mxu0 %v2645
  %3045 = vmatprep.subr.mxu0 0.0
  %3046 = vmatpush2.msra.mxu0 %v2644
  %3047 = vmatprep.subr.mxu0 0.0
  %3048 = vmatpush2.msra.mxu0 %v2643
  %3049 = vmatprep.subr.mxu0 0.0
  %3050 = vmatpush2.msra.mxu0 %v2642
  %3051 = vmatprep.subr.mxu0 0.0
  %3052 = vmatpush2.msra.mxu0 %v2641
  %3053 = vmatprep.subr.mxu0 0.0
  %3054 = vmatpush2.msra.mxu0 %v2640
  %3055 = vmatprep.subr.mxu0 0.0
  %3056 = vmatpush2.msra.mxu0 %v2639
  %3057 = vmatprep.subr.mxu0 0.0
  %3058 = vmatpush2.msra.mxu0 %v2638
  %3059 = vmatprep.mubr.f32.mxu0 %v2993
  %3060 = vmatmul.mubr.f32.gmra.mxu0 %v2990
  %v3061 = vpop.f32.mrf.mxu0
  %v3062 = vadd.f32 0.0, %v3061
  %v3063 = vpop.f32.mrf.mxu0
  %3064 = vdwg.mxu0
  %3065 = vmatprep.subr.mxu0 0.0
  %3066 = vmatpush1.msra.mxu0 %v2668
  %3067 = vmatprep.subr.mxu0 0.0
  %3068 = vmatpush1.msra.mxu0 %v2667
  %3069 = vmatprep.subr.mxu0 0.0
  %3070 = vmatpush1.msra.mxu0 %v2666
  %3071 = vmatprep.subr.mxu0 0.0
  %3072 = vmatpush1.msra.mxu0 %v2665
  %3073 = vmatprep.subr.mxu0 0.0
  %3074 = vmatpush1.msra.mxu0 %v2664
  %3075 = vmatprep.subr.mxu0 0.0
  %3076 = vmatpush1.msra.mxu0 %v2663
  %3077 = vmatprep.subr.mxu0 0.0
  %3078 = vmatpush1.msra.mxu0 %v2662
  %3079 = vmatprep.subr.mxu0 0.0
  %3080 = vmatpush1.msra.mxu0 %v2661
  %3081 = vmatprep.subr.mxu0 0.0
  %3082 = vmatpush1.msra.mxu0 %v2660
  %3083 = vmatprep.subr.mxu0 0.0
  %3084 = vmatpush1.msra.mxu0 %v2659
  %3085 = vmatprep.subr.mxu0 0.0
  %3086 = vmatpush1.msra.mxu0 %v2658
  %3087 = vmatprep.subr.mxu0 0.0
  %3088 = vmatpush1.msra.mxu0 %v2657
  %3089 = vmatprep.subr.mxu0 0.0
  %3090 = vmatpush1.msra.mxu0 %v2656
  %3091 = vmatprep.subr.mxu0 0.0
  %3092 = vmatpush1.msra.mxu0 %v2655
  %3093 = vmatprep.subr.mxu0 0.0
  %3094 = vmatpush1.msra.mxu0 %v2654
  %3095 = vmatprep.subr.mxu0 0.0
  %3096 = vmatpush1.msra.mxu0 %v2653
  %3097 = vmatprep.subr.mxu0 0.0
  %3098 = vmatpush2.msra.mxu0 0.0
  %3099 = vmatprep.subr.mxu0 0.0
  %3100 = vmatpush2.msra.mxu0 0.0
  %3101 = vmatprep.subr.mxu0 0.0
  %3102 = vmatpush2.msra.mxu0 %v2682
  %3103 = vmatprep.subr.mxu0 0.0
  %3104 = vmatpush2.msra.mxu0 %v2681
  %3105 = vmatprep.subr.mxu0 0.0
  %3106 = vmatpush2.msra.mxu0 %v2680
  %3107 = vmatprep.subr.mxu0 0.0
  %3108 = vmatpush2.msra.mxu0 %v2679
  %3109 = vmatprep.subr.mxu0 0.0
  %3110 = vmatpush2.msra.mxu0 %v2678
  %3111 = vmatprep.subr.mxu0 0.0
  %3112 = vmatpush2.msra.mxu0 %v2677
  %3113 = vmatprep.subr.mxu0 0.0
  %3114 = vmatpush2.msra.mxu0 %v2676
  %3115 = vmatprep.subr.mxu0 0.0
  %3116 = vmatpush2.msra.mxu0 %v2675
  %3117 = vmatprep.subr.mxu0 0.0
  %3118 = vmatpush2.msra.mxu0 %v2674
  %3119 = vmatprep.subr.mxu0 0.0
  %3120 = vmatpush2.msra.mxu0 %v2673
  %3121 = vmatprep.subr.mxu0 0.0
  %3122 = vmatpush2.msra.mxu0 %v2672
  %3123 = vmatprep.subr.mxu0 0.0
  %3124 = vmatpush2.msra.mxu0 %v2671
  %3125 = vmatprep.subr.mxu0 0.0
  %3126 = vmatpush2.msra.mxu0 %v2670
  %3127 = vmatprep.subr.mxu0 0.0
  %3128 = vmatpush2.msra.mxu0 %v2669
  %3129 = vmatprep.mubr.f32.mxu0 %v2993
  %3130 = vmatmul.mubr.f32.gmra.mxu0 %v2990
  %v3131 = vpop.f32.mrf.mxu0
  %v3132 = vadd.f32 0.0, %v3131
  %v3133 = vpop.f32.mrf.mxu0
  %3134 = vdwg.mxu0
  %v3135 = vmax.f32 %v3062, %v3132
  %3136 = vst.msk [vmem:[#allocation3 + $0x10] sm:$0xff] %vm2833, %v3135
  %v3137 = vld [vmem:[#allocation2 + $0x60] sm:$0xff]
  %v3138 = vld [vmem:[#allocation2 + $0x68] sm:$0xff]
  %v3139 = vld [vmem:[#allocation2 + $0x70] sm:$0xff]
  %v3140 = vld [vmem:[#allocation2 + $0x78] sm:$0xff]
  %v3141 = vmax.f32 %v3137, %v3139
  %v3142 = vmax.f32 %v3138, %v3140
  %v3144 = vsel %vm888, %v3142, 0
  %3146 = vmatprep.subr.mxu0 0.0
  %3147 = vmatpush1.msra.mxu0 %v2637
  %3148 = vmatprep.subr.mxu0 0.0
  %3149 = vmatpush1.msra.mxu0 %v2636
  %3150 = vmatprep.subr.mxu0 0.0
  %3151 = vmatpush1.msra.mxu0 %v2635
  %3152 = vmatprep.subr.mxu0 0.0
  %3153 = vmatpush1.msra.mxu0 %v2634
  %3154 = vmatprep.subr.mxu0 0.0
  %3155 = vmatpush1.msra.mxu0 %v2633
  %3156 = vmatprep.subr.mxu0 0.0
  %3157 = vmatpush1.msra.mxu0 %v2632
  %3158 = vmatprep.subr.mxu0 0.0
  %3159 = vmatpush1.msra.mxu0 %v2631
  %3160 = vmatprep.subr.mxu0 0.0
  %3161 = vmatpush1.msra.mxu0 %v2630
  %3162 = vmatprep.subr.mxu0 0.0
  %3163 = vmatpush1.msra.mxu0 %v2629
  %3164 = vmatprep.subr.mxu0 0.0
  %3165 = vmatpush1.msra.mxu0 %v2628
  %3166 = vmatprep.subr.mxu0 0.0
  %3167 = vmatpush1.msra.mxu0 %v2627
  %3168 = vmatprep.subr.mxu0 0.0
  %3169 = vmatpush1.msra.mxu0 %v2626
  %3170 = vmatprep.subr.mxu0 0.0
  %3171 = vmatpush1.msra.mxu0 %v2625
  %3172 = vmatprep.subr.mxu0 0.0
  %3173 = vmatpush1.msra.mxu0 %v2624
  %3174 = vmatprep.subr.mxu0 0.0
  %3175 = vmatpush1.msra.mxu0 %v2623
  %3176 = vmatprep.subr.mxu0 0.0
  %3177 = vmatpush1.msra.mxu0 %v2622
  %3178 = vmatprep.subr.mxu0 0.0
  %3179 = vmatpush2.msra.mxu0 0.0
  %3180 = vmatprep.subr.mxu0 0.0
  %3181 = vmatpush2.msra.mxu0 0.0
  %3182 = vmatprep.subr.mxu0 0.0
  %3183 = vmatpush2.msra.mxu0 %v2651
  %3184 = vmatprep.subr.mxu0 0.0
  %3185 = vmatpush2.msra.mxu0 %v2650
  %3186 = vmatprep.subr.mxu0 0.0
  %3187 = vmatpush2.msra.mxu0 %v2649
  %3188 = vmatprep.subr.mxu0 0.0
  %3189 = vmatpush2.msra.mxu0 %v2648
  %3190 = vmatprep.subr.mxu0 0.0
  %3191 = vmatpush2.msra.mxu0 %v2647
  %3192 = vmatprep.subr.mxu0 0.0
  %3193 = vmatpush2.msra.mxu0 %v2646
  %3194 = vmatprep.subr.mxu0 0.0
  %3195 = vmatpush2.msra.mxu0 %v2645
  %3196 = vmatprep.subr.mxu0 0.0
  %3197 = vmatpush2.msra.mxu0 %v2644
  %3198 = vmatprep.subr.mxu0 0.0
  %3199 = vmatpush2.msra.mxu0 %v2643
  %3200 = vmatprep.subr.mxu0 0.0
  %3201 = vmatpush2.msra.mxu0 %v2642
  %3202 = vmatprep.subr.mxu0 0.0
  %3203 = vmatpush2.msra.mxu0 %v2641
  %3204 = vmatprep.subr.mxu0 0.0
  %3205 = vmatpush2.msra.mxu0 %v2640
  %3206 = vmatprep.subr.mxu0 0.0
  %3207 = vmatpush2.msra.mxu0 %v2639
  %3208 = vmatprep.subr.mxu0 0.0
  %3209 = vmatpush2.msra.mxu0 %v2638
  %3210 = vmatprep.mubr.f32.mxu0 %v3144
  %3211 = vmatmul.mubr.f32.gmra.mxu0 %v3141
  %v3212 = vpop.f32.mrf.mxu0
  %v3213 = vadd.f32 0.0, %v3212
  %v3214 = vpop.f32.mrf.mxu0
  %3215 = vdwg.mxu0
  %3216 = vmatprep.subr.mxu0 0.0
  %3217 = vmatpush1.msra.mxu0 %v2668
  %3218 = vmatprep.subr.mxu0 0.0
  %3219 = vmatpush1.msra.mxu0 %v2667
  %3220 = vmatprep.subr.mxu0 0.0
  %3221 = vmatpush1.msra.mxu0 %v2666
  %3222 = vmatprep.subr.mxu0 0.0
  %3223 = vmatpush1.msra.mxu0 %v2665
  %3224 = vmatprep.subr.mxu0 0.0
  %3225 = vmatpush1.msra.mxu0 %v2664
  %3226 = vmatprep.subr.mxu0 0.0
  %3227 = vmatpush1.msra.mxu0 %v2663
  %3228 = vmatprep.subr.mxu0 0.0
  %3229 = vmatpush1.msra.mxu0 %v2662
  %3230 = vmatprep.subr.mxu0 0.0
  %3231 = vmatpush1.msra.mxu0 %v2661
  %3232 = vmatprep.subr.mxu0 0.0
  %3233 = vmatpush1.msra.mxu0 %v2660
  %3234 = vmatprep.subr.mxu0 0.0
  %3235 = vmatpush1.msra.mxu0 %v2659
  %3236 = vmatprep.subr.mxu0 0.0
  %3237 = vmatpush1.msra.mxu0 %v2658
  %3238 = vmatprep.subr.mxu0 0.0
  %3239 = vmatpush1.msra.mxu0 %v2657
  %3240 = vmatprep.subr.mxu0 0.0
  %3241 = vmatpush1.msra.mxu0 %v2656
  %3242 = vmatprep.subr.mxu0 0.0
  %3243 = vmatpush1.msra.mxu0 %v2655
  %3244 = vmatprep.subr.mxu0 0.0
  %3245 = vmatpush1.msra.mxu0 %v2654
  %3246 = vmatprep.subr.mxu0 0.0
  %3247 = vmatpush1.msra.mxu0 %v2653
  %3248 = vmatprep.subr.mxu0 0.0
  %3249 = vmatpush2.msra.mxu0 0.0
  %3250 = vmatprep.subr.mxu0 0.0
  %3251 = vmatpush2.msra.mxu0 0.0
  %3252 = vmatprep.subr.mxu0 0.0
  %3253 = vmatpush2.msra.mxu0 %v2682
  %3254 = vmatprep.subr.mxu0 0.0
  %3255 = vmatpush2.msra.mxu0 %v2681
  %3256 = vmatprep.subr.mxu0 0.0
  %3257 = vmatpush2.msra.mxu0 %v2680
  %3258 = vmatprep.subr.mxu0 0.0
  %3259 = vmatpush2.msra.mxu0 %v2679
  %3260 = vmatprep.subr.mxu0 0.0
  %3261 = vmatpush2.msra.mxu0 %v2678
  %3262 = vmatprep.subr.mxu0 0.0
  %3263 = vmatpush2.msra.mxu0 %v2677
  %3264 = vmatprep.subr.mxu0 0.0
  %3265 = vmatpush2.msra.mxu0 %v2676
  %3266 = vmatprep.subr.mxu0 0.0
  %3267 = vmatpush2.msra.mxu0 %v2675
  %3268 = vmatprep.subr.mxu0 0.0
  %3269 = vmatpush2.msra.mxu0 %v2674
  %3270 = vmatprep.subr.mxu0 0.0
  %3271 = vmatpush2.msra.mxu0 %v2673
  %3272 = vmatprep.subr.mxu0 0.0
  %3273 = vmatpush2.msra.mxu0 %v2672
  %3274 = vmatprep.subr.mxu0 0.0
  %3275 = vmatpush2.msra.mxu0 %v2671
  %3276 = vmatprep.subr.mxu0 0.0
  %3277 = vmatpush2.msra.mxu0 %v2670
  %3278 = vmatprep.subr.mxu0 0.0
  %3279 = vmatpush2.msra.mxu0 %v2669
  %3280 = vmatprep.mubr.f32.mxu0 %v3144
  %3281 = vmatmul.mubr.f32.gmra.mxu0 %v3141
  %v3282 = vpop.f32.mrf.mxu0
  %v3283 = vadd.f32 0.0, %v3282
  %v3284 = vpop.f32.mrf.mxu0
  %3285 = vdwg.mxu0
  %v3286 = vmax.f32 %v3213, %v3283
  %3287 = vst.msk [vmem:[#allocation3 + $0x18] sm:$0xff] %vm2833, %v3286
  %v3288 = vld [vmem:[#allocation2 + $0x80] sm:$0xff]
  %v3289 = vld [vmem:[#allocation2 + $0x88] sm:$0xff]
  %v3290 = vld [vmem:[#allocation2 + $0x90] sm:$0xff]
  %v3291 = vld [vmem:[#allocation2 + $0x98] sm:$0xff]
  %v3292 = vmax.f32 %v3288, %v3290
  %v3293 = vmax.f32 %v3289, %v3291
  %v3295 = vsel %vm888, %v3293, 0
  %3297 = vmatprep.subr.mxu0 0.0
  %3298 = vmatpush1.msra.mxu0 %v2637
  %3299 = vmatprep.subr.mxu0 0.0
  %3300 = vmatpush1.msra.mxu0 %v2636
  %3301 = vmatprep.subr.mxu0 0.0
  %3302 = vmatpush1.msra.mxu0 %v2635
  %3303 = vmatprep.subr.mxu0 0.0
  %3304 = vmatpush1.msra.mxu0 %v2634
  %3305 = vmatprep.subr.mxu0 0.0
  %3306 = vmatpush1.msra.mxu0 %v2633
  %3307 = vmatprep.subr.mxu0 0.0
  %3308 = vmatpush1.msra.mxu0 %v2632
  %3309 = vmatprep.subr.mxu0 0.0
  %3310 = vmatpush1.msra.mxu0 %v2631
  %3311 = vmatprep.subr.mxu0 0.0
  %3312 = vmatpush1.msra.mxu0 %v2630
  %3313 = vmatprep.subr.mxu0 0.0
  %3314 = vmatpush1.msra.mxu0 %v2629
  %3315 = vmatprep.subr.mxu0 0.0
  %3316 = vmatpush1.msra.mxu0 %v2628
  %3317 = vmatprep.subr.mxu0 0.0
  %3318 = vmatpush1.msra.mxu0 %v2627
  %3319 = vmatprep.subr.mxu0 0.0
  %3320 = vmatpush1.msra.mxu0 %v2626
  %3321 = vmatprep.subr.mxu0 0.0
  %3322 = vmatpush1.msra.mxu0 %v2625
  %3323 = vmatprep.subr.mxu0 0.0
  %3324 = vmatpush1.msra.mxu0 %v2624
  %3325 = vmatprep.subr.mxu0 0.0
  %3326 = vmatpush1.msra.mxu0 %v2623
  %3327 = vmatprep.subr.mxu0 0.0
  %3328 = vmatpush1.msra.mxu0 %v2622
  %3329 = vmatprep.subr.mxu0 0.0
  %3330 = vmatpush2.msra.mxu0 0.0
  %3331 = vmatprep.subr.mxu0 0.0
  %3332 = vmatpush2.msra.mxu0 0.0
  %3333 = vmatprep.subr.mxu0 0.0
  %3334 = vmatpush2.msra.mxu0 %v2651
  %3335 = vmatprep.subr.mxu0 0.0
  %3336 = vmatpush2.msra.mxu0 %v2650
  %3337 = vmatprep.subr.mxu0 0.0
  %3338 = vmatpush2.msra.mxu0 %v2649
  %3339 = vmatprep.subr.mxu0 0.0
  %3340 = vmatpush2.msra.mxu0 %v2648
  %3341 = vmatprep.subr.mxu0 0.0
  %3342 = vmatpush2.msra.mxu0 %v2647
  %3343 = vmatprep.subr.mxu0 0.0
  %3344 = vmatpush2.msra.mxu0 %v2646
  %3345 = vmatprep.subr.mxu0 0.0
  %3346 = vmatpush2.msra.mxu0 %v2645
  %3347 = vmatprep.subr.mxu0 0.0
  %3348 = vmatpush2.msra.mxu0 %v2644
  %3349 = vmatprep.subr.mxu0 0.0
  %3350 = vmatpush2.msra.mxu0 %v2643
  %3351 = vmatprep.subr.mxu0 0.0
  %3352 = vmatpush2.msra.mxu0 %v2642
  %3353 = vmatprep.subr.mxu0 0.0
  %3354 = vmatpush2.msra.mxu0 %v2641
  %3355 = vmatprep.subr.mxu0 0.0
  %3356 = vmatpush2.msra.mxu0 %v2640
  %3357 = vmatprep.subr.mxu0 0.0
  %3358 = vmatpush2.msra.mxu0 %v2639
  %3359 = vmatprep.subr.mxu0 0.0
  %3360 = vmatpush2.msra.mxu0 %v2638
  %3361 = vmatprep.mubr.f32.mxu0 %v3295
  %3362 = vmatmul.mubr.f32.gmra.mxu0 %v3292
  %v3363 = vpop.f32.mrf.mxu0
  %v3364 = vadd.f32 0.0, %v3363
  %v3365 = vpop.f32.mrf.mxu0
  %3366 = vdwg.mxu0
  %3367 = vmatprep.subr.mxu0 0.0
  %3368 = vmatpush1.msra.mxu0 %v2668
  %3369 = vmatprep.subr.mxu0 0.0
  %3370 = vmatpush1.msra.mxu0 %v2667
  %3371 = vmatprep.subr.mxu0 0.0
  %3372 = vmatpush1.msra.mxu0 %v2666
  %3373 = vmatprep.subr.mxu0 0.0
  %3374 = vmatpush1.msra.mxu0 %v2665
  %3375 = vmatprep.subr.mxu0 0.0
  %3376 = vmatpush1.msra.mxu0 %v2664
  %3377 = vmatprep.subr.mxu0 0.0
  %3378 = vmatpush1.msra.mxu0 %v2663
  %3379 = vmatprep.subr.mxu0 0.0
  %3380 = vmatpush1.msra.mxu0 %v2662
  %3381 = vmatprep.subr.mxu0 0.0
  %3382 = vmatpush1.msra.mxu0 %v2661
  %3383 = vmatprep.subr.mxu0 0.0
  %3384 = vmatpush1.msra.mxu0 %v2660
  %3385 = vmatprep.subr.mxu0 0.0
  %3386 = vmatpush1.msra.mxu0 %v2659
  %3387 = vmatprep.subr.mxu0 0.0
  %3388 = vmatpush1.msra.mxu0 %v2658
  %3389 = vmatprep.subr.mxu0 0.0
  %3390 = vmatpush1.msra.mxu0 %v2657
  %3391 = vmatprep.subr.mxu0 0.0
  %3392 = vmatpush1.msra.mxu0 %v2656
  %3393 = vmatprep.subr.mxu0 0.0
  %3394 = vmatpush1.msra.mxu0 %v2655
  %3395 = vmatprep.subr.mxu0 0.0
  %3396 = vmatpush1.msra.mxu0 %v2654
  %3397 = vmatprep.subr.mxu0 0.0
  %3398 = vmatpush1.msra.mxu0 %v2653
  %3399 = vmatprep.subr.mxu0 0.0
  %3400 = vmatpush2.msra.mxu0 0.0
  %3401 = vmatprep.subr.mxu0 0.0
  %3402 = vmatpush2.msra.mxu0 0.0
  %3403 = vmatprep.subr.mxu0 0.0
  %3404 = vmatpush2.msra.mxu0 %v2682
  %3405 = vmatprep.subr.mxu0 0.0
  %3406 = vmatpush2.msra.mxu0 %v2681
  %3407 = vmatprep.subr.mxu0 0.0
  %3408 = vmatpush2.msra.mxu0 %v2680
  %3409 = vmatprep.subr.mxu0 0.0
  %3410 = vmatpush2.msra.mxu0 %v2679
  %3411 = vmatprep.subr.mxu0 0.0
  %3412 = vmatpush2.msra.mxu0 %v2678
  %3413 = vmatprep.subr.mxu0 0.0
  %3414 = vmatpush2.msra.mxu0 %v2677
  %3415 = vmatprep.subr.mxu0 0.0
  %3416 = vmatpush2.msra.mxu0 %v2676
  %3417 = vmatprep.subr.mxu0 0.0
  %3418 = vmatpush2.msra.mxu0 %v2675
  %3419 = vmatprep.subr.mxu0 0.0
  %3420 = vmatpush2.msra.mxu0 %v2674
  %3421 = vmatprep.subr.mxu0 0.0
  %3422 = vmatpush2.msra.mxu0 %v2673
  %3423 = vmatprep.subr.mxu0 0.0
  %3424 = vmatpush2.msra.mxu0 %v2672
  %3425 = vmatprep.subr.mxu0 0.0
  %3426 = vmatpush2.msra.mxu0 %v2671
  %3427 = vmatprep.subr.mxu0 0.0
  %3428 = vmatpush2.msra.mxu0 %v2670
  %3429 = vmatprep.subr.mxu0 0.0
  %3430 = vmatpush2.msra.mxu0 %v2669
  %3431 = vmatprep.mubr.f32.mxu0 %v3295
  %3432 = vmatmul.mubr.f32.gmra.mxu0 %v3292
  %v3433 = vpop.f32.mrf.mxu0
  %v3434 = vadd.f32 0.0, %v3433
  %v3435 = vpop.f32.mrf.mxu0
  %3436 = vdwg.mxu0
  %v3437 = vmax.f32 %v3364, %v3434
  %3438 = vst.msk [vmem:[#allocation3 + $0x20] sm:$0xff] %vm2833, %v3437
  %v3439 = vld [vmem:[#allocation2 + $0xa0] sm:$0xff]
  %v3440 = vld [vmem:[#allocation2 + $0xa8] sm:$0xff]
  %v3441 = vld [vmem:[#allocation2 + $0xb0] sm:$0xff]
  %v3442 = vld [vmem:[#allocation2 + $0xb8] sm:$0xff]
  %v3443 = vmax.f32 %v3439, %v3441
  %v3444 = vmax.f32 %v3440, %v3442
  %v3446 = vsel %vm888, %v3444, 0
  %3448 = vmatprep.subr.mxu0 0.0
  %3449 = vmatpush1.msra.mxu0 %v2637
  %3450 = vmatprep.subr.mxu0 0.0
  %3451 = vmatpush1.msra.mxu0 %v2636
  %3452 = vmatprep.subr.mxu0 0.0
  %3453 = vmatpush1.msra.mxu0 %v2635
  %3454 = vmatprep.subr.mxu0 0.0
  %3455 = vmatpush1.msra.mxu0 %v2634
  %3456 = vmatprep.subr.mxu0 0.0
  %3457 = vmatpush1.msra.mxu0 %v2633
  %3458 = vmatprep.subr.mxu0 0.0
  %3459 = vmatpush1.msra.mxu0 %v2632
  %3460 = vmatprep.subr.mxu0 0.0
  %3461 = vmatpush1.msra.mxu0 %v2631
  %3462 = vmatprep.subr.mxu0 0.0
  %3463 = vmatpush1.msra.mxu0 %v2630
  %3464 = vmatprep.subr.mxu0 0.0
  %3465 = vmatpush1.msra.mxu0 %v2629
  %3466 = vmatprep.subr.mxu0 0.0
  %3467 = vmatpush1.msra.mxu0 %v2628
  %3468 = vmatprep.subr.mxu0 0.0
  %3469 = vmatpush1.msra.mxu0 %v2627
  %3470 = vmatprep.subr.mxu0 0.0
  %3471 = vmatpush1.msra.mxu0 %v2626
  %3472 = vmatprep.subr.mxu0 0.0
  %3473 = vmatpush1.msra.mxu0 %v2625
  %3474 = vmatprep.subr.mxu0 0.0
  %3475 = vmatpush1.msra.mxu0 %v2624
  %3476 = vmatprep.subr.mxu0 0.0
  %3477 = vmatpush1.msra.mxu0 %v2623
  %3478 = vmatprep.subr.mxu0 0.0
  %3479 = vmatpush1.msra.mxu0 %v2622
  %3480 = vmatprep.subr.mxu0 0.0
  %3481 = vmatpush2.msra.mxu0 0.0
  %3482 = vmatprep.subr.mxu0 0.0
  %3483 = vmatpush2.msra.mxu0 0.0
  %3484 = vmatprep.subr.mxu0 0.0
  %3485 = vmatpush2.msra.mxu0 %v2651
  %3486 = vmatprep.subr.mxu0 0.0
  %3487 = vmatpush2.msra.mxu0 %v2650
  %3488 = vmatprep.subr.mxu0 0.0
  %3489 = vmatpush2.msra.mxu0 %v2649
  %3490 = vmatprep.subr.mxu0 0.0
  %3491 = vmatpush2.msra.mxu0 %v2648
  %3492 = vmatprep.subr.mxu0 0.0
  %3493 = vmatpush2.msra.mxu0 %v2647
  %3494 = vmatprep.subr.mxu0 0.0
  %3495 = vmatpush2.msra.mxu0 %v2646
  %3496 = vmatprep.subr.mxu0 0.0
  %3497 = vmatpush2.msra.mxu0 %v2645
  %3498 = vmatprep.subr.mxu0 0.0
  %3499 = vmatpush2.msra.mxu0 %v2644
  %3500 = vmatprep.subr.mxu0 0.0
  %3501 = vmatpush2.msra.mxu0 %v2643
  %3502 = vmatprep.subr.mxu0 0.0
  %3503 = vmatpush2.msra.mxu0 %v2642
  %3504 = vmatprep.subr.mxu0 0.0
  %3505 = vmatpush2.msra.mxu0 %v2641
  %3506 = vmatprep.subr.mxu0 0.0
  %3507 = vmatpush2.msra.mxu0 %v2640
  %3508 = vmatprep.subr.mxu0 0.0
  %3509 = vmatpush2.msra.mxu0 %v2639
  %3510 = vmatprep.subr.mxu0 0.0
  %3511 = vmatpush2.msra.mxu0 %v2638
  %3512 = vmatprep.mubr.f32.mxu0 %v3446
  %3513 = vmatmul.mubr.f32.gmra.mxu0 %v3443
  %v3514 = vpop.f32.mrf.mxu0
  %v3515 = vadd.f32 0.0, %v3514
  %v3516 = vpop.f32.mrf.mxu0
  %3517 = vdwg.mxu0
  %3518 = vmatprep.subr.mxu0 0.0
  %3519 = vmatpush1.msra.mxu0 %v2668
  %3520 = vmatprep.subr.mxu0 0.0
  %3521 = vmatpush1.msra.mxu0 %v2667
  %3522 = vmatprep.subr.mxu0 0.0
  %3523 = vmatpush1.msra.mxu0 %v2666
  %3524 = vmatprep.subr.mxu0 0.0
  %3525 = vmatpush1.msra.mxu0 %v2665
  %3526 = vmatprep.subr.mxu0 0.0
  %3527 = vmatpush1.msra.mxu0 %v2664
  %3528 = vmatprep.subr.mxu0 0.0
  %3529 = vmatpush1.msra.mxu0 %v2663
  %3530 = vmatprep.subr.mxu0 0.0
  %3531 = vmatpush1.msra.mxu0 %v2662
  %3532 = vmatprep.subr.mxu0 0.0
  %3533 = vmatpush1.msra.mxu0 %v2661
  %3534 = vmatprep.subr.mxu0 0.0
  %3535 = vmatpush1.msra.mxu0 %v2660
  %3536 = vmatprep.subr.mxu0 0.0
  %3537 = vmatpush1.msra.mxu0 %v2659
  %3538 = vmatprep.subr.mxu0 0.0
  %3539 = vmatpush1.msra.mxu0 %v2658
  %3540 = vmatprep.subr.mxu0 0.0
  %3541 = vmatpush1.msra.mxu0 %v2657
  %3542 = vmatprep.subr.mxu0 0.0
  %3543 = vmatpush1.msra.mxu0 %v2656
  %3544 = vmatprep.subr.mxu0 0.0
  %3545 = vmatpush1.msra.mxu0 %v2655
  %3546 = vmatprep.subr.mxu0 0.0
  %3547 = vmatpush1.msra.mxu0 %v2654
  %3548 = vmatprep.subr.mxu0 0.0
  %3549 = vmatpush1.msra.mxu0 %v2653
  %3550 = vmatprep.subr.mxu0 0.0
  %3551 = vmatpush2.msra.mxu0 0.0
  %3552 = vmatprep.subr.mxu0 0.0
  %3553 = vmatpush2.msra.mxu0 0.0
  %3554 = vmatprep.subr.mxu0 0.0
  %3555 = vmatpush2.msra.mxu0 %v2682
  %3556 = vmatprep.subr.mxu0 0.0
  %3557 = vmatpush2.msra.mxu0 %v2681
  %3558 = vmatprep.subr.mxu0 0.0
  %3559 = vmatpush2.msra.mxu0 %v2680
  %3560 = vmatprep.subr.mxu0 0.0
  %3561 = vmatpush2.msra.mxu0 %v2679
  %3562 = vmatprep.subr.mxu0 0.0
  %3563 = vmatpush2.msra.mxu0 %v2678
  %3564 = vmatprep.subr.mxu0 0.0
  %3565 = vmatpush2.msra.mxu0 %v2677
  %3566 = vmatprep.subr.mxu0 0.0
  %3567 = vmatpush2.msra.mxu0 %v2676
  %3568 = vmatprep.subr.mxu0 0.0
  %3569 = vmatpush2.msra.mxu0 %v2675
  %3570 = vmatprep.subr.mxu0 0.0
  %3571 = vmatpush2.msra.mxu0 %v2674
  %3572 = vmatprep.subr.mxu0 0.0
  %3573 = vmatpush2.msra.mxu0 %v2673
  %3574 = vmatprep.subr.mxu0 0.0
  %3575 = vmatpush2.msra.mxu0 %v2672
  %3576 = vmatprep.subr.mxu0 0.0
  %3577 = vmatpush2.msra.mxu0 %v2671
  %3578 = vmatprep.subr.mxu0 0.0
  %3579 = vmatpush2.msra.mxu0 %v2670
  %3580 = vmatprep.subr.mxu0 0.0
  %3581 = vmatpush2.msra.mxu0 %v2669
  %3582 = vmatprep.mubr.f32.mxu0 %v3446
  %3583 = vmatmul.mubr.f32.gmra.mxu0 %v3443
  %v3584 = vpop.f32.mrf.mxu0
  %v3585 = vadd.f32 0.0, %v3584
  %v3586 = vpop.f32.mrf.mxu0
  %3587 = vdwg.mxu0
  %v3588 = vmax.f32 %v3515, %v3585
  %3589 = vst.msk [vmem:[#allocation3 + $0x28] sm:$0xff] %vm2833, %v3588
  %v3590 = vld [vmem:[#allocation2 + $0xc0] sm:$0xff]
  %v3591 = vld [vmem:[#allocation2 + $0xc8] sm:$0xff]
  %v3592 = vld [vmem:[#allocation2 + $0xd0] sm:$0xff]
  %v3593 = vld [vmem:[#allocation2 + $0xd8] sm:$0xff]
  %v3594 = vmax.f32 %v3590, %v3592
  %v3595 = vmax.f32 %v3591, %v3593
  %v3597 = vsel %vm888, %v3595, 0
  %3599 = vmatprep.subr.mxu0 0.0
  %3600 = vmatpush1.msra.mxu0 %v2637
  %3601 = vmatprep.subr.mxu0 0.0
  %3602 = vmatpush1.msra.mxu0 %v2636
  %3603 = vmatprep.subr.mxu0 0.0
  %3604 = vmatpush1.msra.mxu0 %v2635
  %3605 = vmatprep.subr.mxu0 0.0
  %3606 = vmatpush1.msra.mxu0 %v2634
  %3607 = vmatprep.subr.mxu0 0.0
  %3608 = vmatpush1.msra.mxu0 %v2633
  %3609 = vmatprep.subr.mxu0 0.0
  %3610 = vmatpush1.msra.mxu0 %v2632
  %3611 = vmatprep.subr.mxu0 0.0
  %3612 = vmatpush1.msra.mxu0 %v2631
  %3613 = vmatprep.subr.mxu0 0.0
  %3614 = vmatpush1.msra.mxu0 %v2630
  %3615 = vmatprep.subr.mxu0 0.0
  %3616 = vmatpush1.msra.mxu0 %v2629
  %3617 = vmatprep.subr.mxu0 0.0
  %3618 = vmatpush1.msra.mxu0 %v2628
  %3619 = vmatprep.subr.mxu0 0.0
  %3620 = vmatpush1.msra.mxu0 %v2627
  %3621 = vmatprep.subr.mxu0 0.0
  %3622 = vmatpush1.msra.mxu0 %v2626
  %3623 = vmatprep.subr.mxu0 0.0
  %3624 = vmatpush1.msra.mxu0 %v2625
  %3625 = vmatprep.subr.mxu0 0.0
  %3626 = vmatpush1.msra.mxu0 %v2624
  %3627 = vmatprep.subr.mxu0 0.0
  %3628 = vmatpush1.msra.mxu0 %v2623
  %3629 = vmatprep.subr.mxu0 0.0
  %3630 = vmatpush1.msra.mxu0 %v2622
  %3631 = vmatprep.subr.mxu0 0.0
  %3632 = vmatpush2.msra.mxu0 0.0
  %3633 = vmatprep.subr.mxu0 0.0
  %3634 = vmatpush2.msra.mxu0 0.0
  %3635 = vmatprep.subr.mxu0 0.0
  %3636 = vmatpush2.msra.mxu0 %v2651
  %3637 = vmatprep.subr.mxu0 0.0
  %3638 = vmatpush2.msra.mxu0 %v2650
  %3639 = vmatprep.subr.mxu0 0.0
  %3640 = vmatpush2.msra.mxu0 %v2649
  %3641 = vmatprep.subr.mxu0 0.0
  %3642 = vmatpush2.msra.mxu0 %v2648
  %3643 = vmatprep.subr.mxu0 0.0
  %3644 = vmatpush2.msra.mxu0 %v2647
  %3645 = vmatprep.subr.mxu0 0.0
  %3646 = vmatpush2.msra.mxu0 %v2646
  %3647 = vmatprep.subr.mxu0 0.0
  %3648 = vmatpush2.msra.mxu0 %v2645
  %3649 = vmatprep.subr.mxu0 0.0
  %3650 = vmatpush2.msra.mxu0 %v2644
  %3651 = vmatprep.subr.mxu0 0.0
  %3652 = vmatpush2.msra.mxu0 %v2643
  %3653 = vmatprep.subr.mxu0 0.0
  %3654 = vmatpush2.msra.mxu0 %v2642
  %3655 = vmatprep.subr.mxu0 0.0
  %3656 = vmatpush2.msra.mxu0 %v2641
  %3657 = vmatprep.subr.mxu0 0.0
  %3658 = vmatpush2.msra.mxu0 %v2640
  %3659 = vmatprep.subr.mxu0 0.0
  %3660 = vmatpush2.msra.mxu0 %v2639
  %3661 = vmatprep.subr.mxu0 0.0
  %3662 = vmatpush2.msra.mxu0 %v2638
  %3663 = vmatprep.mubr.f32.mxu0 %v3597
  %3664 = vmatmul.mubr.f32.gmra.mxu0 %v3594
  %v3665 = vpop.f32.mrf.mxu0
  %v3666 = vadd.f32 0.0, %v3665
  %v3667 = vpop.f32.mrf.mxu0
  %3668 = vdwg.mxu0
  %3669 = vmatprep.subr.mxu0 0.0
  %3670 = vmatpush1.msra.mxu0 %v2668
  %3671 = vmatprep.subr.mxu0 0.0
  %3672 = vmatpush1.msra.mxu0 %v2667
  %3673 = vmatprep.subr.mxu0 0.0
  %3674 = vmatpush1.msra.mxu0 %v2666
  %3675 = vmatprep.subr.mxu0 0.0
  %3676 = vmatpush1.msra.mxu0 %v2665
  %3677 = vmatprep.subr.mxu0 0.0
  %3678 = vmatpush1.msra.mxu0 %v2664
  %3679 = vmatprep.subr.mxu0 0.0
  %3680 = vmatpush1.msra.mxu0 %v2663
  %3681 = vmatprep.subr.mxu0 0.0
  %3682 = vmatpush1.msra.mxu0 %v2662
  %3683 = vmatprep.subr.mxu0 0.0
  %3684 = vmatpush1.msra.mxu0 %v2661
  %3685 = vmatprep.subr.mxu0 0.0
  %3686 = vmatpush1.msra.mxu0 %v2660
  %3687 = vmatprep.subr.mxu0 0.0
  %3688 = vmatpush1.msra.mxu0 %v2659
  %3689 = vmatprep.subr.mxu0 0.0
  %3690 = vmatpush1.msra.mxu0 %v2658
  %3691 = vmatprep.subr.mxu0 0.0
  %3692 = vmatpush1.msra.mxu0 %v2657
  %3693 = vmatprep.subr.mxu0 0.0
  %3694 = vmatpush1.msra.mxu0 %v2656
  %3695 = vmatprep.subr.mxu0 0.0
  %3696 = vmatpush1.msra.mxu0 %v2655
  %3697 = vmatprep.subr.mxu0 0.0
  %3698 = vmatpush1.msra.mxu0 %v2654
  %3699 = vmatprep.subr.mxu0 0.0
  %3700 = vmatpush1.msra.mxu0 %v2653
  %3701 = vmatprep.subr.mxu0 0.0
  %3702 = vmatpush2.msra.mxu0 0.0
  %3703 = vmatprep.subr.mxu0 0.0
  %3704 = vmatpush2.msra.mxu0 0.0
  %3705 = vmatprep.subr.mxu0 0.0
  %3706 = vmatpush2.msra.mxu0 %v2682
  %3707 = vmatprep.subr.mxu0 0.0
  %3708 = vmatpush2.msra.mxu0 %v2681
  %3709 = vmatprep.subr.mxu0 0.0
  %3710 = vmatpush2.msra.mxu0 %v2680
  %3711 = vmatprep.subr.mxu0 0.0
  %3712 = vmatpush2.msra.mxu0 %v2679
  %3713 = vmatprep.subr.mxu0 0.0
  %3714 = vmatpush2.msra.mxu0 %v2678
  %3715 = vmatprep.subr.mxu0 0.0
  %3716 = vmatpush2.msra.mxu0 %v2677
  %3717 = vmatprep.subr.mxu0 0.0
  %3718 = vmatpush2.msra.mxu0 %v2676
  %3719 = vmatprep.subr.mxu0 0.0
  %3720 = vmatpush2.msra.mxu0 %v2675
  %3721 = vmatprep.subr.mxu0 0.0
  %3722 = vmatpush2.msra.mxu0 %v2674
  %3723 = vmatprep.subr.mxu0 0.0
  %3724 = vmatpush2.msra.mxu0 %v2673
  %3725 = vmatprep.subr.mxu0 0.0
  %3726 = vmatpush2.msra.mxu0 %v2672
  %3727 = vmatprep.subr.mxu0 0.0
  %3728 = vmatpush2.msra.mxu0 %v2671
  %3729 = vmatprep.subr.mxu0 0.0
  %3730 = vmatpush2.msra.mxu0 %v2670
  %3731 = vmatprep.subr.mxu0 0.0
  %3732 = vmatpush2.msra.mxu0 %v2669
  %3733 = vmatprep.mubr.f32.mxu0 %v3597
  %3734 = vmatmul.mubr.f32.gmra.mxu0 %v3594
  %v3735 = vpop.f32.mrf.mxu0
  %v3736 = vadd.f32 0.0, %v3735
  %v3737 = vpop.f32.mrf.mxu0
  %3738 = vdwg.mxu0
  %v3739 = vmax.f32 %v3666, %v3736
  %3740 = vst.msk [vmem:[#allocation3 + $0x30] sm:$0xff] %vm2833, %v3739
  %v3741 = vld [vmem:[#allocation2 + $0xe0] sm:$0xff]
  %v3742 = vld [vmem:[#allocation2 + $0xe8] sm:$0xff]
  %v3743 = vld [vmem:[#allocation2 + $0xf0] sm:$0xff]
  %v3744 = vld [vmem:[#allocation2 + $0xf8] sm:$0xff]
  %v3745 = vmax.f32 %v3741, %v3743
  %v3746 = vmax.f32 %v3742, %v3744
  %v3748 = vsel %vm888, %v3746, 0
  %3750 = vmatprep.subr.mxu0 0.0
  %3751 = vmatpush1.msra.mxu0 %v2637
  %3752 = vmatprep.subr.mxu0 0.0
  %3753 = vmatpush1.msra.mxu0 %v2636
  %3754 = vmatprep.subr.mxu0 0.0
  %3755 = vmatpush1.msra.mxu0 %v2635
  %3756 = vmatprep.subr.mxu0 0.0
  %3757 = vmatpush1.msra.mxu0 %v2634
  %3758 = vmatprep.subr.mxu0 0.0
  %3759 = vmatpush1.msra.mxu0 %v2633
  %3760 = vmatprep.subr.mxu0 0.0
  %3761 = vmatpush1.msra.mxu0 %v2632
  %3762 = vmatprep.subr.mxu0 0.0
  %3763 = vmatpush1.msra.mxu0 %v2631
  %3764 = vmatprep.subr.mxu0 0.0
  %3765 = vmatpush1.msra.mxu0 %v2630
  %3766 = vmatprep.subr.mxu0 0.0
  %3767 = vmatpush1.msra.mxu0 %v2629
  %3768 = vmatprep.subr.mxu0 0.0
  %3769 = vmatpush1.msra.mxu0 %v2628
  %3770 = vmatprep.subr.mxu0 0.0
  %3771 = vmatpush1.msra.mxu0 %v2627
  %3772 = vmatprep.subr.mxu0 0.0
  %3773 = vmatpush1.msra.mxu0 %v2626
  %3774 = vmatprep.subr.mxu0 0.0
  %3775 = vmatpush1.msra.mxu0 %v2625
  %3776 = vmatprep.subr.mxu0 0.0
  %3777 = vmatpush1.msra.mxu0 %v2624
  %3778 = vmatprep.subr.mxu0 0.0
  %3779 = vmatpush1.msra.mxu0 %v2623
  %3780 = vmatprep.subr.mxu0 0.0
  %3781 = vmatpush1.msra.mxu0 %v2622
  %3782 = vmatprep.subr.mxu0 0.0
  %3783 = vmatpush2.msra.mxu0 0.0
  %3784 = vmatprep.subr.mxu0 0.0
  %3785 = vmatpush2.msra.mxu0 0.0
  %3786 = vmatprep.subr.mxu0 0.0
  %3787 = vmatpush2.msra.mxu0 %v2651
  %3788 = vmatprep.subr.mxu0 0.0
  %3789 = vmatpush2.msra.mxu0 %v2650
  %3790 = vmatprep.subr.mxu0 0.0
  %3791 = vmatpush2.msra.mxu0 %v2649
  %3792 = vmatprep.subr.mxu0 0.0
  %3793 = vmatpush2.msra.mxu0 %v2648
  %3794 = vmatprep.subr.mxu0 0.0
  %3795 = vmatpush2.msra.mxu0 %v2647
  %3796 = vmatprep.subr.mxu0 0.0
  %3797 = vmatpush2.msra.mxu0 %v2646
  %3798 = vmatprep.subr.mxu0 0.0
  %3799 = vmatpush2.msra.mxu0 %v2645
  %3800 = vmatprep.subr.mxu0 0.0
  %3801 = vmatpush2.msra.mxu0 %v2644
  %3802 = vmatprep.subr.mxu0 0.0
  %3803 = vmatpush2.msra.mxu0 %v2643
  %3804 = vmatprep.subr.mxu0 0.0
  %3805 = vmatpush2.msra.mxu0 %v2642
  %3806 = vmatprep.subr.mxu0 0.0
  %3807 = vmatpush2.msra.mxu0 %v2641
  %3808 = vmatprep.subr.mxu0 0.0
  %3809 = vmatpush2.msra.mxu0 %v2640
  %3810 = vmatprep.subr.mxu0 0.0
  %3811 = vmatpush2.msra.mxu0 %v2639
  %3812 = vmatprep.subr.mxu0 0.0
  %3813 = vmatpush2.msra.mxu0 %v2638
  %3814 = vmatprep.mubr.f32.mxu0 %v3748
  %3815 = vmatmul.mubr.f32.gmra.mxu0 %v3745
  %v3816 = vpop.f32.mrf.mxu0
  %v3817 = vadd.f32 0.0, %v3816
  %v3818 = vpop.f32.mrf.mxu0
  %3819 = vdwg.mxu0
  %3820 = vmatprep.subr.mxu0 0.0
  %3821 = vmatpush1.msra.mxu0 %v2668
  %3822 = vmatprep.subr.mxu0 0.0
  %3823 = vmatpush1.msra.mxu0 %v2667
  %3824 = vmatprep.subr.mxu0 0.0
  %3825 = vmatpush1.msra.mxu0 %v2666
  %3826 = vmatprep.subr.mxu0 0.0
  %3827 = vmatpush1.msra.mxu0 %v2665
  %3828 = vmatprep.subr.mxu0 0.0
  %3829 = vmatpush1.msra.mxu0 %v2664
  %3830 = vmatprep.subr.mxu0 0.0
  %3831 = vmatpush1.msra.mxu0 %v2663
  %3832 = vmatprep.subr.mxu0 0.0
  %3833 = vmatpush1.msra.mxu0 %v2662
  %3834 = vmatprep.subr.mxu0 0.0
  %3835 = vmatpush1.msra.mxu0 %v2661
  %3836 = vmatprep.subr.mxu0 0.0
  %3837 = vmatpush1.msra.mxu0 %v2660
  %3838 = vmatprep.subr.mxu0 0.0
  %3839 = vmatpush1.msra.mxu0 %v2659
  %3840 = vmatprep.subr.mxu0 0.0
  %3841 = vmatpush1.msra.mxu0 %v2658
  %3842 = vmatprep.subr.mxu0 0.0
  %3843 = vmatpush1.msra.mxu0 %v2657
  %3844 = vmatprep.subr.mxu0 0.0
  %3845 = vmatpush1.msra.mxu0 %v2656
  %3846 = vmatprep.subr.mxu0 0.0
  %3847 = vmatpush1.msra.mxu0 %v2655
  %3848 = vmatprep.subr.mxu0 0.0
  %3849 = vmatpush1.msra.mxu0 %v2654
  %3850 = vmatprep.subr.mxu0 0.0
  %3851 = vmatpush1.msra.mxu0 %v2653
  %3852 = vmatprep.subr.mxu0 0.0
  %3853 = vmatpush2.msra.mxu0 0.0
  %3854 = vmatprep.subr.mxu0 0.0
  %3855 = vmatpush2.msra.mxu0 0.0
  %3856 = vmatprep.subr.mxu0 0.0
  %3857 = vmatpush2.msra.mxu0 %v2682
  %3858 = vmatprep.subr.mxu0 0.0
  %3859 = vmatpush2.msra.mxu0 %v2681
  %3860 = vmatprep.subr.mxu0 0.0
  %3861 = vmatpush2.msra.mxu0 %v2680
  %3862 = vmatprep.subr.mxu0 0.0
  %3863 = vmatpush2.msra.mxu0 %v2679
  %3864 = vmatprep.subr.mxu0 0.0
  %3865 = vmatpush2.msra.mxu0 %v2678
  %3866 = vmatprep.subr.mxu0 0.0
  %3867 = vmatpush2.msra.mxu0 %v2677
  %3868 = vmatprep.subr.mxu0 0.0
  %3869 = vmatpush2.msra.mxu0 %v2676
  %3870 = vmatprep.subr.mxu0 0.0
  %3871 = vmatpush2.msra.mxu0 %v2675
  %3872 = vmatprep.subr.mxu0 0.0
  %3873 = vmatpush2.msra.mxu0 %v2674
  %3874 = vmatprep.subr.mxu0 0.0
  %3875 = vmatpush2.msra.mxu0 %v2673
  %3876 = vmatprep.subr.mxu0 0.0
  %3877 = vmatpush2.msra.mxu0 %v2672
  %3878 = vmatprep.subr.mxu0 0.0
  %3879 = vmatpush2.msra.mxu0 %v2671
  %3880 = vmatprep.subr.mxu0 0.0
  %3881 = vmatpush2.msra.mxu0 %v2670
  %3882 = vmatprep.subr.mxu0 0.0
  %3883 = vmatpush2.msra.mxu0 %v2669
  %3884 = vmatprep.mubr.f32.mxu0 %v3748
  %3885 = vmatmul.mubr.f32.gmra.mxu0 %v3745
  %v3886 = vpop.f32.mrf.mxu0
  %v3887 = vadd.f32 0.0, %v3886
  %v3888 = vpop.f32.mrf.mxu0
  %3889 = vdwg.mxu0
  %v3890 = vmax.f32 %v3817, %v3887
  %3891 = vst.msk [vmem:[#allocation3 + $0x38] sm:$0xff] %vm2833, %v3890
  %v3892 = vld [vmem:[#allocation2 + $0x100] sm:$0xff]
  %v3893 = vld [vmem:[#allocation2 + $0x108] sm:$0xff]
  %v3894 = vld [vmem:[#allocation2 + $0x110] sm:$0xff]
  %v3895 = vld [vmem:[#allocation2 + $0x118] sm:$0xff]
  %v3896 = vmax.f32 %v3892, %v3894
  %v3897 = vmax.f32 %v3893, %v3895
  %v3899 = vsel %vm888, %v3897, 0
  %3901 = vmatprep.subr.mxu0 0.0
  %3902 = vmatpush1.msra.mxu0 %v2637
  %3903 = vmatprep.subr.mxu0 0.0
  %3904 = vmatpush1.msra.mxu0 %v2636
  %3905 = vmatprep.subr.mxu0 0.0
  %3906 = vmatpush1.msra.mxu0 %v2635
  %3907 = vmatprep.subr.mxu0 0.0
  %3908 = vmatpush1.msra.mxu0 %v2634
  %3909 = vmatprep.subr.mxu0 0.0
  %3910 = vmatpush1.msra.mxu0 %v2633
  %3911 = vmatprep.subr.mxu0 0.0
  %3912 = vmatpush1.msra.mxu0 %v2632
  %3913 = vmatprep.subr.mxu0 0.0
  %3914 = vmatpush1.msra.mxu0 %v2631
  %3915 = vmatprep.subr.mxu0 0.0
  %3916 = vmatpush1.msra.mxu0 %v2630
  %3917 = vmatprep.subr.mxu0 0.0
  %3918 = vmatpush1.msra.mxu0 %v2629
  %3919 = vmatprep.subr.mxu0 0.0
  %3920 = vmatpush1.msra.mxu0 %v2628
  %3921 = vmatprep.subr.mxu0 0.0
  %3922 = vmatpush1.msra.mxu0 %v2627
  %3923 = vmatprep.subr.mxu0 0.0
  %3924 = vmatpush1.msra.mxu0 %v2626
  %3925 = vmatprep.subr.mxu0 0.0
  %3926 = vmatpush1.msra.mxu0 %v2625
  %3927 = vmatprep.subr.mxu0 0.0
  %3928 = vmatpush1.msra.mxu0 %v2624
  %3929 = vmatprep.subr.mxu0 0.0
  %3930 = vmatpush1.msra.mxu0 %v2623
  %3931 = vmatprep.subr.mxu0 0.0
  %3932 = vmatpush1.msra.mxu0 %v2622
  %3933 = vmatprep.subr.mxu0 0.0
  %3934 = vmatpush2.msra.mxu0 0.0
  %3935 = vmatprep.subr.mxu0 0.0
  %3936 = vmatpush2.msra.mxu0 0.0
  %3937 = vmatprep.subr.mxu0 0.0
  %3938 = vmatpush2.msra.mxu0 %v2651
  %3939 = vmatprep.subr.mxu0 0.0
  %3940 = vmatpush2.msra.mxu0 %v2650
  %3941 = vmatprep.subr.mxu0 0.0
  %3942 = vmatpush2.msra.mxu0 %v2649
  %3943 = vmatprep.subr.mxu0 0.0
  %3944 = vmatpush2.msra.mxu0 %v2648
  %3945 = vmatprep.subr.mxu0 0.0
  %3946 = vmatpush2.msra.mxu0 %v2647
  %3947 = vmatprep.subr.mxu0 0.0
  %3948 = vmatpush2.msra.mxu0 %v2646
  %3949 = vmatprep.subr.mxu0 0.0
  %3950 = vmatpush2.msra.mxu0 %v2645
  %3951 = vmatprep.subr.mxu0 0.0
  %3952 = vmatpush2.msra.mxu0 %v2644
  %3953 = vmatprep.subr.mxu0 0.0
  %3954 = vmatpush2.msra.mxu0 %v2643
  %3955 = vmatprep.subr.mxu0 0.0
  %3956 = vmatpush2.msra.mxu0 %v2642
  %3957 = vmatprep.subr.mxu0 0.0
  %3958 = vmatpush2.msra.mxu0 %v2641
  %3959 = vmatprep.subr.mxu0 0.0
  %3960 = vmatpush2.msra.mxu0 %v2640
  %3961 = vmatprep.subr.mxu0 0.0
  %3962 = vmatpush2.msra.mxu0 %v2639
  %3963 = vmatprep.subr.mxu0 0.0
  %3964 = vmatpush2.msra.mxu0 %v2638
  %3965 = vmatprep.mubr.f32.mxu0 %v3899
  %3966 = vmatmul.mubr.f32.gmra.mxu0 %v3896
  %v3967 = vpop.f32.mrf.mxu0
  %v3968 = vadd.f32 0.0, %v3967
  %v3969 = vpop.f32.mrf.mxu0
  %3970 = vdwg.mxu0
  %3971 = vmatprep.subr.mxu0 0.0
  %3972 = vmatpush1.msra.mxu0 %v2668
  %3973 = vmatprep.subr.mxu0 0.0
  %3974 = vmatpush1.msra.mxu0 %v2667
  %3975 = vmatprep.subr.mxu0 0.0
  %3976 = vmatpush1.msra.mxu0 %v2666
  %3977 = vmatprep.subr.mxu0 0.0
  %3978 = vmatpush1.msra.mxu0 %v2665
  %3979 = vmatprep.subr.mxu0 0.0
  %3980 = vmatpush1.msra.mxu0 %v2664
  %3981 = vmatprep.subr.mxu0 0.0
  %3982 = vmatpush1.msra.mxu0 %v2663
  %3983 = vmatprep.subr.mxu0 0.0
  %3984 = vmatpush1.msra.mxu0 %v2662
  %3985 = vmatprep.subr.mxu0 0.0
  %3986 = vmatpush1.msra.mxu0 %v2661
  %3987 = vmatprep.subr.mxu0 0.0
  %3988 = vmatpush1.msra.mxu0 %v2660
  %3989 = vmatprep.subr.mxu0 0.0
  %3990 = vmatpush1.msra.mxu0 %v2659
  %3991 = vmatprep.subr.mxu0 0.0
  %3992 = vmatpush1.msra.mxu0 %v2658
  %3993 = vmatprep.subr.mxu0 0.0
  %3994 = vmatpush1.msra.mxu0 %v2657
  %3995 = vmatprep.subr.mxu0 0.0
  %3996 = vmatpush1.msra.mxu0 %v2656
  %3997 = vmatprep.subr.mxu0 0.0
  %3998 = vmatpush1.msra.mxu0 %v2655
  %3999 = vmatprep.subr.mxu0 0.0
  %4000 = vmatpush1.msra.mxu0 %v2654
  %4001 = vmatprep.subr.mxu0 0.0
  %4002 = vmatpush1.msra.mxu0 %v2653
  %4003 = vmatprep.subr.mxu0 0.0
  %4004 = vmatpush2.msra.mxu0 0.0
  %4005 = vmatprep.subr.mxu0 0.0
  %4006 = vmatpush2.msra.mxu0 0.0
  %4007 = vmatprep.subr.mxu0 0.0
  %4008 = vmatpush2.msra.mxu0 %v2682
  %4009 = vmatprep.subr.mxu0 0.0
  %4010 = vmatpush2.msra.mxu0 %v2681
  %4011 = vmatprep.subr.mxu0 0.0
  %4012 = vmatpush2.msra.mxu0 %v2680
  %4013 = vmatprep.subr.mxu0 0.0
  %4014 = vmatpush2.msra.mxu0 %v2679
  %4015 = vmatprep.subr.mxu0 0.0
  %4016 = vmatpush2.msra.mxu0 %v2678
  %4017 = vmatprep.subr.mxu0 0.0
  %4018 = vmatpush2.msra.mxu0 %v2677
  %4019 = vmatprep.subr.mxu0 0.0
  %4020 = vmatpush2.msra.mxu0 %v2676
  %4021 = vmatprep.subr.mxu0 0.0
  %4022 = vmatpush2.msra.mxu0 %v2675
  %4023 = vmatprep.subr.mxu0 0.0
  %4024 = vmatpush2.msra.mxu0 %v2674
  %4025 = vmatprep.subr.mxu0 0.0
  %4026 = vmatpush2.msra.mxu0 %v2673
  %4027 = vmatprep.subr.mxu0 0.0
  %4028 = vmatpush2.msra.mxu0 %v2672
  %4029 = vmatprep.subr.mxu0 0.0
  %4030 = vmatpush2.msra.mxu0 %v2671
  %4031 = vmatprep.subr.mxu0 0.0
  %4032 = vmatpush2.msra.mxu0 %v2670
  %4033 = vmatprep.subr.mxu0 0.0
  %4034 = vmatpush2.msra.mxu0 %v2669
  %4035 = vmatprep.mubr.f32.mxu0 %v3899
  %4036 = vmatmul.mubr.f32.gmra.mxu0 %v3896
  %v4037 = vpop.f32.mrf.mxu0
  %v4038 = vadd.f32 0.0, %v4037
  %v4039 = vpop.f32.mrf.mxu0
  %4040 = vdwg.mxu0
  %v4041 = vmax.f32 %v3968, %v4038
  %4042 = vst.msk [vmem:[#allocation3 + $0x40] sm:$0xff] %vm2833, %v4041
  %v4043 = vld [vmem:[#allocation2 + $0x120] sm:$0xff]
  %v4044 = vld [vmem:[#allocation2 + $0x128] sm:$0xff]
  %v4045 = vld [vmem:[#allocation2 + $0x130] sm:$0xff]
  %v4046 = vld [vmem:[#allocation2 + $0x138] sm:$0xff]
  %v4047 = vmax.f32 %v4043, %v4045
  %v4048 = vmax.f32 %v4044, %v4046
  %v4050 = vsel %vm888, %v4048, 0
  %4052 = vmatprep.subr.mxu0 0.0
  %4053 = vmatpush1.msra.mxu0 %v2637
  %4054 = vmatprep.subr.mxu0 0.0
  %4055 = vmatpush1.msra.mxu0 %v2636
  %4056 = vmatprep.subr.mxu0 0.0
  %4057 = vmatpush1.msra.mxu0 %v2635
  %4058 = vmatprep.subr.mxu0 0.0
  %4059 = vmatpush1.msra.mxu0 %v2634
  %4060 = vmatprep.subr.mxu0 0.0
  %4061 = vmatpush1.msra.mxu0 %v2633
  %4062 = vmatprep.subr.mxu0 0.0
  %4063 = vmatpush1.msra.mxu0 %v2632
  %4064 = vmatprep.subr.mxu0 0.0
  %4065 = vmatpush1.msra.mxu0 %v2631
  %4066 = vmatprep.subr.mxu0 0.0
  %4067 = vmatpush1.msra.mxu0 %v2630
  %4068 = vmatprep.subr.mxu0 0.0
  %4069 = vmatpush1.msra.mxu0 %v2629
  %4070 = vmatprep.subr.mxu0 0.0
  %4071 = vmatpush1.msra.mxu0 %v2628
  %4072 = vmatprep.subr.mxu0 0.0
  %4073 = vmatpush1.msra.mxu0 %v2627
  %4074 = vmatprep.subr.mxu0 0.0
  %4075 = vmatpush1.msra.mxu0 %v2626
  %4076 = vmatprep.subr.mxu0 0.0
  %4077 = vmatpush1.msra.mxu0 %v2625
  %4078 = vmatprep.subr.mxu0 0.0
  %4079 = vmatpush1.msra.mxu0 %v2624
  %4080 = vmatprep.subr.mxu0 0.0
  %4081 = vmatpush1.msra.mxu0 %v2623
  %4082 = vmatprep.subr.mxu0 0.0
  %4083 = vmatpush1.msra.mxu0 %v2622
  %4084 = vmatprep.subr.mxu0 0.0
  %4085 = vmatpush2.msra.mxu0 0.0
  %4086 = vmatprep.subr.mxu0 0.0
  %4087 = vmatpush2.msra.mxu0 0.0
  %4088 = vmatprep.subr.mxu0 0.0
  %4089 = vmatpush2.msra.mxu0 %v2651
  %4090 = vmatprep.subr.mxu0 0.0
  %4091 = vmatpush2.msra.mxu0 %v2650
  %4092 = vmatprep.subr.mxu0 0.0
  %4093 = vmatpush2.msra.mxu0 %v2649
  %4094 = vmatprep.subr.mxu0 0.0
  %4095 = vmatpush2.msra.mxu0 %v2648
  %4096 = vmatprep.subr.mxu0 0.0
  %4097 = vmatpush2.msra.mxu0 %v2647
  %4098 = vmatprep.subr.mxu0 0.0
  %4099 = vmatpush2.msra.mxu0 %v2646
  %4100 = vmatprep.subr.mxu0 0.0
  %4101 = vmatpush2.msra.mxu0 %v2645
  %4102 = vmatprep.subr.mxu0 0.0
  %4103 = vmatpush2.msra.mxu0 %v2644
  %4104 = vmatprep.subr.mxu0 0.0
  %4105 = vmatpush2.msra.mxu0 %v2643
  %4106 = vmatprep.subr.mxu0 0.0
  %4107 = vmatpush2.msra.mxu0 %v2642
  %4108 = vmatprep.subr.mxu0 0.0
  %4109 = vmatpush2.msra.mxu0 %v2641
  %4110 = vmatprep.subr.mxu0 0.0
  %4111 = vmatpush2.msra.mxu0 %v2640
  %4112 = vmatprep.subr.mxu0 0.0
  %4113 = vmatpush2.msra.mxu0 %v2639
  %4114 = vmatprep.subr.mxu0 0.0
  %4115 = vmatpush2.msra.mxu0 %v2638
  %4116 = vmatprep.mubr.f32.mxu0 %v4050
  %4117 = vmatmul.mubr.f32.gmra.mxu0 %v4047
  %v4118 = vpop.f32.mrf.mxu0
  %v4119 = vadd.f32 0.0, %v4118
  %v4120 = vpop.f32.mrf.mxu0
  %4121 = vdwg.mxu0
  %4122 = vmatprep.subr.mxu0 0.0
  %4123 = vmatpush1.msra.mxu0 %v2668
  %4124 = vmatprep.subr.mxu0 0.0
  %4125 = vmatpush1.msra.mxu0 %v2667
  %4126 = vmatprep.subr.mxu0 0.0
  %4127 = vmatpush1.msra.mxu0 %v2666
  %4128 = vmatprep.subr.mxu0 0.0
  %4129 = vmatpush1.msra.mxu0 %v2665
  %4130 = vmatprep.subr.mxu0 0.0
  %4131 = vmatpush1.msra.mxu0 %v2664
  %4132 = vmatprep.subr.mxu0 0.0
  %4133 = vmatpush1.msra.mxu0 %v2663
  %4134 = vmatprep.subr.mxu0 0.0
  %4135 = vmatpush1.msra.mxu0 %v2662
  %4136 = vmatprep.subr.mxu0 0.0
  %4137 = vmatpush1.msra.mxu0 %v2661
  %4138 = vmatprep.subr.mxu0 0.0
  %4139 = vmatpush1.msra.mxu0 %v2660
  %4140 = vmatprep.subr.mxu0 0.0
  %4141 = vmatpush1.msra.mxu0 %v2659
  %4142 = vmatprep.subr.mxu0 0.0
  %4143 = vmatpush1.msra.mxu0 %v2658
  %4144 = vmatprep.subr.mxu0 0.0
  %4145 = vmatpush1.msra.mxu0 %v2657
  %4146 = vmatprep.subr.mxu0 0.0
  %4147 = vmatpush1.msra.mxu0 %v2656
  %4148 = vmatprep.subr.mxu0 0.0
  %4149 = vmatpush1.msra.mxu0 %v2655
  %4150 = vmatprep.subr.mxu0 0.0
  %4151 = vmatpush1.msra.mxu0 %v2654
  %4152 = vmatprep.subr.mxu0 0.0
  %4153 = vmatpush1.msra.mxu0 %v2653
  %4154 = vmatprep.subr.mxu0 0.0
  %4155 = vmatpush2.msra.mxu0 0.0
  %4156 = vmatprep.subr.mxu0 0.0
  %4157 = vmatpush2.msra.mxu0 0.0
  %4158 = vmatprep.subr.mxu0 0.0
  %4159 = vmatpush2.msra.mxu0 %v2682
  %4160 = vmatprep.subr.mxu0 0.0
  %4161 = vmatpush2.msra.mxu0 %v2681
  %4162 = vmatprep.subr.mxu0 0.0
  %4163 = vmatpush2.msra.mxu0 %v2680
  %4164 = vmatprep.subr.mxu0 0.0
  %4165 = vmatpush2.msra.mxu0 %v2679
  %4166 = vmatprep.subr.mxu0 0.0
  %4167 = vmatpush2.msra.mxu0 %v2678
  %4168 = vmatprep.subr.mxu0 0.0
  %4169 = vmatpush2.msra.mxu0 %v2677
  %4170 = vmatprep.subr.mxu0 0.0
  %4171 = vmatpush2.msra.mxu0 %v2676
  %4172 = vmatprep.subr.mxu0 0.0
  %4173 = vmatpush2.msra.mxu0 %v2675
  %4174 = vmatprep.subr.mxu0 0.0
  %4175 = vmatpush2.msra.mxu0 %v2674
  %4176 = vmatprep.subr.mxu0 0.0
  %4177 = vmatpush2.msra.mxu0 %v2673
  %4178 = vmatprep.subr.mxu0 0.0
  %4179 = vmatpush2.msra.mxu0 %v2672
  %4180 = vmatprep.subr.mxu0 0.0
  %4181 = vmatpush2.msra.mxu0 %v2671
  %4182 = vmatprep.subr.mxu0 0.0
  %4183 = vmatpush2.msra.mxu0 %v2670
  %4184 = vmatprep.subr.mxu0 0.0
  %4185 = vmatpush2.msra.mxu0 %v2669
  %4186 = vmatprep.mubr.f32.mxu0 %v4050
  %4187 = vmatmul.mubr.f32.gmra.mxu0 %v4047
  %v4188 = vpop.f32.mrf.mxu0
  %v4189 = vadd.f32 0.0, %v4188
  %v4190 = vpop.f32.mrf.mxu0
  %4191 = vdwg.mxu0
  %v4192 = vmax.f32 %v4119, %v4189
  %4193 = vst.msk [vmem:[#allocation3 + $0x48] sm:$0xff] %vm2833, %v4192
  %v4194 = vld [vmem:[#allocation2 + $0x140] sm:$0xff]
  %v4195 = vld [vmem:[#allocation2 + $0x148] sm:$0xff]
  %v4196 = vld [vmem:[#allocation2 + $0x150] sm:$0xff]
  %v4197 = vld [vmem:[#allocation2 + $0x158] sm:$0xff]
  %v4198 = vmax.f32 %v4194, %v4196
  %v4199 = vmax.f32 %v4195, %v4197
  %v4201 = vsel %vm888, %v4199, 0
  %4203 = vmatprep.subr.mxu0 0.0
  %4204 = vmatpush1.msra.mxu0 %v2637
  %4205 = vmatprep.subr.mxu0 0.0
  %4206 = vmatpush1.msra.mxu0 %v2636
  %4207 = vmatprep.subr.mxu0 0.0
  %4208 = vmatpush1.msra.mxu0 %v2635
  %4209 = vmatprep.subr.mxu0 0.0
  %4210 = vmatpush1.msra.mxu0 %v2634
  %4211 = vmatprep.subr.mxu0 0.0
  %4212 = vmatpush1.msra.mxu0 %v2633
  %4213 = vmatprep.subr.mxu0 0.0
  %4214 = vmatpush1.msra.mxu0 %v2632
  %4215 = vmatprep.subr.mxu0 0.0
  %4216 = vmatpush1.msra.mxu0 %v2631
  %4217 = vmatprep.subr.mxu0 0.0
  %4218 = vmatpush1.msra.mxu0 %v2630
  %4219 = vmatprep.subr.mxu0 0.0
  %4220 = vmatpush1.msra.mxu0 %v2629
  %4221 = vmatprep.subr.mxu0 0.0
  %4222 = vmatpush1.msra.mxu0 %v2628
  %4223 = vmatprep.subr.mxu0 0.0
  %4224 = vmatpush1.msra.mxu0 %v2627
  %4225 = vmatprep.subr.mxu0 0.0
  %4226 = vmatpush1.msra.mxu0 %v2626
  %4227 = vmatprep.subr.mxu0 0.0
  %4228 = vmatpush1.msra.mxu0 %v2625
  %4229 = vmatprep.subr.mxu0 0.0
  %4230 = vmatpush1.msra.mxu0 %v2624
  %4231 = vmatprep.subr.mxu0 0.0
  %4232 = vmatpush1.msra.mxu0 %v2623
  %4233 = vmatprep.subr.mxu0 0.0
  %4234 = vmatpush1.msra.mxu0 %v2622
  %4235 = vmatprep.subr.mxu0 0.0
  %4236 = vmatpush2.msra.mxu0 0.0
  %4237 = vmatprep.subr.mxu0 0.0
  %4238 = vmatpush2.msra.mxu0 0.0
  %4239 = vmatprep.subr.mxu0 0.0
  %4240 = vmatpush2.msra.mxu0 %v2651
  %4241 = vmatprep.subr.mxu0 0.0
  %4242 = vmatpush2.msra.mxu0 %v2650
  %4243 = vmatprep.subr.mxu0 0.0
  %4244 = vmatpush2.msra.mxu0 %v2649
  %4245 = vmatprep.subr.mxu0 0.0
  %4246 = vmatpush2.msra.mxu0 %v2648
  %4247 = vmatprep.subr.mxu0 0.0
  %4248 = vmatpush2.msra.mxu0 %v2647
  %4249 = vmatprep.subr.mxu0 0.0
  %4250 = vmatpush2.msra.mxu0 %v2646
  %4251 = vmatprep.subr.mxu0 0.0
  %4252 = vmatpush2.msra.mxu0 %v2645
  %4253 = vmatprep.subr.mxu0 0.0
  %4254 = vmatpush2.msra.mxu0 %v2644
  %4255 = vmatprep.subr.mxu0 0.0
  %4256 = vmatpush2.msra.mxu0 %v2643
  %4257 = vmatprep.subr.mxu0 0.0
  %4258 = vmatpush2.msra.mxu0 %v2642
  %4259 = vmatprep.subr.mxu0 0.0
  %4260 = vmatpush2.msra.mxu0 %v2641
  %4261 = vmatprep.subr.mxu0 0.0
  %4262 = vmatpush2.msra.mxu0 %v2640
  %4263 = vmatprep.subr.mxu0 0.0
  %4264 = vmatpush2.msra.mxu0 %v2639
  %4265 = vmatprep.subr.mxu0 0.0
  %4266 = vmatpush2.msra.mxu0 %v2638
  %4267 = vmatprep.mubr.f32.mxu0 %v4201
  %4268 = vmatmul.mubr.f32.gmra.mxu0 %v4198
  %v4269 = vpop.f32.mrf.mxu0
  %v4270 = vadd.f32 0.0, %v4269
  %v4271 = vpop.f32.mrf.mxu0
  %4272 = vdwg.mxu0
  %4273 = vmatprep.subr.mxu0 0.0
  %4274 = vmatpush1.msra.mxu0 %v2668
  %4275 = vmatprep.subr.mxu0 0.0
  %4276 = vmatpush1.msra.mxu0 %v2667
  %4277 = vmatprep.subr.mxu0 0.0
  %4278 = vmatpush1.msra.mxu0 %v2666
  %4279 = vmatprep.subr.mxu0 0.0
  %4280 = vmatpush1.msra.mxu0 %v2665
  %4281 = vmatprep.subr.mxu0 0.0
  %4282 = vmatpush1.msra.mxu0 %v2664
  %4283 = vmatprep.subr.mxu0 0.0
  %4284 = vmatpush1.msra.mxu0 %v2663
  %4285 = vmatprep.subr.mxu0 0.0
  %4286 = vmatpush1.msra.mxu0 %v2662
  %4287 = vmatprep.subr.mxu0 0.0
  %4288 = vmatpush1.msra.mxu0 %v2661
  %4289 = vmatprep.subr.mxu0 0.0
  %4290 = vmatpush1.msra.mxu0 %v2660
  %4291 = vmatprep.subr.mxu0 0.0
  %4292 = vmatpush1.msra.mxu0 %v2659
  %4293 = vmatprep.subr.mxu0 0.0
  %4294 = vmatpush1.msra.mxu0 %v2658
  %4295 = vmatprep.subr.mxu0 0.0
  %4296 = vmatpush1.msra.mxu0 %v2657
  %4297 = vmatprep.subr.mxu0 0.0
  %4298 = vmatpush1.msra.mxu0 %v2656
  %4299 = vmatprep.subr.mxu0 0.0
  %4300 = vmatpush1.msra.mxu0 %v2655
  %4301 = vmatprep.subr.mxu0 0.0
  %4302 = vmatpush1.msra.mxu0 %v2654
  %4303 = vmatprep.subr.mxu0 0.0
  %4304 = vmatpush1.msra.mxu0 %v2653
  %4305 = vmatprep.subr.mxu0 0.0
  %4306 = vmatpush2.msra.mxu0 0.0
  %4307 = vmatprep.subr.mxu0 0.0
  %4308 = vmatpush2.msra.mxu0 0.0
  %4309 = vmatprep.subr.mxu0 0.0
  %4310 = vmatpush2.msra.mxu0 %v2682
  %4311 = vmatprep.subr.mxu0 0.0
  %4312 = vmatpush2.msra.mxu0 %v2681
  %4313 = vmatprep.subr.mxu0 0.0
  %4314 = vmatpush2.msra.mxu0 %v2680
  %4315 = vmatprep.subr.mxu0 0.0
  %4316 = vmatpush2.msra.mxu0 %v2679
  %4317 = vmatprep.subr.mxu0 0.0
  %4318 = vmatpush2.msra.mxu0 %v2678
  %4319 = vmatprep.subr.mxu0 0.0
  %4320 = vmatpush2.msra.mxu0 %v2677
  %4321 = vmatprep.subr.mxu0 0.0
  %4322 = vmatpush2.msra.mxu0 %v2676
  %4323 = vmatprep.subr.mxu0 0.0
  %4324 = vmatpush2.msra.mxu0 %v2675
  %4325 = vmatprep.subr.mxu0 0.0
  %4326 = vmatpush2.msra.mxu0 %v2674
  %4327 = vmatprep.subr.mxu0 0.0
  %4328 = vmatpush2.msra.mxu0 %v2673
  %4329 = vmatprep.subr.mxu0 0.0
  %4330 = vmatpush2.msra.mxu0 %v2672
  %4331 = vmatprep.subr.mxu0 0.0
  %4332 = vmatpush2.msra.mxu0 %v2671
  %4333 = vmatprep.subr.mxu0 0.0
  %4334 = vmatpush2.msra.mxu0 %v2670
  %4335 = vmatprep.subr.mxu0 0.0
  %4336 = vmatpush2.msra.mxu0 %v2669
  %4337 = vmatprep.mubr.f32.mxu0 %v4201
  %4338 = vmatmul.mubr.f32.gmra.mxu0 %v4198
  %v4339 = vpop.f32.mrf.mxu0
  %v4340 = vadd.f32 0.0, %v4339
  %v4341 = vpop.f32.mrf.mxu0
  %4342 = vdwg.mxu0
  %v4343 = vmax.f32 %v4270, %v4340
  %4344 = vst.msk [vmem:[#allocation3 + $0x50] sm:$0xff] %vm2833, %v4343
  %v4345 = vld [vmem:[#allocation2 + $0x160] sm:$0xff]
  %v4346 = vld [vmem:[#allocation2 + $0x168] sm:$0xff]
  %v4347 = vld [vmem:[#allocation2 + $0x170] sm:$0xff]
  %v4348 = vld [vmem:[#allocation2 + $0x178] sm:$0xff]
  %v4349 = vmax.f32 %v4345, %v4347
  %v4350 = vmax.f32 %v4346, %v4348
  %v4352 = vsel %vm888, %v4350, 0
  %4354 = vmatprep.subr.mxu0 0.0
  %4355 = vmatpush1.msra.mxu0 %v2637
  %4356 = vmatprep.subr.mxu0 0.0
  %4357 = vmatpush1.msra.mxu0 %v2636
  %4358 = vmatprep.subr.mxu0 0.0
  %4359 = vmatpush1.msra.mxu0 %v2635
  %4360 = vmatprep.subr.mxu0 0.0
  %4361 = vmatpush1.msra.mxu0 %v2634
  %4362 = vmatprep.subr.mxu0 0.0
  %4363 = vmatpush1.msra.mxu0 %v2633
  %4364 = vmatprep.subr.mxu0 0.0
  %4365 = vmatpush1.msra.mxu0 %v2632
  %4366 = vmatprep.subr.mxu0 0.0
  %4367 = vmatpush1.msra.mxu0 %v2631
  %4368 = vmatprep.subr.mxu0 0.0
  %4369 = vmatpush1.msra.mxu0 %v2630
  %4370 = vmatprep.subr.mxu0 0.0
  %4371 = vmatpush1.msra.mxu0 %v2629
  %4372 = vmatprep.subr.mxu0 0.0
  %4373 = vmatpush1.msra.mxu0 %v2628
  %4374 = vmatprep.subr.mxu0 0.0
  %4375 = vmatpush1.msra.mxu0 %v2627
  %4376 = vmatprep.subr.mxu0 0.0
  %4377 = vmatpush1.msra.mxu0 %v2626
  %4378 = vmatprep.subr.mxu0 0.0
  %4379 = vmatpush1.msra.mxu0 %v2625
  %4380 = vmatprep.subr.mxu0 0.0
  %4381 = vmatpush1.msra.mxu0 %v2624
  %4382 = vmatprep.subr.mxu0 0.0
  %4383 = vmatpush1.msra.mxu0 %v2623
  %4384 = vmatprep.subr.mxu0 0.0
  %4385 = vmatpush1.msra.mxu0 %v2622
  %4386 = vmatprep.subr.mxu0 0.0
  %4387 = vmatpush2.msra.mxu0 0.0
  %4388 = vmatprep.subr.mxu0 0.0
  %4389 = vmatpush2.msra.mxu0 0.0
  %4390 = vmatprep.subr.mxu0 0.0
  %4391 = vmatpush2.msra.mxu0 %v2651
  %4392 = vmatprep.subr.mxu0 0.0
  %4393 = vmatpush2.msra.mxu0 %v2650
  %4394 = vmatprep.subr.mxu0 0.0
  %4395 = vmatpush2.msra.mxu0 %v2649
  %4396 = vmatprep.subr.mxu0 0.0
  %4397 = vmatpush2.msra.mxu0 %v2648
  %4398 = vmatprep.subr.mxu0 0.0
  %4399 = vmatpush2.msra.mxu0 %v2647
  %4400 = vmatprep.subr.mxu0 0.0
  %4401 = vmatpush2.msra.mxu0 %v2646
  %4402 = vmatprep.subr.mxu0 0.0
  %4403 = vmatpush2.msra.mxu0 %v2645
  %4404 = vmatprep.subr.mxu0 0.0
  %4405 = vmatpush2.msra.mxu0 %v2644
  %4406 = vmatprep.subr.mxu0 0.0
  %4407 = vmatpush2.msra.mxu0 %v2643
  %4408 = vmatprep.subr.mxu0 0.0
  %4409 = vmatpush2.msra.mxu0 %v2642
  %4410 = vmatprep.subr.mxu0 0.0
  %4411 = vmatpush2.msra.mxu0 %v2641
  %4412 = vmatprep.subr.mxu0 0.0
  %4413 = vmatpush2.msra.mxu0 %v2640
  %4414 = vmatprep.subr.mxu0 0.0
  %4415 = vmatpush2.msra.mxu0 %v2639
  %4416 = vmatprep.subr.mxu0 0.0
  %4417 = vmatpush2.msra.mxu0 %v2638
  %4418 = vmatprep.mubr.f32.mxu0 %v4352
  %4419 = vmatmul.mubr.f32.gmra.mxu0 %v4349
  %v4420 = vpop.f32.mrf.mxu0
  %v4421 = vadd.f32 0.0, %v4420
  %v4422 = vpop.f32.mrf.mxu0
  %4423 = vdwg.mxu0
  %4424 = vmatprep.subr.mxu0 0.0
  %4425 = vmatpush1.msra.mxu0 %v2668
  %4426 = vmatprep.subr.mxu0 0.0
  %4427 = vmatpush1.msra.mxu0 %v2667
  %4428 = vmatprep.subr.mxu0 0.0
  %4429 = vmatpush1.msra.mxu0 %v2666
  %4430 = vmatprep.subr.mxu0 0.0
  %4431 = vmatpush1.msra.mxu0 %v2665
  %4432 = vmatprep.subr.mxu0 0.0
  %4433 = vmatpush1.msra.mxu0 %v2664
  %4434 = vmatprep.subr.mxu0 0.0
  %4435 = vmatpush1.msra.mxu0 %v2663
  %4436 = vmatprep.subr.mxu0 0.0
  %4437 = vmatpush1.msra.mxu0 %v2662
  %4438 = vmatprep.subr.mxu0 0.0
  %4439 = vmatpush1.msra.mxu0 %v2661
  %4440 = vmatprep.subr.mxu0 0.0
  %4441 = vmatpush1.msra.mxu0 %v2660
  %4442 = vmatprep.subr.mxu0 0.0
  %4443 = vmatpush1.msra.mxu0 %v2659
  %4444 = vmatprep.subr.mxu0 0.0
  %4445 = vmatpush1.msra.mxu0 %v2658
  %4446 = vmatprep.subr.mxu0 0.0
  %4447 = vmatpush1.msra.mxu0 %v2657
  %4448 = vmatprep.subr.mxu0 0.0
  %4449 = vmatpush1.msra.mxu0 %v2656
  %4450 = vmatprep.subr.mxu0 0.0
  %4451 = vmatpush1.msra.mxu0 %v2655
  %4452 = vmatprep.subr.mxu0 0.0
  %4453 = vmatpush1.msra.mxu0 %v2654
  %4454 = vmatprep.subr.mxu0 0.0
  %4455 = vmatpush1.msra.mxu0 %v2653
  %4456 = vmatprep.subr.mxu0 0.0
  %4457 = vmatpush2.msra.mxu0 0.0
  %4458 = vmatprep.subr.mxu0 0.0
  %4459 = vmatpush2.msra.mxu0 0.0
  %4460 = vmatprep.subr.mxu0 0.0
  %4461 = vmatpush2.msra.mxu0 %v2682
  %4462 = vmatprep.subr.mxu0 0.0
  %4463 = vmatpush2.msra.mxu0 %v2681
  %4464 = vmatprep.subr.mxu0 0.0
  %4465 = vmatpush2.msra.mxu0 %v2680
  %4466 = vmatprep.subr.mxu0 0.0
  %4467 = vmatpush2.msra.mxu0 %v2679
  %4468 = vmatprep.subr.mxu0 0.0
  %4469 = vmatpush2.msra.mxu0 %v2678
  %4470 = vmatprep.subr.mxu0 0.0
  %4471 = vmatpush2.msra.mxu0 %v2677
  %4472 = vmatprep.subr.mxu0 0.0
  %4473 = vmatpush2.msra.mxu0 %v2676
  %4474 = vmatprep.subr.mxu0 0.0
  %4475 = vmatpush2.msra.mxu0 %v2675
  %4476 = vmatprep.subr.mxu0 0.0
  %4477 = vmatpush2.msra.mxu0 %v2674
  %4478 = vmatprep.subr.mxu0 0.0
  %4479 = vmatpush2.msra.mxu0 %v2673
  %4480 = vmatprep.subr.mxu0 0.0
  %4481 = vmatpush2.msra.mxu0 %v2672
  %4482 = vmatprep.subr.mxu0 0.0
  %4483 = vmatpush2.msra.mxu0 %v2671
  %4484 = vmatprep.subr.mxu0 0.0
  %4485 = vmatpush2.msra.mxu0 %v2670
  %4486 = vmatprep.subr.mxu0 0.0
  %4487 = vmatpush2.msra.mxu0 %v2669
  %4488 = vmatprep.mubr.f32.mxu0 %v4352
  %4489 = vmatmul.mubr.f32.gmra.mxu0 %v4349
  %v4490 = vpop.f32.mrf.mxu0
  %v4491 = vadd.f32 0.0, %v4490
  %v4492 = vpop.f32.mrf.mxu0
  %4493 = vdwg.mxu0
  %v4494 = vmax.f32 %v4421, %v4491
  %4495 = vst.msk [vmem:[#allocation3 + $0x58] sm:$0xff] %vm2833, %v4494
  %v4496 = vld [vmem:[#allocation3] sm:$0xff]
  %v4497 = vld [vmem:[#allocation3 + $0x8] sm:$0xff]
  %v4498 = vld [vmem:[#allocation3 + $0x10] sm:$0xff]
  %v4499 = vld [vmem:[#allocation3 + $0x18] sm:$0xff]
  %v4500 = vld [vmem:[#allocation3 + $0x20] sm:$0xff]
  %v4501 = vld [vmem:[#allocation3 + $0x28] sm:$0xff]
  %v4502 = vld [vmem:[#allocation3 + $0x30] sm:$0xff]
  %v4503 = vld [vmem:[#allocation3 + $0x38] sm:$0xff]
  %v4504 = vld [vmem:[%s4] sm:$0xff]
  %v4505 = vld [vmem:[%s4 + $0x8] sm:$0xff]
  %v4506 = vld [vmem:[%s4 + $0x10] sm:$0xff]
  %v4507 = vld [vmem:[%s4 + $0x18] sm:$0xff]
  %v4508 = vld [vmem:[%s4 + $0x20] sm:$0xff]
  %v4509 = vld [vmem:[%s4 + $0x28] sm:$0xff]
  %v4510 = vld [vmem:[%s4 + $0x30] sm:$0xff]
  %v4511 = vld [vmem:[%s4 + $0x38] sm:$0xff]
  %v4512 = vld [vmem:[%s4 + $0x40] sm:$0xff]
  %v4513 = vld [vmem:[%s4 + $0x48] sm:$0xff]
  %v4514 = vld [vmem:[%s4 + $0x50] sm:$0xff]
  %v4515 = vld [vmem:[%s4 + $0x58] sm:$0xff]
  %v4516 = vld [vmem:[%s4 + $0x60] sm:$0xff]
  %v4517 = vld [vmem:[%s4 + $0x68] sm:$0xff]
  %v4518 = vld [vmem:[%s4 + $0x70] sm:$0xff]
  %v4519 = vld [vmem:[%s4 + $0x78] sm:$0xff]
  %v4520 = vld [vmem:[%s4 + $0x80] sm:$0xff]
  %v4521 = vld [vmem:[%s4 + $0x88] sm:$0xff]
  %v4522 = vld [vmem:[%s4 + $0x90] sm:$0xff]
  %v4523 = vld [vmem:[%s4 + $0x98] sm:$0xff]
  %v4524 = vld [vmem:[%s4 + $0xa0] sm:$0xff]
  %v4525 = vld [vmem:[%s4 + $0xa8] sm:$0xff]
  %v4526 = vld [vmem:[%s4 + $0xb0] sm:$0xff]
  %v4527 = vld [vmem:[%s4 + $0xb8] sm:$0xff]
  %v4528 = vld [vmem:[%s4 + $0xc0] sm:$0xff]
  %v4529 = vld [vmem:[%s4 + $0xc8] sm:$0xff]
  %v4530 = vld [vmem:[%s4 + $0xd0] sm:$0xff]
  %v4531 = vld [vmem:[%s4 + $0xd8] sm:$0xff]
  %v4532 = vld [vmem:[%s4 + $0xe0] sm:$0xff]
  %v4533 = vld [vmem:[%s4 + $0xe8] sm:$0xff]
  %v4534 = vld [vmem:[#allocation3 + $0x40] sm:$0xff]
  %s4535 = scalar_lea.vmem %s4, 240
  %v4536 = vld [vmem:[%s4535] sm:$0xff]
  %v4537 = vld [vmem:[%s4535 + $0x8] sm:$0xff]
  %v4538 = vld [vmem:[%s4535 + $0x10] sm:$0xff]
  %v4539 = vld [vmem:[%s4535 + $0x18] sm:$0xff]
  %v4540 = vld [vmem:[%s4535 + $0x20] sm:$0xff]
  %v4541 = vld [vmem:[%s4535 + $0x28] sm:$0xff]
  %v4542 = vld [vmem:[%s4535 + $0x30] sm:$0xff]
  %v4543 = vld [vmem:[%s4535 + $0x38] sm:$0xff]
  %v4544 = vld [vmem:[%s4535 + $0x40] sm:$0xff]
  %v4545 = vld [vmem:[%s4535 + $0x48] sm:$0xff]
  %v4546 = vld [vmem:[%s4535 + $0x50] sm:$0xff]
  %v4547 = vld [vmem:[%s4535 + $0x58] sm:$0xff]
  %v4548 = vld [vmem:[%s4535 + $0x60] sm:$0xff]
  %v4549 = vld [vmem:[%s4535 + $0x68] sm:$0xff]
  %v4550 = vld [vmem:[%s4535 + $0x70] sm:$0xff]
  %v4551 = vld [vmem:[%s4535 + $0x78] sm:$0xff]
  %v4552 = vld [vmem:[%s4535 + $0x80] sm:$0xff]
  %v4553 = vld [vmem:[%s4535 + $0x88] sm:$0xff]
  %v4554 = vld [vmem:[%s4535 + $0x90] sm:$0xff]
  %v4555 = vld [vmem:[%s4535 + $0x98] sm:$0xff]
  %v4556 = vld [vmem:[%s4535 + $0xa0] sm:$0xff]
  %v4557 = vld [vmem:[%s4535 + $0xa8] sm:$0xff]
  %v4558 = vld [vmem:[%s4535 + $0xb0] sm:$0xff]
  %v4559 = vld [vmem:[%s4535 + $0xb8] sm:$0xff]
  %v4560 = vld [vmem:[%s4535 + $0xc0] sm:$0xff]
  %v4561 = vld [vmem:[%s4535 + $0xc8] sm:$0xff]
  %v4562 = vld [vmem:[%s4535 + $0xd0] sm:$0xff]
  %v4563 = vld [vmem:[%s4535 + $0xd8] sm:$0xff]
  %v4564 = vld [vmem:[%s4535 + $0xe0] sm:$0xff]
  %v4565 = vld [vmem:[%s4535 + $0xe8] sm:$0xff]
  %v4567 = vsel %vm2833, %v4497, 0
  %v4570 = vsel %vm2833, %v4498, 0
  %v4573 = vsel %vm2833, %v4499, 0
  %v4576 = vsel %vm2833, %v4500, 0
  %v4579 = vsel %vm2833, %v4501, 0
  %v4582 = vsel %vm2833, %v4502, 0
  %v4585 = vsel %vm2833, %v4503, 0
  %v4588 = vsel %vm2833, %v4534, 0
  %4590 = vmatprep.subr.mxu0 0.0
  %4591 = vmatpush1.msra.mxu0 0.0
  %4592 = vmatprep.subr.mxu0 %v4565
  %4593 = vmatpush1.msra.mxu0 %v4564
  %4594 = vmatprep.subr.mxu0 %v4563
  %4595 = vmatpush1.msra.mxu0 %v4562
  %4596 = vmatprep.subr.mxu0 %v4561
  %4597 = vmatpush1.msra.mxu0 %v4560
  %4598 = vmatprep.subr.mxu0 %v4559
  %4599 = vmatpush1.msra.mxu0 %v4558
  %4600 = vmatprep.subr.mxu0 %v4557
  %4601 = vmatpush1.msra.mxu0 %v4556
  %4602 = vmatprep.subr.mxu0 %v4555
  %4603 = vmatpush1.msra.mxu0 %v4554
  %4604 = vmatprep.subr.mxu0 %v4553
  %4605 = vmatpush1.msra.mxu0 %v4552
  %4606 = vmatprep.subr.mxu0 %v4551
  %4607 = vmatpush1.msra.mxu0 %v4550
  %4608 = vmatprep.subr.mxu0 %v4549
  %4609 = vmatpush1.msra.mxu0 %v4548
  %4610 = vmatprep.subr.mxu0 %v4547
  %4611 = vmatpush1.msra.mxu0 %v4546
  %4612 = vmatprep.subr.mxu0 %v4545
  %4613 = vmatpush1.msra.mxu0 %v4544
  %4614 = vmatprep.subr.mxu0 %v4543
  %4615 = vmatpush1.msra.mxu0 %v4542
  %4616 = vmatprep.subr.mxu0 %v4541
  %4617 = vmatpush1.msra.mxu0 %v4540
  %4618 = vmatprep.subr.mxu0 %v4539
  %4619 = vmatpush1.msra.mxu0 %v4538
  %4620 = vmatprep.subr.mxu0 %v4537
  %4621 = vmatpush1.msra.mxu0 %v4536
  %4622 = vmatprep.subr.mxu0 0.0
  %4623 = vmatpush2.msra.mxu0 0.0
  %4624 = vmatprep.subr.mxu0 0.0
  %4625 = vmatpush2.msra.mxu0 0.0
  %4626 = vmatprep.subr.mxu0 0.0
  %4627 = vmatpush2.msra.mxu0 0.0
  %4628 = vmatprep.subr.mxu0 0.0
  %4629 = vmatpush2.msra.mxu0 0.0
  %4630 = vmatprep.subr.mxu0 0.0
  %4631 = vmatpush2.msra.mxu0 0.0
  %4632 = vmatprep.subr.mxu0 0.0
  %4633 = vmatpush2.msra.mxu0 0.0
  %4634 = vmatprep.subr.mxu0 0.0
  %4635 = vmatpush2.msra.mxu0 0.0
  %4636 = vmatprep.subr.mxu0 0.0
  %4637 = vmatpush2.msra.mxu0 0.0
  %4638 = vmatprep.subr.mxu0 0.0
  %4639 = vmatpush2.msra.mxu0 0.0
  %4640 = vmatprep.subr.mxu0 0.0
  %4641 = vmatpush2.msra.mxu0 0.0
  %4642 = vmatprep.subr.mxu0 0.0
  %4643 = vmatpush2.msra.mxu0 0.0
  %4644 = vmatprep.subr.mxu0 0.0
  %4645 = vmatpush2.msra.mxu0 0.0
  %4646 = vmatprep.subr.mxu0 0.0
  %4647 = vmatpush2.msra.mxu0 0.0
  %4648 = vmatprep.subr.mxu0 0.0
  %4649 = vmatpush2.msra.mxu0 0.0
  %4650 = vmatprep.subr.mxu0 0.0
  %4651 = vmatpush2.msra.mxu0 0.0
  %4652 = vmatprep.subr.mxu0 0.0
  %4653 = vmatpush2.msra.mxu0 0.0
  %4654 = vmatprep.mubr.f32.mxu0 0.0
  %4655 = vmatmul.mubr.f32.gmra.mxu0 %v4567
  %v4656 = vpop.f32.mrf.mxu0
  %v4657 = vadd.f32 0.0, %v4656
  %v4658 = vpop.f32.mrf.mxu0
  %v4659 = vadd.f32 0.0, %v4658
  %4660 = vmatprep.mubr.f32.mxu0 0.0
  %4661 = vmatmul.mubr.f32.gmra.mxu0 %v4570
  %v4662 = vpop.f32.mrf.mxu0
  %v4663 = vadd.f32 0.0, %v4662
  %v4664 = vpop.f32.mrf.mxu0
  %v4665 = vadd.f32 0.0, %v4664
  %4666 = vmatprep.mubr.f32.mxu0 0.0
  %4667 = vmatmul.mubr.f32.gmra.mxu0 %v4573
  %v4668 = vpop.f32.mrf.mxu0
  %v4669 = vadd.f32 0.0, %v4668
  %v4670 = vpop.f32.mrf.mxu0
  %v4671 = vadd.f32 0.0, %v4670
  %4672 = vmatprep.mubr.f32.mxu0 0.0
  %4673 = vmatmul.mubr.f32.gmra.mxu0 %v4576
  %v4674 = vpop.f32.mrf.mxu0
  %v4675 = vadd.f32 0.0, %v4674
  %v4676 = vpop.f32.mrf.mxu0
  %v4677 = vadd.f32 0.0, %v4676
  %4678 = vmatprep.mubr.f32.mxu0 0.0
  %4679 = vmatmul.mubr.f32.gmra.mxu0 %v4579
  %v4680 = vpop.f32.mrf.mxu0
  %v4681 = vadd.f32 0.0, %v4680
  %v4682 = vpop.f32.mrf.mxu0
  %v4683 = vadd.f32 0.0, %v4682
  %4684 = vmatprep.mubr.f32.mxu0 0.0
  %4685 = vmatmul.mubr.f32.gmra.mxu0 %v4582
  %v4686 = vpop.f32.mrf.mxu0
  %v4687 = vadd.f32 0.0, %v4686
  %v4688 = vpop.f32.mrf.mxu0
  %v4689 = vadd.f32 0.0, %v4688
  %4690 = vmatprep.mubr.f32.mxu0 0.0
  %4691 = vmatmul.mubr.f32.gmra.mxu0 %v4585
  %v4692 = vpop.f32.mrf.mxu0
  %v4693 = vadd.f32 0.0, %v4692
  %v4694 = vpop.f32.mrf.mxu0
  %v4695 = vadd.f32 0.0, %v4694
  %4696 = vmatprep.mubr.f32.mxu0 0.0
  %4697 = vmatmul.mubr.f32.gmra.mxu0 %v4588
  %v4698 = vpop.f32.mrf.mxu0
  %v4699 = vadd.f32 0.0, %v4698
  %v4700 = vpop.f32.mrf.mxu0
  %v4701 = vadd.f32 0.0, %v4700
  %4702 = vdwg.mxu0
  %v4704 = vsel %vm2833, %v4496, 0
  %4706 = vmatprep.subr.mxu0 0.0
  %4707 = vmatpush1.msra.mxu0 0.0
  %4708 = vmatprep.subr.mxu0 %v4533
  %4709 = vmatpush1.msra.mxu0 %v4532
  %4710 = vmatprep.subr.mxu0 %v4531
  %4711 = vmatpush1.msra.mxu0 %v4530
  %4712 = vmatprep.subr.mxu0 %v4529
  %4713 = vmatpush1.msra.mxu0 %v4528
  %4714 = vmatprep.subr.mxu0 %v4527
  %4715 = vmatpush1.msra.mxu0 %v4526
  %4716 = vmatprep.subr.mxu0 %v4525
  %4717 = vmatpush1.msra.mxu0 %v4524
  %4718 = vmatprep.subr.mxu0 %v4523
  %4719 = vmatpush1.msra.mxu0 %v4522
  %4720 = vmatprep.subr.mxu0 %v4521
  %4721 = vmatpush1.msra.mxu0 %v4520
  %4722 = vmatprep.subr.mxu0 %v4519
  %4723 = vmatpush1.msra.mxu0 %v4518
  %4724 = vmatprep.subr.mxu0 %v4517
  %4725 = vmatpush1.msra.mxu0 %v4516
  %4726 = vmatprep.subr.mxu0 %v4515
  %4727 = vmatpush1.msra.mxu0 %v4514
  %4728 = vmatprep.subr.mxu0 %v4513
  %4729 = vmatpush1.msra.mxu0 %v4512
  %4730 = vmatprep.subr.mxu0 %v4511
  %4731 = vmatpush1.msra.mxu0 %v4510
  %4732 = vmatprep.subr.mxu0 %v4509
  %4733 = vmatpush1.msra.mxu0 %v4508
  %4734 = vmatprep.subr.mxu0 %v4507
  %4735 = vmatpush1.msra.mxu0 %v4506
  %4736 = vmatprep.subr.mxu0 %v4505
  %4737 = vmatpush1.msra.mxu0 %v4504
  %4738 = vmatprep.subr.mxu0 0.0
  %4739 = vmatpush2.msra.mxu0 0.0
  %4740 = vmatprep.subr.mxu0 0.0
  %4741 = vmatpush2.msra.mxu0 0.0
  %4742 = vmatprep.subr.mxu0 0.0
  %4743 = vmatpush2.msra.mxu0 0.0
  %4744 = vmatprep.subr.mxu0 0.0
  %4745 = vmatpush2.msra.mxu0 0.0
  %4746 = vmatprep.subr.mxu0 0.0
  %4747 = vmatpush2.msra.mxu0 0.0
  %4748 = vmatprep.subr.mxu0 0.0
  %4749 = vmatpush2.msra.mxu0 0.0
  %4750 = vmatprep.subr.mxu0 0.0
  %4751 = vmatpush2.msra.mxu0 0.0
  %4752 = vmatprep.subr.mxu0 0.0
  %4753 = vmatpush2.msra.mxu0 0.0
  %4754 = vmatprep.subr.mxu0 0.0
  %4755 = vmatpush2.msra.mxu0 0.0
  %4756 = vmatprep.subr.mxu0 0.0
  %4757 = vmatpush2.msra.mxu0 0.0
  %4758 = vmatprep.subr.mxu0 0.0
  %4759 = vmatpush2.msra.mxu0 0.0
  %4760 = vmatprep.subr.mxu0 0.0
  %4761 = vmatpush2.msra.mxu0 0.0
  %4762 = vmatprep.subr.mxu0 0.0
  %4763 = vmatpush2.msra.mxu0 0.0
  %4764 = vmatprep.subr.mxu0 0.0
  %4765 = vmatpush2.msra.mxu0 0.0
  %4766 = vmatprep.subr.mxu0 0.0
  %4767 = vmatpush2.msra.mxu0 0.0
  %4768 = vmatprep.subr.mxu0 0.0
  %4769 = vmatpush2.msra.mxu0 0.0
  %4770 = vmatprep.mubr.f32.mxu0 0.0
  %4771 = vmatmul.mubr.f32.gmra.mxu0 %v4704
  %v4772 = vpop.f32.mrf.mxu0
  %v4773 = vadd.f32 %v4657, %v4772
  %v4774 = vpop.f32.mrf.mxu0
  %v4775 = vadd.f32 %v4659, %v4774
  %4776 = vmatprep.mubr.f32.mxu0 0.0
  %4777 = vmatmul.mubr.f32.gmra.mxu0 %v4567
  %v4778 = vpop.f32.mrf.mxu0
  %v4779 = vadd.f32 %v4663, %v4778
  %v4780 = vpop.f32.mrf.mxu0
  %v4781 = vadd.f32 %v4665, %v4780
  %4782 = vmatprep.mubr.f32.mxu0 0.0
  %4783 = vmatmul.mubr.f32.gmra.mxu0 %v4570
  %v4784 = vpop.f32.mrf.mxu0
  %v4785 = vadd.f32 %v4669, %v4784
  %v4786 = vpop.f32.mrf.mxu0
  %v4787 = vadd.f32 %v4671, %v4786
  %4788 = vmatprep.mubr.f32.mxu0 0.0
  %4789 = vmatmul.mubr.f32.gmra.mxu0 %v4573
  %v4790 = vpop.f32.mrf.mxu0
  %v4791 = vadd.f32 %v4675, %v4790
  %v4792 = vpop.f32.mrf.mxu0
  %v4793 = vadd.f32 %v4677, %v4792
  %4794 = vmatprep.mubr.f32.mxu0 0.0
  %4795 = vmatmul.mubr.f32.gmra.mxu0 %v4576
  %v4796 = vpop.f32.mrf.mxu0
  %v4797 = vadd.f32 %v4681, %v4796
  %v4798 = vpop.f32.mrf.mxu0
  %v4799 = vadd.f32 %v4683, %v4798
  %4800 = vmatprep.mubr.f32.mxu0 0.0
  %4801 = vmatmul.mubr.f32.gmra.mxu0 %v4579
  %v4802 = vpop.f32.mrf.mxu0
  %v4803 = vadd.f32 %v4687, %v4802
  %v4804 = vpop.f32.mrf.mxu0
  %v4805 = vadd.f32 %v4689, %v4804
  %4806 = vmatprep.mubr.f32.mxu0 0.0
  %4807 = vmatmul.mubr.f32.gmra.mxu0 %v4582
  %v4808 = vpop.f32.mrf.mxu0
  %v4809 = vadd.f32 %v4693, %v4808
  %v4810 = vpop.f32.mrf.mxu0
  %v4811 = vadd.f32 %v4695, %v4810
  %4812 = vmatprep.mubr.f32.mxu0 0.0
  %4813 = vmatmul.mubr.f32.gmra.mxu0 %v4585
  %v4814 = vpop.f32.mrf.mxu0
  %v4815 = vadd.f32 %v4699, %v4814
  %v4816 = vpop.f32.mrf.mxu0
  %v4817 = vadd.f32 %v4701, %v4816
  %4818 = vdwg.mxu0
  %v4819 = vld [vmem:[#allocation3 + $0x10] sm:$0xff]
  %v4820 = vld [vmem:[#allocation3 + $0x18] sm:$0xff]
  %v4821 = vld [vmem:[#allocation3 + $0x20] sm:$0xff]
  %v4822 = vld [vmem:[#allocation3 + $0x28] sm:$0xff]
  %v4823 = vld [vmem:[#allocation3 + $0x30] sm:$0xff]
  %v4824 = vld [vmem:[#allocation3 + $0x38] sm:$0xff]
  %v4825 = vld [vmem:[#allocation3 + $0x40] sm:$0xff]
  %v4826 = vld [vmem:[#allocation3 + $0x48] sm:$0xff]
  %s4827 = scalar_lea.vmem %s4, 480
  %v4828 = vld [vmem:[%s4827] sm:$0xff]
  %v4829 = vld [vmem:[%s4827 + $0x8] sm:$0xff]
  %v4830 = vld [vmem:[%s4827 + $0x10] sm:$0xff]
  %v4831 = vld [vmem:[%s4827 + $0x18] sm:$0xff]
  %v4832 = vld [vmem:[%s4827 + $0x20] sm:$0xff]
  %v4833 = vld [vmem:[%s4827 + $0x28] sm:$0xff]
  %v4834 = vld [vmem:[%s4827 + $0x30] sm:$0xff]
  %v4835 = vld [vmem:[%s4827 + $0x38] sm:$0xff]
  %v4836 = vld [vmem:[%s4827 + $0x40] sm:$0xff]
  %v4837 = vld [vmem:[%s4827 + $0x48] sm:$0xff]
  %v4838 = vld [vmem:[%s4827 + $0x50] sm:$0xff]
  %v4839 = vld [vmem:[%s4827 + $0x58] sm:$0xff]
  %v4840 = vld [vmem:[%s4827 + $0x60] sm:$0xff]
  %v4841 = vld [vmem:[%s4827 + $0x68] sm:$0xff]
  %v4842 = vld [vmem:[%s4827 + $0x70] sm:$0xff]
  %v4843 = vld [vmem:[%s4827 + $0x78] sm:$0xff]
  %v4844 = vld [vmem:[%s4827 + $0x80] sm:$0xff]
  %v4845 = vld [vmem:[%s4827 + $0x88] sm:$0xff]
  %v4846 = vld [vmem:[%s4827 + $0x90] sm:$0xff]
  %v4847 = vld [vmem:[%s4827 + $0x98] sm:$0xff]
  %v4848 = vld [vmem:[%s4827 + $0xa0] sm:$0xff]
  %v4849 = vld [vmem:[%s4827 + $0xa8] sm:$0xff]
  %v4850 = vld [vmem:[%s4827 + $0xb0] sm:$0xff]
  %v4851 = vld [vmem:[%s4827 + $0xb8] sm:$0xff]
  %v4852 = vld [vmem:[%s4827 + $0xc0] sm:$0xff]
  %v4853 = vld [vmem:[%s4827 + $0xc8] sm:$0xff]
  %v4854 = vld [vmem:[%s4827 + $0xd0] sm:$0xff]
  %v4855 = vld [vmem:[%s4827 + $0xd8] sm:$0xff]
  %v4856 = vld [vmem:[%s4827 + $0xe0] sm:$0xff]
  %v4857 = vld [vmem:[%s4827 + $0xe8] sm:$0xff]
  %v4859 = vsel %vm2833, %v4819, 0
  %v4862 = vsel %vm2833, %v4820, 0
  %v4865 = vsel %vm2833, %v4821, 0
  %v4868 = vsel %vm2833, %v4822, 0
  %v4871 = vsel %vm2833, %v4823, 0
  %v4874 = vsel %vm2833, %v4824, 0
  %v4877 = vsel %vm2833, %v4825, 0
  %v4880 = vsel %vm2833, %v4826, 0
  %4882 = vmatprep.subr.mxu0 0.0
  %4883 = vmatpush1.msra.mxu0 0.0
  %4884 = vmatprep.subr.mxu0 %v4857
  %4885 = vmatpush1.msra.mxu0 %v4856
  %4886 = vmatprep.subr.mxu0 %v4855
  %4887 = vmatpush1.msra.mxu0 %v4854
  %4888 = vmatprep.subr.mxu0 %v4853
  %4889 = vmatpush1.msra.mxu0 %v4852
  %4890 = vmatprep.subr.mxu0 %v4851
  %4891 = vmatpush1.msra.mxu0 %v4850
  %4892 = vmatprep.subr.mxu0 %v4849
  %4893 = vmatpush1.msra.mxu0 %v4848
  %4894 = vmatprep.subr.mxu0 %v4847
  %4895 = vmatpush1.msra.mxu0 %v4846
  %4896 = vmatprep.subr.mxu0 %v4845
  %4897 = vmatpush1.msra.mxu0 %v4844
  %4898 = vmatprep.subr.mxu0 %v4843
  %4899 = vmatpush1.msra.mxu0 %v4842
  %4900 = vmatprep.subr.mxu0 %v4841
  %4901 = vmatpush1.msra.mxu0 %v4840
  %4902 = vmatprep.subr.mxu0 %v4839
  %4903 = vmatpush1.msra.mxu0 %v4838
  %4904 = vmatprep.subr.mxu0 %v4837
  %4905 = vmatpush1.msra.mxu0 %v4836
  %4906 = vmatprep.subr.mxu0 %v4835
  %4907 = vmatpush1.msra.mxu0 %v4834
  %4908 = vmatprep.subr.mxu0 %v4833
  %4909 = vmatpush1.msra.mxu0 %v4832
  %4910 = vmatprep.subr.mxu0 %v4831
  %4911 = vmatpush1.msra.mxu0 %v4830
  %4912 = vmatprep.subr.mxu0 %v4829
  %4913 = vmatpush1.msra.mxu0 %v4828
  %4914 = vmatprep.subr.mxu0 0.0
  %4915 = vmatpush2.msra.mxu0 0.0
  %4916 = vmatprep.subr.mxu0 0.0
  %4917 = vmatpush2.msra.mxu0 0.0
  %4918 = vmatprep.subr.mxu0 0.0
  %4919 = vmatpush2.msra.mxu0 0.0
  %4920 = vmatprep.subr.mxu0 0.0
  %4921 = vmatpush2.msra.mxu0 0.0
  %4922 = vmatprep.subr.mxu0 0.0
  %4923 = vmatpush2.msra.mxu0 0.0
  %4924 = vmatprep.subr.mxu0 0.0
  %4925 = vmatpush2.msra.mxu0 0.0
  %4926 = vmatprep.subr.mxu0 0.0
  %4927 = vmatpush2.msra.mxu0 0.0
  %4928 = vmatprep.subr.mxu0 0.0
  %4929 = vmatpush2.msra.mxu0 0.0
  %4930 = vmatprep.subr.mxu0 0.0
  %4931 = vmatpush2.msra.mxu0 0.0
  %4932 = vmatprep.subr.mxu0 0.0
  %4933 = vmatpush2.msra.mxu0 0.0
  %4934 = vmatprep.subr.mxu0 0.0
  %4935 = vmatpush2.msra.mxu0 0.0
  %4936 = vmatprep.subr.mxu0 0.0
  %4937 = vmatpush2.msra.mxu0 0.0
  %4938 = vmatprep.subr.mxu0 0.0
  %4939 = vmatpush2.msra.mxu0 0.0
  %4940 = vmatprep.subr.mxu0 0.0
  %4941 = vmatpush2.msra.mxu0 0.0
  %4942 = vmatprep.subr.mxu0 0.0
  %4943 = vmatpush2.msra.mxu0 0.0
  %4944 = vmatprep.subr.mxu0 0.0
  %4945 = vmatpush2.msra.mxu0 0.0
  %4946 = vmatprep.mubr.f32.mxu0 0.0
  %4947 = vmatmul.mubr.f32.gmra.mxu0 %v4859
  %v4948 = vpop.f32.mrf.mxu0
  %v4949 = vadd.f32 0.0, %v4948
  %v4950 = vpop.f32.mrf.mxu0
  %v4951 = vadd.f32 0.0, %v4950
  %4952 = vmatprep.mubr.f32.mxu0 0.0
  %4953 = vmatmul.mubr.f32.gmra.mxu0 %v4862
  %v4954 = vpop.f32.mrf.mxu0
  %v4955 = vadd.f32 0.0, %v4954
  %v4956 = vpop.f32.mrf.mxu0
  %v4957 = vadd.f32 0.0, %v4956
  %4958 = vmatprep.mubr.f32.mxu0 0.0
  %4959 = vmatmul.mubr.f32.gmra.mxu0 %v4865
  %v4960 = vpop.f32.mrf.mxu0
  %v4961 = vadd.f32 0.0, %v4960
  %v4962 = vpop.f32.mrf.mxu0
  %v4963 = vadd.f32 0.0, %v4962
  %4964 = vmatprep.mubr.f32.mxu0 0.0
  %4965 = vmatmul.mubr.f32.gmra.mxu0 %v4868
  %v4966 = vpop.f32.mrf.mxu0
  %v4967 = vadd.f32 0.0, %v4966
  %v4968 = vpop.f32.mrf.mxu0
  %v4969 = vadd.f32 0.0, %v4968
  %4970 = vmatprep.mubr.f32.mxu0 0.0
  %4971 = vmatmul.mubr.f32.gmra.mxu0 %v4871
  %v4972 = vpop.f32.mrf.mxu0
  %v4973 = vadd.f32 0.0, %v4972
  %v4974 = vpop.f32.mrf.mxu0
  %v4975 = vadd.f32 0.0, %v4974
  %4976 = vmatprep.mubr.f32.mxu0 0.0
  %4977 = vmatmul.mubr.f32.gmra.mxu0 %v4874
  %v4978 = vpop.f32.mrf.mxu0
  %v4979 = vadd.f32 0.0, %v4978
  %v4980 = vpop.f32.mrf.mxu0
  %v4981 = vadd.f32 0.0, %v4980
  %4982 = vmatprep.mubr.f32.mxu0 0.0
  %4983 = vmatmul.mubr.f32.gmra.mxu0 %v4877
  %v4984 = vpop.f32.mrf.mxu0
  %v4985 = vadd.f32 0.0, %v4984
  %v4986 = vpop.f32.mrf.mxu0
  %v4987 = vadd.f32 0.0, %v4986
  %4988 = vmatprep.mubr.f32.mxu0 0.0
  %4989 = vmatmul.mubr.f32.gmra.mxu0 %v4880
  %v4990 = vpop.f32.mrf.mxu0
  %v4991 = vadd.f32 0.0, %v4990
  %v4992 = vpop.f32.mrf.mxu0
  %v4993 = vadd.f32 0.0, %v4992
  %4994 = vdwg.mxu0
  %v4995 = vadd.f32 %v4773, %v4949
  %v4996 = vadd.f32 %v4775, %v4951
  %v4997 = vadd.f32 %v4779, %v4955
  %v4998 = vadd.f32 %v4781, %v4957
  %v4999 = vadd.f32 %v4785, %v4961
  %v5000 = vadd.f32 %v4787, %v4963
  %v5001 = vadd.f32 %v4791, %v4967
  %v5002 = vadd.f32 %v4793, %v4969
  %v5003 = vadd.f32 %v4797, %v4973
  %v5004 = vadd.f32 %v4799, %v4975
  %v5005 = vadd.f32 %v4803, %v4979
  %v5006 = vadd.f32 %v4805, %v4981
  %v5007 = vadd.f32 %v4809, %v4985
  %v5008 = vadd.f32 %v4811, %v4987
  %v5009 = vadd.f32 %v4815, %v4991
  %v5010 = vadd.f32 %v4817, %v4993
  %v5011 = vld [vmem:[#allocation3 + $0x18] sm:$0xff]
  %v5012 = vld [vmem:[#allocation3 + $0x20] sm:$0xff]
  %v5013 = vld [vmem:[#allocation3 + $0x28] sm:$0xff]
  %v5014 = vld [vmem:[#allocation3 + $0x30] sm:$0xff]
  %v5015 = vld [vmem:[#allocation3 + $0x38] sm:$0xff]
  %v5016 = vld [vmem:[#allocation3 + $0x40] sm:$0xff]
  %v5017 = vld [vmem:[#allocation3 + $0x48] sm:$0xff]
  %v5018 = vld [vmem:[#allocation3 + $0x50] sm:$0xff]
  %s5019 = scalar_lea.vmem %s4, 720
  %v5020 = vld [vmem:[%s5019] sm:$0xff]
  %v5021 = vld [vmem:[%s5019 + $0x8] sm:$0xff]
  %v5022 = vld [vmem:[%s5019 + $0x10] sm:$0xff]
  %v5023 = vld [vmem:[%s5019 + $0x18] sm:$0xff]
  %v5024 = vld [vmem:[%s5019 + $0x20] sm:$0xff]
  %v5025 = vld [vmem:[%s5019 + $0x28] sm:$0xff]
  %v5026 = vld [vmem:[%s5019 + $0x30] sm:$0xff]
  %v5027 = vld [vmem:[%s5019 + $0x38] sm:$0xff]
  %v5028 = vld [vmem:[%s5019 + $0x40] sm:$0xff]
  %v5029 = vld [vmem:[%s5019 + $0x48] sm:$0xff]
  %v5030 = vld [vmem:[%s5019 + $0x50] sm:$0xff]
  %v5031 = vld [vmem:[%s5019 + $0x58] sm:$0xff]
  %v5032 = vld [vmem:[%s5019 + $0x60] sm:$0xff]
  %v5033 = vld [vmem:[%s5019 + $0x68] sm:$0xff]
  %v5034 = vld [vmem:[%s5019 + $0x70] sm:$0xff]
  %v5035 = vld [vmem:[%s5019 + $0x78] sm:$0xff]
  %v5036 = vld [vmem:[%s5019 + $0x80] sm:$0xff]
  %v5037 = vld [vmem:[%s5019 + $0x88] sm:$0xff]
  %v5038 = vld [vmem:[%s5019 + $0x90] sm:$0xff]
  %v5039 = vld [vmem:[%s5019 + $0x98] sm:$0xff]
  %v5040 = vld [vmem:[%s5019 + $0xa0] sm:$0xff]
  %v5041 = vld [vmem:[%s5019 + $0xa8] sm:$0xff]
  %v5042 = vld [vmem:[%s5019 + $0xb0] sm:$0xff]
  %v5043 = vld [vmem:[%s5019 + $0xb8] sm:$0xff]
  %v5044 = vld [vmem:[%s5019 + $0xc0] sm:$0xff]
  %v5045 = vld [vmem:[%s5019 + $0xc8] sm:$0xff]
  %v5046 = vld [vmem:[%s5019 + $0xd0] sm:$0xff]
  %v5047 = vld [vmem:[%s5019 + $0xd8] sm:$0xff]
  %v5048 = vld [vmem:[%s5019 + $0xe0] sm:$0xff]
  %v5049 = vld [vmem:[%s5019 + $0xe8] sm:$0xff]
  %v5051 = vsel %vm2833, %v5011, 0
  %v5054 = vsel %vm2833, %v5012, 0
  %v5057 = vsel %vm2833, %v5013, 0
  %v5060 = vsel %vm2833, %v5014, 0
  %v5063 = vsel %vm2833, %v5015, 0
  %v5066 = vsel %vm2833, %v5016, 0
  %v5069 = vsel %vm2833, %v5017, 0
  %v5072 = vsel %vm2833, %v5018, 0
  %5074 = vmatprep.subr.mxu0 0.0
  %5075 = vmatpush1.msra.mxu0 0.0
  %5076 = vmatprep.subr.mxu0 %v5049
  %5077 = vmatpush1.msra.mxu0 %v5048
  %5078 = vmatprep.subr.mxu0 %v5047
  %5079 = vmatpush1.msra.mxu0 %v5046
  %5080 = vmatprep.subr.mxu0 %v5045
  %5081 = vmatpush1.msra.mxu0 %v5044
  %5082 = vmatprep.subr.mxu0 %v5043
  %5083 = vmatpush1.msra.mxu0 %v5042
  %5084 = vmatprep.subr.mxu0 %v5041
  %5085 = vmatpush1.msra.mxu0 %v5040
  %5086 = vmatprep.subr.mxu0 %v5039
  %5087 = vmatpush1.msra.mxu0 %v5038
  %5088 = vmatprep.subr.mxu0 %v5037
  %5089 = vmatpush1.msra.mxu0 %v5036
  %5090 = vmatprep.subr.mxu0 %v5035
  %5091 = vmatpush1.msra.mxu0 %v5034
  %5092 = vmatprep.subr.mxu0 %v5033
  %5093 = vmatpush1.msra.mxu0 %v5032
  %5094 = vmatprep.subr.mxu0 %v5031
  %5095 = vmatpush1.msra.mxu0 %v5030
  %5096 = vmatprep.subr.mxu0 %v5029
  %5097 = vmatpush1.msra.mxu0 %v5028
  %5098 = vmatprep.subr.mxu0 %v5027
  %5099 = vmatpush1.msra.mxu0 %v5026
  %5100 = vmatprep.subr.mxu0 %v5025
  %5101 = vmatpush1.msra.mxu0 %v5024
  %5102 = vmatprep.subr.mxu0 %v5023
  %5103 = vmatpush1.msra.mxu0 %v5022
  %5104 = vmatprep.subr.mxu0 %v5021
  %5105 = vmatpush1.msra.mxu0 %v5020
  %5106 = vmatprep.subr.mxu0 0.0
  %5107 = vmatpush2.msra.mxu0 0.0
  %5108 = vmatprep.subr.mxu0 0.0
  %5109 = vmatpush2.msra.mxu0 0.0
  %5110 = vmatprep.subr.mxu0 0.0
  %5111 = vmatpush2.msra.mxu0 0.0
  %5112 = vmatprep.subr.mxu0 0.0
  %5113 = vmatpush2.msra.mxu0 0.0
  %5114 = vmatprep.subr.mxu0 0.0
  %5115 = vmatpush2.msra.mxu0 0.0
  %5116 = vmatprep.subr.mxu0 0.0
  %5117 = vmatpush2.msra.mxu0 0.0
  %5118 = vmatprep.subr.mxu0 0.0
  %5119 = vmatpush2.msra.mxu0 0.0
  %5120 = vmatprep.subr.mxu0 0.0
  %5121 = vmatpush2.msra.mxu0 0.0
  %5122 = vmatprep.subr.mxu0 0.0
  %5123 = vmatpush2.msra.mxu0 0.0
  %5124 = vmatprep.subr.mxu0 0.0
  %5125 = vmatpush2.msra.mxu0 0.0
  %5126 = vmatprep.subr.mxu0 0.0
  %5127 = vmatpush2.msra.mxu0 0.0
  %5128 = vmatprep.subr.mxu0 0.0
  %5129 = vmatpush2.msra.mxu0 0.0
  %5130 = vmatprep.subr.mxu0 0.0
  %5131 = vmatpush2.msra.mxu0 0.0
  %5132 = vmatprep.subr.mxu0 0.0
  %5133 = vmatpush2.msra.mxu0 0.0
  %5134 = vmatprep.subr.mxu0 0.0
  %5135 = vmatpush2.msra.mxu0 0.0
  %5136 = vmatprep.subr.mxu0 0.0
  %5137 = vmatpush2.msra.mxu0 0.0
  %5138 = vmatprep.mubr.f32.mxu0 0.0
  %5139 = vmatmul.mubr.f32.gmra.mxu0 %v5051
  %v5140 = vpop.f32.mrf.mxu0
  %v5141 = vadd.f32 0.0, %v5140
  %v5142 = vpop.f32.mrf.mxu0
  %v5143 = vadd.f32 0.0, %v5142
  %5144 = vmatprep.mubr.f32.mxu0 0.0
  %5145 = vmatmul.mubr.f32.gmra.mxu0 %v5054
  %v5146 = vpop.f32.mrf.mxu0
  %v5147 = vadd.f32 0.0, %v5146
  %v5148 = vpop.f32.mrf.mxu0
  %v5149 = vadd.f32 0.0, %v5148
  %5150 = vmatprep.mubr.f32.mxu0 0.0
  %5151 = vmatmul.mubr.f32.gmra.mxu0 %v5057
  %v5152 = vpop.f32.mrf.mxu0
  %v5153 = vadd.f32 0.0, %v5152
  %v5154 = vpop.f32.mrf.mxu0
  %v5155 = vadd.f32 0.0, %v5154
  %5156 = vmatprep.mubr.f32.mxu0 0.0
  %5157 = vmatmul.mubr.f32.gmra.mxu0 %v5060
  %v5158 = vpop.f32.mrf.mxu0
  %v5159 = vadd.f32 0.0, %v5158
  %v5160 = vpop.f32.mrf.mxu0
  %v5161 = vadd.f32 0.0, %v5160
  %5162 = vmatprep.mubr.f32.mxu0 0.0
  %5163 = vmatmul.mubr.f32.gmra.mxu0 %v5063
  %v5164 = vpop.f32.mrf.mxu0
  %v5165 = vadd.f32 0.0, %v5164
  %v5166 = vpop.f32.mrf.mxu0
  %v5167 = vadd.f32 0.0, %v5166
  %5168 = vmatprep.mubr.f32.mxu0 0.0
  %5169 = vmatmul.mubr.f32.gmra.mxu0 %v5066
  %v5170 = vpop.f32.mrf.mxu0
  %v5171 = vadd.f32 0.0, %v5170
  %v5172 = vpop.f32.mrf.mxu0
  %v5173 = vadd.f32 0.0, %v5172
  %5174 = vmatprep.mubr.f32.mxu0 0.0
  %5175 = vmatmul.mubr.f32.gmra.mxu0 %v5069
  %v5176 = vpop.f32.mrf.mxu0
  %v5177 = vadd.f32 0.0, %v5176
  %v5178 = vpop.f32.mrf.mxu0
  %v5179 = vadd.f32 0.0, %v5178
  %5180 = vmatprep.mubr.f32.mxu0 0.0
  %5181 = vmatmul.mubr.f32.gmra.mxu0 %v5072
  %v5182 = vpop.f32.mrf.mxu0
  %v5183 = vadd.f32 0.0, %v5182
  %v5184 = vpop.f32.mrf.mxu0
  %v5185 = vadd.f32 0.0, %v5184
  %5186 = vdwg.mxu0
  %v5187 = vadd.f32 %v4995, %v5141
  %v5188 = vadd.f32 %v4996, %v5143
  %v5189 = vadd.f32 %v4997, %v5147
  %v5190 = vadd.f32 %v4998, %v5149
  %v5191 = vadd.f32 %v4999, %v5153
  %v5192 = vadd.f32 %v5000, %v5155
  %v5193 = vadd.f32 %v5001, %v5159
  %v5194 = vadd.f32 %v5002, %v5161
  %v5195 = vadd.f32 %v5003, %v5165
  %v5196 = vadd.f32 %v5004, %v5167
  %v5197 = vadd.f32 %v5005, %v5171
  %v5198 = vadd.f32 %v5006, %v5173
  %v5199 = vadd.f32 %v5007, %v5177
  %v5200 = vadd.f32 %v5008, %v5179
  %v5201 = vadd.f32 %v5009, %v5183
  %v5202 = vadd.f32 %v5010, %v5185
  %v5203 = vld [vmem:[#allocation3 + $0x20] sm:$0xff]
  %v5204 = vld [vmem:[#allocation3 + $0x28] sm:$0xff]
  %v5205 = vld [vmem:[#allocation3 + $0x30] sm:$0xff]
  %v5206 = vld [vmem:[#allocation3 + $0x38] sm:$0xff]
  %v5207 = vld [vmem:[#allocation3 + $0x40] sm:$0xff]
  %v5208 = vld [vmem:[#allocation3 + $0x48] sm:$0xff]
  %v5209 = vld [vmem:[#allocation3 + $0x50] sm:$0xff]
  %v5210 = vld [vmem:[#allocation3 + $0x58] sm:$0xff]
  %s5211 = scalar_lea.vmem %s4, 960
  %v5212 = vld [vmem:[%s5211] sm:$0xff]
  %v5213 = vld [vmem:[%s5211 + $0x8] sm:$0xff]
  %v5214 = vld [vmem:[%s5211 + $0x10] sm:$0xff]
  %v5215 = vld [vmem:[%s5211 + $0x18] sm:$0xff]
  %v5216 = vld [vmem:[%s5211 + $0x20] sm:$0xff]
  %v5217 = vld [vmem:[%s5211 + $0x28] sm:$0xff]
  %v5218 = vld [vmem:[%s5211 + $0x30] sm:$0xff]
  %v5219 = vld [vmem:[%s5211 + $0x38] sm:$0xff]
  %v5220 = vld [vmem:[%s5211 + $0x40] sm:$0xff]
  %v5221 = vld [vmem:[%s5211 + $0x48] sm:$0xff]
  %v5222 = vld [vmem:[%s5211 + $0x50] sm:$0xff]
  %v5223 = vld [vmem:[%s5211 + $0x58] sm:$0xff]
  %v5224 = vld [vmem:[%s5211 + $0x60] sm:$0xff]
  %v5225 = vld [vmem:[%s5211 + $0x68] sm:$0xff]
  %v5226 = vld [vmem:[%s5211 + $0x70] sm:$0xff]
  %v5227 = vld [vmem:[%s5211 + $0x78] sm:$0xff]
  %v5228 = vld [vmem:[%s5211 + $0x80] sm:$0xff]
  %v5229 = vld [vmem:[%s5211 + $0x88] sm:$0xff]
  %v5230 = vld [vmem:[%s5211 + $0x90] sm:$0xff]
  %v5231 = vld [vmem:[%s5211 + $0x98] sm:$0xff]
  %v5232 = vld [vmem:[%s5211 + $0xa0] sm:$0xff]
  %v5233 = vld [vmem:[%s5211 + $0xa8] sm:$0xff]
  %v5234 = vld [vmem:[%s5211 + $0xb0] sm:$0xff]
  %v5235 = vld [vmem:[%s5211 + $0xb8] sm:$0xff]
  %v5236 = vld [vmem:[%s5211 + $0xc0] sm:$0xff]
  %v5237 = vld [vmem:[%s5211 + $0xc8] sm:$0xff]
  %v5238 = vld [vmem:[%s5211 + $0xd0] sm:$0xff]
  %v5239 = vld [vmem:[%s5211 + $0xd8] sm:$0xff]
  %v5240 = vld [vmem:[%s5211 + $0xe0] sm:$0xff]
  %v5241 = vld [vmem:[%s5211 + $0xe8] sm:$0xff]
  %v5243 = vsel %vm2833, %v5203, 0
  %v5246 = vsel %vm2833, %v5204, 0
  %v5249 = vsel %vm2833, %v5205, 0
  %v5252 = vsel %vm2833, %v5206, 0
  %v5255 = vsel %vm2833, %v5207, 0
  %v5258 = vsel %vm2833, %v5208, 0
  %v5261 = vsel %vm2833, %v5209, 0
  %v5264 = vsel %vm2833, %v5210, 0
  %5266 = vmatprep.subr.mxu0 0.0
  %5267 = vmatpush1.msra.mxu0 0.0
  %5268 = vmatprep.subr.mxu0 %v5241
  %5269 = vmatpush1.msra.mxu0 %v5240
  %5270 = vmatprep.subr.mxu0 %v5239
  %5271 = vmatpush1.msra.mxu0 %v5238
  %5272 = vmatprep.subr.mxu0 %v5237
  %5273 = vmatpush1.msra.mxu0 %v5236
  %5274 = vmatprep.subr.mxu0 %v5235
  %5275 = vmatpush1.msra.mxu0 %v5234
  %5276 = vmatprep.subr.mxu0 %v5233
  %5277 = vmatpush1.msra.mxu0 %v5232
  %5278 = vmatprep.subr.mxu0 %v5231
  %5279 = vmatpush1.msra.mxu0 %v5230
  %5280 = vmatprep.subr.mxu0 %v5229
  %5281 = vmatpush1.msra.mxu0 %v5228
  %5282 = vmatprep.subr.mxu0 %v5227
  %5283 = vmatpush1.msra.mxu0 %v5226
  %5284 = vmatprep.subr.mxu0 %v5225
  %5285 = vmatpush1.msra.mxu0 %v5224
  %5286 = vmatprep.subr.mxu0 %v5223
  %5287 = vmatpush1.msra.mxu0 %v5222
  %5288 = vmatprep.subr.mxu0 %v5221
  %5289 = vmatpush1.msra.mxu0 %v5220
  %5290 = vmatprep.subr.mxu0 %v5219
  %5291 = vmatpush1.msra.mxu0 %v5218
  %5292 = vmatprep.subr.mxu0 %v5217
  %5293 = vmatpush1.msra.mxu0 %v5216
  %5294 = vmatprep.subr.mxu0 %v5215
  %5295 = vmatpush1.msra.mxu0 %v5214
  %5296 = vmatprep.subr.mxu0 %v5213
  %5297 = vmatpush1.msra.mxu0 %v5212
  %5298 = vmatprep.subr.mxu0 0.0
  %5299 = vmatpush2.msra.mxu0 0.0
  %5300 = vmatprep.subr.mxu0 0.0
  %5301 = vmatpush2.msra.mxu0 0.0
  %5302 = vmatprep.subr.mxu0 0.0
  %5303 = vmatpush2.msra.mxu0 0.0
  %5304 = vmatprep.subr.mxu0 0.0
  %5305 = vmatpush2.msra.mxu0 0.0
  %5306 = vmatprep.subr.mxu0 0.0
  %5307 = vmatpush2.msra.mxu0 0.0
  %5308 = vmatprep.subr.mxu0 0.0
  %5309 = vmatpush2.msra.mxu0 0.0
  %5310 = vmatprep.subr.mxu0 0.0
  %5311 = vmatpush2.msra.mxu0 0.0
  %5312 = vmatprep.subr.mxu0 0.0
  %5313 = vmatpush2.msra.mxu0 0.0
  %5314 = vmatprep.subr.mxu0 0.0
  %5315 = vmatpush2.msra.mxu0 0.0
  %5316 = vmatprep.subr.mxu0 0.0
  %5317 = vmatpush2.msra.mxu0 0.0
  %5318 = vmatprep.subr.mxu0 0.0
  %5319 = vmatpush2.msra.mxu0 0.0
  %5320 = vmatprep.subr.mxu0 0.0
  %5321 = vmatpush2.msra.mxu0 0.0
  %5322 = vmatprep.subr.mxu0 0.0
  %5323 = vmatpush2.msra.mxu0 0.0
  %5324 = vmatprep.subr.mxu0 0.0
  %5325 = vmatpush2.msra.mxu0 0.0
  %5326 = vmatprep.subr.mxu0 0.0
  %5327 = vmatpush2.msra.mxu0 0.0
  %5328 = vmatprep.subr.mxu0 0.0
  %5329 = vmatpush2.msra.mxu0 0.0
  %5330 = vmatprep.mubr.f32.mxu0 0.0
  %5331 = vmatmul.mubr.f32.gmra.mxu0 %v5243
  %v5332 = vpop.f32.mrf.mxu0
  %v5333 = vadd.f32 0.0, %v5332
  %v5334 = vpop.f32.mrf.mxu0
  %v5335 = vadd.f32 0.0, %v5334
  %5336 = vmatprep.mubr.f32.mxu0 0.0
  %5337 = vmatmul.mubr.f32.gmra.mxu0 %v5246
  %v5338 = vpop.f32.mrf.mxu0
  %v5339 = vadd.f32 0.0, %v5338
  %v5340 = vpop.f32.mrf.mxu0
  %v5341 = vadd.f32 0.0, %v5340
  %5342 = vmatprep.mubr.f32.mxu0 0.0
  %5343 = vmatmul.mubr.f32.gmra.mxu0 %v5249
  %v5344 = vpop.f32.mrf.mxu0
  %v5345 = vadd.f32 0.0, %v5344
  %v5346 = vpop.f32.mrf.mxu0
  %v5347 = vadd.f32 0.0, %v5346
  %5348 = vmatprep.mubr.f32.mxu0 0.0
  %5349 = vmatmul.mubr.f32.gmra.mxu0 %v5252
  %v5350 = vpop.f32.mrf.mxu0
  %v5351 = vadd.f32 0.0, %v5350
  %v5352 = vpop.f32.mrf.mxu0
  %v5353 = vadd.f32 0.0, %v5352
  %5354 = vmatprep.mubr.f32.mxu0 0.0
  %5355 = vmatmul.mubr.f32.gmra.mxu0 %v5255
  %v5356 = vpop.f32.mrf.mxu0
  %v5357 = vadd.f32 0.0, %v5356
  %v5358 = vpop.f32.mrf.mxu0
  %v5359 = vadd.f32 0.0, %v5358
  %5360 = vmatprep.mubr.f32.mxu0 0.0
  %5361 = vmatmul.mubr.f32.gmra.mxu0 %v5258
  %v5362 = vpop.f32.mrf.mxu0
  %v5363 = vadd.f32 0.0, %v5362
  %v5364 = vpop.f32.mrf.mxu0
  %v5365 = vadd.f32 0.0, %v5364
  %5366 = vmatprep.mubr.f32.mxu0 0.0
  %5367 = vmatmul.mubr.f32.gmra.mxu0 %v5261
  %v5368 = vpop.f32.mrf.mxu0
  %v5369 = vadd.f32 0.0, %v5368
  %v5370 = vpop.f32.mrf.mxu0
  %v5371 = vadd.f32 0.0, %v5370
  %5372 = vmatprep.mubr.f32.mxu0 0.0
  %5373 = vmatmul.mubr.f32.gmra.mxu0 %v5264
  %v5374 = vpop.f32.mrf.mxu0
  %v5375 = vadd.f32 0.0, %v5374
  %v5376 = vpop.f32.mrf.mxu0
  %v5377 = vadd.f32 0.0, %v5376
  %5378 = vdwg.mxu0
  %v5379 = vadd.f32 %v5187, %v5333
  %v5380 = vadd.f32 %v5188, %v5335
  %v5381 = vadd.f32 %v5189, %v5339
  %v5382 = vadd.f32 %v5190, %v5341
  %v5383 = vadd.f32 %v5191, %v5345
  %v5384 = vadd.f32 %v5192, %v5347
  %v5385 = vadd.f32 %v5193, %v5351
  %v5386 = vadd.f32 %v5194, %v5353
  %v5387 = vadd.f32 %v5195, %v5357
  %v5388 = vadd.f32 %v5196, %v5359
  %v5389 = vadd.f32 %v5197, %v5363
  %v5390 = vadd.f32 %v5198, %v5365
  %v5391 = vadd.f32 %v5199, %v5369
  %v5392 = vadd.f32 %v5200, %v5371
  %v5393 = vadd.f32 %v5201, %v5375
  %v5394 = vadd.f32 %v5202, %v5377
  %v5395 = vld [vmem:[%s5] sm:$0x3]
  %v5397 = vlaneseq
  %v5398 = vshrl.u32 %v5397, 7
  %v5399 = vsub.s32 0, %v5398
  %v5400 = vrot.slane %v5395, %v5399
  %v5401 = vlaneseq
  %v5402 = vshrl.u32 %v5401, 7
  %v5403 = vsub.s32 1, %v5402
  %v5404 = vrot.slane %v5395, %v5403
  %v5407 = vadd.f32 %v5379, %v5400
  %v5408 = vadd.f32 %v5380, %v5404
  %v5409 = vadd.f32 %v5381, %v5400
  %v5410 = vadd.f32 %v5382, %v5404
  %v5411 = vadd.f32 %v5383, %v5400
  %v5412 = vadd.f32 %v5384, %v5404
  %v5413 = vadd.f32 %v5385, %v5400
  %v5414 = vadd.f32 %v5386, %v5404
  %v5415 = vadd.f32 %v5387, %v5400
  %v5416 = vadd.f32 %v5388, %v5404
  %v5417 = vadd.f32 %v5389, %v5400
  %v5418 = vadd.f32 %v5390, %v5404
  %v5419 = vadd.f32 %v5391, %v5400
  %v5420 = vadd.f32 %v5392, %v5404
  %v5421 = vadd.f32 %v5393, %v5400
  %v5422 = vadd.f32 %v5394, %v5404
  %5423 = vst [vmem:[#allocation4] sm:$0xff] %v5407
  %vm5424 = vcmask 261120
  %5425 = vst.msk [vmem:[#allocation4 + $0x8] sm:$0xff] %vm5424, %v5408
  %5426 = vst [vmem:[#allocation4 + $0x10] sm:$0xff] %v5409
  %5427 = vst.msk [vmem:[#allocation4 + $0x18] sm:$0xff] %vm5424, %v5410
  %5428 = vst [vmem:[#allocation4 + $0x20] sm:$0xff] %v5411
  %5429 = vst.msk [vmem:[#allocation4 + $0x28] sm:$0xff] %vm5424, %v5412
  %5430 = vst [vmem:[#allocation4 + $0x30] sm:$0xff] %v5413
  %5431 = vst.msk [vmem:[#allocation4 + $0x38] sm:$0xff] %vm5424, %v5414
  %5432 = vst [vmem:[#allocation4 + $0x40] sm:$0xff] %v5415
  %5433 = vst.msk [vmem:[#allocation4 + $0x48] sm:$0xff] %vm5424, %v5416
  %5434 = vst [vmem:[#allocation4 + $0x50] sm:$0xff] %v5417
  %5435 = vst.msk [vmem:[#allocation4 + $0x58] sm:$0xff] %vm5424, %v5418
  %5436 = vst [vmem:[#allocation4 + $0x60] sm:$0xff] %v5419
  %5437 = vst.msk [vmem:[#allocation4 + $0x68] sm:$0xff] %vm5424, %v5420
  %5438 = vst [vmem:[#allocation4 + $0x70] sm:$0xff] %v5421
  %5439 = vst.msk [vmem:[#allocation4 + $0x78] sm:$0xff] %vm5424, %v5422
  %v5440 = vld [vmem:[%s6] sm:$0xff]
  %v5441 = vld [vmem:[%s6 + $0x8] sm:$0xff]
  %v5442 = vld [vmem:[%s6 + $0x10] sm:$0xff]
  %v5443 = vld [vmem:[%s6 + $0x18] sm:$0xff]
  %v5444 = vld [vmem:[%s6 + $0x20] sm:$0xff]
  %v5445 = vld [vmem:[%s6 + $0x28] sm:$0xff]
  %v5446 = vld [vmem:[%s6 + $0x30] sm:$0xff]
  %v5447 = vld [vmem:[%s6 + $0x38] sm:$0xff]
  %v5448 = vld [vmem:[%s6 + $0x40] sm:$0xff]
  %v5449 = vld [vmem:[%s6 + $0x48] sm:$0xff]
  %v5450 = vld [vmem:[%s6 + $0x50] sm:$0xff]
  %v5451 = vld [vmem:[%s6 + $0x58] sm:$0xff]
  %v5452 = vld [vmem:[%s6 + $0x60] sm:$0xff]
  %v5453 = vld [vmem:[%s6 + $0x68] sm:$0xff]
  %v5454 = vld [vmem:[%s6 + $0x70] sm:$0xff]
  %v5455 = vld [vmem:[%s6 + $0x78] sm:$0xff]
  %v5456 = vld [vmem:[%s6 + $0x80] sm:$0xff]
  %v5457 = vld [vmem:[%s6 + $0x88] sm:$0xff]
  %v5458 = vld [vmem:[%s6 + $0x90] sm:$0xff]
  %v5459 = vld [vmem:[%s6 + $0x98] sm:$0xff]
  %s5460 = scalar_lea.vmem %s6, 160
  %v5461 = vld [vmem:[%s5460] sm:$0xff]
  %v5462 = vld [vmem:[%s5460 + $0x8] sm:$0xff]
  %v5463 = vld [vmem:[%s5460 + $0x10] sm:$0xff]
  %v5464 = vld [vmem:[%s5460 + $0x18] sm:$0xff]
  %v5465 = vld [vmem:[%s5460 + $0x20] sm:$0xff]
  %v5466 = vld [vmem:[%s5460 + $0x28] sm:$0xff]
  %v5467 = vld [vmem:[%s5460 + $0x30] sm:$0xff]
  %v5468 = vld [vmem:[%s5460 + $0x38] sm:$0xff]
  %v5469 = vld [vmem:[%s5460 + $0x40] sm:$0xff]
  %v5470 = vld [vmem:[%s5460 + $0x48] sm:$0xff]
  %v5471 = vld [vmem:[%s5460 + $0x50] sm:$0xff]
  %v5472 = vld [vmem:[%s5460 + $0x58] sm:$0xff]
  %v5473 = vld [vmem:[%s5460 + $0x60] sm:$0xff]
  %v5474 = vld [vmem:[%s5460 + $0x68] sm:$0xff]
  %v5475 = vld [vmem:[%s5460 + $0x70] sm:$0xff]
  %v5476 = vld [vmem:[%s5460 + $0x78] sm:$0xff]
  %v5477 = vld [vmem:[%s5460 + $0x80] sm:$0xff]
  %v5478 = vld [vmem:[%s5460 + $0x88] sm:$0xff]
  %v5479 = vld [vmem:[%s5460 + $0x90] sm:$0xff]
  %v5480 = vld [vmem:[%s5460 + $0x98] sm:$0xff]
  %v5481 = vld [vmem:[#allocation4] sm:$0xff]
  %v5482 = vld [vmem:[#allocation4 + $0x8] sm:$0xff]
  %v5483 = vld [vmem:[#allocation4 + $0x10] sm:$0xff]
  %v5484 = vld [vmem:[#allocation4 + $0x18] sm:$0xff]
  %v5485 = vmax.f32 %v5481, %v5483
  %v5486 = vmax.f32 %v5482, %v5484
  %v5488 = vsel %vm5424, %v5486, 0
  %5490 = vmatprep.subr.mxu0 0.0
  %5491 = vmatpush1.msra.mxu0 %v5455
  %5492 = vmatprep.subr.mxu0 0.0
  %5493 = vmatpush1.msra.mxu0 %v5454
  %5494 = vmatprep.subr.mxu0 0.0
  %5495 = vmatpush1.msra.mxu0 %v5453
  %5496 = vmatprep.subr.mxu0 0.0
  %5497 = vmatpush1.msra.mxu0 %v5452
  %5498 = vmatprep.subr.mxu0 0.0
  %5499 = vmatpush1.msra.mxu0 %v5451
  %5500 = vmatprep.subr.mxu0 0.0
  %5501 = vmatpush1.msra.mxu0 %v5450
  %5502 = vmatprep.subr.mxu0 0.0
  %5503 = vmatpush1.msra.mxu0 %v5449
  %5504 = vmatprep.subr.mxu0 0.0
  %5505 = vmatpush1.msra.mxu0 %v5448
  %5506 = vmatprep.subr.mxu0 0.0
  %5507 = vmatpush1.msra.mxu0 %v5447
  %5508 = vmatprep.subr.mxu0 0.0
  %5509 = vmatpush1.msra.mxu0 %v5446
  %5510 = vmatprep.subr.mxu0 0.0
  %5511 = vmatpush1.msra.mxu0 %v5445
  %5512 = vmatprep.subr.mxu0 0.0
  %5513 = vmatpush1.msra.mxu0 %v5444
  %5514 = vmatprep.subr.mxu0 0.0
  %5515 = vmatpush1.msra.mxu0 %v5443
  %5516 = vmatprep.subr.mxu0 0.0
  %5517 = vmatpush1.msra.mxu0 %v5442
  %5518 = vmatprep.subr.mxu0 0.0
  %5519 = vmatpush1.msra.mxu0 %v5441
  %5520 = vmatprep.subr.mxu0 0.0
  %5521 = vmatpush1.msra.mxu0 %v5440
  %5522 = vmatprep.subr.mxu0 0.0
  %5523 = vmatpush2.msra.mxu0 0.0
  %5524 = vmatprep.subr.mxu0 0.0
  %5525 = vmatpush2.msra.mxu0 0.0
  %5526 = vmatprep.subr.mxu0 0.0
  %5527 = vmatpush2.msra.mxu0 0.0
  %5528 = vmatprep.subr.mxu0 0.0
  %5529 = vmatpush2.msra.mxu0 0.0
  %5530 = vmatprep.subr.mxu0 0.0
  %5531 = vmatpush2.msra.mxu0 0.0
  %5532 = vmatprep.subr.mxu0 0.0
  %5533 = vmatpush2.msra.mxu0 0.0
  %5534 = vmatprep.subr.mxu0 0.0
  %5535 = vmatpush2.msra.mxu0 0.0
  %5536 = vmatprep.subr.mxu0 0.0
  %5537 = vmatpush2.msra.mxu0 0.0
  %5538 = vmatprep.subr.mxu0 0.0
  %5539 = vmatpush2.msra.mxu0 0.0
  %5540 = vmatprep.subr.mxu0 0.0
  %5541 = vmatpush2.msra.mxu0 0.0
  %5542 = vmatprep.subr.mxu0 0.0
  %5543 = vmatpush2.msra.mxu0 0.0
  %5544 = vmatprep.subr.mxu0 0.0
  %5545 = vmatpush2.msra.mxu0 0.0
  %5546 = vmatprep.subr.mxu0 0.0
  %5547 = vmatpush2.msra.mxu0 %v5459
  %5548 = vmatprep.subr.mxu0 0.0
  %5549 = vmatpush2.msra.mxu0 %v5458
  %5550 = vmatprep.subr.mxu0 0.0
  %5551 = vmatpush2.msra.mxu0 %v5457
  %5552 = vmatprep.subr.mxu0 0.0
  %5553 = vmatpush2.msra.mxu0 %v5456
  %5554 = vmatprep.mubr.f32.mxu0 %v5488
  %5555 = vmatmul.mubr.f32.gmra.mxu0 %v5485
  %v5556 = vpop.f32.mrf.mxu0
  %v5557 = vadd.f32 0.0, %v5556
  %v5558 = vpop.f32.mrf.mxu0
  %5559 = vdwg.mxu0
  %5560 = vmatprep.subr.mxu0 0.0
  %5561 = vmatpush1.msra.mxu0 %v5476
  %5562 = vmatprep.subr.mxu0 0.0
  %5563 = vmatpush1.msra.mxu0 %v5475
  %5564 = vmatprep.subr.mxu0 0.0
  %5565 = vmatpush1.msra.mxu0 %v5474
  %5566 = vmatprep.subr.mxu0 0.0
  %5567 = vmatpush1.msra.mxu0 %v5473
  %5568 = vmatprep.subr.mxu0 0.0
  %5569 = vmatpush1.msra.mxu0 %v5472
  %5570 = vmatprep.subr.mxu0 0.0
  %5571 = vmatpush1.msra.mxu0 %v5471
  %5572 = vmatprep.subr.mxu0 0.0
  %5573 = vmatpush1.msra.mxu0 %v5470
  %5574 = vmatprep.subr.mxu0 0.0
  %5575 = vmatpush1.msra.mxu0 %v5469
  %5576 = vmatprep.subr.mxu0 0.0
  %5577 = vmatpush1.msra.mxu0 %v5468
  %5578 = vmatprep.subr.mxu0 0.0
  %5579 = vmatpush1.msra.mxu0 %v5467
  %5580 = vmatprep.subr.mxu0 0.0
  %5581 = vmatpush1.msra.mxu0 %v5466
  %5582 = vmatprep.subr.mxu0 0.0
  %5583 = vmatpush1.msra.mxu0 %v5465
  %5584 = vmatprep.subr.mxu0 0.0
  %5585 = vmatpush1.msra.mxu0 %v5464
  %5586 = vmatprep.subr.mxu0 0.0
  %5587 = vmatpush1.msra.mxu0 %v5463
  %5588 = vmatprep.subr.mxu0 0.0
  %5589 = vmatpush1.msra.mxu0 %v5462
  %5590 = vmatprep.subr.mxu0 0.0
  %5591 = vmatpush1.msra.mxu0 %v5461
  %5592 = vmatprep.subr.mxu0 0.0
  %5593 = vmatpush2.msra.mxu0 0.0
  %5594 = vmatprep.subr.mxu0 0.0
  %5595 = vmatpush2.msra.mxu0 0.0
  %5596 = vmatprep.subr.mxu0 0.0
  %5597 = vmatpush2.msra.mxu0 0.0
  %5598 = vmatprep.subr.mxu0 0.0
  %5599 = vmatpush2.msra.mxu0 0.0
  %5600 = vmatprep.subr.mxu0 0.0
  %5601 = vmatpush2.msra.mxu0 0.0
  %5602 = vmatprep.subr.mxu0 0.0
  %5603 = vmatpush2.msra.mxu0 0.0
  %5604 = vmatprep.subr.mxu0 0.0
  %5605 = vmatpush2.msra.mxu0 0.0
  %5606 = vmatprep.subr.mxu0 0.0
  %5607 = vmatpush2.msra.mxu0 0.0
  %5608 = vmatprep.subr.mxu0 0.0
  %5609 = vmatpush2.msra.mxu0 0.0
  %5610 = vmatprep.subr.mxu0 0.0
  %5611 = vmatpush2.msra.mxu0 0.0
  %5612 = vmatprep.subr.mxu0 0.0
  %5613 = vmatpush2.msra.mxu0 0.0
  %5614 = vmatprep.subr.mxu0 0.0
  %5615 = vmatpush2.msra.mxu0 0.0
  %5616 = vmatprep.subr.mxu0 0.0
  %5617 = vmatpush2.msra.mxu0 %v5480
  %5618 = vmatprep.subr.mxu0 0.0
  %5619 = vmatpush2.msra.mxu0 %v5479
  %5620 = vmatprep.subr.mxu0 0.0
  %5621 = vmatpush2.msra.mxu0 %v5478
  %5622 = vmatprep.subr.mxu0 0.0
  %5623 = vmatpush2.msra.mxu0 %v5477
  %5624 = vmatprep.mubr.f32.mxu0 %v5488
  %5625 = vmatmul.mubr.f32.gmra.mxu0 %v5485
  %v5626 = vpop.f32.mrf.mxu0
  %v5627 = vadd.f32 0.0, %v5626
  %v5628 = vpop.f32.mrf.mxu0
  %5629 = vdwg.mxu0
  %v5630 = vmax.f32 %v5557, %v5627
  %v5631 = vld [vmem:[%s7] sm:$0xff]
  %v5632 = vld [vmem:[%s7 + $0x8] sm:$0xff]
  %v5633 = vld [vmem:[%s7 + $0x10] sm:$0xff]
  %v5634 = vld [vmem:[%s7 + $0x18] sm:$0xff]
  %v5635 = vld [vmem:[%s7 + $0x20] sm:$0xff]
  %v5636 = vld [vmem:[%s7 + $0x28] sm:$0xff]
  %v5637 = vld [vmem:[%s7 + $0x30] sm:$0xff]
  %v5638 = vld [vmem:[%s7 + $0x38] sm:$0xff]
  %v5639 = vld [vmem:[%s7 + $0x40] sm:$0xff]
  %v5640 = vld [vmem:[%s7 + $0x48] sm:$0xff]
  %v5641 = vld [vmem:[#allocation4 + $0x20] sm:$0xff]
  %v5642 = vld [vmem:[#allocation4 + $0x28] sm:$0xff]
  %v5643 = vld [vmem:[#allocation4 + $0x30] sm:$0xff]
  %v5644 = vld [vmem:[#allocation4 + $0x38] sm:$0xff]
  %v5645 = vmax.f32 %v5641, %v5643
  %v5646 = vmax.f32 %v5642, %v5644
  %v5648 = vsel %vm5424, %v5646, 0
  %5650 = vmatprep.subr.mxu0 0.0
  %5651 = vmatpush1.msra.mxu0 %v5455
  %5652 = vmatprep.subr.mxu0 0.0
  %5653 = vmatpush1.msra.mxu0 %v5454
  %5654 = vmatprep.subr.mxu0 0.0
  %5655 = vmatpush1.msra.mxu0 %v5453
  %5656 = vmatprep.subr.mxu0 0.0
  %5657 = vmatpush1.msra.mxu0 %v5452
  %5658 = vmatprep.subr.mxu0 0.0
  %5659 = vmatpush1.msra.mxu0 %v5451
  %5660 = vmatprep.subr.mxu0 0.0
  %5661 = vmatpush1.msra.mxu0 %v5450
  %5662 = vmatprep.subr.mxu0 0.0
  %5663 = vmatpush1.msra.mxu0 %v5449
  %5664 = vmatprep.subr.mxu0 0.0
  %5665 = vmatpush1.msra.mxu0 %v5448
  %5666 = vmatprep.subr.mxu0 0.0
  %5667 = vmatpush1.msra.mxu0 %v5447
  %5668 = vmatprep.subr.mxu0 0.0
  %5669 = vmatpush1.msra.mxu0 %v5446
  %5670 = vmatprep.subr.mxu0 0.0
  %5671 = vmatpush1.msra.mxu0 %v5445
  %5672 = vmatprep.subr.mxu0 0.0
  %5673 = vmatpush1.msra.mxu0 %v5444
  %5674 = vmatprep.subr.mxu0 0.0
  %5675 = vmatpush1.msra.mxu0 %v5443
  %5676 = vmatprep.subr.mxu0 0.0
  %5677 = vmatpush1.msra.mxu0 %v5442
  %5678 = vmatprep.subr.mxu0 0.0
  %5679 = vmatpush1.msra.mxu0 %v5441
  %5680 = vmatprep.subr.mxu0 0.0
  %5681 = vmatpush1.msra.mxu0 %v5440
  %5682 = vmatprep.subr.mxu0 0.0
  %5683 = vmatpush2.msra.mxu0 0.0
  %5684 = vmatprep.subr.mxu0 0.0
  %5685 = vmatpush2.msra.mxu0 0.0
  %5686 = vmatprep.subr.mxu0 0.0
  %5687 = vmatpush2.msra.mxu0 0.0
  %5688 = vmatprep.subr.mxu0 0.0
  %5689 = vmatpush2.msra.mxu0 0.0
  %5690 = vmatprep.subr.mxu0 0.0
  %5691 = vmatpush2.msra.mxu0 0.0
  %5692 = vmatprep.subr.mxu0 0.0
  %5693 = vmatpush2.msra.mxu0 0.0
  %5694 = vmatprep.subr.mxu0 0.0
  %5695 = vmatpush2.msra.mxu0 0.0
  %5696 = vmatprep.subr.mxu0 0.0
  %5697 = vmatpush2.msra.mxu0 0.0
  %5698 = vmatprep.subr.mxu0 0.0
  %5699 = vmatpush2.msra.mxu0 0.0
  %5700 = vmatprep.subr.mxu0 0.0
  %5701 = vmatpush2.msra.mxu0 0.0
  %5702 = vmatprep.subr.mxu0 0.0
  %5703 = vmatpush2.msra.mxu0 0.0
  %5704 = vmatprep.subr.mxu0 0.0
  %5705 = vmatpush2.msra.mxu0 0.0
  %5706 = vmatprep.subr.mxu0 0.0
  %5707 = vmatpush2.msra.mxu0 %v5459
  %5708 = vmatprep.subr.mxu0 0.0
  %5709 = vmatpush2.msra.mxu0 %v5458
  %5710 = vmatprep.subr.mxu0 0.0
  %5711 = vmatpush2.msra.mxu0 %v5457
  %5712 = vmatprep.subr.mxu0 0.0
  %5713 = vmatpush2.msra.mxu0 %v5456
  %5714 = vmatprep.mubr.f32.mxu0 %v5648
  %5715 = vmatmul.mubr.f32.gmra.mxu0 %v5645
  %v5716 = vpop.f32.mrf.mxu0
  %v5717 = vadd.f32 0.0, %v5716
  %v5718 = vpop.f32.mrf.mxu0
  %5719 = vdwg.mxu0
  %5720 = vmatprep.subr.mxu0 0.0
  %5721 = vmatpush1.msra.mxu0 %v5476
  %5722 = vmatprep.subr.mxu0 0.0
  %5723 = vmatpush1.msra.mxu0 %v5475
  %5724 = vmatprep.subr.mxu0 0.0
  %5725 = vmatpush1.msra.mxu0 %v5474
  %5726 = vmatprep.subr.mxu0 0.0
  %5727 = vmatpush1.msra.mxu0 %v5473
  %5728 = vmatprep.subr.mxu0 0.0
  %5729 = vmatpush1.msra.mxu0 %v5472
  %5730 = vmatprep.subr.mxu0 0.0
  %5731 = vmatpush1.msra.mxu0 %v5471
  %5732 = vmatprep.subr.mxu0 0.0
  %5733 = vmatpush1.msra.mxu0 %v5470
  %5734 = vmatprep.subr.mxu0 0.0
  %5735 = vmatpush1.msra.mxu0 %v5469
  %5736 = vmatprep.subr.mxu0 0.0
  %5737 = vmatpush1.msra.mxu0 %v5468
  %5738 = vmatprep.subr.mxu0 0.0
  %5739 = vmatpush1.msra.mxu0 %v5467
  %5740 = vmatprep.subr.mxu0 0.0
  %5741 = vmatpush1.msra.mxu0 %v5466
  %5742 = vmatprep.subr.mxu0 0.0
  %5743 = vmatpush1.msra.mxu0 %v5465
  %5744 = vmatprep.subr.mxu0 0.0
  %5745 = vmatpush1.msra.mxu0 %v5464
  %5746 = vmatprep.subr.mxu0 0.0
  %5747 = vmatpush1.msra.mxu0 %v5463
  %5748 = vmatprep.subr.mxu0 0.0
  %5749 = vmatpush1.msra.mxu0 %v5462
  %5750 = vmatprep.subr.mxu0 0.0
  %5751 = vmatpush1.msra.mxu0 %v5461
  %5752 = vmatprep.subr.mxu0 0.0
  %5753 = vmatpush2.msra.mxu0 0.0
  %5754 = vmatprep.subr.mxu0 0.0
  %5755 = vmatpush2.msra.mxu0 0.0
  %5756 = vmatprep.subr.mxu0 0.0
  %5757 = vmatpush2.msra.mxu0 0.0
  %5758 = vmatprep.subr.mxu0 0.0
  %5759 = vmatpush2.msra.mxu0 0.0
  %5760 = vmatprep.subr.mxu0 0.0
  %5761 = vmatpush2.msra.mxu0 0.0
  %5762 = vmatprep.subr.mxu0 0.0
  %5763 = vmatpush2.msra.mxu0 0.0
  %5764 = vmatprep.subr.mxu0 0.0
  %5765 = vmatpush2.msra.mxu0 0.0
  %5766 = vmatprep.subr.mxu0 0.0
  %5767 = vmatpush2.msra.mxu0 0.0
  %5768 = vmatprep.subr.mxu0 0.0
  %5769 = vmatpush2.msra.mxu0 0.0
  %5770 = vmatprep.subr.mxu0 0.0
  %5771 = vmatpush2.msra.mxu0 0.0
  %5772 = vmatprep.subr.mxu0 0.0
  %5773 = vmatpush2.msra.mxu0 0.0
  %5774 = vmatprep.subr.mxu0 0.0
  %5775 = vmatpush2.msra.mxu0 0.0
  %5776 = vmatprep.subr.mxu0 0.0
  %5777 = vmatpush2.msra.mxu0 %v5480
  %5778 = vmatprep.subr.mxu0 0.0
  %5779 = vmatpush2.msra.mxu0 %v5479
  %5780 = vmatprep.subr.mxu0 0.0
  %5781 = vmatpush2.msra.mxu0 %v5478
  %5782 = vmatprep.subr.mxu0 0.0
  %5783 = vmatpush2.msra.mxu0 %v5477
  %5784 = vmatprep.mubr.f32.mxu0 %v5648
  %5785 = vmatmul.mubr.f32.gmra.mxu0 %v5645
  %v5786 = vpop.f32.mrf.mxu0
  %v5787 = vadd.f32 0.0, %v5786
  %v5788 = vpop.f32.mrf.mxu0
  %5789 = vdwg.mxu0
  %v5790 = vmax.f32 %v5717, %v5787
  %v5791 = vld [vmem:[%s7 + $0x50] sm:$0xff]
  %v5792 = vld [vmem:[%s7 + $0x58] sm:$0xff]
  %v5793 = vld [vmem:[%s7 + $0x60] sm:$0xff]
  %v5794 = vld [vmem:[%s7 + $0x68] sm:$0xff]
  %v5795 = vld [vmem:[%s7 + $0x70] sm:$0xff]
  %v5796 = vld [vmem:[%s7 + $0x78] sm:$0xff]
  %v5797 = vld [vmem:[%s7 + $0x80] sm:$0xff]
  %v5798 = vld [vmem:[%s7 + $0x88] sm:$0xff]
  %v5799 = vld [vmem:[%s7 + $0x90] sm:$0xff]
  %v5800 = vld [vmem:[%s7 + $0x98] sm:$0xff]
  %vm5801 = vcmask 654336
  %v5803 = vsel %vm5801, %v5790, 0
  %5805 = vmatprep.subr.mxu0 0.0
  %5806 = vmatpush1.msra.mxu0 0.0
  %5807 = vmatprep.subr.mxu0 0.0
  %5808 = vmatpush1.msra.mxu0 0.0
  %5809 = vmatprep.subr.mxu0 0.0
  %5810 = vmatpush1.msra.mxu0 0.0
  %5811 = vmatprep.subr.mxu0 0.0
  %5812 = vmatpush1.msra.mxu0 0.0
  %5813 = vmatprep.subr.mxu0 0.0
  %5814 = vmatpush1.msra.mxu0 0.0
  %5815 = vmatprep.subr.mxu0 0.0
  %5816 = vmatpush1.msra.mxu0 0.0
  %5817 = vmatprep.subr.mxu0 0.0
  %5818 = vmatpush1.msra.mxu0 %v5800
  %5819 = vmatprep.subr.mxu0 0.0
  %5820 = vmatpush1.msra.mxu0 %v5799
  %5821 = vmatprep.subr.mxu0 0.0
  %5822 = vmatpush1.msra.mxu0 %v5798
  %5823 = vmatprep.subr.mxu0 0.0
  %5824 = vmatpush1.msra.mxu0 %v5797
  %5825 = vmatprep.subr.mxu0 0.0
  %5826 = vmatpush1.msra.mxu0 %v5796
  %5827 = vmatprep.subr.mxu0 0.0
  %5828 = vmatpush1.msra.mxu0 %v5795
  %5829 = vmatprep.subr.mxu0 0.0
  %5830 = vmatpush1.msra.mxu0 %v5794
  %5831 = vmatprep.subr.mxu0 0.0
  %5832 = vmatpush1.msra.mxu0 %v5793
  %5833 = vmatprep.subr.mxu0 0.0
  %5834 = vmatpush1.msra.mxu0 %v5792
  %5835 = vmatprep.subr.mxu0 0.0
  %5836 = vmatpush1.msra.mxu0 %v5791
  %5837 = vmatprep.subr.mxu0 0.0
  %5838 = vmatpush2.msra.mxu0 0.0
  %5839 = vmatprep.subr.mxu0 0.0
  %5840 = vmatpush2.msra.mxu0 0.0
  %5841 = vmatprep.subr.mxu0 0.0
  %5842 = vmatpush2.msra.mxu0 0.0
  %5843 = vmatprep.subr.mxu0 0.0
  %5844 = vmatpush2.msra.mxu0 0.0
  %5845 = vmatprep.subr.mxu0 0.0
  %5846 = vmatpush2.msra.mxu0 0.0
  %5847 = vmatprep.subr.mxu0 0.0
  %5848 = vmatpush2.msra.mxu0 0.0
  %5849 = vmatprep.subr.mxu0 0.0
  %5850 = vmatpush2.msra.mxu0 0.0
  %5851 = vmatprep.subr.mxu0 0.0
  %5852 = vmatpush2.msra.mxu0 0.0
  %5853 = vmatprep.subr.mxu0 0.0
  %5854 = vmatpush2.msra.mxu0 0.0
  %5855 = vmatprep.subr.mxu0 0.0
  %5856 = vmatpush2.msra.mxu0 0.0
  %5857 = vmatprep.subr.mxu0 0.0
  %5858 = vmatpush2.msra.mxu0 0.0
  %5859 = vmatprep.subr.mxu0 0.0
  %5860 = vmatpush2.msra.mxu0 0.0
  %5861 = vmatprep.subr.mxu0 0.0
  %5862 = vmatpush2.msra.mxu0 0.0
  %5863 = vmatprep.subr.mxu0 0.0
  %5864 = vmatpush2.msra.mxu0 0.0
  %5865 = vmatprep.subr.mxu0 0.0
  %5866 = vmatpush2.msra.mxu0 0.0
  %5867 = vmatprep.subr.mxu0 0.0
  %5868 = vmatpush2.msra.mxu0 0.0
  %5869 = vmatprep.mubr.f32.mxu0 0.0
  %5870 = vmatmul.mubr.f32.gmra.mxu0 %v5803
  %v5871 = vpop.f32.mrf.mxu0
  %v5872 = vadd.f32 0.0, %v5871
  %v5873 = vpop.f32.mrf.mxu0
  %5874 = vdwg.mxu0
  %v5876 = vsel %vm5801, %v5630, 0
  %5878 = vmatprep.subr.mxu0 0.0
  %5879 = vmatpush1.msra.mxu0 0.0
  %5880 = vmatprep.subr.mxu0 0.0
  %5881 = vmatpush1.msra.mxu0 0.0
  %5882 = vmatprep.subr.mxu0 0.0
  %5883 = vmatpush1.msra.mxu0 0.0
  %5884 = vmatprep.subr.mxu0 0.0
  %5885 = vmatpush1.msra.mxu0 0.0
  %5886 = vmatprep.subr.mxu0 0.0
  %5887 = vmatpush1.msra.mxu0 0.0
  %5888 = vmatprep.subr.mxu0 0.0
  %5889 = vmatpush1.msra.mxu0 0.0
  %5890 = vmatprep.subr.mxu0 0.0
  %5891 = vmatpush1.msra.mxu0 %v5640
  %5892 = vmatprep.subr.mxu0 0.0
  %5893 = vmatpush1.msra.mxu0 %v5639
  %5894 = vmatprep.subr.mxu0 0.0
  %5895 = vmatpush1.msra.mxu0 %v5638
  %5896 = vmatprep.subr.mxu0 0.0
  %5897 = vmatpush1.msra.mxu0 %v5637
  %5898 = vmatprep.subr.mxu0 0.0
  %5899 = vmatpush1.msra.mxu0 %v5636
  %5900 = vmatprep.subr.mxu0 0.0
  %5901 = vmatpush1.msra.mxu0 %v5635
  %5902 = vmatprep.subr.mxu0 0.0
  %5903 = vmatpush1.msra.mxu0 %v5634
  %5904 = vmatprep.subr.mxu0 0.0
  %5905 = vmatpush1.msra.mxu0 %v5633
  %5906 = vmatprep.subr.mxu0 0.0
  %5907 = vmatpush1.msra.mxu0 %v5632
  %5908 = vmatprep.subr.mxu0 0.0
  %5909 = vmatpush1.msra.mxu0 %v5631
  %5910 = vmatprep.subr.mxu0 0.0
  %5911 = vmatpush2.msra.mxu0 0.0
  %5912 = vmatprep.subr.mxu0 0.0
  %5913 = vmatpush2.msra.mxu0 0.0
  %5914 = vmatprep.subr.mxu0 0.0
  %5915 = vmatpush2.msra.mxu0 0.0
  %5916 = vmatprep.subr.mxu0 0.0
  %5917 = vmatpush2.msra.mxu0 0.0
  %5918 = vmatprep.subr.mxu0 0.0
  %5919 = vmatpush2.msra.mxu0 0.0
  %5920 = vmatprep.subr.mxu0 0.0
  %5921 = vmatpush2.msra.mxu0 0.0
  %5922 = vmatprep.subr.mxu0 0.0
  %5923 = vmatpush2.msra.mxu0 0.0
  %5924 = vmatprep.subr.mxu0 0.0
  %5925 = vmatpush2.msra.mxu0 0.0
  %5926 = vmatprep.subr.mxu0 0.0
  %5927 = vmatpush2.msra.mxu0 0.0
  %5928 = vmatprep.subr.mxu0 0.0
  %5929 = vmatpush2.msra.mxu0 0.0
  %5930 = vmatprep.subr.mxu0 0.0
  %5931 = vmatpush2.msra.mxu0 0.0
  %5932 = vmatprep.subr.mxu0 0.0
  %5933 = vmatpush2.msra.mxu0 0.0
  %5934 = vmatprep.subr.mxu0 0.0
  %5935 = vmatpush2.msra.mxu0 0.0
  %5936 = vmatprep.subr.mxu0 0.0
  %5937 = vmatpush2.msra.mxu0 0.0
  %5938 = vmatprep.subr.mxu0 0.0
  %5939 = vmatpush2.msra.mxu0 0.0
  %5940 = vmatprep.subr.mxu0 0.0
  %5941 = vmatpush2.msra.mxu0 0.0
  %5942 = vmatprep.mubr.f32.mxu0 0.0
  %5943 = vmatmul.mubr.f32.gmra.mxu0 %v5876
  %v5944 = vpop.f32.mrf.mxu0
  %v5945 = vadd.f32 %v5872, %v5944
  %v5946 = vpop.f32.mrf.mxu0
  %5947 = vdwg.mxu0
  %v5948 = vld [vmem:[#allocation4 + $0x40] sm:$0xff]
  %v5949 = vld [vmem:[#allocation4 + $0x48] sm:$0xff]
  %v5950 = vld [vmem:[#allocation4 + $0x50] sm:$0xff]
  %v5951 = vld [vmem:[#allocation4 + $0x58] sm:$0xff]
  %v5952 = vmax.f32 %v5948, %v5950
  %v5953 = vmax.f32 %v5949, %v5951
  %v5955 = vsel %vm5424, %v5953, 0
  %5957 = vmatprep.subr.mxu0 0.0
  %5958 = vmatpush1.msra.mxu0 %v5455
  %5959 = vmatprep.subr.mxu0 0.0
  %5960 = vmatpush1.msra.mxu0 %v5454
  %5961 = vmatprep.subr.mxu0 0.0
  %5962 = vmatpush1.msra.mxu0 %v5453
  %5963 = vmatprep.subr.mxu0 0.0
  %5964 = vmatpush1.msra.mxu0 %v5452
  %5965 = vmatprep.subr.mxu0 0.0
  %5966 = vmatpush1.msra.mxu0 %v5451
  %5967 = vmatprep.subr.mxu0 0.0
  %5968 = vmatpush1.msra.mxu0 %v5450
  %5969 = vmatprep.subr.mxu0 0.0
  %5970 = vmatpush1.msra.mxu0 %v5449
  %5971 = vmatprep.subr.mxu0 0.0
  %5972 = vmatpush1.msra.mxu0 %v5448
  %5973 = vmatprep.subr.mxu0 0.0
  %5974 = vmatpush1.msra.mxu0 %v5447
  %5975 = vmatprep.subr.mxu0 0.0
  %5976 = vmatpush1.msra.mxu0 %v5446
  %5977 = vmatprep.subr.mxu0 0.0
  %5978 = vmatpush1.msra.mxu0 %v5445
  %5979 = vmatprep.subr.mxu0 0.0
  %5980 = vmatpush1.msra.mxu0 %v5444
  %5981 = vmatprep.subr.mxu0 0.0
  %5982 = vmatpush1.msra.mxu0 %v5443
  %5983 = vmatprep.subr.mxu0 0.0
  %5984 = vmatpush1.msra.mxu0 %v5442
  %5985 = vmatprep.subr.mxu0 0.0
  %5986 = vmatpush1.msra.mxu0 %v5441
  %5987 = vmatprep.subr.mxu0 0.0
  %5988 = vmatpush1.msra.mxu0 %v5440
  %5989 = vmatprep.subr.mxu0 0.0
  %5990 = vmatpush2.msra.mxu0 0.0
  %5991 = vmatprep.subr.mxu0 0.0
  %5992 = vmatpush2.msra.mxu0 0.0
  %5993 = vmatprep.subr.mxu0 0.0
  %5994 = vmatpush2.msra.mxu0 0.0
  %5995 = vmatprep.subr.mxu0 0.0
  %5996 = vmatpush2.msra.mxu0 0.0
  %5997 = vmatprep.subr.mxu0 0.0
  %5998 = vmatpush2.msra.mxu0 0.0
  %5999 = vmatprep.subr.mxu0 0.0
  %6000 = vmatpush2.msra.mxu0 0.0
  %6001 = vmatprep.subr.mxu0 0.0
  %6002 = vmatpush2.msra.mxu0 0.0
  %6003 = vmatprep.subr.mxu0 0.0
  %6004 = vmatpush2.msra.mxu0 0.0
  %6005 = vmatprep.subr.mxu0 0.0
  %6006 = vmatpush2.msra.mxu0 0.0
  %6007 = vmatprep.subr.mxu0 0.0
  %6008 = vmatpush2.msra.mxu0 0.0
  %6009 = vmatprep.subr.mxu0 0.0
  %6010 = vmatpush2.msra.mxu0 0.0
  %6011 = vmatprep.subr.mxu0 0.0
  %6012 = vmatpush2.msra.mxu0 0.0
  %6013 = vmatprep.subr.mxu0 0.0
  %6014 = vmatpush2.msra.mxu0 %v5459
  %6015 = vmatprep.subr.mxu0 0.0
  %6016 = vmatpush2.msra.mxu0 %v5458
  %6017 = vmatprep.subr.mxu0 0.0
  %6018 = vmatpush2.msra.mxu0 %v5457
  %6019 = vmatprep.subr.mxu0 0.0
  %6020 = vmatpush2.msra.mxu0 %v5456
  %6021 = vmatprep.mubr.f32.mxu0 %v5955
  %6022 = vmatmul.mubr.f32.gmra.mxu0 %v5952
  %v6023 = vpop.f32.mrf.mxu0
  %v6024 = vadd.f32 0.0, %v6023
  %v6025 = vpop.f32.mrf.mxu0
  %6026 = vdwg.mxu0
  %6027 = vmatprep.subr.mxu0 0.0
  %6028 = vmatpush1.msra.mxu0 %v5476
  %6029 = vmatprep.subr.mxu0 0.0
  %6030 = vmatpush1.msra.mxu0 %v5475
  %6031 = vmatprep.subr.mxu0 0.0
  %6032 = vmatpush1.msra.mxu0 %v5474
  %6033 = vmatprep.subr.mxu0 0.0
  %6034 = vmatpush1.msra.mxu0 %v5473
  %6035 = vmatprep.subr.mxu0 0.0
  %6036 = vmatpush1.msra.mxu0 %v5472
  %6037 = vmatprep.subr.mxu0 0.0
  %6038 = vmatpush1.msra.mxu0 %v5471
  %6039 = vmatprep.subr.mxu0 0.0
  %6040 = vmatpush1.msra.mxu0 %v5470
  %6041 = vmatprep.subr.mxu0 0.0
  %6042 = vmatpush1.msra.mxu0 %v5469
  %6043 = vmatprep.subr.mxu0 0.0
  %6044 = vmatpush1.msra.mxu0 %v5468
  %6045 = vmatprep.subr.mxu0 0.0
  %6046 = vmatpush1.msra.mxu0 %v5467
  %6047 = vmatprep.subr.mxu0 0.0
  %6048 = vmatpush1.msra.mxu0 %v5466
  %6049 = vmatprep.subr.mxu0 0.0
  %6050 = vmatpush1.msra.mxu0 %v5465
  %6051 = vmatprep.subr.mxu0 0.0
  %6052 = vmatpush1.msra.mxu0 %v5464
  %6053 = vmatprep.subr.mxu0 0.0
  %6054 = vmatpush1.msra.mxu0 %v5463
  %6055 = vmatprep.subr.mxu0 0.0
  %6056 = vmatpush1.msra.mxu0 %v5462
  %6057 = vmatprep.subr.mxu0 0.0
  %6058 = vmatpush1.msra.mxu0 %v5461
  %6059 = vmatprep.subr.mxu0 0.0
  %6060 = vmatpush2.msra.mxu0 0.0
  %6061 = vmatprep.subr.mxu0 0.0
  %6062 = vmatpush2.msra.mxu0 0.0
  %6063 = vmatprep.subr.mxu0 0.0
  %6064 = vmatpush2.msra.mxu0 0.0
  %6065 = vmatprep.subr.mxu0 0.0
  %6066 = vmatpush2.msra.mxu0 0.0
  %6067 = vmatprep.subr.mxu0 0.0
  %6068 = vmatpush2.msra.mxu0 0.0
  %6069 = vmatprep.subr.mxu0 0.0
  %6070 = vmatpush2.msra.mxu0 0.0
  %6071 = vmatprep.subr.mxu0 0.0
  %6072 = vmatpush2.msra.mxu0 0.0
  %6073 = vmatprep.subr.mxu0 0.0
  %6074 = vmatpush2.msra.mxu0 0.0
  %6075 = vmatprep.subr.mxu0 0.0
  %6076 = vmatpush2.msra.mxu0 0.0
  %6077 = vmatprep.subr.mxu0 0.0
  %6078 = vmatpush2.msra.mxu0 0.0
  %6079 = vmatprep.subr.mxu0 0.0
  %6080 = vmatpush2.msra.mxu0 0.0
  %6081 = vmatprep.subr.mxu0 0.0
  %6082 = vmatpush2.msra.mxu0 0.0
  %6083 = vmatprep.subr.mxu0 0.0
  %6084 = vmatpush2.msra.mxu0 %v5480
  %6085 = vmatprep.subr.mxu0 0.0
  %6086 = vmatpush2.msra.mxu0 %v5479
  %6087 = vmatprep.subr.mxu0 0.0
  %6088 = vmatpush2.msra.mxu0 %v5478
  %6089 = vmatprep.subr.mxu0 0.0
  %6090 = vmatpush2.msra.mxu0 %v5477
  %6091 = vmatprep.mubr.f32.mxu0 %v5955
  %6092 = vmatmul.mubr.f32.gmra.mxu0 %v5952
  %v6093 = vpop.f32.mrf.mxu0
  %v6094 = vadd.f32 0.0, %v6093
  %v6095 = vpop.f32.mrf.mxu0
  %6096 = vdwg.mxu0
  %v6097 = vmax.f32 %v6024, %v6094
  %v6098 = vld [vmem:[%s7 + $0xa0] sm:$0xff]
  %v6099 = vld [vmem:[%s7 + $0xa8] sm:$0xff]
  %v6100 = vld [vmem:[%s7 + $0xb0] sm:$0xff]
  %v6101 = vld [vmem:[%s7 + $0xb8] sm:$0xff]
  %v6102 = vld [vmem:[%s7 + $0xc0] sm:$0xff]
  %v6103 = vld [vmem:[%s7 + $0xc8] sm:$0xff]
  %v6104 = vld [vmem:[%s7 + $0xd0] sm:$0xff]
  %v6105 = vld [vmem:[%s7 + $0xd8] sm:$0xff]
  %v6106 = vld [vmem:[%s7 + $0xe0] sm:$0xff]
  %v6107 = vld [vmem:[%s7 + $0xe8] sm:$0xff]
  %v6109 = vsel %vm5801, %v6097, 0
  %6111 = vmatprep.subr.mxu0 0.0
  %6112 = vmatpush1.msra.mxu0 0.0
  %6113 = vmatprep.subr.mxu0 0.0
  %6114 = vmatpush1.msra.mxu0 0.0
  %6115 = vmatprep.subr.mxu0 0.0
  %6116 = vmatpush1.msra.mxu0 0.0
  %6117 = vmatprep.subr.mxu0 0.0
  %6118 = vmatpush1.msra.mxu0 0.0
  %6119 = vmatprep.subr.mxu0 0.0
  %6120 = vmatpush1.msra.mxu0 0.0
  %6121 = vmatprep.subr.mxu0 0.0
  %6122 = vmatpush1.msra.mxu0 0.0
  %6123 = vmatprep.subr.mxu0 0.0
  %6124 = vmatpush1.msra.mxu0 %v6107
  %6125 = vmatprep.subr.mxu0 0.0
  %6126 = vmatpush1.msra.mxu0 %v6106
  %6127 = vmatprep.subr.mxu0 0.0
  %6128 = vmatpush1.msra.mxu0 %v6105
  %6129 = vmatprep.subr.mxu0 0.0
  %6130 = vmatpush1.msra.mxu0 %v6104
  %6131 = vmatprep.subr.mxu0 0.0
  %6132 = vmatpush1.msra.mxu0 %v6103
  %6133 = vmatprep.subr.mxu0 0.0
  %6134 = vmatpush1.msra.mxu0 %v6102
  %6135 = vmatprep.subr.mxu0 0.0
  %6136 = vmatpush1.msra.mxu0 %v6101
  %6137 = vmatprep.subr.mxu0 0.0
  %6138 = vmatpush1.msra.mxu0 %v6100
  %6139 = vmatprep.subr.mxu0 0.0
  %6140 = vmatpush1.msra.mxu0 %v6099
  %6141 = vmatprep.subr.mxu0 0.0
  %6142 = vmatpush1.msra.mxu0 %v6098
  %6143 = vmatprep.subr.mxu0 0.0
  %6144 = vmatpush2.msra.mxu0 0.0
  %6145 = vmatprep.subr.mxu0 0.0
  %6146 = vmatpush2.msra.mxu0 0.0
  %6147 = vmatprep.subr.mxu0 0.0
  %6148 = vmatpush2.msra.mxu0 0.0
  %6149 = vmatprep.subr.mxu0 0.0
  %6150 = vmatpush2.msra.mxu0 0.0
  %6151 = vmatprep.subr.mxu0 0.0
  %6152 = vmatpush2.msra.mxu0 0.0
  %6153 = vmatprep.subr.mxu0 0.0
  %6154 = vmatpush2.msra.mxu0 0.0
  %6155 = vmatprep.subr.mxu0 0.0
  %6156 = vmatpush2.msra.mxu0 0.0
  %6157 = vmatprep.subr.mxu0 0.0
  %6158 = vmatpush2.msra.mxu0 0.0
  %6159 = vmatprep.subr.mxu0 0.0
  %6160 = vmatpush2.msra.mxu0 0.0
  %6161 = vmatprep.subr.mxu0 0.0
  %6162 = vmatpush2.msra.mxu0 0.0
  %6163 = vmatprep.subr.mxu0 0.0
  %6164 = vmatpush2.msra.mxu0 0.0
  %6165 = vmatprep.subr.mxu0 0.0
  %6166 = vmatpush2.msra.mxu0 0.0
  %6167 = vmatprep.subr.mxu0 0.0
  %6168 = vmatpush2.msra.mxu0 0.0
  %6169 = vmatprep.subr.mxu0 0.0
  %6170 = vmatpush2.msra.mxu0 0.0
  %6171 = vmatprep.subr.mxu0 0.0
  %6172 = vmatpush2.msra.mxu0 0.0
  %6173 = vmatprep.subr.mxu0 0.0
  %6174 = vmatpush2.msra.mxu0 0.0
  %6175 = vmatprep.mubr.f32.mxu0 0.0
  %6176 = vmatmul.mubr.f32.gmra.mxu0 %v6109
  %v6177 = vpop.f32.mrf.mxu0
  %v6178 = vadd.f32 0.0, %v6177
  %v6179 = vpop.f32.mrf.mxu0
  %6180 = vdwg.mxu0
  %v6181 = vadd.f32 %v5945, %v6178
  %v6182 = vld [vmem:[#allocation4 + $0x60] sm:$0xff]
  %v6183 = vld [vmem:[#allocation4 + $0x68] sm:$0xff]
  %v6184 = vld [vmem:[#allocation4 + $0x70] sm:$0xff]
  %v6185 = vld [vmem:[#allocation4 + $0x78] sm:$0xff]
  %v6186 = vmax.f32 %v6182, %v6184
  %v6187 = vmax.f32 %v6183, %v6185
  %v6189 = vsel %vm5424, %v6187, 0
  %6191 = vmatprep.subr.mxu0 0.0
  %6192 = vmatpush1.msra.mxu0 %v5455
  %6193 = vmatprep.subr.mxu0 0.0
  %6194 = vmatpush1.msra.mxu0 %v5454
  %6195 = vmatprep.subr.mxu0 0.0
  %6196 = vmatpush1.msra.mxu0 %v5453
  %6197 = vmatprep.subr.mxu0 0.0
  %6198 = vmatpush1.msra.mxu0 %v5452
  %6199 = vmatprep.subr.mxu0 0.0
  %6200 = vmatpush1.msra.mxu0 %v5451
  %6201 = vmatprep.subr.mxu0 0.0
  %6202 = vmatpush1.msra.mxu0 %v5450
  %6203 = vmatprep.subr.mxu0 0.0
  %6204 = vmatpush1.msra.mxu0 %v5449
  %6205 = vmatprep.subr.mxu0 0.0
  %6206 = vmatpush1.msra.mxu0 %v5448
  %6207 = vmatprep.subr.mxu0 0.0
  %6208 = vmatpush1.msra.mxu0 %v5447
  %6209 = vmatprep.subr.mxu0 0.0
  %6210 = vmatpush1.msra.mxu0 %v5446
  %6211 = vmatprep.subr.mxu0 0.0
  %6212 = vmatpush1.msra.mxu0 %v5445
  %6213 = vmatprep.subr.mxu0 0.0
  %6214 = vmatpush1.msra.mxu0 %v5444
  %6215 = vmatprep.subr.mxu0 0.0
  %6216 = vmatpush1.msra.mxu0 %v5443
  %6217 = vmatprep.subr.mxu0 0.0
  %6218 = vmatpush1.msra.mxu0 %v5442
  %6219 = vmatprep.subr.mxu0 0.0
  %6220 = vmatpush1.msra.mxu0 %v5441
  %6221 = vmatprep.subr.mxu0 0.0
  %6222 = vmatpush1.msra.mxu0 %v5440
  %6223 = vmatprep.subr.mxu0 0.0
  %6224 = vmatpush2.msra.mxu0 0.0
  %6225 = vmatprep.subr.mxu0 0.0
  %6226 = vmatpush2.msra.mxu0 0.0
  %6227 = vmatprep.subr.mxu0 0.0
  %6228 = vmatpush2.msra.mxu0 0.0
  %6229 = vmatprep.subr.mxu0 0.0
  %6230 = vmatpush2.msra.mxu0 0.0
  %6231 = vmatprep.subr.mxu0 0.0
  %6232 = vmatpush2.msra.mxu0 0.0
  %6233 = vmatprep.subr.mxu0 0.0
  %6234 = vmatpush2.msra.mxu0 0.0
  %6235 = vmatprep.subr.mxu0 0.0
  %6236 = vmatpush2.msra.mxu0 0.0
  %6237 = vmatprep.subr.mxu0 0.0
  %6238 = vmatpush2.msra.mxu0 0.0
  %6239 = vmatprep.subr.mxu0 0.0
  %6240 = vmatpush2.msra.mxu0 0.0
  %6241 = vmatprep.subr.mxu0 0.0
  %6242 = vmatpush2.msra.mxu0 0.0
  %6243 = vmatprep.subr.mxu0 0.0
  %6244 = vmatpush2.msra.mxu0 0.0
  %6245 = vmatprep.subr.mxu0 0.0
  %6246 = vmatpush2.msra.mxu0 0.0
  %6247 = vmatprep.subr.mxu0 0.0
  %6248 = vmatpush2.msra.mxu0 %v5459
  %6249 = vmatprep.subr.mxu0 0.0
  %6250 = vmatpush2.msra.mxu0 %v5458
  %6251 = vmatprep.subr.mxu0 0.0
  %6252 = vmatpush2.msra.mxu0 %v5457
  %6253 = vmatprep.subr.mxu0 0.0
  %6254 = vmatpush2.msra.mxu0 %v5456
  %6255 = vmatprep.mubr.f32.mxu0 %v6189
  %6256 = vmatmul.mubr.f32.gmra.mxu0 %v6186
  %v6257 = vpop.f32.mrf.mxu0
  %v6258 = vadd.f32 0.0, %v6257
  %v6259 = vpop.f32.mrf.mxu0
  %6260 = vdwg.mxu0
  %6261 = vmatprep.subr.mxu0 0.0
  %6262 = vmatpush1.msra.mxu0 %v5476
  %6263 = vmatprep.subr.mxu0 0.0
  %6264 = vmatpush1.msra.mxu0 %v5475
  %6265 = vmatprep.subr.mxu0 0.0
  %6266 = vmatpush1.msra.mxu0 %v5474
  %6267 = vmatprep.subr.mxu0 0.0
  %6268 = vmatpush1.msra.mxu0 %v5473
  %6269 = vmatprep.subr.mxu0 0.0
  %6270 = vmatpush1.msra.mxu0 %v5472
  %6271 = vmatprep.subr.mxu0 0.0
  %6272 = vmatpush1.msra.mxu0 %v5471
  %6273 = vmatprep.subr.mxu0 0.0
  %6274 = vmatpush1.msra.mxu0 %v5470
  %6275 = vmatprep.subr.mxu0 0.0
  %6276 = vmatpush1.msra.mxu0 %v5469
  %6277 = vmatprep.subr.mxu0 0.0
  %6278 = vmatpush1.msra.mxu0 %v5468
  %6279 = vmatprep.subr.mxu0 0.0
  %6280 = vmatpush1.msra.mxu0 %v5467
  %6281 = vmatprep.subr.mxu0 0.0
  %6282 = vmatpush1.msra.mxu0 %v5466
  %6283 = vmatprep.subr.mxu0 0.0
  %6284 = vmatpush1.msra.mxu0 %v5465
  %6285 = vmatprep.subr.mxu0 0.0
  %6286 = vmatpush1.msra.mxu0 %v5464
  %6287 = vmatprep.subr.mxu0 0.0
  %6288 = vmatpush1.msra.mxu0 %v5463
  %6289 = vmatprep.subr.mxu0 0.0
  %6290 = vmatpush1.msra.mxu0 %v5462
  %6291 = vmatprep.subr.mxu0 0.0
  %6292 = vmatpush1.msra.mxu0 %v5461
  %6293 = vmatprep.subr.mxu0 0.0
  %6294 = vmatpush2.msra.mxu0 0.0
  %6295 = vmatprep.subr.mxu0 0.0
  %6296 = vmatpush2.msra.mxu0 0.0
  %6297 = vmatprep.subr.mxu0 0.0
  %6298 = vmatpush2.msra.mxu0 0.0
  %6299 = vmatprep.subr.mxu0 0.0
  %6300 = vmatpush2.msra.mxu0 0.0
  %6301 = vmatprep.subr.mxu0 0.0
  %6302 = vmatpush2.msra.mxu0 0.0
  %6303 = vmatprep.subr.mxu0 0.0
  %6304 = vmatpush2.msra.mxu0 0.0
  %6305 = vmatprep.subr.mxu0 0.0
  %6306 = vmatpush2.msra.mxu0 0.0
  %6307 = vmatprep.subr.mxu0 0.0
  %6308 = vmatpush2.msra.mxu0 0.0
  %6309 = vmatprep.subr.mxu0 0.0
  %6310 = vmatpush2.msra.mxu0 0.0
  %6311 = vmatprep.subr.mxu0 0.0
  %6312 = vmatpush2.msra.mxu0 0.0
  %6313 = vmatprep.subr.mxu0 0.0
  %6314 = vmatpush2.msra.mxu0 0.0
  %6315 = vmatprep.subr.mxu0 0.0
  %6316 = vmatpush2.msra.mxu0 0.0
  %6317 = vmatprep.subr.mxu0 0.0
  %6318 = vmatpush2.msra.mxu0 %v5480
  %6319 = vmatprep.subr.mxu0 0.0
  %6320 = vmatpush2.msra.mxu0 %v5479
  %6321 = vmatprep.subr.mxu0 0.0
  %6322 = vmatpush2.msra.mxu0 %v5478
  %6323 = vmatprep.subr.mxu0 0.0
  %6324 = vmatpush2.msra.mxu0 %v5477
  %6325 = vmatprep.mubr.f32.mxu0 %v6189
  %6326 = vmatmul.mubr.f32.gmra.mxu0 %v6186
  %v6327 = vpop.f32.mrf.mxu0
  %v6328 = vadd.f32 0.0, %v6327
  %v6329 = vpop.f32.mrf.mxu0
  %6330 = vdwg.mxu0
  %v6331 = vmax.f32 %v6258, %v6328
  %v6332 = vld [vmem:[%s7 + $0xf0] sm:$0xff]
  %v6333 = vld [vmem:[%s7 + $0xf8] sm:$0xff]
  %v6334 = vld [vmem:[%s7 + $0x100] sm:$0xff]
  %v6335 = vld [vmem:[%s7 + $0x108] sm:$0xff]
  %v6336 = vld [vmem:[%s7 + $0x110] sm:$0xff]
  %v6337 = vld [vmem:[%s7 + $0x118] sm:$0xff]
  %v6338 = vld [vmem:[%s7 + $0x120] sm:$0xff]
  %v6339 = vld [vmem:[%s7 + $0x128] sm:$0xff]
  %v6340 = vld [vmem:[%s7 + $0x130] sm:$0xff]
  %v6341 = vld [vmem:[%s7 + $0x138] sm:$0xff]
  %v6343 = vsel %vm5801, %v6331, 0
  %6345 = vmatprep.subr.mxu0 0.0
  %6346 = vmatpush1.msra.mxu0 0.0
  %6347 = vmatprep.subr.mxu0 0.0
  %6348 = vmatpush1.msra.mxu0 0.0
  %6349 = vmatprep.subr.mxu0 0.0
  %6350 = vmatpush1.msra.mxu0 0.0
  %6351 = vmatprep.subr.mxu0 0.0
  %6352 = vmatpush1.msra.mxu0 0.0
  %6353 = vmatprep.subr.mxu0 0.0
  %6354 = vmatpush1.msra.mxu0 0.0
  %6355 = vmatprep.subr.mxu0 0.0
  %6356 = vmatpush1.msra.mxu0 0.0
  %6357 = vmatprep.subr.mxu0 0.0
  %6358 = vmatpush1.msra.mxu0 %v6341
  %6359 = vmatprep.subr.mxu0 0.0
  %6360 = vmatpush1.msra.mxu0 %v6340
  %6361 = vmatprep.subr.mxu0 0.0
  %6362 = vmatpush1.msra.mxu0 %v6339
  %6363 = vmatprep.subr.mxu0 0.0
  %6364 = vmatpush1.msra.mxu0 %v6338
  %6365 = vmatprep.subr.mxu0 0.0
  %6366 = vmatpush1.msra.mxu0 %v6337
  %6367 = vmatprep.subr.mxu0 0.0
  %6368 = vmatpush1.msra.mxu0 %v6336
  %6369 = vmatprep.subr.mxu0 0.0
  %6370 = vmatpush1.msra.mxu0 %v6335
  %6371 = vmatprep.subr.mxu0 0.0
  %6372 = vmatpush1.msra.mxu0 %v6334
  %6373 = vmatprep.subr.mxu0 0.0
  %6374 = vmatpush1.msra.mxu0 %v6333
  %6375 = vmatprep.subr.mxu0 0.0
  %6376 = vmatpush1.msra.mxu0 %v6332
  %6377 = vmatprep.subr.mxu0 0.0
  %6378 = vmatpush2.msra.mxu0 0.0
  %6379 = vmatprep.subr.mxu0 0.0
  %6380 = vmatpush2.msra.mxu0 0.0
  %6381 = vmatprep.subr.mxu0 0.0
  %6382 = vmatpush2.msra.mxu0 0.0
  %6383 = vmatprep.subr.mxu0 0.0
  %6384 = vmatpush2.msra.mxu0 0.0
  %6385 = vmatprep.subr.mxu0 0.0
  %6386 = vmatpush2.msra.mxu0 0.0
  %6387 = vmatprep.subr.mxu0 0.0
  %6388 = vmatpush2.msra.mxu0 0.0
  %6389 = vmatprep.subr.mxu0 0.0
  %6390 = vmatpush2.msra.mxu0 0.0
  %6391 = vmatprep.subr.mxu0 0.0
  %6392 = vmatpush2.msra.mxu0 0.0
  %6393 = vmatprep.subr.mxu0 0.0
  %6394 = vmatpush2.msra.mxu0 0.0
  %6395 = vmatprep.subr.mxu0 0.0
  %6396 = vmatpush2.msra.mxu0 0.0
  %6397 = vmatprep.subr.mxu0 0.0
  %6398 = vmatpush2.msra.mxu0 0.0
  %6399 = vmatprep.subr.mxu0 0.0
  %6400 = vmatpush2.msra.mxu0 0.0
  %6401 = vmatprep.subr.mxu0 0.0
  %6402 = vmatpush2.msra.mxu0 0.0
  %6403 = vmatprep.subr.mxu0 0.0
  %6404 = vmatpush2.msra.mxu0 0.0
  %6405 = vmatprep.subr.mxu0 0.0
  %6406 = vmatpush2.msra.mxu0 0.0
  %6407 = vmatprep.subr.mxu0 0.0
  %6408 = vmatpush2.msra.mxu0 0.0
  %6409 = vmatprep.mubr.f32.mxu0 0.0
  %6410 = vmatmul.mubr.f32.gmra.mxu0 %v6343
  %v6411 = vpop.f32.mrf.mxu0
  %v6412 = vadd.f32 0.0, %v6411
  %v6413 = vpop.f32.mrf.mxu0
  %6414 = vdwg.mxu0
  %v6415 = vadd.f32 %v6181, %v6412
  %v6416 = vld [vmem:[%s8] sm:$0x1]
  %v6418 = vlaneseq
  %v6419 = vshrl.u32 %v6418, 7
  %v6420 = vsub.s32 0, %v6419
  %v6421 = vrot.slane %v6416, %v6420
  %v6423 = vadd.f32 %v6415, %v6421
  %v6424 = vmax.f32 %v6423, 0.0
  %v6425 = vld [vmem:[%s9] sm:$0xff]
  %v6426 = vld [vmem:[%s9 + $0x8] sm:$0xff]
  %v6427 = vld [vmem:[%s9 + $0x10] sm:$0xff]
  %v6428 = vld [vmem:[%s9 + $0x18] sm:$0xff]
  %v6429 = vld [vmem:[%s9 + $0x20] sm:$0xff]
  %v6430 = vld [vmem:[%s9 + $0x28] sm:$0xff]
  %v6431 = vld [vmem:[%s9 + $0x30] sm:$0x3]
  %v6432 = vld [vmem:[%s10] sm:$0x1]
  %v6434 = vlaneseq
  %v6435 = vshrl.u32 %v6434, 7
  %v6436 = vsub.s32 0, %v6435
  %v6437 = vrot.slane %v6432, %v6436
  %vm6439 = vcmask 408576
  %v6441 = vsel %vm6439, %v6424, 0
  %vm6443 = vcmask 1041408
  %v6445 = vsel %vm6443, %v6431, 0
  %6447 = vmatprep.subr.mxu0 0.0
  %6448 = vmatpush1.msra.mxu0 0.0
  %6449 = vmatprep.subr.mxu0 0.0
  %6450 = vmatpush1.msra.mxu0 0.0
  %6451 = vmatprep.subr.mxu0 0.0
  %6452 = vmatpush1.msra.mxu0 0.0
  %6453 = vmatprep.subr.mxu0 0.0
  %6454 = vmatpush1.msra.mxu0 0.0
  %6455 = vmatprep.subr.mxu0 0.0
  %6456 = vmatpush1.msra.mxu0 0.0
  %6457 = vmatprep.subr.mxu0 0.0
  %6458 = vmatpush1.msra.mxu0 0.0
  %6459 = vmatprep.subr.mxu0 0.0
  %6460 = vmatpush1.msra.mxu0 0.0
  %6461 = vmatprep.subr.mxu0 0.0
  %6462 = vmatpush1.msra.mxu0 0.0
  %6463 = vmatprep.subr.mxu0 0.0
  %6464 = vmatpush1.msra.mxu0 0.0
  %6465 = vmatprep.subr.mxu0 0.0
  %6466 = vmatpush1.msra.mxu0 %v6445
  %6467 = vmatprep.subr.mxu0 0.0
  %6468 = vmatpush1.msra.mxu0 %v6430
  %6469 = vmatprep.subr.mxu0 0.0
  %6470 = vmatpush1.msra.mxu0 %v6429
  %6471 = vmatprep.subr.mxu0 0.0
  %6472 = vmatpush1.msra.mxu0 %v6428
  %6473 = vmatprep.subr.mxu0 0.0
  %6474 = vmatpush1.msra.mxu0 %v6427
  %6475 = vmatprep.subr.mxu0 0.0
  %6476 = vmatpush1.msra.mxu0 %v6426
  %6477 = vmatprep.subr.mxu0 0.0
  %6478 = vmatpush1.msra.mxu0 %v6425
  %6479 = vmatprep.subr.mxu0 0.0
  %6480 = vmatpush2.msra.mxu0 0.0
  %6481 = vmatprep.subr.mxu0 0.0
  %6482 = vmatpush2.msra.mxu0 0.0
  %6483 = vmatprep.subr.mxu0 0.0
  %6484 = vmatpush2.msra.mxu0 0.0
  %6485 = vmatprep.subr.mxu0 0.0
  %6486 = vmatpush2.msra.mxu0 0.0
  %6487 = vmatprep.subr.mxu0 0.0
  %6488 = vmatpush2.msra.mxu0 0.0
  %6489 = vmatprep.subr.mxu0 0.0
  %6490 = vmatpush2.msra.mxu0 0.0
  %6491 = vmatprep.subr.mxu0 0.0
  %6492 = vmatpush2.msra.mxu0 0.0
  %6493 = vmatprep.subr.mxu0 0.0
  %6494 = vmatpush2.msra.mxu0 0.0
  %6495 = vmatprep.subr.mxu0 0.0
  %6496 = vmatpush2.msra.mxu0 0.0
  %6497 = vmatprep.subr.mxu0 0.0
  %6498 = vmatpush2.msra.mxu0 0.0
  %6499 = vmatprep.subr.mxu0 0.0
  %6500 = vmatpush2.msra.mxu0 0.0
  %6501 = vmatprep.subr.mxu0 0.0
  %6502 = vmatpush2.msra.mxu0 0.0
  %6503 = vmatprep.subr.mxu0 0.0
  %6504 = vmatpush2.msra.mxu0 0.0
  %6505 = vmatprep.subr.mxu0 0.0
  %6506 = vmatpush2.msra.mxu0 0.0
  %6507 = vmatprep.subr.mxu0 0.0
  %6508 = vmatpush2.msra.mxu0 0.0
  %6509 = vmatprep.subr.mxu0 0.0
  %6510 = vmatpush2.msra.mxu0 0.0
  %6511 = vmatprep.mubr.f32.mxu0 0.0
  %6512 = vmatmul.mubr.f32.gmra.mxu0 %v6441
  %v6513 = vpop.f32.mrf.mxu0
  %v6514 = vadd.f32 %v6437, %v6513
  %v6515 = vpop.f32.mrf.mxu0
  %6516 = vdwg.mxu0
  %vm6517 = vcmask 80896
  %v6518 = vsel %vm6517, %v6514, -inf
  %6519 = vmax.xlane.f32.xlu0 %v6518
  %v6520 = vpop.xlane.xlu0 %6519
  %v6521 = vsub.f32 %v6514, %v6520
  %v6522 = vmul.f32 %v6521, 1.442695
  %v6523 = vpow.pop %v6522
  %v6524 = vsel %vm6517, %v6523, 0.0
  %6525 = vadd.xlane.f32.xlu0 %v6524
  %v6526 = vpop.xlane.xlu0 %6525
  %v6527 = vlog2.pop %v6526
  %v6528 = vmul.f32 %v6527, 0.6931472
  %v6529 = vsub.f32 %v6521, %v6528
  %6530 = vst.msk [vmem:[%s11] sm:$0xff] %vm6517, %v6529
  // Predicated region
  $region46: #{net_forward.1} parent=0 // pred_check
    _
  $region47: #{net_forward.1} parent=0 // pred_check_branch
    %6532 = sbr.rel (0) target = $region49
  $region48: #{net_forward.1} parent=0 // pred_region
    _
  $region49: #{net_forward.1} parent=0 // pred_fallthru
    _
  // Predicated region
  $region50: #{net_forward.1} parent=0 // pred_check
    _
  $region51: #{net_forward.1} parent=0 // pred_check_branch
    %6534 = sbr.rel (0) target = $region53
  $region52: #{net_forward.1} parent=0 // pred_region
    _
  $region53: #{net_forward.1} parent=0 // pred_fallthru
    _

</llo_original>
